<compile_context>
chip_gen: v7x
topology: tpu7x:2x2x1
jax: 0.10.0
libtpu: 0.0.40
codegen_flags: <defaults>
</compile_context>

<pallas_src>
import jax
import jax.numpy as jnp
from jax.experimental import pallas as pl
from jax.experimental.pallas import tpu as pltpu

HIDDEN = 32
CONV_IN = 3
CONV_OUT = 6
K = 3                           # conv kernel size
IMG = 15                        # 169*6 in fc1 => 13x13 conv output => 15x15 input
FEAT = IMG * IMG * CONV_IN      # 675 flattened input features per timestep
GATES = 4 * HIDDEN              # 128 -- lane-dense gate width


# ---------------------------------------------------------------- kernel -----

def critic_fused_kernel(x_ref, weff_ref, beff_ref, w2_ref, b2_ref,
                        wih_ref, bg_ref, whh_ref, w3_ref, b3_ref,
                        wq_ref, bq_ref, q_ref):
    """Fused Critic forward for one batch tile.

    x_ref : (TB, T, 675)  obs (f32 or bf16)
    q_ref : (TB, T)       f32 output, written once at the end.
    Weights are bf16 (MXU), biases f32.  Gate order is (i, f, o, g).
    """
    TB, T, _ = x_ref.shape
    H = HIDDEN

    weff = weff_ref[...]
    w2 = w2_ref[...]
    wih = wih_ref[...]
    whh = whh_ref[...]
    w3 = w3_ref[...]
    wq = wq_ref[...]
    beff = beff_ref[...]
    b2 = b2_ref[...]
    bg = bg_ref[...]
    b3 = b3_ref[...]
    bq = bq_ref[...]

    h = jnp.zeros((TB, H), jnp.float32)
    c = jnp.zeros((TB, H), jnp.float32)
    qs = []
    # Statically unrolled: T is a trace-time constant (short RL rollout chunks).
    for t in range(T):
        x = x_ref[:, t, :].astype(jnp.bfloat16)                      # (TB, 675)
        h1 = jnp.dot(x, weff, preferred_element_type=jnp.float32) + beff
        h1 = jnp.maximum(h1, 0.0).astype(jnp.bfloat16)               # (TB, 32)
        h2 = jnp.dot(h1, w2, preferred_element_type=jnp.float32) + b2
        h2 = jnp.maximum(h2, 0.0).astype(jnp.bfloat16)               # (TB, 32)

        gates = (jnp.dot(h2, wih, preferred_element_type=jnp.float32)
                 + bg
                 + jnp.dot(h.astype(jnp.bfloat16), whh,
                           preferred_element_type=jnp.float32))      # (TB, 128)

        ifo = jax.nn.sigmoid(gates[:, :3 * H])       # one EUP pass over (TB, 96)
        g_in = jnp.tanh(gates[:, 3 * H:])            # (TB, 32)
        c = ifo[:, H:2 * H] * c + ifo[:, :H] * g_in  # f32 cell state
        h = ifo[:, 2 * H:] * jnp.tanh(c)             # f32 hidden state

        h3 = jnp.dot(h.astype(jnp.bfloat16), w3,
                     preferred_element_type=jnp.float32) + b3
        h3 = jnp.maximum(h3, 0.0).astype(jnp.bfloat16)               # (TB, 32)
        qs.append(jnp.dot(h3, wq, preferred_element_type=jnp.float32) + bq)

    q_ref[...] = jnp.concatenate(qs, axis=1)         # single (TB, T) store


# --------------------------------------------------------------- params ------

def init_params(key):
    # Deterministic synthetic init in PyTorch layouts (fc weights normal(0,0.1)
    # as in the original module; used everywhere here for simplicity).
    ks = jax.random.split(key, 14)
    n = lambda k, shape, s=0.1: jax.random.normal(k, shape, jnp.float32) * s
    return dict(
        conv_w=n(ks[0], (CONV_OUT, CONV_IN, K, K)),
        conv_b=n(ks[1], (CONV_OUT,)),
        fc1_w=n(ks[2], (HIDDEN, 169 * CONV_OUT)),
        fc1_b=n(ks[3], (HIDDEN,)),
        fc2_w=n(ks[4], (HIDDEN, HIDDEN)),
        fc2_b=n(ks[5], (HIDDEN,)),
        w_ih=n(ks[6], (GATES, HIDDEN)),              # PyTorch gate order (i,f,g,o)
        w_hh=n(ks[7], (GATES, HIDDEN)),
        b_ih=n(ks[8], (GATES,)),
        b_hh=n(ks[9], (GATES,)),
        fc3_w=n(ks[10], (HIDDEN, HIDDEN)),
        fc3_b=n(ks[11], (HIDDEN,)),
        q_w=n(ks[12], (1, HIDDEN)),
        q_b=n(ks[13], (1,)),
    )


def prepare_params(p):
    """Fold conv into fc1, reorder LSTM gates to (i,f,o,g), pre-transpose, cast
    MXU operands to bf16 (biases stay f32).  Done once, outside the kernel."""
    OH = OW = IMG - K + 1                                          # 13
    # fc1 weight viewed over the channel-major NCHW conv-output flatten
    w1r = p["fc1_w"].reshape(HIDDEN, CONV_OUT, OH, OW)             # [j, co, oh, ow]
    # W_eff[h, w, ci, j] = sum_{co,kh,kw} conv_w[co,ci,kh,kw] * w1r[j,co,h-kh,w-kw]
    w_eff = jnp.zeros((IMG, IMG, CONV_IN, HIDDEN), jnp.float32)
    for kh in range(K):
        for kw in range(K):
            contrib = jnp.einsum("oc,joyx->yxcj", p["conv_w"][:, :, kh, kw], w1r)
            w_eff = w_eff.at[kh:kh + OH, kw:kw + OW, :, :].add(contrib)
    w_eff = w_eff.reshape(FEAT, HIDDEN)                            # (675, 32)
    b_eff = p["fc1_b"] + jnp.einsum("joyx,o->j", w1r, p["conv_b"])

    def reorder(m):      # PyTorch (i,f,g,o) -> kernel (i,f,o,g)
        i, f, g, o = jnp.split(m, 4, axis=0)
        return jnp.concatenate([i, f, o, g], axis=0)

    wih = reorder(p["w_ih"]).T                                     # (32, 128)
    whh = reorder(p["w_hh"]).T                                     # (32, 128)
    bg = (reorder(p["b_ih"]) + reorder(p["b_hh"]))[None, :]        # (1, 128)

    bf = lambda x: x.astype(jnp.bfloat16)
    return dict(
        w_eff=bf(w_eff), b_eff=b_eff[None, :],
        w2=bf(p["fc2_w"].T), b2=p["fc2_b"][None, :],
        wih=bf(wih), bg=bg,
        whh=bf(whh),
        w3=bf(p["fc3_w"].T), b3=p["fc3_b"][None, :],
        wq=bf(p["q_w"].T), bq=p["q_b"][None, :],
    )


# --------------------------------------------------------------- wrapper -----

def _pick_batch_tile(batch, seq_len, itemsize, budget_bytes=24 * 1024 * 1024):
    """Batch-tile size: divisor of B, fits a ~24 MB double-buffered obs block,
    prefers multiples of 8 with >= 2 grid steps (v7x megacore + DMA prefetch)."""
    per_row = 2 * seq_len * FEAT * itemsize + 8 * seq_len * GATES  # obs x2 + slack
    cap = max(1, budget_bytes // per_row)
    divs = [d for d in range(1, batch + 1) if batch % d == 0 and d <= cap]
    preds = (
        lambda d: d % 8 == 0 and batch // d >= 2,   # sublane-aligned, >=2 steps
        lambda d: d % 8 == 0,                       # sublane-aligned single block
        lambda d: d == batch,                       # full extent (always legal)
        lambda d: batch // d >= 2,                  # any divisor, >=2 steps
        lambda d: True,
    )
    for pred in preds:
        ok = [d for d in divs if pred(d)]
        if ok:
            return max(ok)
    return batch


@jax.jit
def critic_forward(obs, prep):
    # obs: (B, T, 15, 15, 3) float32 (or bf16)  ->  q_value: (B, T, 1) float32
    B, T, Hh, Ww, C = obs.shape
    feat = Hh * Ww * C
    x3d = obs.reshape(B, T, feat)                   # free reshape, (h, w, c) order

    tile_b = _pick_batch_tile(B, T, obs.dtype.itemsize)

    q2d = pl.pallas_call(
        critic_fused_kernel,
        out_shape=jax.ShapeDtypeStruct((B, T), jnp.float32),
        grid=(B // tile_b,),
        in_specs=[
            pl.BlockSpec((tile_b, T, feat), lambda i: (i, 0, 0)),
            pl.BlockSpec(prep["w_eff"].shape, lambda i: (0, 0)),
            pl.BlockSpec(prep["b_eff"].shape, lambda i: (0, 0)),
            pl.BlockSpec(prep["w2"].shape, lambda i: (0, 0)),
            pl.BlockSpec(prep["b2"].shape, lambda i: (0, 0)),
            pl.BlockSpec(prep["wih"].shape, lambda i: (0, 0)),
            pl.BlockSpec(prep["bg"].shape, lambda i: (0, 0)),
            pl.BlockSpec(prep["whh"].shape, lambda i: (0, 0)),
            pl.BlockSpec(prep["w3"].shape, lambda i: (0, 0)),
            pl.BlockSpec(prep["b3"].shape, lambda i: (0, 0)),
            pl.BlockSpec(prep["wq"].shape, lambda i: (0, 0)),
            pl.BlockSpec(prep["bq"].shape, lambda i: (0, 0)),
        ],
        out_specs=pl.BlockSpec((tile_b, T), lambda i: (i, 0)),
        compiler_params=pltpu.CompilerParams(
            dimension_semantics=("parallel",),
            vmem_limit_bytes=48 * 1024 * 1024),
    )(x3d, prep["w_eff"], prep["b_eff"], prep["w2"], prep["b2"],
      prep["wih"], prep["bg"], prep["whh"], prep["w3"], prep["b3"],
      prep["wq"], prep["bq"])

    return q2d.reshape(B, T, 1)                     # free reshape


# ------------------------------------------------------------- reference -----

def critic_reference(obs, p):
    # Pure-JAX f32 replica of the PyTorch forward (unfolded conv, PyTorch gate
    # order) used only to sanity-check the folded/fused kernel.
    B, T, Hh, Ww, C = obs.shape
    OH, OW = Hh - K + 1, Ww - K + 1
    x = obs.astype(jnp.float32).reshape(B * T, Hh, Ww, C)
    patches = jnp.stack(
        [jnp.stack([x[:, kh:kh + OH, kw:kw + OW, :] for kw in range(K)], axis=-1)
         for kh in range(K)], axis=-2)                       # (N, OH, OW, C, Kh, Kw)
    conv = (jnp.einsum("nyxckl,ockl->noyx", patches, p["conv_w"])
            + p["conv_b"][None, :, None, None])
    flat = conv.reshape(B * T, -1)                           # channel-major flatten
    h1 = jax.nn.relu(flat @ p["fc1_w"].T + p["fc1_b"])
    emb = jax.nn.relu(h1 @ p["fc2_w"].T + p["fc2_b"]).reshape(B, T, HIDDEN)
    Hd = HIDDEN
    h = jnp.zeros((B, Hd), jnp.float32)
    c = jnp.zeros((B, Hd), jnp.float32)
    hs = []
    for t in range(T):
        g = emb[:, t] @ p["w_ih"].T + p["b_ih"] + h @ p["w_hh"].T + p["b_hh"]
        i = jax.nn.sigmoid(g[:, :Hd])
        f = jax.nn.sigmoid(g[:, Hd:2 * Hd])
        gg = jnp.tanh(g[:, 2 * Hd:3 * Hd])
        o = jax.nn.sigmoid(g[:, 3 * Hd:])
        c = f * c + i * gg
        h = o * jnp.tanh(c)
        hs.append(h)
    seq = jnp.stack(hs, axis=1)                              # (B, T, H)
    h3 = jax.nn.relu(seq @ p["fc3_w"].T + p["fc3_b"])
    return h3 @ p["q_w"].T + p["q_b"]                        # (B, T, 1)


if __name__ == "__main__":
    key = jax.random.PRNGKey(0)
    pkey, okey = jax.random.split(key)
    raw = init_params(pkey)
    prep = prepare_params(raw)

    # Small shapes consistent with the module: 15x15x3 obs (fc1 expects 169*6),
    # batch=16 so the parallel grid has >=2 steps, seq_len=8 rollout chunk.
    B, T = 16, 8
    obs = jax.random.normal(okey, (B, T, IMG, IMG, CONV_IN), jnp.float32)

    q_value = critic_forward(obs, prep)
    jax.block_until_ready(q_value)
    assert q_value.shape == (B, T, 1) and q_value.dtype == jnp.float32

    q_ref = critic_reference(obs, raw)
    err = float(jnp.max(jnp.abs(q_value - q_ref)))
    assert err < 5e-2, f"kernel/reference mismatch: max abs err {err}"
    print("KERNEL_OK")
</pallas_src>

<mosaic_0001>
module attributes {stable_mosaic.version = 11 : i64} {
  func.func @critic_fused_kernel(%arg0: i32, %arg1: memref<8x8x675xf32, #tpu.memory_space<vmem>>, %arg2: memref<675x32xbf16, #tpu.memory_space<vmem>>, %arg3: memref<1x32xf32, #tpu.memory_space<vmem>>, %arg4: memref<32x32xbf16, #tpu.memory_space<vmem>>, %arg5: memref<1x32xf32, #tpu.memory_space<vmem>>, %arg6: memref<32x128xbf16, #tpu.memory_space<vmem>>, %arg7: memref<1x128xf32, #tpu.memory_space<vmem>>, %arg8: memref<32x128xbf16, #tpu.memory_space<vmem>>, %arg9: memref<32x32xbf16, #tpu.memory_space<vmem>>, %arg10: memref<1x32xf32, #tpu.memory_space<vmem>>, %arg11: memref<32x1xbf16, #tpu.memory_space<vmem>>, %arg12: memref<1x1xf32, #tpu.memory_space<vmem>>, %arg13: memref<8x8xf32, #tpu.memory_space<vmem>>) attributes {dimension_semantics = [#tpu.dimension_semantics<parallel>], iteration_bounds = array<i64: 2>, scalar_prefetch = 0 : i64, scratch_operands = 0 : i64, tpu.core_type = #tpu.core_type<tc>, window_params = [{transform_indices = @transform_0, window_bounds = array<i64: 8, 8, 675>}, {pipeline_mode = #tpu.pipeline_mode<synchronous>, transform_indices = @transform_1, window_bounds = array<i64: 675, 32>}, {pipeline_mode = #tpu.pipeline_mode<synchronous>, transform_indices = @transform_2, window_bounds = array<i64: 1, 32>}, {pipeline_mode = #tpu.pipeline_mode<synchronous>, transform_indices = @transform_3, window_bounds = array<i64: 32, 32>}, {pipeline_mode = #tpu.pipeline_mode<synchronous>, transform_indices = @transform_4, window_bounds = array<i64: 1, 32>}, {pipeline_mode = #tpu.pipeline_mode<synchronous>, transform_indices = @transform_5, window_bounds = array<i64: 32, 128>}, {pipeline_mode = #tpu.pipeline_mode<synchronous>, transform_indices = @transform_6, window_bounds = array<i64: 1, 128>}, {pipeline_mode = #tpu.pipeline_mode<synchronous>, transform_indices = @transform_7, window_bounds = array<i64: 32, 128>}, {pipeline_mode = #tpu.pipeline_mode<synchronous>, transform_indices = @transform_8, window_bounds = array<i64: 32, 32>}, {pipeline_mode = #tpu.pipeline_mode<synchronous>, transform_indices = @transform_9, window_bounds = array<i64: 1, 32>}, {pipeline_mode = #tpu.pipeline_mode<synchronous>, transform_indices = @transform_10, window_bounds = array<i64: 32, 1>}, {pipeline_mode = #tpu.pipeline_mode<synchronous>, transform_indices = @transform_11, window_bounds = array<i64: 1, 1>}, {transform_indices = @transform_12, window_bounds = array<i64: 8, 8>}]} {
    %c0 = arith.constant 0 : index
    %c0_0 = arith.constant 0 : index
    %0 = vector.load %arg2[%c0, %c0_0] : memref<675x32xbf16, #tpu.memory_space<vmem>>, vector<675x32xbf16>
    %c0_1 = arith.constant 0 : index
    %c0_2 = arith.constant 0 : index
    %1 = vector.load %arg4[%c0_1, %c0_2] : memref<32x32xbf16, #tpu.memory_space<vmem>>, vector<32x32xbf16>
    %c0_3 = arith.constant 0 : index
    %c0_4 = arith.constant 0 : index
    %2 = vector.load %arg6[%c0_3, %c0_4] : memref<32x128xbf16, #tpu.memory_space<vmem>>, vector<32x128xbf16>
    %c0_5 = arith.constant 0 : index
    %c0_6 = arith.constant 0 : index
    %3 = vector.load %arg8[%c0_5, %c0_6] : memref<32x128xbf16, #tpu.memory_space<vmem>>, vector<32x128xbf16>
    %c0_7 = arith.constant 0 : index
    %c0_8 = arith.constant 0 : index
    %4 = vector.load %arg9[%c0_7, %c0_8] : memref<32x32xbf16, #tpu.memory_space<vmem>>, vector<32x32xbf16>
    %c0_9 = arith.constant 0 : index
    %c0_10 = arith.constant 0 : index
    %5 = vector.load %arg11[%c0_9, %c0_10] : memref<32x1xbf16, #tpu.memory_space<vmem>>, vector<32x1xbf16>
    %c0_11 = arith.constant 0 : index
    %c0_12 = arith.constant 0 : index
    %6 = vector.load %arg3[%c0_11, %c0_12] : memref<1x32xf32, #tpu.memory_space<vmem>>, vector<1x32xf32>
    %c0_13 = arith.constant 0 : index
    %c0_14 = arith.constant 0 : index
    %7 = vector.load %arg5[%c0_13, %c0_14] : memref<1x32xf32, #tpu.memory_space<vmem>>, vector<1x32xf32>
    %c0_15 = arith.constant 0 : index
    %c0_16 = arith.constant 0 : index
    %8 = vector.load %arg7[%c0_15, %c0_16] : memref<1x128xf32, #tpu.memory_space<vmem>>, vector<1x128xf32>
    %c0_17 = arith.constant 0 : index
    %c0_18 = arith.constant 0 : index
    %9 = vector.load %arg10[%c0_17, %c0_18] : memref<1x32xf32, #tpu.memory_space<vmem>>, vector<1x32xf32>
    %c0_19 = arith.constant 0 : index
    %c0_20 = arith.constant 0 : index
    %10 = vector.load %arg12[%c0_19, %c0_20] : memref<1x1xf32, #tpu.memory_space<vmem>>, vector<1x1xf32>
    %cst = arith.constant 0.000000e+00 : f32
    %11 = vector.broadcast %cst : f32 to vector<8x32xf32>
    %cst_21 = arith.constant 0.000000e+00 : f32
    %12 = vector.broadcast %cst_21 : f32 to vector<8x32xf32>
    %c0_22 = arith.constant 0 : index
    %c0_23 = arith.constant 0 : index
    %c0_24 = arith.constant 0 : index
    %13 = vector.load %arg1[%c0_22, %c0_23, %c0_24] : memref<8x8x675xf32, #tpu.memory_space<vmem>>, vector<8x1x675xf32>
    %14 = vector.shape_cast %13 : vector<8x1x675xf32> to vector<8x675xf32>
    %15 = arith.truncf %14 : vector<8x675xf32> to vector<8x675xbf16>
    %cst_25 = arith.constant dense<0.000000e+00> : vector<8x32xf32>
    %16 = tpu.matmul %15, %0, %cst_25 {dimension_numbers = #tpu.dot_dimension_numbers<[1], [0], [0], [1], [0, 0, 1, 1], [], []>} : vector<8x675xbf16>, vector<675x32xbf16>, vector<8x32xf32> -> vector<8x32xf32>
    %17 = vector.broadcast %6 : vector<1x32xf32> to vector<8x32xf32>
    %18 = arith.addf %16, %17 : vector<8x32xf32>
    %cst_26 = arith.constant 0.000000e+00 : f32
    %19 = vector.broadcast %cst_26 : f32 to vector<8x32xf32>
    %20 = arith.maximumf %18, %19 : vector<8x32xf32>
    %21 = arith.truncf %20 : vector<8x32xf32> to vector<8x32xbf16>
    %cst_27 = arith.constant dense<0.000000e+00> : vector<8x32xf32>
    %22 = tpu.matmul %21, %1, %cst_27 {dimension_numbers = #tpu.dot_dimension_numbers<[1], [0], [0], [1], [0, 0, 1, 1], [], []>} : vector<8x32xbf16>, vector<32x32xbf16>, vector<8x32xf32> -> vector<8x32xf32>
    %23 = vector.broadcast %7 : vector<1x32xf32> to vector<8x32xf32>
    %24 = arith.addf %22, %23 : vector<8x32xf32>
    %cst_28 = arith.constant 0.000000e+00 : f32
    %25 = vector.broadcast %cst_28 : f32 to vector<8x32xf32>
    %26 = arith.maximumf %24, %25 : vector<8x32xf32>
    %27 = arith.truncf %26 : vector<8x32xf32> to vector<8x32xbf16>
    %cst_29 = arith.constant dense<0.000000e+00> : vector<8x128xf32>
    %28 = tpu.matmul %27, %2, %cst_29 {dimension_numbers = #tpu.dot_dimension_numbers<[1], [0], [0], [1], [0, 0, 1, 1], [], []>} : vector<8x32xbf16>, vector<32x128xbf16>, vector<8x128xf32> -> vector<8x128xf32>
    %29 = vector.broadcast %8 : vector<1x128xf32> to vector<8x128xf32>
    %30 = arith.addf %28, %29 : vector<8x128xf32>
    %31 = arith.truncf %11 : vector<8x32xf32> to vector<8x32xbf16>
    %cst_30 = arith.constant dense<0.000000e+00> : vector<8x128xf32>
    %32 = tpu.matmul %31, %3, %cst_30 {dimension_numbers = #tpu.dot_dimension_numbers<[1], [0], [0], [1], [0, 0, 1, 1], [], []>} : vector<8x32xbf16>, vector<32x128xbf16>, vector<8x128xf32> -> vector<8x128xf32>
    %33 = arith.addf %30, %32 : vector<8x128xf32>
    %34 = vector.extract_strided_slice %33 {offsets = [0, 0], sizes = [8, 96], strides = [1, 1]} : vector<8x128xf32> to vector<8x96xf32>
    %35 = arith.negf %34 : vector<8x96xf32>
    %36 = math.exp %35 : vector<8x96xf32>
    %cst_31 = arith.constant 1.000000e+00 : f32
    %37 = vector.broadcast %cst_31 : f32 to vector<8x96xf32>
    %38 = arith.addf %37, %36 : vector<8x96xf32>
    %39 = arith.divf %37, %38 : vector<8x96xf32>
    %40 = vector.extract_strided_slice %33 {offsets = [0, 96], sizes = [8, 32], strides = [1, 1]} : vector<8x128xf32> to vector<8x32xf32>
    %41 = math.tanh %40 : vector<8x32xf32>
    %42 = vector.extract_strided_slice %39 {offsets = [0, 32], sizes = [8, 32], strides = [1, 1]} : vector<8x96xf32> to vector<8x32xf32>
    %43 = arith.mulf %42, %12 : vector<8x32xf32>
    %44 = vector.extract_strided_slice %39 {offsets = [0, 0], sizes = [8, 32], strides = [1, 1]} : vector<8x96xf32> to vector<8x32xf32>
    %45 = arith.mulf %44, %41 : vector<8x32xf32>
    %46 = arith.addf %43, %45 : vector<8x32xf32>
    %47 = vector.extract_strided_slice %39 {offsets = [0, 64], sizes = [8, 32], strides = [1, 1]} : vector<8x96xf32> to vector<8x32xf32>
    %48 = math.tanh %46 : vector<8x32xf32>
    %49 = arith.mulf %47, %48 : vector<8x32xf32>
    %50 = arith.truncf %49 : vector<8x32xf32> to vector<8x32xbf16>
    %cst_32 = arith.constant dense<0.000000e+00> : vector<8x32xf32>
    %51 = tpu.matmul %50, %4, %cst_32 {dimension_numbers = #tpu.dot_dimension_numbers<[1], [0], [0], [1], [0, 0, 1, 1], [], []>} : vector<8x32xbf16>, vector<32x32xbf16>, vector<8x32xf32> -> vector<8x32xf32>
    %52 = vector.broadcast %9 : vector<1x32xf32> to vector<8x32xf32>
    %53 = arith.addf %51, %52 : vector<8x32xf32>
    %cst_33 = arith.constant 0.000000e+00 : f32
    %54 = vector.broadcast %cst_33 : f32 to vector<8x32xf32>
    %55 = arith.maximumf %53, %54 : vector<8x32xf32>
    %56 = arith.truncf %55 : vector<8x32xf32> to vector<8x32xbf16>
    %cst_34 = arith.constant dense<0.000000e+00> : vector<8x1xf32>
    %57 = tpu.matmul %56, %5, %cst_34 {dimension_numbers = #tpu.dot_dimension_numbers<[1], [0], [0], [1], [0, 0, 1, 1], [], []>} : vector<8x32xbf16>, vector<32x1xbf16>, vector<8x1xf32> -> vector<8x1xf32>
    %58 = vector.broadcast %10 : vector<1x1xf32> to vector<8x1xf32>
    %59 = arith.addf %57, %58 : vector<8x1xf32>
    %c0_35 = arith.constant 0 : index
    %c1 = arith.constant 1 : index
    %c0_36 = arith.constant 0 : index
    %60 = vector.load %arg1[%c0_35, %c1, %c0_36] : memref<8x8x675xf32, #tpu.memory_space<vmem>>, vector<8x1x675xf32>
    %61 = vector.shape_cast %60 : vector<8x1x675xf32> to vector<8x675xf32>
    %62 = arith.truncf %61 : vector<8x675xf32> to vector<8x675xbf16>
    %cst_37 = arith.constant dense<0.000000e+00> : vector<8x32xf32>
    %63 = tpu.matmul %62, %0, %cst_37 {dimension_numbers = #tpu.dot_dimension_numbers<[1], [0], [0], [1], [0, 0, 1, 1], [], []>} : vector<8x675xbf16>, vector<675x32xbf16>, vector<8x32xf32> -> vector<8x32xf32>
    %64 = vector.broadcast %6 : vector<1x32xf32> to vector<8x32xf32>
    %65 = arith.addf %63, %64 : vector<8x32xf32>
    %cst_38 = arith.constant 0.000000e+00 : f32
    %66 = vector.broadcast %cst_38 : f32 to vector<8x32xf32>
    %67 = arith.maximumf %65, %66 : vector<8x32xf32>
    %68 = arith.truncf %67 : vector<8x32xf32> to vector<8x32xbf16>
    %cst_39 = arith.constant dense<0.000000e+00> : vector<8x32xf32>
    %69 = tpu.matmul %68, %1, %cst_39 {dimension_numbers = #tpu.dot_dimension_numbers<[1], [0], [0], [1], [0, 0, 1, 1], [], []>} : vector<8x32xbf16>, vector<32x32xbf16>, vector<8x32xf32> -> vector<8x32xf32>
    %70 = vector.broadcast %7 : vector<1x32xf32> to vector<8x32xf32>
    %71 = arith.addf %69, %70 : vector<8x32xf32>
    %cst_40 = arith.constant 0.000000e+00 : f32
    %72 = vector.broadcast %cst_40 : f32 to vector<8x32xf32>
    %73 = arith.maximumf %71, %72 : vector<8x32xf32>
    %74 = arith.truncf %73 : vector<8x32xf32> to vector<8x32xbf16>
    %cst_41 = arith.constant dense<0.000000e+00> : vector<8x128xf32>
    %75 = tpu.matmul %74, %2, %cst_41 {dimension_numbers = #tpu.dot_dimension_numbers<[1], [0], [0], [1], [0, 0, 1, 1], [], []>} : vector<8x32xbf16>, vector<32x128xbf16>, vector<8x128xf32> -> vector<8x128xf32>
    %76 = vector.broadcast %8 : vector<1x128xf32> to vector<8x128xf32>
    %77 = arith.addf %75, %76 : vector<8x128xf32>
    %78 = arith.truncf %49 : vector<8x32xf32> to vector<8x32xbf16>
    %cst_42 = arith.constant dense<0.000000e+00> : vector<8x128xf32>
    %79 = tpu.matmul %78, %3, %cst_42 {dimension_numbers = #tpu.dot_dimension_numbers<[1], [0], [0], [1], [0, 0, 1, 1], [], []>} : vector<8x32xbf16>, vector<32x128xbf16>, vector<8x128xf32> -> vector<8x128xf32>
    %80 = arith.addf %77, %79 : vector<8x128xf32>
    %81 = vector.extract_strided_slice %80 {offsets = [0, 0], sizes = [8, 96], strides = [1, 1]} : vector<8x128xf32> to vector<8x96xf32>
    %82 = arith.negf %81 : vector<8x96xf32>
    %83 = math.exp %82 : vector<8x96xf32>
    %cst_43 = arith.constant 1.000000e+00 : f32
    %84 = vector.broadcast %cst_43 : f32 to vector<8x96xf32>
    %85 = arith.addf %84, %83 : vector<8x96xf32>
    %86 = arith.divf %84, %85 : vector<8x96xf32>
    %87 = vector.extract_strided_slice %80 {offsets = [0, 96], sizes = [8, 32], strides = [1, 1]} : vector<8x128xf32> to vector<8x32xf32>
    %88 = math.tanh %87 : vector<8x32xf32>
    %89 = vector.extract_strided_slice %86 {offsets = [0, 32], sizes = [8, 32], strides = [1, 1]} : vector<8x96xf32> to vector<8x32xf32>
    %90 = arith.mulf %89, %46 : vector<8x32xf32>
    %91 = vector.extract_strided_slice %86 {offsets = [0, 0], sizes = [8, 32], strides = [1, 1]} : vector<8x96xf32> to vector<8x32xf32>
    %92 = arith.mulf %91, %88 : vector<8x32xf32>
    %93 = arith.addf %90, %92 : vector<8x32xf32>
    %94 = vector.extract_strided_slice %86 {offsets = [0, 64], sizes = [8, 32], strides = [1, 1]} : vector<8x96xf32> to vector<8x32xf32>
    %95 = math.tanh %93 : vector<8x32xf32>
    %96 = arith.mulf %94, %95 : vector<8x32xf32>
    %97 = arith.truncf %96 : vector<8x32xf32> to vector<8x32xbf16>
    %cst_44 = arith.constant dense<0.000000e+00> : vector<8x32xf32>
    %98 = tpu.matmul %97, %4, %cst_44 {dimension_numbers = #tpu.dot_dimension_numbers<[1], [0], [0], [1], [0, 0, 1, 1], [], []>} : vector<8x32xbf16>, vector<32x32xbf16>, vector<8x32xf32> -> vector<8x32xf32>
    %99 = vector.broadcast %9 : vector<1x32xf32> to vector<8x32xf32>
    %100 = arith.addf %98, %99 : vector<8x32xf32>
    %cst_45 = arith.constant 0.000000e+00 : f32
    %101 = vector.broadcast %cst_45 : f32 to vector<8x32xf32>
    %102 = arith.maximumf %100, %101 : vector<8x32xf32>
    %103 = arith.truncf %102 : vector<8x32xf32> to vector<8x32xbf16>
    %cst_46 = arith.constant dense<0.000000e+00> : vector<8x1xf32>
    %104 = tpu.matmul %103, %5, %cst_46 {dimension_numbers = #tpu.dot_dimension_numbers<[1], [0], [0], [1], [0, 0, 1, 1], [], []>} : vector<8x32xbf16>, vector<32x1xbf16>, vector<8x1xf32> -> vector<8x1xf32>
    %105 = vector.broadcast %10 : vector<1x1xf32> to vector<8x1xf32>
    %106 = arith.addf %104, %105 : vector<8x1xf32>
    %c0_47 = arith.constant 0 : index
    %c2 = arith.constant 2 : index
    %c0_48 = arith.constant 0 : index
    %107 = vector.load %arg1[%c0_47, %c2, %c0_48] : memref<8x8x675xf32, #tpu.memory_space<vmem>>, vector<8x1x675xf32>
    %108 = vector.shape_cast %107 : vector<8x1x675xf32> to vector<8x675xf32>
    %109 = arith.truncf %108 : vector<8x675xf32> to vector<8x675xbf16>
    %cst_49 = arith.constant dense<0.000000e+00> : vector<8x32xf32>
    %110 = tpu.matmul %109, %0, %cst_49 {dimension_numbers = #tpu.dot_dimension_numbers<[1], [0], [0], [1], [0, 0, 1, 1], [], []>} : vector<8x675xbf16>, vector<675x32xbf16>, vector<8x32xf32> -> vector<8x32xf32>
    %111 = vector.broadcast %6 : vector<1x32xf32> to vector<8x32xf32>
    %112 = arith.addf %110, %111 : vector<8x32xf32>
    %cst_50 = arith.constant 0.000000e+00 : f32
    %113 = vector.broadcast %cst_50 : f32 to vector<8x32xf32>
    %114 = arith.maximumf %112, %113 : vector<8x32xf32>
    %115 = arith.truncf %114 : vector<8x32xf32> to vector<8x32xbf16>
    %cst_51 = arith.constant dense<0.000000e+00> : vector<8x32xf32>
    %116 = tpu.matmul %115, %1, %cst_51 {dimension_numbers = #tpu.dot_dimension_numbers<[1], [0], [0], [1], [0, 0, 1, 1], [], []>} : vector<8x32xbf16>, vector<32x32xbf16>, vector<8x32xf32> -> vector<8x32xf32>
    %117 = vector.broadcast %7 : vector<1x32xf32> to vector<8x32xf32>
    %118 = arith.addf %116, %117 : vector<8x32xf32>
    %cst_52 = arith.constant 0.000000e+00 : f32
    %119 = vector.broadcast %cst_52 : f32 to vector<8x32xf32>
    %120 = arith.maximumf %118, %119 : vector<8x32xf32>
    %121 = arith.truncf %120 : vector<8x32xf32> to vector<8x32xbf16>
    %cst_53 = arith.constant dense<0.000000e+00> : vector<8x128xf32>
    %122 = tpu.matmul %121, %2, %cst_53 {dimension_numbers = #tpu.dot_dimension_numbers<[1], [0], [0], [1], [0, 0, 1, 1], [], []>} : vector<8x32xbf16>, vector<32x128xbf16>, vector<8x128xf32> -> vector<8x128xf32>
    %123 = vector.broadcast %8 : vector<1x128xf32> to vector<8x128xf32>
    %124 = arith.addf %122, %123 : vector<8x128xf32>
    %125 = arith.truncf %96 : vector<8x32xf32> to vector<8x32xbf16>
    %cst_54 = arith.constant dense<0.000000e+00> : vector<8x128xf32>
    %126 = tpu.matmul %125, %3, %cst_54 {dimension_numbers = #tpu.dot_dimension_numbers<[1], [0], [0], [1], [0, 0, 1, 1], [], []>} : vector<8x32xbf16>, vector<32x128xbf16>, vector<8x128xf32> -> vector<8x128xf32>
    %127 = arith.addf %124, %126 : vector<8x128xf32>
    %128 = vector.extract_strided_slice %127 {offsets = [0, 0], sizes = [8, 96], strides = [1, 1]} : vector<8x128xf32> to vector<8x96xf32>
    %129 = arith.negf %128 : vector<8x96xf32>
    %130 = math.exp %129 : vector<8x96xf32>
    %cst_55 = arith.constant 1.000000e+00 : f32
    %131 = vector.broadcast %cst_55 : f32 to vector<8x96xf32>
    %132 = arith.addf %131, %130 : vector<8x96xf32>
    %133 = arith.divf %131, %132 : vector<8x96xf32>
    %134 = vector.extract_strided_slice %127 {offsets = [0, 96], sizes = [8, 32], strides = [1, 1]} : vector<8x128xf32> to vector<8x32xf32>
    %135 = math.tanh %134 : vector<8x32xf32>
    %136 = vector.extract_strided_slice %133 {offsets = [0, 32], sizes = [8, 32], strides = [1, 1]} : vector<8x96xf32> to vector<8x32xf32>
    %137 = arith.mulf %136, %93 : vector<8x32xf32>
    %138 = vector.extract_strided_slice %133 {offsets = [0, 0], sizes = [8, 32], strides = [1, 1]} : vector<8x96xf32> to vector<8x32xf32>
    %139 = arith.mulf %138, %135 : vector<8x32xf32>
    %140 = arith.addf %137, %139 : vector<8x32xf32>
    %141 = vector.extract_strided_slice %133 {offsets = [0, 64], sizes = [8, 32], strides = [1, 1]} : vector<8x96xf32> to vector<8x32xf32>
    %142 = math.tanh %140 : vector<8x32xf32>
    %143 = arith.mulf %141, %142 : vector<8x32xf32>
    %144 = arith.truncf %143 : vector<8x32xf32> to vector<8x32xbf16>
    %cst_56 = arith.constant dense<0.000000e+00> : vector<8x32xf32>
    %145 = tpu.matmul %144, %4, %cst_56 {dimension_numbers = #tpu.dot_dimension_numbers<[1], [0], [0], [1], [0, 0, 1, 1], [], []>} : vector<8x32xbf16>, vector<32x32xbf16>, vector<8x32xf32> -> vector<8x32xf32>
    %146 = vector.broadcast %9 : vector<1x32xf32> to vector<8x32xf32>
    %147 = arith.addf %145, %146 : vector<8x32xf32>
    %cst_57 = arith.constant 0.000000e+00 : f32
    %148 = vector.broadcast %cst_57 : f32 to vector<8x32xf32>
    %149 = arith.maximumf %147, %148 : vector<8x32xf32>
    %150 = arith.truncf %149 : vector<8x32xf32> to vector<8x32xbf16>
    %cst_58 = arith.constant dense<0.000000e+00> : vector<8x1xf32>
    %151 = tpu.matmul %150, %5, %cst_58 {dimension_numbers = #tpu.dot_dimension_numbers<[1], [0], [0], [1], [0, 0, 1, 1], [], []>} : vector<8x32xbf16>, vector<32x1xbf16>, vector<8x1xf32> -> vector<8x1xf32>
    %152 = vector.broadcast %10 : vector<1x1xf32> to vector<8x1xf32>
    %153 = arith.addf %151, %152 : vector<8x1xf32>
    %c0_59 = arith.constant 0 : index
    %c3 = arith.constant 3 : index
    %c0_60 = arith.constant 0 : index
    %154 = vector.load %arg1[%c0_59, %c3, %c0_60] : memref<8x8x675xf32, #tpu.memory_space<vmem>>, vector<8x1x675xf32>
    %155 = vector.shape_cast %154 : vector<8x1x675xf32> to vector<8x675xf32>
    %156 = arith.truncf %155 : vector<8x675xf32> to vector<8x675xbf16>
    %cst_61 = arith.constant dense<0.000000e+00> : vector<8x32xf32>
    %157 = tpu.matmul %156, %0, %cst_61 {dimension_numbers = #tpu.dot_dimension_numbers<[1], [0], [0], [1], [0, 0, 1, 1], [], []>} : vector<8x675xbf16>, vector<675x32xbf16>, vector<8x32xf32> -> vector<8x32xf32>
    %158 = vector.broadcast %6 : vector<1x32xf32> to vector<8x32xf32>
    %159 = arith.addf %157, %158 : vector<8x32xf32>
    %cst_62 = arith.constant 0.000000e+00 : f32
    %160 = vector.broadcast %cst_62 : f32 to vector<8x32xf32>
    %161 = arith.maximumf %159, %160 : vector<8x32xf32>
    %162 = arith.truncf %161 : vector<8x32xf32> to vector<8x32xbf16>
    %cst_63 = arith.constant dense<0.000000e+00> : vector<8x32xf32>
    %163 = tpu.matmul %162, %1, %cst_63 {dimension_numbers = #tpu.dot_dimension_numbers<[1], [0], [0], [1], [0, 0, 1, 1], [], []>} : vector<8x32xbf16>, vector<32x32xbf16>, vector<8x32xf32> -> vector<8x32xf32>
    %164 = vector.broadcast %7 : vector<1x32xf32> to vector<8x32xf32>
    %165 = arith.addf %163, %164 : vector<8x32xf32>
    %cst_64 = arith.constant 0.000000e+00 : f32
    %166 = vector.broadcast %cst_64 : f32 to vector<8x32xf32>
    %167 = arith.maximumf %165, %166 : vector<8x32xf32>
    %168 = arith.truncf %167 : vector<8x32xf32> to vector<8x32xbf16>
    %cst_65 = arith.constant dense<0.000000e+00> : vector<8x128xf32>
    %169 = tpu.matmul %168, %2, %cst_65 {dimension_numbers = #tpu.dot_dimension_numbers<[1], [0], [0], [1], [0, 0, 1, 1], [], []>} : vector<8x32xbf16>, vector<32x128xbf16>, vector<8x128xf32> -> vector<8x128xf32>
    %170 = vector.broadcast %8 : vector<1x128xf32> to vector<8x128xf32>
    %171 = arith.addf %169, %170 : vector<8x128xf32>
    %172 = arith.truncf %143 : vector<8x32xf32> to vector<8x32xbf16>
    %cst_66 = arith.constant dense<0.000000e+00> : vector<8x128xf32>
    %173 = tpu.matmul %172, %3, %cst_66 {dimension_numbers = #tpu.dot_dimension_numbers<[1], [0], [0], [1], [0, 0, 1, 1], [], []>} : vector<8x32xbf16>, vector<32x128xbf16>, vector<8x128xf32> -> vector<8x128xf32>
    %174 = arith.addf %171, %173 : vector<8x128xf32>
    %175 = vector.extract_strided_slice %174 {offsets = [0, 0], sizes = [8, 96], strides = [1, 1]} : vector<8x128xf32> to vector<8x96xf32>
    %176 = arith.negf %175 : vector<8x96xf32>
    %177 = math.exp %176 : vector<8x96xf32>
    %cst_67 = arith.constant 1.000000e+00 : f32
    %178 = vector.broadcast %cst_67 : f32 to vector<8x96xf32>
    %179 = arith.addf %178, %177 : vector<8x96xf32>
    %180 = arith.divf %178, %179 : vector<8x96xf32>
    %181 = vector.extract_strided_slice %174 {offsets = [0, 96], sizes = [8, 32], strides = [1, 1]} : vector<8x128xf32> to vector<8x32xf32>
    %182 = math.tanh %181 : vector<8x32xf32>
    %183 = vector.extract_strided_slice %180 {offsets = [0, 32], sizes = [8, 32], strides = [1, 1]} : vector<8x96xf32> to vector<8x32xf32>
    %184 = arith.mulf %183, %140 : vector<8x32xf32>
    %185 = vector.extract_strided_slice %180 {offsets = [0, 0], sizes = [8, 32], strides = [1, 1]} : vector<8x96xf32> to vector<8x32xf32>
    %186 = arith.mulf %185, %182 : vector<8x32xf32>
    %187 = arith.addf %184, %186 : vector<8x32xf32>
    %188 = vector.extract_strided_slice %180 {offsets = [0, 64], sizes = [8, 32], strides = [1, 1]} : vector<8x96xf32> to vector<8x32xf32>
    %189 = math.tanh %187 : vector<8x32xf32>
    %190 = arith.mulf %188, %189 : vector<8x32xf32>
    %191 = arith.truncf %190 : vector<8x32xf32> to vector<8x32xbf16>
    %cst_68 = arith.constant dense<0.000000e+00> : vector<8x32xf32>
    %192 = tpu.matmul %191, %4, %cst_68 {dimension_numbers = #tpu.dot_dimension_numbers<[1], [0], [0], [1], [0, 0, 1, 1], [], []>} : vector<8x32xbf16>, vector<32x32xbf16>, vector<8x32xf32> -> vector<8x32xf32>
    %193 = vector.broadcast %9 : vector<1x32xf32> to vector<8x32xf32>
    %194 = arith.addf %192, %193 : vector<8x32xf32>
    %cst_69 = arith.constant 0.000000e+00 : f32
    %195 = vector.broadcast %cst_69 : f32 to vector<8x32xf32>
    %196 = arith.maximumf %194, %195 : vector<8x32xf32>
    %197 = arith.truncf %196 : vector<8x32xf32> to vector<8x32xbf16>
    %cst_70 = arith.constant dense<0.000000e+00> : vector<8x1xf32>
    %198 = tpu.matmul %197, %5, %cst_70 {dimension_numbers = #tpu.dot_dimension_numbers<[1], [0], [0], [1], [0, 0, 1, 1], [], []>} : vector<8x32xbf16>, vector<32x1xbf16>, vector<8x1xf32> -> vector<8x1xf32>
    %199 = vector.broadcast %10 : vector<1x1xf32> to vector<8x1xf32>
    %200 = arith.addf %198, %199 : vector<8x1xf32>
    %c0_71 = arith.constant 0 : index
    %c4 = arith.constant 4 : index
    %c0_72 = arith.constant 0 : index
    %201 = vector.load %arg1[%c0_71, %c4, %c0_72] : memref<8x8x675xf32, #tpu.memory_space<vmem>>, vector<8x1x675xf32>
    %202 = vector.shape_cast %201 : vector<8x1x675xf32> to vector<8x675xf32>
    %203 = arith.truncf %202 : vector<8x675xf32> to vector<8x675xbf16>
    %cst_73 = arith.constant dense<0.000000e+00> : vector<8x32xf32>
    %204 = tpu.matmul %203, %0, %cst_73 {dimension_numbers = #tpu.dot_dimension_numbers<[1], [0], [0], [1], [0, 0, 1, 1], [], []>} : vector<8x675xbf16>, vector<675x32xbf16>, vector<8x32xf32> -> vector<8x32xf32>
    %205 = vector.broadcast %6 : vector<1x32xf32> to vector<8x32xf32>
    %206 = arith.addf %204, %205 : vector<8x32xf32>
    %cst_74 = arith.constant 0.000000e+00 : f32
    %207 = vector.broadcast %cst_74 : f32 to vector<8x32xf32>
    %208 = arith.maximumf %206, %207 : vector<8x32xf32>
    %209 = arith.truncf %208 : vector<8x32xf32> to vector<8x32xbf16>
    %cst_75 = arith.constant dense<0.000000e+00> : vector<8x32xf32>
    %210 = tpu.matmul %209, %1, %cst_75 {dimension_numbers = #tpu.dot_dimension_numbers<[1], [0], [0], [1], [0, 0, 1, 1], [], []>} : vector<8x32xbf16>, vector<32x32xbf16>, vector<8x32xf32> -> vector<8x32xf32>
    %211 = vector.broadcast %7 : vector<1x32xf32> to vector<8x32xf32>
    %212 = arith.addf %210, %211 : vector<8x32xf32>
    %cst_76 = arith.constant 0.000000e+00 : f32
    %213 = vector.broadcast %cst_76 : f32 to vector<8x32xf32>
    %214 = arith.maximumf %212, %213 : vector<8x32xf32>
    %215 = arith.truncf %214 : vector<8x32xf32> to vector<8x32xbf16>
    %cst_77 = arith.constant dense<0.000000e+00> : vector<8x128xf32>
    %216 = tpu.matmul %215, %2, %cst_77 {dimension_numbers = #tpu.dot_dimension_numbers<[1], [0], [0], [1], [0, 0, 1, 1], [], []>} : vector<8x32xbf16>, vector<32x128xbf16>, vector<8x128xf32> -> vector<8x128xf32>
    %217 = vector.broadcast %8 : vector<1x128xf32> to vector<8x128xf32>
    %218 = arith.addf %216, %217 : vector<8x128xf32>
    %219 = arith.truncf %190 : vector<8x32xf32> to vector<8x32xbf16>
    %cst_78 = arith.constant dense<0.000000e+00> : vector<8x128xf32>
    %220 = tpu.matmul %219, %3, %cst_78 {dimension_numbers = #tpu.dot_dimension_numbers<[1], [0], [0], [1], [0, 0, 1, 1], [], []>} : vector<8x32xbf16>, vector<32x128xbf16>, vector<8x128xf32> -> vector<8x128xf32>
    %221 = arith.addf %218, %220 : vector<8x128xf32>
    %222 = vector.extract_strided_slice %221 {offsets = [0, 0], sizes = [8, 96], strides = [1, 1]} : vector<8x128xf32> to vector<8x96xf32>
    %223 = arith.negf %222 : vector<8x96xf32>
    %224 = math.exp %223 : vector<8x96xf32>
    %cst_79 = arith.constant 1.000000e+00 : f32
    %225 = vector.broadcast %cst_79 : f32 to vector<8x96xf32>
    %226 = arith.addf %225, %224 : vector<8x96xf32>
    %227 = arith.divf %225, %226 : vector<8x96xf32>
    %228 = vector.extract_strided_slice %221 {offsets = [0, 96], sizes = [8, 32], strides = [1, 1]} : vector<8x128xf32> to vector<8x32xf32>
    %229 = math.tanh %228 : vector<8x32xf32>
    %230 = vector.extract_strided_slice %227 {offsets = [0, 32], sizes = [8, 32], strides = [1, 1]} : vector<8x96xf32> to vector<8x32xf32>
    %231 = arith.mulf %230, %187 : vector<8x32xf32>
    %232 = vector.extract_strided_slice %227 {offsets = [0, 0], sizes = [8, 32], strides = [1, 1]} : vector<8x96xf32> to vector<8x32xf32>
    %233 = arith.mulf %232, %229 : vector<8x32xf32>
    %234 = arith.addf %231, %233 : vector<8x32xf32>
    %235 = vector.extract_strided_slice %227 {offsets = [0, 64], sizes = [8, 32], strides = [1, 1]} : vector<8x96xf32> to vector<8x32xf32>
    %236 = math.tanh %234 : vector<8x32xf32>
    %237 = arith.mulf %235, %236 : vector<8x32xf32>
    %238 = arith.truncf %237 : vector<8x32xf32> to vector<8x32xbf16>
    %cst_80 = arith.constant dense<0.000000e+00> : vector<8x32xf32>
    %239 = tpu.matmul %238, %4, %cst_80 {dimension_numbers = #tpu.dot_dimension_numbers<[1], [0], [0], [1], [0, 0, 1, 1], [], []>} : vector<8x32xbf16>, vector<32x32xbf16>, vector<8x32xf32> -> vector<8x32xf32>
    %240 = vector.broadcast %9 : vector<1x32xf32> to vector<8x32xf32>
    %241 = arith.addf %239, %240 : vector<8x32xf32>
    %cst_81 = arith.constant 0.000000e+00 : f32
    %242 = vector.broadcast %cst_81 : f32 to vector<8x32xf32>
    %243 = arith.maximumf %241, %242 : vector<8x32xf32>
    %244 = arith.truncf %243 : vector<8x32xf32> to vector<8x32xbf16>
    %cst_82 = arith.constant dense<0.000000e+00> : vector<8x1xf32>
    %245 = tpu.matmul %244, %5, %cst_82 {dimension_numbers = #tpu.dot_dimension_numbers<[1], [0], [0], [1], [0, 0, 1, 1], [], []>} : vector<8x32xbf16>, vector<32x1xbf16>, vector<8x1xf32> -> vector<8x1xf32>
    %246 = vector.broadcast %10 : vector<1x1xf32> to vector<8x1xf32>
    %247 = arith.addf %245, %246 : vector<8x1xf32>
    %c0_83 = arith.constant 0 : index
    %c5 = arith.constant 5 : index
    %c0_84 = arith.constant 0 : index
    %248 = vector.load %arg1[%c0_83, %c5, %c0_84] : memref<8x8x675xf32, #tpu.memory_space<vmem>>, vector<8x1x675xf32>
    %249 = vector.shape_cast %248 : vector<8x1x675xf32> to vector<8x675xf32>
    %250 = arith.truncf %249 : vector<8x675xf32> to vector<8x675xbf16>
    %cst_85 = arith.constant dense<0.000000e+00> : vector<8x32xf32>
    %251 = tpu.matmul %250, %0, %cst_85 {dimension_numbers = #tpu.dot_dimension_numbers<[1], [0], [0], [1], [0, 0, 1, 1], [], []>} : vector<8x675xbf16>, vector<675x32xbf16>, vector<8x32xf32> -> vector<8x32xf32>
    %252 = vector.broadcast %6 : vector<1x32xf32> to vector<8x32xf32>
    %253 = arith.addf %251, %252 : vector<8x32xf32>
    %cst_86 = arith.constant 0.000000e+00 : f32
    %254 = vector.broadcast %cst_86 : f32 to vector<8x32xf32>
    %255 = arith.maximumf %253, %254 : vector<8x32xf32>
    %256 = arith.truncf %255 : vector<8x32xf32> to vector<8x32xbf16>
    %cst_87 = arith.constant dense<0.000000e+00> : vector<8x32xf32>
    %257 = tpu.matmul %256, %1, %cst_87 {dimension_numbers = #tpu.dot_dimension_numbers<[1], [0], [0], [1], [0, 0, 1, 1], [], []>} : vector<8x32xbf16>, vector<32x32xbf16>, vector<8x32xf32> -> vector<8x32xf32>
    %258 = vector.broadcast %7 : vector<1x32xf32> to vector<8x32xf32>
    %259 = arith.addf %257, %258 : vector<8x32xf32>
    %cst_88 = arith.constant 0.000000e+00 : f32
    %260 = vector.broadcast %cst_88 : f32 to vector<8x32xf32>
    %261 = arith.maximumf %259, %260 : vector<8x32xf32>
    %262 = arith.truncf %261 : vector<8x32xf32> to vector<8x32xbf16>
    %cst_89 = arith.constant dense<0.000000e+00> : vector<8x128xf32>
    %263 = tpu.matmul %262, %2, %cst_89 {dimension_numbers = #tpu.dot_dimension_numbers<[1], [0], [0], [1], [0, 0, 1, 1], [], []>} : vector<8x32xbf16>, vector<32x128xbf16>, vector<8x128xf32> -> vector<8x128xf32>
    %264 = vector.broadcast %8 : vector<1x128xf32> to vector<8x128xf32>
    %265 = arith.addf %263, %264 : vector<8x128xf32>
    %266 = arith.truncf %237 : vector<8x32xf32> to vector<8x32xbf16>
    %cst_90 = arith.constant dense<0.000000e+00> : vector<8x128xf32>
    %267 = tpu.matmul %266, %3, %cst_90 {dimension_numbers = #tpu.dot_dimension_numbers<[1], [0], [0], [1], [0, 0, 1, 1], [], []>} : vector<8x32xbf16>, vector<32x128xbf16>, vector<8x128xf32> -> vector<8x128xf32>
    %268 = arith.addf %265, %267 : vector<8x128xf32>
    %269 = vector.extract_strided_slice %268 {offsets = [0, 0], sizes = [8, 96], strides = [1, 1]} : vector<8x128xf32> to vector<8x96xf32>
    %270 = arith.negf %269 : vector<8x96xf32>
    %271 = math.exp %270 : vector<8x96xf32>
    %cst_91 = arith.constant 1.000000e+00 : f32
    %272 = vector.broadcast %cst_91 : f32 to vector<8x96xf32>
    %273 = arith.addf %272, %271 : vector<8x96xf32>
    %274 = arith.divf %272, %273 : vector<8x96xf32>
    %275 = vector.extract_strided_slice %268 {offsets = [0, 96], sizes = [8, 32], strides = [1, 1]} : vector<8x128xf32> to vector<8x32xf32>
    %276 = math.tanh %275 : vector<8x32xf32>
    %277 = vector.extract_strided_slice %274 {offsets = [0, 32], sizes = [8, 32], strides = [1, 1]} : vector<8x96xf32> to vector<8x32xf32>
    %278 = arith.mulf %277, %234 : vector<8x32xf32>
    %279 = vector.extract_strided_slice %274 {offsets = [0, 0], sizes = [8, 32], strides = [1, 1]} : vector<8x96xf32> to vector<8x32xf32>
    %280 = arith.mulf %279, %276 : vector<8x32xf32>
    %281 = arith.addf %278, %280 : vector<8x32xf32>
    %282 = vector.extract_strided_slice %274 {offsets = [0, 64], sizes = [8, 32], strides = [1, 1]} : vector<8x96xf32> to vector<8x32xf32>
    %283 = math.tanh %281 : vector<8x32xf32>
    %284 = arith.mulf %282, %283 : vector<8x32xf32>
    %285 = arith.truncf %284 : vector<8x32xf32> to vector<8x32xbf16>
    %cst_92 = arith.constant dense<0.000000e+00> : vector<8x32xf32>
    %286 = tpu.matmul %285, %4, %cst_92 {dimension_numbers = #tpu.dot_dimension_numbers<[1], [0], [0], [1], [0, 0, 1, 1], [], []>} : vector<8x32xbf16>, vector<32x32xbf16>, vector<8x32xf32> -> vector<8x32xf32>
    %287 = vector.broadcast %9 : vector<1x32xf32> to vector<8x32xf32>
    %288 = arith.addf %286, %287 : vector<8x32xf32>
    %cst_93 = arith.constant 0.000000e+00 : f32
    %289 = vector.broadcast %cst_93 : f32 to vector<8x32xf32>
    %290 = arith.maximumf %288, %289 : vector<8x32xf32>
    %291 = arith.truncf %290 : vector<8x32xf32> to vector<8x32xbf16>
    %cst_94 = arith.constant dense<0.000000e+00> : vector<8x1xf32>
    %292 = tpu.matmul %291, %5, %cst_94 {dimension_numbers = #tpu.dot_dimension_numbers<[1], [0], [0], [1], [0, 0, 1, 1], [], []>} : vector<8x32xbf16>, vector<32x1xbf16>, vector<8x1xf32> -> vector<8x1xf32>
    %293 = vector.broadcast %10 : vector<1x1xf32> to vector<8x1xf32>
    %294 = arith.addf %292, %293 : vector<8x1xf32>
    %c0_95 = arith.constant 0 : index
    %c6 = arith.constant 6 : index
    %c0_96 = arith.constant 0 : index
    %295 = vector.load %arg1[%c0_95, %c6, %c0_96] : memref<8x8x675xf32, #tpu.memory_space<vmem>>, vector<8x1x675xf32>
    %296 = vector.shape_cast %295 : vector<8x1x675xf32> to vector<8x675xf32>
    %297 = arith.truncf %296 : vector<8x675xf32> to vector<8x675xbf16>
    %cst_97 = arith.constant dense<0.000000e+00> : vector<8x32xf32>
    %298 = tpu.matmul %297, %0, %cst_97 {dimension_numbers = #tpu.dot_dimension_numbers<[1], [0], [0], [1], [0, 0, 1, 1], [], []>} : vector<8x675xbf16>, vector<675x32xbf16>, vector<8x32xf32> -> vector<8x32xf32>
    %299 = vector.broadcast %6 : vector<1x32xf32> to vector<8x32xf32>
    %300 = arith.addf %298, %299 : vector<8x32xf32>
    %cst_98 = arith.constant 0.000000e+00 : f32
    %301 = vector.broadcast %cst_98 : f32 to vector<8x32xf32>
    %302 = arith.maximumf %300, %301 : vector<8x32xf32>
    %303 = arith.truncf %302 : vector<8x32xf32> to vector<8x32xbf16>
    %cst_99 = arith.constant dense<0.000000e+00> : vector<8x32xf32>
    %304 = tpu.matmul %303, %1, %cst_99 {dimension_numbers = #tpu.dot_dimension_numbers<[1], [0], [0], [1], [0, 0, 1, 1], [], []>} : vector<8x32xbf16>, vector<32x32xbf16>, vector<8x32xf32> -> vector<8x32xf32>
    %305 = vector.broadcast %7 : vector<1x32xf32> to vector<8x32xf32>
    %306 = arith.addf %304, %305 : vector<8x32xf32>
    %cst_100 = arith.constant 0.000000e+00 : f32
    %307 = vector.broadcast %cst_100 : f32 to vector<8x32xf32>
    %308 = arith.maximumf %306, %307 : vector<8x32xf32>
    %309 = arith.truncf %308 : vector<8x32xf32> to vector<8x32xbf16>
    %cst_101 = arith.constant dense<0.000000e+00> : vector<8x128xf32>
    %310 = tpu.matmul %309, %2, %cst_101 {dimension_numbers = #tpu.dot_dimension_numbers<[1], [0], [0], [1], [0, 0, 1, 1], [], []>} : vector<8x32xbf16>, vector<32x128xbf16>, vector<8x128xf32> -> vector<8x128xf32>
    %311 = vector.broadcast %8 : vector<1x128xf32> to vector<8x128xf32>
    %312 = arith.addf %310, %311 : vector<8x128xf32>
    %313 = arith.truncf %284 : vector<8x32xf32> to vector<8x32xbf16>
    %cst_102 = arith.constant dense<0.000000e+00> : vector<8x128xf32>
    %314 = tpu.matmul %313, %3, %cst_102 {dimension_numbers = #tpu.dot_dimension_numbers<[1], [0], [0], [1], [0, 0, 1, 1], [], []>} : vector<8x32xbf16>, vector<32x128xbf16>, vector<8x128xf32> -> vector<8x128xf32>
    %315 = arith.addf %312, %314 : vector<8x128xf32>
    %316 = vector.extract_strided_slice %315 {offsets = [0, 0], sizes = [8, 96], strides = [1, 1]} : vector<8x128xf32> to vector<8x96xf32>
    %317 = arith.negf %316 : vector<8x96xf32>
    %318 = math.exp %317 : vector<8x96xf32>
    %cst_103 = arith.constant 1.000000e+00 : f32
    %319 = vector.broadcast %cst_103 : f32 to vector<8x96xf32>
    %320 = arith.addf %319, %318 : vector<8x96xf32>
    %321 = arith.divf %319, %320 : vector<8x96xf32>
    %322 = vector.extract_strided_slice %315 {offsets = [0, 96], sizes = [8, 32], strides = [1, 1]} : vector<8x128xf32> to vector<8x32xf32>
    %323 = math.tanh %322 : vector<8x32xf32>
    %324 = vector.extract_strided_slice %321 {offsets = [0, 32], sizes = [8, 32], strides = [1, 1]} : vector<8x96xf32> to vector<8x32xf32>
    %325 = arith.mulf %324, %281 : vector<8x32xf32>
    %326 = vector.extract_strided_slice %321 {offsets = [0, 0], sizes = [8, 32], strides = [1, 1]} : vector<8x96xf32> to vector<8x32xf32>
    %327 = arith.mulf %326, %323 : vector<8x32xf32>
    %328 = arith.addf %325, %327 : vector<8x32xf32>
    %329 = vector.extract_strided_slice %321 {offsets = [0, 64], sizes = [8, 32], strides = [1, 1]} : vector<8x96xf32> to vector<8x32xf32>
    %330 = math.tanh %328 : vector<8x32xf32>
    %331 = arith.mulf %329, %330 : vector<8x32xf32>
    %332 = arith.truncf %331 : vector<8x32xf32> to vector<8x32xbf16>
    %cst_104 = arith.constant dense<0.000000e+00> : vector<8x32xf32>
    %333 = tpu.matmul %332, %4, %cst_104 {dimension_numbers = #tpu.dot_dimension_numbers<[1], [0], [0], [1], [0, 0, 1, 1], [], []>} : vector<8x32xbf16>, vector<32x32xbf16>, vector<8x32xf32> -> vector<8x32xf32>
    %334 = vector.broadcast %9 : vector<1x32xf32> to vector<8x32xf32>
    %335 = arith.addf %333, %334 : vector<8x32xf32>
    %cst_105 = arith.constant 0.000000e+00 : f32
    %336 = vector.broadcast %cst_105 : f32 to vector<8x32xf32>
    %337 = arith.maximumf %335, %336 : vector<8x32xf32>
    %338 = arith.truncf %337 : vector<8x32xf32> to vector<8x32xbf16>
    %cst_106 = arith.constant dense<0.000000e+00> : vector<8x1xf32>
    %339 = tpu.matmul %338, %5, %cst_106 {dimension_numbers = #tpu.dot_dimension_numbers<[1], [0], [0], [1], [0, 0, 1, 1], [], []>} : vector<8x32xbf16>, vector<32x1xbf16>, vector<8x1xf32> -> vector<8x1xf32>
    %340 = vector.broadcast %10 : vector<1x1xf32> to vector<8x1xf32>
    %341 = arith.addf %339, %340 : vector<8x1xf32>
    %c0_107 = arith.constant 0 : index
    %c7 = arith.constant 7 : index
    %c0_108 = arith.constant 0 : index
    %342 = vector.load %arg1[%c0_107, %c7, %c0_108] : memref<8x8x675xf32, #tpu.memory_space<vmem>>, vector<8x1x675xf32>
    %343 = vector.shape_cast %342 : vector<8x1x675xf32> to vector<8x675xf32>
    %344 = arith.truncf %343 : vector<8x675xf32> to vector<8x675xbf16>
    %cst_109 = arith.constant dense<0.000000e+00> : vector<8x32xf32>
    %345 = tpu.matmul %344, %0, %cst_109 {dimension_numbers = #tpu.dot_dimension_numbers<[1], [0], [0], [1], [0, 0, 1, 1], [], []>} : vector<8x675xbf16>, vector<675x32xbf16>, vector<8x32xf32> -> vector<8x32xf32>
    %346 = vector.broadcast %6 : vector<1x32xf32> to vector<8x32xf32>
    %347 = arith.addf %345, %346 : vector<8x32xf32>
    %cst_110 = arith.constant 0.000000e+00 : f32
    %348 = vector.broadcast %cst_110 : f32 to vector<8x32xf32>
    %349 = arith.maximumf %347, %348 : vector<8x32xf32>
    %350 = arith.truncf %349 : vector<8x32xf32> to vector<8x32xbf16>
    %cst_111 = arith.constant dense<0.000000e+00> : vector<8x32xf32>
    %351 = tpu.matmul %350, %1, %cst_111 {dimension_numbers = #tpu.dot_dimension_numbers<[1], [0], [0], [1], [0, 0, 1, 1], [], []>} : vector<8x32xbf16>, vector<32x32xbf16>, vector<8x32xf32> -> vector<8x32xf32>
    %352 = vector.broadcast %7 : vector<1x32xf32> to vector<8x32xf32>
    %353 = arith.addf %351, %352 : vector<8x32xf32>
    %cst_112 = arith.constant 0.000000e+00 : f32
    %354 = vector.broadcast %cst_112 : f32 to vector<8x32xf32>
    %355 = arith.maximumf %353, %354 : vector<8x32xf32>
    %356 = arith.truncf %355 : vector<8x32xf32> to vector<8x32xbf16>
    %cst_113 = arith.constant dense<0.000000e+00> : vector<8x128xf32>
    %357 = tpu.matmul %356, %2, %cst_113 {dimension_numbers = #tpu.dot_dimension_numbers<[1], [0], [0], [1], [0, 0, 1, 1], [], []>} : vector<8x32xbf16>, vector<32x128xbf16>, vector<8x128xf32> -> vector<8x128xf32>
    %358 = vector.broadcast %8 : vector<1x128xf32> to vector<8x128xf32>
    %359 = arith.addf %357, %358 : vector<8x128xf32>
    %360 = arith.truncf %331 : vector<8x32xf32> to vector<8x32xbf16>
    %cst_114 = arith.constant dense<0.000000e+00> : vector<8x128xf32>
    %361 = tpu.matmul %360, %3, %cst_114 {dimension_numbers = #tpu.dot_dimension_numbers<[1], [0], [0], [1], [0, 0, 1, 1], [], []>} : vector<8x32xbf16>, vector<32x128xbf16>, vector<8x128xf32> -> vector<8x128xf32>
    %362 = arith.addf %359, %361 : vector<8x128xf32>
    %363 = vector.extract_strided_slice %362 {offsets = [0, 0], sizes = [8, 96], strides = [1, 1]} : vector<8x128xf32> to vector<8x96xf32>
    %364 = arith.negf %363 : vector<8x96xf32>
    %365 = math.exp %364 : vector<8x96xf32>
    %cst_115 = arith.constant 1.000000e+00 : f32
    %366 = vector.broadcast %cst_115 : f32 to vector<8x96xf32>
    %367 = arith.addf %366, %365 : vector<8x96xf32>
    %368 = arith.divf %366, %367 : vector<8x96xf32>
    %369 = vector.extract_strided_slice %362 {offsets = [0, 96], sizes = [8, 32], strides = [1, 1]} : vector<8x128xf32> to vector<8x32xf32>
    %370 = math.tanh %369 : vector<8x32xf32>
    %371 = vector.extract_strided_slice %368 {offsets = [0, 32], sizes = [8, 32], strides = [1, 1]} : vector<8x96xf32> to vector<8x32xf32>
    %372 = arith.mulf %371, %328 : vector<8x32xf32>
    %373 = vector.extract_strided_slice %368 {offsets = [0, 0], sizes = [8, 32], strides = [1, 1]} : vector<8x96xf32> to vector<8x32xf32>
    %374 = arith.mulf %373, %370 : vector<8x32xf32>
    %375 = arith.addf %372, %374 : vector<8x32xf32>
    %376 = vector.extract_strided_slice %368 {offsets = [0, 64], sizes = [8, 32], strides = [1, 1]} : vector<8x96xf32> to vector<8x32xf32>
    %377 = math.tanh %375 : vector<8x32xf32>
    %378 = arith.mulf %376, %377 : vector<8x32xf32>
    %379 = arith.truncf %378 : vector<8x32xf32> to vector<8x32xbf16>
    %cst_116 = arith.constant dense<0.000000e+00> : vector<8x32xf32>
    %380 = tpu.matmul %379, %4, %cst_116 {dimension_numbers = #tpu.dot_dimension_numbers<[1], [0], [0], [1], [0, 0, 1, 1], [], []>} : vector<8x32xbf16>, vector<32x32xbf16>, vector<8x32xf32> -> vector<8x32xf32>
    %381 = vector.broadcast %9 : vector<1x32xf32> to vector<8x32xf32>
    %382 = arith.addf %380, %381 : vector<8x32xf32>
    %cst_117 = arith.constant 0.000000e+00 : f32
    %383 = vector.broadcast %cst_117 : f32 to vector<8x32xf32>
    %384 = arith.maximumf %382, %383 : vector<8x32xf32>
    %385 = arith.truncf %384 : vector<8x32xf32> to vector<8x32xbf16>
    %cst_118 = arith.constant dense<0.000000e+00> : vector<8x1xf32>
    %386 = tpu.matmul %385, %5, %cst_118 {dimension_numbers = #tpu.dot_dimension_numbers<[1], [0], [0], [1], [0, 0, 1, 1], [], []>} : vector<8x32xbf16>, vector<32x1xbf16>, vector<8x1xf32> -> vector<8x1xf32>
    %387 = vector.broadcast %10 : vector<1x1xf32> to vector<8x1xf32>
    %388 = arith.addf %386, %387 : vector<8x1xf32>
    %389 = tpu.concatenate %59, %106, %153, %200, %247, %294, %341, %388 in 1 : vector<8x1xf32>, vector<8x1xf32>, vector<8x1xf32>, vector<8x1xf32>, vector<8x1xf32>, vector<8x1xf32>, vector<8x1xf32>, vector<8x1xf32> -> vector<8x8xf32>
    %c0_119 = arith.constant 0 : index
    %c0_120 = arith.constant 0 : index
    %390 = vector.load %arg13[%c0_119, %c0_120] : memref<8x8xf32, #tpu.memory_space<vmem>>, vector<8x8xf32>
    tpu.vector_store %arg13[%c0_119, %c0_120], %389 {strides = array<i32>} : memref<8x8xf32, #tpu.memory_space<vmem>>, vector<8x8xf32>,
    return
  }
  func.func @transform_0(%arg0: i32) -> (i32, i32, i32) {
    %c0_i32 = arith.constant 0 : i32
    %c0_i32_0 = arith.constant 0 : i32
    %c0_i32_1 = arith.constant 0 : i32
    return %arg0, %c0_i32, %c0_i32_0 : i32, i32, i32
  }
  func.func @transform_1(%arg0: i32) -> (i32, i32) {
    %c0_i32 = arith.constant 0 : i32
    %c0_i32_0 = arith.constant 0 : i32
    %c0_i32_1 = arith.constant 0 : i32
    return %c0_i32, %c0_i32_0 : i32, i32
  }
  func.func @transform_2(%arg0: i32) -> (i32, i32) {
    %c0_i32 = arith.constant 0 : i32
    %c0_i32_0 = arith.constant 0 : i32
    %c0_i32_1 = arith.constant 0 : i32
    return %c0_i32, %c0_i32_0 : i32, i32
  }
  func.func @transform_3(%arg0: i32) -> (i32, i32) {
    %c0_i32 = arith.constant 0 : i32
    %c0_i32_0 = arith.constant 0 : i32
    %c0_i32_1 = arith.constant 0 : i32
    return %c0_i32, %c0_i32_0 : i32, i32
  }
  func.func @transform_4(%arg0: i32) -> (i32, i32) {
    %c0_i32 = arith.constant 0 : i32
    %c0_i32_0 = arith.constant 0 : i32
    %c0_i32_1 = arith.constant 0 : i32
    return %c0_i32, %c0_i32_0 : i32, i32
  }
  func.func @transform_5(%arg0: i32) -> (i32, i32) {
    %c0_i32 = arith.constant 0 : i32
    %c0_i32_0 = arith.constant 0 : i32
    %c0_i32_1 = arith.constant 0 : i32
    return %c0_i32, %c0_i32_0 : i32, i32
  }
  func.func @transform_6(%arg0: i32) -> (i32, i32) {
    %c0_i32 = arith.constant 0 : i32
    %c0_i32_0 = arith.constant 0 : i32
    %c0_i32_1 = arith.constant 0 : i32
    return %c0_i32, %c0_i32_0 : i32, i32
  }
  func.func @transform_7(%arg0: i32) -> (i32, i32) {
    %c0_i32 = arith.constant 0 : i32
    %c0_i32_0 = arith.constant 0 : i32
    %c0_i32_1 = arith.constant 0 : i32
    return %c0_i32, %c0_i32_0 : i32, i32
  }
  func.func @transform_8(%arg0: i32) -> (i32, i32) {
    %c0_i32 = arith.constant 0 : i32
    %c0_i32_0 = arith.constant 0 : i32
    %c0_i32_1 = arith.constant 0 : i32
    return %c0_i32, %c0_i32_0 : i32, i32
  }
  func.func @transform_9(%arg0: i32) -> (i32, i32) {
    %c0_i32 = arith.constant 0 : i32
    %c0_i32_0 = arith.constant 0 : i32
    %c0_i32_1 = arith.constant 0 : i32
    return %c0_i32, %c0_i32_0 : i32, i32
  }
  func.func @transform_10(%arg0: i32) -> (i32, i32) {
    %c0_i32 = arith.constant 0 : i32
    %c0_i32_0 = arith.constant 0 : i32
    %c0_i32_1 = arith.constant 0 : i32
    return %c0_i32, %c0_i32_0 : i32, i32
  }
  func.func @transform_11(%arg0: i32) -> (i32, i32) {
    %c0_i32 = arith.constant 0 : i32
    %c0_i32_0 = arith.constant 0 : i32
    %c0_i32_1 = arith.constant 0 : i32
    return %c0_i32, %c0_i32_0 : i32, i32
  }
  func.func @transform_12(%arg0: i32) -> (i32, i32) {
    %c0_i32 = arith.constant 0 : i32
    %c0_i32_0 = arith.constant 0 : i32
    return %arg0, %c0_i32 : i32, i32
  }
}

</mosaic_0001>

<llo_original>
// kernel: critic_forward.1
$region0: #{critic_forward.1}
  #allocation0 [shape = 'u32[]', space=smem, size = 0x4, offset = 0x4, fixed_abs, tag = 'smem constant byte address 0x4 - core index']
  #allocation1 [shape = 'u32[144,128]{1,0:T(1,128)}', space=vmem, size = 0x12000, scoped, tag = 'internal scratch']
  #allocation2 [shape = 'f32[1,1]{1,0:T(1,128)S(1)}', space=vmem, size = 0x200, scoped, tag = 'scoped memory for critic_forward.1']
  %s0 = inlined_call_operand.vmem [shape: f32[16,8,675], index: 0, kind: input, shape index: {}]
  %s1 = inlined_call_operand.vmem [shape: bf16[675,32], index: 1, kind: input, shape index: {}]
  %s2 = inlined_call_operand.vmem [shape: f32[1,32], index: 2, kind: input, shape index: {}]
  %s3 = inlined_call_operand.vmem [shape: bf16[32,32], index: 3, kind: input, shape index: {}]
  %s4 = inlined_call_operand.vmem [shape: f32[1,32], index: 4, kind: input, shape index: {}]
  %s5 = inlined_call_operand.vmem [shape: bf16[32,128], index: 5, kind: input, shape index: {}]
  %s6 = inlined_call_operand.vmem [shape: f32[1,128], index: 6, kind: input, shape index: {}]
  %s7 = inlined_call_operand.vmem [shape: bf16[32,128], index: 7, kind: input, shape index: {}]
  %s8 = inlined_call_operand.vmem [shape: bf16[32,32], index: 8, kind: input, shape index: {}]
  %s9 = inlined_call_operand.vmem [shape: f32[1,32], index: 9, kind: input, shape index: {}]
  %s10 = inlined_call_operand.vmem [shape: bf16[32,1], index: 10, kind: input, shape index: {}]
  %s11 = inlined_call_operand.<no memory space> [shape: f32[1,1], index: 11, kind: input, shape index: {}]
  %s12 = inlined_call_operand.vmem [shape: f32[16,8], index: 12, kind: output, shape index: {}]
  %s13 = sld [smem:[#allocation0]]
  $region81: #{critic_forward.1} parent=0
    _
  %s15 = ssub.s32 1, %s13
  %s16 = scalar_select 0, %s15, %s13
  %v17 = vstv %s11
  %18 = vst [vmem:[#allocation2] sm:$0x1] %v17
  loop: start=0, step=1, limit=4
  $region2: #{critic_forward.1} parent=0 // loop_pre_header
    _
  $region3: #{critic_forward.1} parent=0 // loop_header
    %s20 = sphi 0, %s24
    %p21 = scmp.ge.s32.totalorder %s20, 4
    %s30 = sphi 0, %s32
    %s33 = sphi 0, %s30
    %s34 = sphi 0, %s33
    %s50 = sphi 0, %s34
    %s54 = sphi 0, %s54
    %s56 = sphi 0, %s54
    %s57 = sphi 0, %s56
    %s71 = sphi 0, %s57
    %s75 = sphi 0, %s75
    %s77 = sphi 0, %s75
    %s78 = sphi 0, %s77
    %s92 = sphi 0, %s78
    %s96 = sphi 0, %s96
    %s98 = sphi 0, %s96
    %s99 = sphi 0, %s98
    %s113 = sphi 0, %s99
    %s117 = sphi 0, %s117
    %s119 = sphi 0, %s117
    %s120 = sphi 0, %s119
    %s134 = sphi 0, %s120
    %s138 = sphi 0, %s138
    %s140 = sphi 0, %s138
    %s141 = sphi 0, %s140
    %s155 = sphi 0, %s141
    %s159 = sphi 0, %s159
    %s161 = sphi 0, %s159
    %s162 = sphi 0, %s161
    %s176 = sphi 0, %s162
    %s180 = sphi 0, %s180
    %s182 = sphi 0, %s180
    %s183 = sphi 0, %s182
    %s197 = sphi 0, %s183
    %s201 = sphi 0, %s201
    %s203 = sphi 0, %s201
    %s204 = sphi 0, %s203
    %s218 = sphi 0, %s204
    %s222 = sphi 0, %s222
    %s224 = sphi 0, %s222
    %s225 = sphi 0, %s224
    %s239 = sphi 0, %s225
    %s243 = sphi 0, %s243
    %s245 = sphi 0, %s243
    %s246 = sphi 0, %s245
    %s260 = sphi 0, %s246
    %s264 = sphi 0, %s264
    %s266 = sphi 0, %s264
    %s267 = sphi 0, %s266
    %s281 = sphi 0, %s267
    %s287 = sphi 0, %s289
    %s290 = sphi 0, %s287
    %s291 = sphi 0, %s290
    %s307 = sphi 0, %s291
  $region4: #{critic_forward.1} parent=0 // loop_header_branch
    %23 = sbr.rel (%p21) target = $region8
  $region5: #{critic_forward.1} parent=0 // loop_body
    %s25 = ssub.s32 %s20, 1
    %s26 = ssub.s32 %s20, 2
    %s27 = sadd.s32 %s20, 1
    %s28 = ssub.s32 %s20, %s27
    %p29 = scmp.eq.s32.totalorder %s28, 0
    %s31 = sadd.s32 %s30, 1
    %s32 = scalar_select %p29, %s30, %s31
    %p35 = pneg %p29
    %p36 = scmp.eq.s32.totalorder %s20, 1
    %p37 = por %p35, %p36
    %p38 = scmp.ne.s32.totalorder %s30, %s33
    %p39 = scmp.eq.s32.totalorder %s20, 0
    %p40 = por %p38, %p39
    %p41 = scmp.ne.s32.totalorder %s30, %s33
    %p42 = scmp.eq.s32.totalorder %s25, 1
    %p43 = por %p41, %p42
    %p44 = scmp.ne.s32.totalorder %s33, %s34
    %p45 = scmp.eq.s32.totalorder %s25, 0
    %p46 = por %p44, %p45
    %p47 = scmp.ne.s32.totalorder %s33, %s34
    %p48 = scmp.eq.s32.totalorder %s26, 1
    %p49 = por %p47, %p48
    %p51 = scmp.ne.s32.totalorder %s34, %s50
    %p52 = scmp.eq.s32.totalorder %s26, 0
    %p53 = por %p51, %p52
    %s55 = sadd.s32 %s54, 1
    %p58 = scmp.eq.s32.totalorder %s20, 1
    %p59 = scmp.ne.s32.totalorder %s54, %s56
    %p60 = scmp.eq.s32.totalorder %s20, 0
    %p61 = por %p59, %p60
    %p62 = scmp.ne.s32.totalorder %s54, %s56
    %p63 = scmp.eq.s32.totalorder %s25, 1
    %p64 = por %p62, %p63
    %p65 = scmp.ne.s32.totalorder %s56, %s57
    %p66 = scmp.eq.s32.totalorder %s25, 0
    %p67 = por %p65, %p66
    %p68 = scmp.ne.s32.totalorder %s56, %s57
    %p69 = scmp.eq.s32.totalorder %s26, 1
    %p70 = por %p68, %p69
    %p72 = scmp.ne.s32.totalorder %s57, %s71
    %p73 = scmp.eq.s32.totalorder %s26, 0
    %p74 = por %p72, %p73
    %s76 = sadd.s32 %s75, 1
    %p79 = scmp.eq.s32.totalorder %s20, 1
    %p80 = scmp.ne.s32.totalorder %s75, %s77
    %p81 = scmp.eq.s32.totalorder %s20, 0
    %p82 = por %p80, %p81
    %p83 = scmp.ne.s32.totalorder %s75, %s77
    %p84 = scmp.eq.s32.totalorder %s25, 1
    %p85 = por %p83, %p84
    %p86 = scmp.ne.s32.totalorder %s77, %s78
    %p87 = scmp.eq.s32.totalorder %s25, 0
    %p88 = por %p86, %p87
    %p89 = scmp.ne.s32.totalorder %s77, %s78
    %p90 = scmp.eq.s32.totalorder %s26, 1
    %p91 = por %p89, %p90
    %p93 = scmp.ne.s32.totalorder %s78, %s92
    %p94 = scmp.eq.s32.totalorder %s26, 0
    %p95 = por %p93, %p94
    %s97 = sadd.s32 %s96, 1
    %p100 = scmp.eq.s32.totalorder %s20, 1
    %p101 = scmp.ne.s32.totalorder %s96, %s98
    %p102 = scmp.eq.s32.totalorder %s20, 0
    %p103 = por %p101, %p102
    %p104 = scmp.ne.s32.totalorder %s96, %s98
    %p105 = scmp.eq.s32.totalorder %s25, 1
    %p106 = por %p104, %p105
    %p107 = scmp.ne.s32.totalorder %s98, %s99
    %p108 = scmp.eq.s32.totalorder %s25, 0
    %p109 = por %p107, %p108
    %p110 = scmp.ne.s32.totalorder %s98, %s99
    %p111 = scmp.eq.s32.totalorder %s26, 1
    %p112 = por %p110, %p111
    %p114 = scmp.ne.s32.totalorder %s99, %s113
    %p115 = scmp.eq.s32.totalorder %s26, 0
    %p116 = por %p114, %p115
    %s118 = sadd.s32 %s117, 1
    %p121 = scmp.eq.s32.totalorder %s20, 1
    %p122 = scmp.ne.s32.totalorder %s117, %s119
    %p123 = scmp.eq.s32.totalorder %s20, 0
    %p124 = por %p122, %p123
    %p125 = scmp.ne.s32.totalorder %s117, %s119
    %p126 = scmp.eq.s32.totalorder %s25, 1
    %p127 = por %p125, %p126
    %p128 = scmp.ne.s32.totalorder %s119, %s120
    %p129 = scmp.eq.s32.totalorder %s25, 0
    %p130 = por %p128, %p129
    %p131 = scmp.ne.s32.totalorder %s119, %s120
    %p132 = scmp.eq.s32.totalorder %s26, 1
    %p133 = por %p131, %p132
    %p135 = scmp.ne.s32.totalorder %s120, %s134
    %p136 = scmp.eq.s32.totalorder %s26, 0
    %p137 = por %p135, %p136
    %s139 = sadd.s32 %s138, 1
    %p142 = scmp.eq.s32.totalorder %s20, 1
    %p143 = scmp.ne.s32.totalorder %s138, %s140
    %p144 = scmp.eq.s32.totalorder %s20, 0
    %p145 = por %p143, %p144
    %p146 = scmp.ne.s32.totalorder %s138, %s140
    %p147 = scmp.eq.s32.totalorder %s25, 1
    %p148 = por %p146, %p147
    %p149 = scmp.ne.s32.totalorder %s140, %s141
    %p150 = scmp.eq.s32.totalorder %s25, 0
    %p151 = por %p149, %p150
    %p152 = scmp.ne.s32.totalorder %s140, %s141
    %p153 = scmp.eq.s32.totalorder %s26, 1
    %p154 = por %p152, %p153
    %p156 = scmp.ne.s32.totalorder %s141, %s155
    %p157 = scmp.eq.s32.totalorder %s26, 0
    %p158 = por %p156, %p157
    %s160 = sadd.s32 %s159, 1
    %p163 = scmp.eq.s32.totalorder %s20, 1
    %p164 = scmp.ne.s32.totalorder %s159, %s161
    %p165 = scmp.eq.s32.totalorder %s20, 0
    %p166 = por %p164, %p165
    %p167 = scmp.ne.s32.totalorder %s159, %s161
    %p168 = scmp.eq.s32.totalorder %s25, 1
    %p169 = por %p167, %p168
    %p170 = scmp.ne.s32.totalorder %s161, %s162
    %p171 = scmp.eq.s32.totalorder %s25, 0
    %p172 = por %p170, %p171
    %p173 = scmp.ne.s32.totalorder %s161, %s162
    %p174 = scmp.eq.s32.totalorder %s26, 1
    %p175 = por %p173, %p174
    %p177 = scmp.ne.s32.totalorder %s162, %s176
    %p178 = scmp.eq.s32.totalorder %s26, 0
    %p179 = por %p177, %p178
    %s181 = sadd.s32 %s180, 1
    %p184 = scmp.eq.s32.totalorder %s20, 1
    %p185 = scmp.ne.s32.totalorder %s180, %s182
    %p186 = scmp.eq.s32.totalorder %s20, 0
    %p187 = por %p185, %p186
    %p188 = scmp.ne.s32.totalorder %s180, %s182
    %p189 = scmp.eq.s32.totalorder %s25, 1
    %p190 = por %p188, %p189
    %p191 = scmp.ne.s32.totalorder %s182, %s183
    %p192 = scmp.eq.s32.totalorder %s25, 0
    %p193 = por %p191, %p192
    %p194 = scmp.ne.s32.totalorder %s182, %s183
    %p195 = scmp.eq.s32.totalorder %s26, 1
    %p196 = por %p194, %p195
    %p198 = scmp.ne.s32.totalorder %s183, %s197
    %p199 = scmp.eq.s32.totalorder %s26, 0
    %p200 = por %p198, %p199
    %s202 = sadd.s32 %s201, 1
    %p205 = scmp.eq.s32.totalorder %s20, 1
    %p206 = scmp.ne.s32.totalorder %s201, %s203
    %p207 = scmp.eq.s32.totalorder %s20, 0
    %p208 = por %p206, %p207
    %p209 = scmp.ne.s32.totalorder %s201, %s203
    %p210 = scmp.eq.s32.totalorder %s25, 1
    %p211 = por %p209, %p210
    %p212 = scmp.ne.s32.totalorder %s203, %s204
    %p213 = scmp.eq.s32.totalorder %s25, 0
    %p214 = por %p212, %p213
    %p215 = scmp.ne.s32.totalorder %s203, %s204
    %p216 = scmp.eq.s32.totalorder %s26, 1
    %p217 = por %p215, %p216
    %p219 = scmp.ne.s32.totalorder %s204, %s218
    %p220 = scmp.eq.s32.totalorder %s26, 0
    %p221 = por %p219, %p220
    %s223 = sadd.s32 %s222, 1
    %p226 = scmp.eq.s32.totalorder %s20, 1
    %p227 = scmp.ne.s32.totalorder %s222, %s224
    %p228 = scmp.eq.s32.totalorder %s20, 0
    %p229 = por %p227, %p228
    %p230 = scmp.ne.s32.totalorder %s222, %s224
    %p231 = scmp.eq.s32.totalorder %s25, 1
    %p232 = por %p230, %p231
    %p233 = scmp.ne.s32.totalorder %s224, %s225
    %p234 = scmp.eq.s32.totalorder %s25, 0
    %p235 = por %p233, %p234
    %p236 = scmp.ne.s32.totalorder %s224, %s225
    %p237 = scmp.eq.s32.totalorder %s26, 1
    %p238 = por %p236, %p237
    %p240 = scmp.ne.s32.totalorder %s225, %s239
    %p241 = scmp.eq.s32.totalorder %s26, 0
    %p242 = por %p240, %p241
    %s244 = sadd.s32 %s243, 1
    %p247 = scmp.eq.s32.totalorder %s20, 1
    %p248 = scmp.ne.s32.totalorder %s243, %s245
    %p249 = scmp.eq.s32.totalorder %s20, 0
    %p250 = por %p248, %p249
    %p251 = scmp.ne.s32.totalorder %s243, %s245
    %p252 = scmp.eq.s32.totalorder %s25, 1
    %p253 = por %p251, %p252
    %p254 = scmp.ne.s32.totalorder %s245, %s246
    %p255 = scmp.eq.s32.totalorder %s25, 0
    %p256 = por %p254, %p255
    %p257 = scmp.ne.s32.totalorder %s245, %s246
    %p258 = scmp.eq.s32.totalorder %s26, 1
    %p259 = por %p257, %p258
    %p261 = scmp.ne.s32.totalorder %s246, %s260
    %p262 = scmp.eq.s32.totalorder %s26, 0
    %p263 = por %p261, %p262
    %s265 = sadd.s32 %s264, 1
    %p268 = scmp.eq.s32.totalorder %s20, 1
    %p269 = scmp.ne.s32.totalorder %s264, %s266
    %p270 = scmp.eq.s32.totalorder %s20, 0
    %p271 = por %p269, %p270
    %p272 = scmp.ne.s32.totalorder %s264, %s266
    %p273 = scmp.eq.s32.totalorder %s25, 1
    %p274 = por %p272, %p273
    %p275 = scmp.ne.s32.totalorder %s266, %s267
    %p276 = scmp.eq.s32.totalorder %s25, 0
    %p277 = por %p275, %p276
    %p278 = scmp.ne.s32.totalorder %s266, %s267
    %p279 = scmp.eq.s32.totalorder %s26, 1
    %p280 = por %p278, %p279
    %p282 = scmp.ne.s32.totalorder %s267, %s281
    %p283 = scmp.eq.s32.totalorder %s26, 0
    %p284 = por %p282, %p283
    %s285 = ssub.s32 %s20, %s27
    %p286 = scmp.eq.s32.totalorder %s285, 0
    %s288 = sadd.s32 %s287, 1
    %s289 = scalar_select %p286, %s287, %s288
    %p292 = pneg %p286
    %p293 = scmp.eq.s32.totalorder %s20, 1
    %p294 = por %p292, %p293
    %p295 = scmp.ne.s32.totalorder %s287, %s290
    %p296 = scmp.eq.s32.totalorder %s20, 0
    %p297 = por %p295, %p296
    %p298 = scmp.ne.s32.totalorder %s287, %s290
    %p299 = scmp.eq.s32.totalorder %s25, 1
    %p300 = por %p298, %p299
    %p301 = scmp.ne.s32.totalorder %s290, %s291
    %p302 = scmp.eq.s32.totalorder %s25, 0
    %p303 = por %p301, %p302
    %p304 = scmp.ne.s32.totalorder %s290, %s291
    %p305 = scmp.eq.s32.totalorder %s26, 1
    %p306 = por %p304, %p305
    %p308 = scmp.ne.s32.totalorder %s291, %s307
    %p309 = scmp.eq.s32.totalorder %s26, 0
    %p310 = por %p308, %p309
    %p311 = scmp.le.s32.totalorder 1, %s20
    %p312 = scmp.lt.s32.totalorder %s20, 3
    %p313 = pnand %p311, %p312
    %p314 = pneg %p313
    // Predicated region
    $region9: #{critic_forward.1} parent=5 // pred_check
      _
    $region10: #{critic_forward.1} parent=5 // pred_check_branch
      %316 = sbr.rel (%p313) target = $region12
    $region11: #{critic_forward.1} parent=5 // pred_region
      %s317 = ssub.s32 %s20, 1
      // Predicated region
      $region13: #{critic_forward.1} parent=11 // pred_check
        %p318 = pneg %p67
      $region14: #{critic_forward.1} parent=11 // pred_check_branch
        %320 = sbr.rel (%p318) target = $region16
      $region15: #{critic_forward.1} parent=11 // pred_region
        _
      $region16: #{critic_forward.1} parent=11 // pred_fallthru
        _
      // Predicated region
      $region17: #{critic_forward.1} parent=11 // pred_check
        %p321 = pneg %p88
      $region18: #{critic_forward.1} parent=11 // pred_check_branch
        %323 = sbr.rel (%p321) target = $region20
      $region19: #{critic_forward.1} parent=11 // pred_region
        _
      $region20: #{critic_forward.1} parent=11 // pred_fallthru
        _
      // Predicated region
      $region21: #{critic_forward.1} parent=11 // pred_check
        %p324 = pneg %p109
      $region22: #{critic_forward.1} parent=11 // pred_check_branch
        %326 = sbr.rel (%p324) target = $region24
      $region23: #{critic_forward.1} parent=11 // pred_region
        _
      $region24: #{critic_forward.1} parent=11 // pred_fallthru
        _
      // Predicated region
      $region25: #{critic_forward.1} parent=11 // pred_check
        %p327 = pneg %p130
      $region26: #{critic_forward.1} parent=11 // pred_check_branch
        %329 = sbr.rel (%p327) target = $region28
      $region27: #{critic_forward.1} parent=11 // pred_region
        _
      $region28: #{critic_forward.1} parent=11 // pred_fallthru
        _
      // Predicated region
      $region29: #{critic_forward.1} parent=11 // pred_check
        %p330 = pneg %p151
      $region30: #{critic_forward.1} parent=11 // pred_check_branch
        %332 = sbr.rel (%p330) target = $region32
      $region31: #{critic_forward.1} parent=11 // pred_region
        _
      $region32: #{critic_forward.1} parent=11 // pred_fallthru
        _
      // Predicated region
      $region33: #{critic_forward.1} parent=11 // pred_check
        %p333 = pneg %p172
      $region34: #{critic_forward.1} parent=11 // pred_check_branch
        %335 = sbr.rel (%p333) target = $region36
      $region35: #{critic_forward.1} parent=11 // pred_region
        _
      $region36: #{critic_forward.1} parent=11 // pred_fallthru
        _
      // Predicated region
      $region37: #{critic_forward.1} parent=11 // pred_check
        %p336 = pneg %p193
      $region38: #{critic_forward.1} parent=11 // pred_check_branch
        %338 = sbr.rel (%p336) target = $region40
      $region39: #{critic_forward.1} parent=11 // pred_region
        _
      $region40: #{critic_forward.1} parent=11 // pred_fallthru
        _
      // Predicated region
      $region41: #{critic_forward.1} parent=11 // pred_check
        %p339 = pneg %p214
      $region42: #{critic_forward.1} parent=11 // pred_check_branch
        %341 = sbr.rel (%p339) target = $region44
      $region43: #{critic_forward.1} parent=11 // pred_region
        _
      $region44: #{critic_forward.1} parent=11 // pred_fallthru
        _
      // Predicated region
      $region45: #{critic_forward.1} parent=11 // pred_check
        %p342 = pneg %p235
      $region46: #{critic_forward.1} parent=11 // pred_check_branch
        %344 = sbr.rel (%p342) target = $region48
      $region47: #{critic_forward.1} parent=11 // pred_region
        _
      $region48: #{critic_forward.1} parent=11 // pred_fallthru
        _
      // Predicated region
      $region49: #{critic_forward.1} parent=11 // pred_check
        %p345 = pneg %p256
      $region50: #{critic_forward.1} parent=11 // pred_check_branch
        %347 = sbr.rel (%p345) target = $region52
      $region51: #{critic_forward.1} parent=11 // pred_region
        _
      $region52: #{critic_forward.1} parent=11 // pred_fallthru
        _
      // Predicated region
      $region53: #{critic_forward.1} parent=11 // pred_check
        %p348 = pneg %p277
      $region54: #{critic_forward.1} parent=11 // pred_check_branch
        %350 = sbr.rel (%p348) target = $region56
      $region55: #{critic_forward.1} parent=11 // pred_region
        _
      $region56: #{critic_forward.1} parent=11 // pred_fallthru
        _
    $region12: #{critic_forward.1} parent=5 // pred_fallthru
      _
    %p351 = scmp.lt.s32.totalorder %s20, 2
    // Predicated region
    $region57: #{critic_forward.1} parent=5 // pred_check
      %p352 = pneg %p351
    $region58: #{critic_forward.1} parent=5 // pred_check_branch
      %354 = sbr.rel (%p352) target = $region60
    $region59: #{critic_forward.1} parent=5 // pred_region
      // Predicated region
      $region61: #{critic_forward.1} parent=59 // pred_check
        %p355 = pneg %p40
      $region62: #{critic_forward.1} parent=59 // pred_check_branch
        %357 = sbr.rel (%p355) target = $region64
      $region63: #{critic_forward.1} parent=59 // pred_region
        %s358 = smul.u32 8, %s20
        %p359 = scmp.lt.s32.totalorder %s358, 15
        %s360 = scalar_select %p359, %s358, 15
        %s361 = smul.addr %s360, 6
        %s362 = smul.addr %s361, 8
        %s363 = scalar_lea.vmem %s0, %s362
        %s364 = smul.u32 8, %s20
      $region64: #{critic_forward.1} parent=59 // pred_fallthru
        _
    $region60: #{critic_forward.1} parent=5 // pred_fallthru
      _
    %p365 = scmp.le.s32.totalorder 1, %s20
    %p366 = scmp.lt.s32.totalorder %s20, 3
    %p367 = pnand %p365, %p366
    %p368 = pneg %p367
    // Predicated region
    $region65: #{critic_forward.1} parent=5 // pred_check
      _
    $region66: #{critic_forward.1} parent=5 // pred_check_branch
      %370 = sbr.rel (%p367) target = $region68
    $region67: #{critic_forward.1} parent=5 // pred_region
      %s371 = ssub.s32 %s20, 1
      %s372 = smul.u32 8, %s25
      %p373 = scmp.lt.s32.totalorder %s372, 15
      %s374 = scalar_select %p373, %s372, 15
      %s375 = smul.addr %s374, 6
      %s376 = smul.addr %s375, 8
      %s377 = scalar_lea.vmem %s0, %s376
      %p378 = pneg %p46
      %p379 = pneg %p43
      %p380 = pneg %p67
      %p381 = pneg %p64
      %p382 = pneg %p88
      %p383 = pneg %p85
      %p384 = pneg %p109
      %p385 = pneg %p106
      %p386 = pneg %p130
      %p387 = pneg %p127
      %p388 = pneg %p151
      %p389 = pneg %p148
      %p390 = pneg %p172
      %p391 = pneg %p169
      %p392 = pneg %p193
      %p393 = pneg %p190
      %p394 = pneg %p214
      %p395 = pneg %p211
      %p396 = pneg %p235
      %p397 = pneg %p232
      %p398 = pneg %p256
      %p399 = pneg %p253
      %p400 = pneg %p277
      %p401 = pneg %p274
      %p402 = pneg %p303
      %p403 = pneg %p300
      %p404 = scmp.lt.s32.totalorder %s25, 1
      %s405 = scalar_select %p404, %s25, 1
      %s406 = smul.addr %s405, 8
      %s407 = scalar_lea.vmem %s12, %s406
      %s408 = smul.u32 8, %s25
      %p409 = scmp.lt.s32.totalorder %s408, 15
      %s410 = scalar_select %p409, %s408, 15
      %s411 = smul.addr %s410, 6
      %s412 = smul.addr %s411, 8
      %s413 = scalar_lea.vmem %s0, %s412
      %s414 = smul.u32 8, %s25
      %p415 = scmp.lt.s32.totalorder %s25, 1
      %s416 = scalar_select %p415, %s25, 1
      %s417 = smul.addr %s416, 8
      %s418 = scalar_lea.vmem %s12, %s417
      %v420 = vld [vmem:[%s1] sm:$0xf]
      %v421 = vld [vmem:[%s1 + $0x4] sm:$0xf]
      %v422 = vld [vmem:[%s1 + $0x8] sm:$0xf]
      %v423 = vld [vmem:[%s1 + $0xc] sm:$0xf]
      %v424 = vld [vmem:[%s1 + $0x10] sm:$0xf]
      %v425 = vld [vmem:[%s1 + $0x14] sm:$0xf]
      %v426 = vld [vmem:[%s1 + $0x18] sm:$0xf]
      %v427 = vld [vmem:[%s1 + $0x1c] sm:$0xf]
      %v428 = vld [vmem:[%s1 + $0x20] sm:$0xf]
      %v429 = vld [vmem:[%s1 + $0x24] sm:$0xf]
      %v430 = vld [vmem:[%s1 + $0x28] sm:$0xf]
      %v431 = vld [vmem:[%s1 + $0x2c] sm:$0xf]
      %v432 = vld [vmem:[%s1 + $0x30] sm:$0xf]
      %v433 = vld [vmem:[%s1 + $0x34] sm:$0xf]
      %v434 = vld [vmem:[%s1 + $0x38] sm:$0xf]
      %v435 = vld [vmem:[%s1 + $0x3c] sm:$0xf]
      %v436 = vld [vmem:[%s1 + $0x40] sm:$0xf]
      %v437 = vld [vmem:[%s1 + $0x44] sm:$0xf]
      %v438 = vld [vmem:[%s1 + $0x48] sm:$0xf]
      %v439 = vld [vmem:[%s1 + $0x4c] sm:$0xf]
      %v440 = vld [vmem:[%s1 + $0x50] sm:$0xf]
      %v441 = vld [vmem:[%s1 + $0x54] sm:$0xf]
      %v442 = vld [vmem:[%s1 + $0x58] sm:$0xf]
      %v443 = vld [vmem:[%s1 + $0x5c] sm:$0xf]
      %v444 = vld [vmem:[%s1 + $0x60] sm:$0xf]
      %v445 = vld [vmem:[%s1 + $0x64] sm:$0xf]
      %v446 = vld [vmem:[%s1 + $0x68] sm:$0xf]
      %v447 = vld [vmem:[%s1 + $0x6c] sm:$0xf]
      %v448 = vld [vmem:[%s1 + $0x70] sm:$0xf]
      %v449 = vld [vmem:[%s1 + $0x74] sm:$0xf]
      %v450 = vld [vmem:[%s1 + $0x78] sm:$0xf]
      %v451 = vld [vmem:[%s1 + $0x7c] sm:$0xf]
      %v452 = vld [vmem:[%s1 + $0x80] sm:$0xf]
      %v453 = vld [vmem:[%s1 + $0x84] sm:$0xf]
      %v454 = vld [vmem:[%s1 + $0x88] sm:$0xf]
      %v455 = vld [vmem:[%s1 + $0x8c] sm:$0xf]
      %v456 = vld [vmem:[%s1 + $0x90] sm:$0xf]
      %v457 = vld [vmem:[%s1 + $0x94] sm:$0xf]
      %v458 = vld [vmem:[%s1 + $0x98] sm:$0xf]
      %v459 = vld [vmem:[%s1 + $0x9c] sm:$0xf]
      %v460 = vld [vmem:[%s1 + $0xa0] sm:$0xf]
      %v461 = vld [vmem:[%s1 + $0xa4] sm:$0xf]
      %v462 = vld [vmem:[%s1 + $0xa8] sm:$0xf]
      %v463 = vld [vmem:[%s1 + $0xac] sm:$0xf]
      %v464 = vld [vmem:[%s1 + $0xb0] sm:$0xf]
      %v465 = vld [vmem:[%s1 + $0xb4] sm:$0xf]
      %v466 = vld [vmem:[%s1 + $0xb8] sm:$0xf]
      %v467 = vld [vmem:[%s1 + $0xbc] sm:$0xf]
      %v468 = vld [vmem:[%s1 + $0xc0] sm:$0xf]
      %v469 = vld [vmem:[%s1 + $0xc4] sm:$0xf]
      %v470 = vld [vmem:[%s1 + $0xc8] sm:$0xf]
      %v471 = vld [vmem:[%s1 + $0xcc] sm:$0xf]
      %v472 = vld [vmem:[%s1 + $0xd0] sm:$0xf]
      %v473 = vld [vmem:[%s1 + $0xd4] sm:$0xf]
      %v474 = vld [vmem:[%s1 + $0xd8] sm:$0xf]
      %v475 = vld [vmem:[%s1 + $0xdc] sm:$0xf]
      %v476 = vld [vmem:[%s1 + $0xe0] sm:$0xf]
      %v477 = vld [vmem:[%s1 + $0xe4] sm:$0xf]
      %v478 = vld [vmem:[%s1 + $0xe8] sm:$0xf]
      %v479 = vld [vmem:[%s1 + $0xec] sm:$0xf]
      %v480 = vld [vmem:[%s1 + $0xf0] sm:$0xf]
      %v481 = vld [vmem:[%s1 + $0xf4] sm:$0xf]
      %v482 = vld [vmem:[%s1 + $0xf8] sm:$0xf]
      %v483 = vld [vmem:[%s1 + $0xfc] sm:$0xf]
      %v484 = vld [vmem:[%s1 + $0x100] sm:$0xf]
      %v485 = vld [vmem:[%s1 + $0x104] sm:$0xf]
      %v486 = vld [vmem:[%s1 + $0x108] sm:$0xf]
      %v487 = vld [vmem:[%s1 + $0x10c] sm:$0xf]
      %v488 = vld [vmem:[%s1 + $0x110] sm:$0xf]
      %v489 = vld [vmem:[%s1 + $0x114] sm:$0xf]
      %v490 = vld [vmem:[%s1 + $0x118] sm:$0xf]
      %v491 = vld [vmem:[%s1 + $0x11c] sm:$0xf]
      %v492 = vld [vmem:[%s1 + $0x120] sm:$0xf]
      %v493 = vld [vmem:[%s1 + $0x124] sm:$0xf]
      %v494 = vld [vmem:[%s1 + $0x128] sm:$0xf]
      %v495 = vld [vmem:[%s1 + $0x12c] sm:$0xf]
      %v496 = vld [vmem:[%s1 + $0x130] sm:$0xf]
      %v497 = vld [vmem:[%s1 + $0x134] sm:$0xf]
      %v498 = vld [vmem:[%s1 + $0x138] sm:$0xf]
      %v499 = vld [vmem:[%s1 + $0x13c] sm:$0xf]
      %v500 = vld [vmem:[%s1 + $0x140] sm:$0xf]
      %v501 = vld [vmem:[%s1 + $0x144] sm:$0xf]
      %v502 = vld [vmem:[%s1 + $0x148] sm:$0xf]
      %v503 = vld [vmem:[%s1 + $0x14c] sm:$0xf]
      %v504 = vld [vmem:[%s1 + $0x150] sm:$0x3]
      %v505 = vld [vmem:[%s3] sm:$0xf]
      %v506 = vld [vmem:[%s3 + $0x4] sm:$0xf]
      %v507 = vld [vmem:[%s3 + $0x8] sm:$0xf]
      %v508 = vld [vmem:[%s3 + $0xc] sm:$0xf]
      %v509 = vld [vmem:[%s5] sm:$0xf]
      %v510 = vld [vmem:[%s5 + $0x4] sm:$0xf]
      %v511 = vld [vmem:[%s5 + $0x8] sm:$0xf]
      %v512 = vld [vmem:[%s5 + $0xc] sm:$0xf]
      %v513 = vld [vmem:[%s7] sm:$0xf]
      %v514 = vld [vmem:[%s7 + $0x4] sm:$0xf]
      %v515 = vld [vmem:[%s7 + $0x8] sm:$0xf]
      %v516 = vld [vmem:[%s7 + $0xc] sm:$0xf]
      %v517 = vld [vmem:[%s8] sm:$0xf]
      %v518 = vld [vmem:[%s8 + $0x4] sm:$0xf]
      %v519 = vld [vmem:[%s8 + $0x8] sm:$0xf]
      %v520 = vld [vmem:[%s8 + $0xc] sm:$0xf]
      %v521 = vld [vmem:[%s10] sm:$0xf]
      %v522 = vld [vmem:[%s10 + $0x4] sm:$0xf]
      %v523 = vld [vmem:[%s10 + $0x8] sm:$0xf]
      %v524 = vld [vmem:[%s10 + $0xc] sm:$0xf]
      %v525 = vld [vmem:[%s2] sm:$0x1]
      %v526 = vld [vmem:[%s4] sm:$0x1]
      %v527 = vld [vmem:[%s6] sm:$0x1]
      %v528 = vld [vmem:[%s9] sm:$0x1]
      %v529 = vld [vmem:[#allocation2] sm:$0x1]
      %v530 = vld [vmem:[%s413] ss:$8 sm:$0xf]
      %v531 = vld [vmem:[%s413] ss:$8 sm:$0x30]
      %v532 = vor.u32 %v530, %v531
      %s533 = scalar_lea.vmem %s413, 48
      %v534 = vld [vmem:[%s533] ss:$8 sm:$0xf]
      %v535 = vld [vmem:[%s533] ss:$8 sm:$0x30]
      %v536 = vor.u32 %v534, %v535
      %s537 = scalar_lea.vmem %s413, 96
      %v538 = vld [vmem:[%s537] ss:$8 sm:$0xf]
      %v539 = vld [vmem:[%s537] ss:$8 sm:$0x30]
      %v540 = vor.u32 %v538, %v539
      %s541 = scalar_lea.vmem %s413, 144
      %v542 = vld [vmem:[%s541] ss:$8 sm:$0xf]
      %v543 = vld [vmem:[%s541] ss:$8 sm:$0x30]
      %v544 = vor.u32 %v542, %v543
      %s545 = scalar_lea.vmem %s413, 192
      %v546 = vld [vmem:[%s545] ss:$8 sm:$0xf]
      %v547 = vld [vmem:[%s545] ss:$8 sm:$0x30]
      %v548 = vor.u32 %v546, %v547
      %s549 = scalar_lea.vmem %s413, 240
      %v550 = vld [vmem:[%s549] ss:$8 sm:$0xf]
      %v551 = vld [vmem:[%s549] ss:$8 sm:$0x30]
      %v552 = vor.u32 %v550, %v551
      %s553 = scalar_lea.vmem %s413, 288
      %v554 = vld [vmem:[%s553] ss:$8 sm:$0xf]
      %v555 = vld [vmem:[%s553] ss:$8 sm:$0x30]
      %v556 = vor.u32 %v554, %v555
      %s557 = scalar_lea.vmem %s413, 336
      %v558 = vld [vmem:[%s557] ss:$8 sm:$0xf]
      %v559 = vld [vmem:[%s557] ss:$8 sm:$0x30]
      %v560 = vor.u32 %v558, %v559
      %v569 = vlaneseq
      %v570 = vshrl.u32 %v569, 7
      %v571 = vsub.s32 0, %v570
      %v572 = vrot.slane %v532, %v571
      %v573 = vlaneseq
      %v574 = vshrl.u32 %v573, 7
      %v575 = vsub.s32 1, %v574
      %v576 = vrot.slane %v532, %v575
      %v577 = vlaneseq
      %v578 = vshrl.u32 %v577, 7
      %v579 = vsub.s32 2, %v578
      %v580 = vrot.slane %v532, %v579
      %v581 = vlaneseq
      %v582 = vshrl.u32 %v581, 7
      %v583 = vsub.s32 3, %v582
      %v584 = vrot.slane %v532, %v583
      %v585 = vlaneseq
      %v586 = vshrl.u32 %v585, 7
      %v587 = vsub.s32 4, %v586
      %v588 = vrot.slane %v532, %v587
      %v589 = vlaneseq
      %v590 = vshrl.u32 %v589, 7
      %v591 = vsub.s32 5, %v590
      %v592 = vrot.slane %v532, %v591
      %v593 = vlaneseq
      %v594 = vshrl.u32 %v593, 7
      %v595 = vsub.s32 0, %v594
      %v596 = vrot.slane %v536, %v595
      %v597 = vlaneseq
      %v598 = vshrl.u32 %v597, 7
      %v599 = vsub.s32 1, %v598
      %v600 = vrot.slane %v536, %v599
      %v601 = vlaneseq
      %v602 = vshrl.u32 %v601, 7
      %v603 = vsub.s32 2, %v602
      %v604 = vrot.slane %v536, %v603
      %v605 = vlaneseq
      %v606 = vshrl.u32 %v605, 7
      %v607 = vsub.s32 3, %v606
      %v608 = vrot.slane %v536, %v607
      %v609 = vlaneseq
      %v610 = vshrl.u32 %v609, 7
      %v611 = vsub.s32 4, %v610
      %v612 = vrot.slane %v536, %v611
      %v613 = vlaneseq
      %v614 = vshrl.u32 %v613, 7
      %v615 = vsub.s32 5, %v614
      %v616 = vrot.slane %v536, %v615
      %v617 = vlaneseq
      %v618 = vshrl.u32 %v617, 7
      %v619 = vsub.s32 0, %v618
      %v620 = vrot.slane %v540, %v619
      %v621 = vlaneseq
      %v622 = vshrl.u32 %v621, 7
      %v623 = vsub.s32 1, %v622
      %v624 = vrot.slane %v540, %v623
      %v625 = vlaneseq
      %v626 = vshrl.u32 %v625, 7
      %v627 = vsub.s32 2, %v626
      %v628 = vrot.slane %v540, %v627
      %v629 = vlaneseq
      %v630 = vshrl.u32 %v629, 7
      %v631 = vsub.s32 3, %v630
      %v632 = vrot.slane %v540, %v631
      %v633 = vlaneseq
      %v634 = vshrl.u32 %v633, 7
      %v635 = vsub.s32 4, %v634
      %v636 = vrot.slane %v540, %v635
      %v637 = vlaneseq
      %v638 = vshrl.u32 %v637, 7
      %v639 = vsub.s32 5, %v638
      %v640 = vrot.slane %v540, %v639
      %v641 = vlaneseq
      %v642 = vshrl.u32 %v641, 7
      %v643 = vsub.s32 0, %v642
      %v644 = vrot.slane %v544, %v643
      %v645 = vlaneseq
      %v646 = vshrl.u32 %v645, 7
      %v647 = vsub.s32 1, %v646
      %v648 = vrot.slane %v544, %v647
      %v649 = vlaneseq
      %v650 = vshrl.u32 %v649, 7
      %v651 = vsub.s32 2, %v650
      %v652 = vrot.slane %v544, %v651
      %v653 = vlaneseq
      %v654 = vshrl.u32 %v653, 7
      %v655 = vsub.s32 3, %v654
      %v656 = vrot.slane %v544, %v655
      %v657 = vlaneseq
      %v658 = vshrl.u32 %v657, 7
      %v659 = vsub.s32 4, %v658
      %v660 = vrot.slane %v544, %v659
      %v661 = vlaneseq
      %v662 = vshrl.u32 %v661, 7
      %v663 = vsub.s32 5, %v662
      %v664 = vrot.slane %v544, %v663
      %v665 = vlaneseq
      %v666 = vshrl.u32 %v665, 7
      %v667 = vsub.s32 0, %v666
      %v668 = vrot.slane %v548, %v667
      %v669 = vlaneseq
      %v670 = vshrl.u32 %v669, 7
      %v671 = vsub.s32 1, %v670
      %v672 = vrot.slane %v548, %v671
      %v673 = vlaneseq
      %v674 = vshrl.u32 %v673, 7
      %v675 = vsub.s32 2, %v674
      %v676 = vrot.slane %v548, %v675
      %v677 = vlaneseq
      %v678 = vshrl.u32 %v677, 7
      %v679 = vsub.s32 3, %v678
      %v680 = vrot.slane %v548, %v679
      %v681 = vlaneseq
      %v682 = vshrl.u32 %v681, 7
      %v683 = vsub.s32 4, %v682
      %v684 = vrot.slane %v548, %v683
      %v685 = vlaneseq
      %v686 = vshrl.u32 %v685, 7
      %v687 = vsub.s32 5, %v686
      %v688 = vrot.slane %v548, %v687
      %v689 = vlaneseq
      %v690 = vshrl.u32 %v689, 7
      %v691 = vsub.s32 0, %v690
      %v692 = vrot.slane %v552, %v691
      %v693 = vlaneseq
      %v694 = vshrl.u32 %v693, 7
      %v695 = vsub.s32 1, %v694
      %v696 = vrot.slane %v552, %v695
      %v697 = vlaneseq
      %v698 = vshrl.u32 %v697, 7
      %v699 = vsub.s32 2, %v698
      %v700 = vrot.slane %v552, %v699
      %v701 = vlaneseq
      %v702 = vshrl.u32 %v701, 7
      %v703 = vsub.s32 3, %v702
      %v704 = vrot.slane %v552, %v703
      %v705 = vlaneseq
      %v706 = vshrl.u32 %v705, 7
      %v707 = vsub.s32 4, %v706
      %v708 = vrot.slane %v552, %v707
      %v709 = vlaneseq
      %v710 = vshrl.u32 %v709, 7
      %v711 = vsub.s32 5, %v710
      %v712 = vrot.slane %v552, %v711
      %v713 = vlaneseq
      %v714 = vshrl.u32 %v713, 7
      %v715 = vsub.s32 0, %v714
      %v716 = vrot.slane %v556, %v715
      %v717 = vlaneseq
      %v718 = vshrl.u32 %v717, 7
      %v719 = vsub.s32 1, %v718
      %v720 = vrot.slane %v556, %v719
      %v721 = vlaneseq
      %v722 = vshrl.u32 %v721, 7
      %v723 = vsub.s32 2, %v722
      %v724 = vrot.slane %v556, %v723
      %v725 = vlaneseq
      %v726 = vshrl.u32 %v725, 7
      %v727 = vsub.s32 3, %v726
      %v728 = vrot.slane %v556, %v727
      %v729 = vlaneseq
      %v730 = vshrl.u32 %v729, 7
      %v731 = vsub.s32 4, %v730
      %v732 = vrot.slane %v556, %v731
      %v733 = vlaneseq
      %v734 = vshrl.u32 %v733, 7
      %v735 = vsub.s32 5, %v734
      %v736 = vrot.slane %v556, %v735
      %v737 = vlaneseq
      %v738 = vshrl.u32 %v737, 7
      %v739 = vsub.s32 0, %v738
      %v740 = vrot.slane %v560, %v739
      %v741 = vlaneseq
      %v742 = vshrl.u32 %v741, 7
      %v743 = vsub.s32 1, %v742
      %v744 = vrot.slane %v560, %v743
      %v745 = vlaneseq
      %v746 = vshrl.u32 %v745, 7
      %v747 = vsub.s32 2, %v746
      %v748 = vrot.slane %v560, %v747
      %v749 = vlaneseq
      %v750 = vshrl.u32 %v749, 7
      %v751 = vsub.s32 3, %v750
      %v752 = vrot.slane %v560, %v751
      %v753 = vlaneseq
      %v754 = vshrl.u32 %v753, 7
      %v755 = vsub.s32 4, %v754
      %v756 = vrot.slane %v560, %v755
      %v757 = vlaneseq
      %v758 = vshrl.u32 %v757, 7
      %v759 = vsub.s32 5, %v758
      %v760 = vrot.slane %v560, %v759
      %v809 = vpack.c.bf16 %v572, %v572
      %v810 = vpack.c.bf16 %v576, %v576
      %v811 = vpack.c.bf16 %v580, %v580
      %v812 = vpack.c.bf16 %v584, %v584
      %v813 = vpack.c.bf16 %v588, %v588
      %v814 = vpack.c.bf16 %v592, %v592
      %v815 = vpack.c.bf16 %v596, %v596
      %v816 = vpack.c.bf16 %v600, %v600
      %v817 = vpack.c.bf16 %v604, %v604
      %v818 = vpack.c.bf16 %v608, %v608
      %v819 = vpack.c.bf16 %v612, %v612
      %v820 = vpack.c.bf16 %v616, %v616
      %v821 = vpack.c.bf16 %v620, %v620
      %v822 = vpack.c.bf16 %v624, %v624
      %v823 = vpack.c.bf16 %v628, %v628
      %v824 = vpack.c.bf16 %v632, %v632
      %v825 = vpack.c.bf16 %v636, %v636
      %v826 = vpack.c.bf16 %v640, %v640
      %v827 = vpack.c.bf16 %v644, %v644
      %v828 = vpack.c.bf16 %v648, %v648
      %v829 = vpack.c.bf16 %v652, %v652
      %v830 = vpack.c.bf16 %v656, %v656
      %v831 = vpack.c.bf16 %v660, %v660
      %v832 = vpack.c.bf16 %v664, %v664
      %v833 = vpack.c.bf16 %v668, %v668
      %v834 = vpack.c.bf16 %v672, %v672
      %v835 = vpack.c.bf16 %v676, %v676
      %v836 = vpack.c.bf16 %v680, %v680
      %v837 = vpack.c.bf16 %v684, %v684
      %v838 = vpack.c.bf16 %v688, %v688
      %v839 = vpack.c.bf16 %v692, %v692
      %v840 = vpack.c.bf16 %v696, %v696
      %v841 = vpack.c.bf16 %v700, %v700
      %v842 = vpack.c.bf16 %v704, %v704
      %v843 = vpack.c.bf16 %v708, %v708
      %v844 = vpack.c.bf16 %v712, %v712
      %v845 = vpack.c.bf16 %v716, %v716
      %v846 = vpack.c.bf16 %v720, %v720
      %v847 = vpack.c.bf16 %v724, %v724
      %v848 = vpack.c.bf16 %v728, %v728
      %v849 = vpack.c.bf16 %v732, %v732
      %v850 = vpack.c.bf16 %v736, %v736
      %v851 = vpack.c.bf16 %v740, %v740
      %v852 = vpack.c.bf16 %v744, %v744
      %v853 = vpack.c.bf16 %v748, %v748
      %v854 = vpack.c.bf16 %v752, %v752
      %v855 = vpack.c.bf16 %v756, %v756
      %v856 = vpack.c.bf16 %v760, %v760
      %v858 = vlaneseq
      %v859 = vshrl.u32 %v858, 7
      %v860 = vsub.s32 0, %v859
      %v861 = vrot.slane %v525, %v860
      %v911 = vunpack.c.l.b16 %v809
      %v912 = vunpack.c.l.b16 %v810
      %v913 = vunpack.c.l.b16 %v811
      %v914 = vunpack.c.l.b16 %v812
      %v915 = vunpack.c.l.b16 %v813
      %v916 = vunpack.c.l.b16 %v814
      %v917 = vunpack.c.l.b16 %v815
      %v918 = vunpack.c.l.b16 %v816
      %v919 = vunpack.c.l.b16 %v817
      %v920 = vunpack.c.l.b16 %v818
      %v921 = vunpack.c.l.b16 %v819
      %v922 = vunpack.c.l.b16 %v820
      %v923 = vunpack.c.l.b16 %v821
      %v924 = vunpack.c.l.b16 %v822
      %v925 = vunpack.c.l.b16 %v823
      %v926 = vunpack.c.l.b16 %v824
      %v927 = vunpack.c.l.b16 %v825
      %v928 = vunpack.c.l.b16 %v826
      %v929 = vunpack.c.l.b16 %v827
      %v930 = vunpack.c.l.b16 %v828
      %v931 = vunpack.c.l.b16 %v829
      %v932 = vunpack.c.l.b16 %v830
      %v933 = vunpack.c.l.b16 %v831
      %v934 = vunpack.c.l.b16 %v832
      %v935 = vunpack.c.l.b16 %v833
      %v936 = vunpack.c.l.b16 %v834
      %v937 = vunpack.c.l.b16 %v835
      %v938 = vunpack.c.l.b16 %v836
      %v939 = vunpack.c.l.b16 %v837
      %v940 = vunpack.c.l.b16 %v838
      %v941 = vunpack.c.l.b16 %v839
      %v942 = vunpack.c.l.b16 %v840
      %v943 = vunpack.c.l.b16 %v841
      %v944 = vunpack.c.l.b16 %v842
      %v945 = vunpack.c.l.b16 %v843
      %v946 = vunpack.c.l.b16 %v844
      %v947 = vunpack.c.l.b16 %v845
      %v948 = vunpack.c.l.b16 %v846
      %v949 = vunpack.c.l.b16 %v847
      %v950 = vunpack.c.l.b16 %v848
      %v951 = vunpack.c.l.b16 %v849
      %v952 = vunpack.c.l.b16 %v850
      %v953 = vunpack.c.l.b16 %v851
      %v954 = vunpack.c.l.b16 %v852
      %v955 = vunpack.c.l.b16 %v853
      %v956 = vunpack.c.l.b16 %v854
      %v957 = vunpack.c.l.b16 %v855
      %v958 = vunpack.c.l.b16 %v856
      %v959 = vrot.slane %v917, 7
      %vm960 = vcmask 1041409
      %v961 = vsel %vm960, %v959, %v911
      %v962 = vrot.slane %v923, 6
      %vm963 = vcmask 1042434
      %v964 = vsel %vm963, %v962, %v961
      %v965 = vrot.slane %v929, 5
      %vm966 = vcmask 1043459
      %v967 = vsel %vm966, %v965, %v964
      %v968 = vrot.slane %v935, 4
      %vm969 = vcmask 1044484
      %v970 = vsel %vm969, %v968, %v967
      %v971 = vrot.slane %v941, 3
      %vm972 = vcmask 1045509
      %v973 = vsel %vm972, %v971, %v970
      %v974 = vrot.slane %v947, 2
      %vm975 = vcmask 1046534
      %v976 = vsel %vm975, %v974, %v973
      %v977 = vrot.slane %v953, 1
      %vm978 = vcmask 1047559
      %v979 = vsel %vm978, %v977, %v976
      %v980 = vrot.slane %v918, 7
      %v981 = vsel %vm960, %v980, %v912
      %v982 = vrot.slane %v924, 6
      %v983 = vsel %vm963, %v982, %v981
      %v984 = vrot.slane %v930, 5
      %v985 = vsel %vm966, %v984, %v983
      %v986 = vrot.slane %v936, 4
      %v987 = vsel %vm969, %v986, %v985
      %v988 = vrot.slane %v942, 3
      %v989 = vsel %vm972, %v988, %v987
      %v990 = vrot.slane %v948, 2
      %v991 = vsel %vm975, %v990, %v989
      %v992 = vrot.slane %v954, 1
      %v993 = vsel %vm978, %v992, %v991
      %v994 = vrot.slane %v919, 7
      %v995 = vsel %vm960, %v994, %v913
      %v996 = vrot.slane %v925, 6
      %v997 = vsel %vm963, %v996, %v995
      %v998 = vrot.slane %v931, 5
      %v999 = vsel %vm966, %v998, %v997
      %v1000 = vrot.slane %v937, 4
      %v1001 = vsel %vm969, %v1000, %v999
      %v1002 = vrot.slane %v943, 3
      %v1003 = vsel %vm972, %v1002, %v1001
      %v1004 = vrot.slane %v949, 2
      %v1005 = vsel %vm975, %v1004, %v1003
      %v1006 = vrot.slane %v955, 1
      %v1007 = vsel %vm978, %v1006, %v1005
      %v1008 = vrot.slane %v920, 7
      %v1009 = vsel %vm960, %v1008, %v914
      %v1010 = vrot.slane %v926, 6
      %v1011 = vsel %vm963, %v1010, %v1009
      %v1012 = vrot.slane %v932, 5
      %v1013 = vsel %vm966, %v1012, %v1011
      %v1014 = vrot.slane %v938, 4
      %v1015 = vsel %vm969, %v1014, %v1013
      %v1016 = vrot.slane %v944, 3
      %v1017 = vsel %vm972, %v1016, %v1015
      %v1018 = vrot.slane %v950, 2
      %v1019 = vsel %vm975, %v1018, %v1017
      %v1020 = vrot.slane %v956, 1
      %v1021 = vsel %vm978, %v1020, %v1019
      %v1022 = vrot.slane %v921, 7
      %v1023 = vsel %vm960, %v1022, %v915
      %v1024 = vrot.slane %v927, 6
      %v1025 = vsel %vm963, %v1024, %v1023
      %v1026 = vrot.slane %v933, 5
      %v1027 = vsel %vm966, %v1026, %v1025
      %v1028 = vrot.slane %v939, 4
      %v1029 = vsel %vm969, %v1028, %v1027
      %v1030 = vrot.slane %v945, 3
      %v1031 = vsel %vm972, %v1030, %v1029
      %v1032 = vrot.slane %v951, 2
      %v1033 = vsel %vm975, %v1032, %v1031
      %v1034 = vrot.slane %v957, 1
      %v1035 = vsel %vm978, %v1034, %v1033
      %v1036 = vrot.slane %v922, 7
      %v1037 = vsel %vm960, %v1036, %v916
      %v1038 = vrot.slane %v928, 6
      %v1039 = vsel %vm963, %v1038, %v1037
      %v1040 = vrot.slane %v934, 5
      %v1041 = vsel %vm966, %v1040, %v1039
      %v1042 = vrot.slane %v940, 4
      %v1043 = vsel %vm969, %v1042, %v1041
      %v1044 = vrot.slane %v946, 3
      %v1045 = vsel %vm972, %v1044, %v1043
      %v1046 = vrot.slane %v952, 2
      %v1047 = vsel %vm975, %v1046, %v1045
      %v1048 = vrot.slane %v958, 1
      %v1049 = vsel %vm978, %v1048, %v1047
      %v1050 = vpack.c.b16 %v979, %v979
      %v1051 = vpack.c.b16 %v993, %v993
      %v1052 = vpack.c.b16 %v1007, %v1007
      %v1053 = vpack.c.b16 %v1021, %v1021
      %v1054 = vpack.c.b16 %v1035, %v1035
      %v1055 = vpack.c.b16 %v1049, %v1049
      %v1146 = vunpack.c.l.b16 %v420
      %v1147 = vunpack.c.l.b16 %v421
      %v1148 = vunpack.c.l.b16 %v422
      %v1149 = vunpack.c.l.b16 %v423
      %v1150 = vunpack.c.l.b16 %v424
      %v1151 = vunpack.c.l.b16 %v425
      %v1152 = vunpack.c.l.b16 %v426
      %v1153 = vunpack.c.l.b16 %v427
      %v1154 = vunpack.c.l.b16 %v428
      %v1155 = vunpack.c.l.b16 %v429
      %v1156 = vunpack.c.l.b16 %v430
      %v1157 = vunpack.c.l.b16 %v431
      %v1158 = vunpack.c.l.b16 %v432
      %v1159 = vunpack.c.l.b16 %v433
      %v1160 = vunpack.c.l.b16 %v434
      %v1161 = vunpack.c.l.b16 %v435
      %v1162 = vunpack.c.l.b16 %v436
      %v1163 = vunpack.c.l.b16 %v437
      %v1164 = vunpack.c.l.b16 %v438
      %v1165 = vunpack.c.l.b16 %v439
      %v1166 = vunpack.c.l.b16 %v440
      %v1167 = vunpack.c.l.b16 %v441
      %v1168 = vunpack.c.l.b16 %v442
      %v1169 = vunpack.c.l.b16 %v443
      %v1170 = vunpack.c.l.b16 %v444
      %v1171 = vunpack.c.l.b16 %v445
      %v1172 = vunpack.c.l.b16 %v446
      %v1173 = vunpack.c.l.b16 %v447
      %v1174 = vunpack.c.l.b16 %v448
      %v1175 = vunpack.c.l.b16 %v449
      %v1176 = vunpack.c.l.b16 %v450
      %v1177 = vunpack.c.l.b16 %v451
      %v1178 = vunpack.c.l.b16 %v452
      %v1179 = vunpack.c.l.b16 %v453
      %v1180 = vunpack.c.l.b16 %v454
      %v1181 = vunpack.c.l.b16 %v455
      %v1182 = vunpack.c.l.b16 %v456
      %v1183 = vunpack.c.l.b16 %v457
      %v1184 = vunpack.c.l.b16 %v458
      %v1185 = vunpack.c.l.b16 %v459
      %v1186 = vunpack.c.l.b16 %v460
      %v1187 = vunpack.c.l.b16 %v461
      %v1188 = vunpack.c.l.b16 %v462
      %v1189 = vunpack.c.l.b16 %v463
      %v1190 = vunpack.c.l.b16 %v464
      %v1191 = vunpack.c.l.b16 %v465
      %v1192 = vunpack.c.l.b16 %v466
      %v1193 = vunpack.c.l.b16 %v467
      %v1194 = vunpack.c.l.b16 %v468
      %v1195 = vunpack.c.l.b16 %v469
      %v1196 = vunpack.c.l.b16 %v470
      %v1197 = vunpack.c.l.b16 %v471
      %v1198 = vunpack.c.l.b16 %v472
      %v1199 = vunpack.c.l.b16 %v473
      %v1200 = vunpack.c.l.b16 %v474
      %v1201 = vunpack.c.l.b16 %v475
      %v1202 = vunpack.c.l.b16 %v476
      %v1203 = vunpack.c.l.b16 %v477
      %v1204 = vunpack.c.l.b16 %v478
      %v1205 = vunpack.c.l.b16 %v479
      %v1206 = vunpack.c.l.b16 %v480
      %v1207 = vunpack.c.l.b16 %v481
      %v1208 = vunpack.c.l.b16 %v482
      %v1209 = vunpack.c.l.b16 %v483
      %v1210 = vunpack.c.l.b16 %v484
      %v1211 = vunpack.c.l.b16 %v485
      %v1212 = vunpack.c.l.b16 %v486
      %v1213 = vunpack.c.l.b16 %v487
      %v1214 = vunpack.c.l.b16 %v488
      %v1215 = vunpack.c.l.b16 %v489
      %v1216 = vunpack.c.l.b16 %v490
      %v1217 = vunpack.c.l.b16 %v491
      %v1218 = vunpack.c.l.b16 %v492
      %v1219 = vunpack.c.l.b16 %v493
      %v1220 = vunpack.c.l.b16 %v494
      %v1221 = vunpack.c.l.b16 %v495
      %v1222 = vunpack.c.l.b16 %v496
      %v1223 = vunpack.c.l.b16 %v497
      %v1224 = vunpack.c.l.b16 %v498
      %v1225 = vunpack.c.l.b16 %v499
      %v1226 = vunpack.c.l.b16 %v500
      %v1227 = vunpack.c.l.b16 %v501
      %v1228 = vunpack.c.l.b16 %v502
      %v1229 = vunpack.c.l.b16 %v503
      %v1230 = vunpack.c.l.b16 %v504
      %v1231 = vpack.c.b16 %v1147, %v1146
      %v1232 = vpack.c.b16 %v1149, %v1148
      %v1233 = vpack.c.b16 %v1151, %v1150
      %v1234 = vpack.c.b16 %v1153, %v1152
      %v1235 = vpack.c.b16 %v1155, %v1154
      %v1236 = vpack.c.b16 %v1157, %v1156
      %v1237 = vpack.c.b16 %v1159, %v1158
      %v1238 = vpack.c.b16 %v1161, %v1160
      %v1239 = vpack.c.b16 %v1163, %v1162
      %v1240 = vpack.c.b16 %v1165, %v1164
      %v1241 = vpack.c.b16 %v1167, %v1166
      %v1242 = vpack.c.b16 %v1169, %v1168
      %v1243 = vpack.c.b16 %v1171, %v1170
      %v1244 = vpack.c.b16 %v1173, %v1172
      %v1245 = vpack.c.b16 %v1175, %v1174
      %v1246 = vpack.c.b16 %v1177, %v1176
      %v1247 = vpack.c.b16 %v1179, %v1178
      %v1248 = vpack.c.b16 %v1181, %v1180
      %v1249 = vpack.c.b16 %v1183, %v1182
      %v1250 = vpack.c.b16 %v1185, %v1184
      %v1251 = vpack.c.b16 %v1187, %v1186
      %v1252 = vpack.c.b16 %v1189, %v1188
      %v1253 = vpack.c.b16 %v1191, %v1190
      %v1254 = vpack.c.b16 %v1193, %v1192
      %v1255 = vpack.c.b16 %v1195, %v1194
      %v1256 = vpack.c.b16 %v1197, %v1196
      %v1257 = vpack.c.b16 %v1199, %v1198
      %v1258 = vpack.c.b16 %v1201, %v1200
      %v1259 = vpack.c.b16 %v1203, %v1202
      %v1260 = vpack.c.b16 %v1205, %v1204
      %v1261 = vpack.c.b16 %v1207, %v1206
      %v1262 = vpack.c.b16 %v1209, %v1208
      %v1263 = vpack.c.b16 %v1211, %v1210
      %v1264 = vpack.c.b16 %v1213, %v1212
      %v1265 = vpack.c.b16 %v1215, %v1214
      %v1266 = vpack.c.b16 %v1217, %v1216
      %v1267 = vpack.c.b16 %v1219, %v1218
      %v1268 = vpack.c.b16 %v1221, %v1220
      %v1269 = vpack.c.b16 %v1223, %v1222
      %v1270 = vpack.c.b16 %v1225, %v1224
      %v1271 = vpack.c.b16 %v1227, %v1226
      %v1272 = vpack.c.b16 %v1229, %v1228
      %v1273 = vpack.c.b16 %v1230, %v1230
      %vm1316 = vcmask 285696
      %v1318 = vsel %vm1316, %v1055, 0
      %vm1320 = vcmask 1040384
      %vm1321 = vcmask 1041408
      %v1322 = vsel %vm1320, 4294967295, 65535
      %v1323 = vsel %vm1321, %v1322, 0
      %v1325 = vand.u32 %v1273, %v1323
      %1327 = vmatprep.subr.bf16.mxu0 0
      %1328 = vmatpush1.bf16.msra.mxu0 %v1231
      %1329 = vmatprep.subr.bf16.mxu0 0
      %1330 = vmatpush1.bf16.msra.mxu0 %v1232
      %1331 = vmatprep.subr.bf16.mxu0 0
      %1332 = vmatpush1.bf16.msra.mxu0 %v1233
      %1333 = vmatprep.subr.bf16.mxu0 0
      %1334 = vmatpush1.bf16.msra.mxu0 %v1234
      %1335 = vmatprep.subr.bf16.mxu0 0
      %1336 = vmatpush1.bf16.msra.mxu0 %v1235
      %1337 = vmatprep.subr.bf16.mxu0 0
      %1338 = vmatpush1.bf16.msra.mxu0 %v1236
      %1339 = vmatprep.subr.bf16.mxu0 0
      %1340 = vmatpush1.bf16.msra.mxu0 %v1237
      %1341 = vmatprep.subr.bf16.mxu0 0
      %1342 = vmatpush1.bf16.msra.mxu0 %v1238
      %1343 = vmatprep.subr.bf16.mxu0 0
      %1344 = vmatpush1.bf16.msra.mxu0 %v1239
      %1345 = vmatprep.subr.bf16.mxu0 0
      %1346 = vmatpush1.bf16.msra.mxu0 %v1240
      %1347 = vmatprep.subr.bf16.mxu0 0
      %1348 = vmatpush1.bf16.msra.mxu0 %v1241
      %1349 = vmatprep.subr.bf16.mxu0 0
      %1350 = vmatpush1.bf16.msra.mxu0 %v1242
      %1351 = vmatprep.subr.bf16.mxu0 0
      %1352 = vmatpush1.bf16.msra.mxu0 %v1243
      %1353 = vmatprep.subr.bf16.mxu0 0
      %1354 = vmatpush1.bf16.msra.mxu0 %v1244
      %1355 = vmatprep.subr.bf16.mxu0 0
      %1356 = vmatpush1.bf16.msra.mxu0 %v1245
      %1357 = vmatprep.subr.bf16.mxu0 0
      %1358 = vmatpush1.bf16.msra.mxu0 %v1246
      %1359 = vmatprep.mubr.bf16.mxu0 %v1051
      %1360 = vmatmul.mubr.bf16.gmra.mrb[0].mxu0 %v1050
      %v1361 = vpop.f32.mrb[0].mxu0
      %v1362 = vadd.f32 %v861, %v1361
      %v1363 = vpop.f32.mrb[0].mxu0
      %v1364 = vpop.f32.mrb[0].mxu0
      %v1365 = vpop.f32.mrb[0].mxu0
      %1366 = vdwg.mxu0
      %1367 = vmatprep.subr.bf16.mxu0 0
      %1368 = vmatpush1.bf16.msra.mxu0 %v1247
      %1369 = vmatprep.subr.bf16.mxu0 0
      %1370 = vmatpush1.bf16.msra.mxu0 %v1248
      %1371 = vmatprep.subr.bf16.mxu0 0
      %1372 = vmatpush1.bf16.msra.mxu0 %v1249
      %1373 = vmatprep.subr.bf16.mxu0 0
      %1374 = vmatpush1.bf16.msra.mxu0 %v1250
      %1375 = vmatprep.subr.bf16.mxu0 0
      %1376 = vmatpush1.bf16.msra.mxu0 %v1251
      %1377 = vmatprep.subr.bf16.mxu0 0
      %1378 = vmatpush1.bf16.msra.mxu0 %v1252
      %1379 = vmatprep.subr.bf16.mxu0 0
      %1380 = vmatpush1.bf16.msra.mxu0 %v1253
      %1381 = vmatprep.subr.bf16.mxu0 0
      %1382 = vmatpush1.bf16.msra.mxu0 %v1254
      %1383 = vmatprep.subr.bf16.mxu0 0
      %1384 = vmatpush1.bf16.msra.mxu0 %v1255
      %1385 = vmatprep.subr.bf16.mxu0 0
      %1386 = vmatpush1.bf16.msra.mxu0 %v1256
      %1387 = vmatprep.subr.bf16.mxu0 0
      %1388 = vmatpush1.bf16.msra.mxu0 %v1257
      %1389 = vmatprep.subr.bf16.mxu0 0
      %1390 = vmatpush1.bf16.msra.mxu0 %v1258
      %1391 = vmatprep.subr.bf16.mxu0 0
      %1392 = vmatpush1.bf16.msra.mxu0 %v1259
      %1393 = vmatprep.subr.bf16.mxu0 0
      %1394 = vmatpush1.bf16.msra.mxu0 %v1260
      %1395 = vmatprep.subr.bf16.mxu0 0
      %1396 = vmatpush1.bf16.msra.mxu0 %v1261
      %1397 = vmatprep.subr.bf16.mxu0 0
      %1398 = vmatpush1.bf16.msra.mxu0 %v1262
      %1399 = vmatprep.mubr.bf16.mxu0 %v1053
      %1400 = vmatmul.mubr.bf16.gmra.mrb[0].mxu0 %v1052
      %v1401 = vpop.f32.mrb[0].mxu0
      %v1402 = vadd.f32 %v1362, %v1401
      %v1403 = vpop.f32.mrb[0].mxu0
      %v1404 = vpop.f32.mrb[0].mxu0
      %v1405 = vpop.f32.mrb[0].mxu0
      %1406 = vdwg.mxu0
      %1407 = vmatprep.subr.bf16.mxu0 0
      %1408 = vmatpush1.bf16.msra.mxu0 %v1263
      %1409 = vmatprep.subr.bf16.mxu0 0
      %1410 = vmatpush1.bf16.msra.mxu0 %v1264
      %1411 = vmatprep.subr.bf16.mxu0 0
      %1412 = vmatpush1.bf16.msra.mxu0 %v1265
      %1413 = vmatprep.subr.bf16.mxu0 0
      %1414 = vmatpush1.bf16.msra.mxu0 %v1266
      %1415 = vmatprep.subr.bf16.mxu0 0
      %1416 = vmatpush1.bf16.msra.mxu0 %v1267
      %1417 = vmatprep.subr.bf16.mxu0 0
      %1418 = vmatpush1.bf16.msra.mxu0 %v1268
      %1419 = vmatprep.subr.bf16.mxu0 0
      %1420 = vmatpush1.bf16.msra.mxu0 %v1269
      %1421 = vmatprep.subr.bf16.mxu0 0
      %1422 = vmatpush1.bf16.msra.mxu0 %v1270
      %1423 = vmatprep.subr.bf16.mxu0 0
      %1424 = vmatpush1.bf16.msra.mxu0 %v1271
      %1425 = vmatprep.subr.bf16.mxu0 0
      %1426 = vmatpush1.bf16.msra.mxu0 %v1272
      %1427 = vmatprep.subr.bf16.mxu0 0
      %1428 = vmatpush1.bf16.msra.mxu0 %v1325
      %1429 = vmatprep.subr.bf16.mxu0 0
      %1430 = vmatpush1.bf16.msra.mxu0 0
      %1431 = vmatprep.subr.bf16.mxu0 0
      %1432 = vmatpush1.bf16.msra.mxu0 0
      %1433 = vmatprep.subr.bf16.mxu0 0
      %1434 = vmatpush1.bf16.msra.mxu0 0
      %1435 = vmatprep.subr.bf16.mxu0 0
      %1436 = vmatpush1.bf16.msra.mxu0 0
      %1437 = vmatprep.subr.bf16.mxu0 0
      %1438 = vmatpush1.bf16.msra.mxu0 0
      %1439 = vmatprep.mubr.bf16.mxu0 %v1318
      %1440 = vmatmul.mubr.bf16.gmra.mrb[0].mxu0 %v1054
      %v1441 = vpop.f32.mrb[0].mxu0
      %v1442 = vadd.f32 %v1402, %v1441
      %v1443 = vpop.f32.mrb[0].mxu0
      %v1444 = vpop.f32.mrb[0].mxu0
      %v1445 = vpop.f32.mrb[0].mxu0
      %1446 = vdwg.mxu0
      %v1447 = vmax.f32 %v1442, 0.0
      %v1448 = vpack.c.bf16 %v1447, %v1447
      %v1450 = vlaneseq
      %v1451 = vshrl.u32 %v1450, 7
      %v1452 = vsub.s32 0, %v1451
      %v1453 = vrot.slane %v526, %v1452
      %v1459 = vunpack.c.l.b16 %v505
      %v1460 = vunpack.c.l.b16 %v506
      %v1461 = vunpack.c.l.b16 %v507
      %v1462 = vunpack.c.l.b16 %v508
      %v1463 = vpack.c.b16 %v1460, %v1459
      %v1464 = vpack.c.b16 %v1462, %v1461
      %vm1467 = vcmask 261120
      %v1469 = vsel %vm1467, %v1448, 0
      %1471 = vmatprep.subr.bf16.mxu0 0
      %1472 = vmatpush1.bf16.msra.mxu0 %v1463
      %1473 = vmatprep.subr.bf16.mxu0 0
      %1474 = vmatpush1.bf16.msra.mxu0 %v1464
      %1475 = vmatprep.subr.bf16.mxu0 0
      %1476 = vmatpush1.bf16.msra.mxu0 0
      %1477 = vmatprep.subr.bf16.mxu0 0
      %1478 = vmatpush1.bf16.msra.mxu0 0
      %1479 = vmatprep.subr.bf16.mxu0 0
      %1480 = vmatpush1.bf16.msra.mxu0 0
      %1481 = vmatprep.subr.bf16.mxu0 0
      %1482 = vmatpush1.bf16.msra.mxu0 0
      %1483 = vmatprep.subr.bf16.mxu0 0
      %1484 = vmatpush1.bf16.msra.mxu0 0
      %1485 = vmatprep.subr.bf16.mxu0 0
      %1486 = vmatpush1.bf16.msra.mxu0 0
      %1487 = vmatprep.subr.bf16.mxu0 0
      %1488 = vmatpush1.bf16.msra.mxu0 0
      %1489 = vmatprep.subr.bf16.mxu0 0
      %1490 = vmatpush1.bf16.msra.mxu0 0
      %1491 = vmatprep.subr.bf16.mxu0 0
      %1492 = vmatpush1.bf16.msra.mxu0 0
      %1493 = vmatprep.subr.bf16.mxu0 0
      %1494 = vmatpush1.bf16.msra.mxu0 0
      %1495 = vmatprep.subr.bf16.mxu0 0
      %1496 = vmatpush1.bf16.msra.mxu0 0
      %1497 = vmatprep.subr.bf16.mxu0 0
      %1498 = vmatpush1.bf16.msra.mxu0 0
      %1499 = vmatprep.subr.bf16.mxu0 0
      %1500 = vmatpush1.bf16.msra.mxu0 0
      %1501 = vmatprep.subr.bf16.mxu0 0
      %1502 = vmatpush1.bf16.msra.mxu0 0
      %1503 = vmatprep.mubr.bf16.mxu0 0
      %1504 = vmatmul.mubr.bf16.gmra.mrb[0].mxu0 %v1469
      %v1505 = vpop.f32.mrb[0].mxu0
      %v1506 = vadd.f32 %v1453, %v1505
      %v1507 = vpop.f32.mrb[0].mxu0
      %v1508 = vpop.f32.mrb[0].mxu0
      %v1509 = vpop.f32.mrb[0].mxu0
      %1510 = vdwg.mxu0
      %v1511 = vmax.f32 %v1506, 0.0
      %v1512 = vpack.c.bf16 %v1511, %v1511
      %v1514 = vlaneseq
      %v1515 = vshrl.u32 %v1514, 7
      %v1516 = vsub.s32 0, %v1515
      %v1517 = vrot.slane %v527, %v1516
      %v1523 = vunpack.c.l.b16 %v509
      %v1524 = vunpack.c.l.b16 %v510
      %v1525 = vunpack.c.l.b16 %v511
      %v1526 = vunpack.c.l.b16 %v512
      %v1527 = vpack.c.b16 %v1524, %v1523
      %v1528 = vpack.c.b16 %v1526, %v1525
      %v1532 = vsel %vm1467, %v1512, 0
      %1534 = vmatprep.subr.bf16.mxu0 0
      %1535 = vmatpush1.bf16.msra.mxu0 %v1527
      %1536 = vmatprep.subr.bf16.mxu0 0
      %1537 = vmatpush1.bf16.msra.mxu0 %v1528
      %1538 = vmatprep.subr.bf16.mxu0 0
      %1539 = vmatpush1.bf16.msra.mxu0 0
      %1540 = vmatprep.subr.bf16.mxu0 0
      %1541 = vmatpush1.bf16.msra.mxu0 0
      %1542 = vmatprep.subr.bf16.mxu0 0
      %1543 = vmatpush1.bf16.msra.mxu0 0
      %1544 = vmatprep.subr.bf16.mxu0 0
      %1545 = vmatpush1.bf16.msra.mxu0 0
      %1546 = vmatprep.subr.bf16.mxu0 0
      %1547 = vmatpush1.bf16.msra.mxu0 0
      %1548 = vmatprep.subr.bf16.mxu0 0
      %1549 = vmatpush1.bf16.msra.mxu0 0
      %1550 = vmatprep.subr.bf16.mxu0 0
      %1551 = vmatpush1.bf16.msra.mxu0 0
      %1552 = vmatprep.subr.bf16.mxu0 0
      %1553 = vmatpush1.bf16.msra.mxu0 0
      %1554 = vmatprep.subr.bf16.mxu0 0
      %1555 = vmatpush1.bf16.msra.mxu0 0
      %1556 = vmatprep.subr.bf16.mxu0 0
      %1557 = vmatpush1.bf16.msra.mxu0 0
      %1558 = vmatprep.subr.bf16.mxu0 0
      %1559 = vmatpush1.bf16.msra.mxu0 0
      %1560 = vmatprep.subr.bf16.mxu0 0
      %1561 = vmatpush1.bf16.msra.mxu0 0
      %1562 = vmatprep.subr.bf16.mxu0 0
      %1563 = vmatpush1.bf16.msra.mxu0 0
      %1564 = vmatprep.subr.bf16.mxu0 0
      %1565 = vmatpush1.bf16.msra.mxu0 0
      %1566 = vmatprep.mubr.bf16.mxu0 0
      %1567 = vmatmul.mubr.bf16.gmra.mrb[0].mxu0 %v1532
      %v1568 = vpop.f32.mrb[0].mxu0
      %v1569 = vadd.f32 %v1517, %v1568
      %v1570 = vpop.f32.mrb[0].mxu0
      %v1571 = vpop.f32.mrb[0].mxu0
      %v1572 = vpop.f32.mrb[0].mxu0
      %1573 = vdwg.mxu0
      %v1578 = vunpack.c.l.b16 %v513
      %v1579 = vunpack.c.l.b16 %v514
      %v1580 = vunpack.c.l.b16 %v515
      %v1581 = vunpack.c.l.b16 %v516
      %v1582 = vpack.c.b16 %v1579, %v1578
      %v1583 = vpack.c.b16 %v1581, %v1580
      %v1587 = vsel %vm1467, 0, 0
      %1589 = vmatprep.subr.bf16.mxu0 0
      %1590 = vmatpush1.bf16.msra.mxu0 %v1582
      %1591 = vmatprep.subr.bf16.mxu0 0
      %1592 = vmatpush1.bf16.msra.mxu0 %v1583
      %1593 = vmatprep.subr.bf16.mxu0 0
      %1594 = vmatpush1.bf16.msra.mxu0 0
      %1595 = vmatprep.subr.bf16.mxu0 0
      %1596 = vmatpush1.bf16.msra.mxu0 0
      %1597 = vmatprep.subr.bf16.mxu0 0
      %1598 = vmatpush1.bf16.msra.mxu0 0
      %1599 = vmatprep.subr.bf16.mxu0 0
      %1600 = vmatpush1.bf16.msra.mxu0 0
      %1601 = vmatprep.subr.bf16.mxu0 0
      %1602 = vmatpush1.bf16.msra.mxu0 0
      %1603 = vmatprep.subr.bf16.mxu0 0
      %1604 = vmatpush1.bf16.msra.mxu0 0
      %1605 = vmatprep.subr.bf16.mxu0 0
      %1606 = vmatpush1.bf16.msra.mxu0 0
      %1607 = vmatprep.subr.bf16.mxu0 0
      %1608 = vmatpush1.bf16.msra.mxu0 0
      %1609 = vmatprep.subr.bf16.mxu0 0
      %1610 = vmatpush1.bf16.msra.mxu0 0
      %1611 = vmatprep.subr.bf16.mxu0 0
      %1612 = vmatpush1.bf16.msra.mxu0 0
      %1613 = vmatprep.subr.bf16.mxu0 0
      %1614 = vmatpush1.bf16.msra.mxu0 0
      %1615 = vmatprep.subr.bf16.mxu0 0
      %1616 = vmatpush1.bf16.msra.mxu0 0
      %1617 = vmatprep.subr.bf16.mxu0 0
      %1618 = vmatpush1.bf16.msra.mxu0 0
      %1619 = vmatprep.subr.bf16.mxu0 0
      %1620 = vmatpush1.bf16.msra.mxu0 0
      %1621 = vmatprep.mubr.bf16.mxu0 0
      %1622 = vmatmul.mubr.bf16.gmra.mrb[0].mxu0 %v1587
      %v1623 = vpop.f32.mrb[0].mxu0
      %v1624 = vadd.f32 0.0, %v1623
      %v1625 = vpop.f32.mrb[0].mxu0
      %v1626 = vpop.f32.mrb[0].mxu0
      %v1627 = vpop.f32.mrb[0].mxu0
      %1628 = vdwg.mxu0
      %v1629 = vadd.f32 %v1569, %v1624
      %v1630 = vxor.u32 %v1629, 2147483648
      %v1631 = vmul.f32 %v1630, 1.442695
      %v1632 = vpow.pop %v1631
      %v1633 = vadd.f32 %v1632, 1.0
      %v1634 = vrcp.pop %v1633
      %v1635 = vmul.f32 1.0, %v1634
      %v1636 = vtanh.pop %v1629
      %v1637 = vmul.f32 %v1635, 0.0
      %1639 = vrot.lane.b32.xlu0 %v1636, 32
      %v1640 = vpop.permute.xlu0 %1639
      %v1642 = vmul.f32 %v1635, %v1640
      %1644 = vrot.lane.b32.xlu0 %v1642, 32
      %v1645 = vpop.permute.xlu0 %1644
      %v1647 = vadd.f32 %v1637, %v1645
      %v1648 = vtanh.pop %v1647
      %1650 = vrot.lane.b32.xlu0 %v1648, 32
      %v1651 = vpop.permute.xlu0 %1650
      %v1653 = vmul.f32 %v1635, %v1651
      %v1654 = vpack.c.bf16 %v1653, %v1653
      %v1656 = vlaneseq
      %v1657 = vshrl.u32 %v1656, 7
      %v1658 = vsub.s32 0, %v1657
      %v1659 = vrot.slane %v528, %v1658
      %1662 = vrot.lane.b32.xlu0 %v1654, 64
      %v1663 = vpop.permute.xlu0 %1662
      %v1668 = vunpack.c.l.b16 %v517
      %v1669 = vunpack.c.l.b16 %v518
      %v1670 = vunpack.c.l.b16 %v519
      %v1671 = vunpack.c.l.b16 %v520
      %v1672 = vpack.c.b16 %v1669, %v1668
      %v1673 = vpack.c.b16 %v1671, %v1670
      %v1677 = vsel %vm1467, %v1663, 0
      %1679 = vmatprep.subr.bf16.mxu0 0
      %1680 = vmatpush1.bf16.msra.mxu0 %v1672
      %1681 = vmatprep.subr.bf16.mxu0 0
      %1682 = vmatpush1.bf16.msra.mxu0 %v1673
      %1683 = vmatprep.subr.bf16.mxu0 0
      %1684 = vmatpush1.bf16.msra.mxu0 0
      %1685 = vmatprep.subr.bf16.mxu0 0
      %1686 = vmatpush1.bf16.msra.mxu0 0
      %1687 = vmatprep.subr.bf16.mxu0 0
      %1688 = vmatpush1.bf16.msra.mxu0 0
      %1689 = vmatprep.subr.bf16.mxu0 0
      %1690 = vmatpush1.bf16.msra.mxu0 0
      %1691 = vmatprep.subr.bf16.mxu0 0
      %1692 = vmatpush1.bf16.msra.mxu0 0
      %1693 = vmatprep.subr.bf16.mxu0 0
      %1694 = vmatpush1.bf16.msra.mxu0 0
      %1695 = vmatprep.subr.bf16.mxu0 0
      %1696 = vmatpush1.bf16.msra.mxu0 0
      %1697 = vmatprep.subr.bf16.mxu0 0
      %1698 = vmatpush1.bf16.msra.mxu0 0
      %1699 = vmatprep.subr.bf16.mxu0 0
      %1700 = vmatpush1.bf16.msra.mxu0 0
      %1701 = vmatprep.subr.bf16.mxu0 0
      %1702 = vmatpush1.bf16.msra.mxu0 0
      %1703 = vmatprep.subr.bf16.mxu0 0
      %1704 = vmatpush1.bf16.msra.mxu0 0
      %1705 = vmatprep.subr.bf16.mxu0 0
      %1706 = vmatpush1.bf16.msra.mxu0 0
      %1707 = vmatprep.subr.bf16.mxu0 0
      %1708 = vmatpush1.bf16.msra.mxu0 0
      %1709 = vmatprep.subr.bf16.mxu0 0
      %1710 = vmatpush1.bf16.msra.mxu0 0
      %1711 = vmatprep.mubr.bf16.mxu0 0
      %1712 = vmatmul.mubr.bf16.gmra.mrb[0].mxu0 %v1677
      %v1713 = vpop.f32.mrb[0].mxu0
      %v1714 = vadd.f32 %v1659, %v1713
      %v1715 = vpop.f32.mrb[0].mxu0
      %v1716 = vpop.f32.mrb[0].mxu0
      %v1717 = vpop.f32.mrb[0].mxu0
      %1718 = vdwg.mxu0
      %v1719 = vmax.f32 %v1714, 0.0
      %v1720 = vpack.c.bf16 %v1719, %v1719
      %v1722 = vlaneseq
      %v1723 = vshrl.u32 %v1722, 7
      %v1724 = vsub.s32 0, %v1723
      %v1725 = vrot.slane %v529, %v1724
      %v1731 = vunpack.c.l.b16 %v521
      %v1732 = vunpack.c.l.b16 %v522
      %v1733 = vunpack.c.l.b16 %v523
      %v1734 = vunpack.c.l.b16 %v524
      %v1735 = vpack.c.b16 %v1732, %v1731
      %v1736 = vpack.c.b16 %v1734, %v1733
      %v1740 = vsel %vm1467, %v1720, 0
      %1742 = vmatprep.subr.bf16.mxu0 0
      %1743 = vmatpush1.bf16.msra.mxu0 %v1735
      %1744 = vmatprep.subr.bf16.mxu0 0
      %1745 = vmatpush1.bf16.msra.mxu0 %v1736
      %1746 = vmatprep.subr.bf16.mxu0 0
      %1747 = vmatpush1.bf16.msra.mxu0 0
      %1748 = vmatprep.subr.bf16.mxu0 0
      %1749 = vmatpush1.bf16.msra.mxu0 0
      %1750 = vmatprep.subr.bf16.mxu0 0
      %1751 = vmatpush1.bf16.msra.mxu0 0
      %1752 = vmatprep.subr.bf16.mxu0 0
      %1753 = vmatpush1.bf16.msra.mxu0 0
      %1754 = vmatprep.subr.bf16.mxu0 0
      %1755 = vmatpush1.bf16.msra.mxu0 0
      %1756 = vmatprep.subr.bf16.mxu0 0
      %1757 = vmatpush1.bf16.msra.mxu0 0
      %1758 = vmatprep.subr.bf16.mxu0 0
      %1759 = vmatpush1.bf16.msra.mxu0 0
      %1760 = vmatprep.subr.bf16.mxu0 0
      %1761 = vmatpush1.bf16.msra.mxu0 0
      %1762 = vmatprep.subr.bf16.mxu0 0
      %1763 = vmatpush1.bf16.msra.mxu0 0
      %1764 = vmatprep.subr.bf16.mxu0 0
      %1765 = vmatpush1.bf16.msra.mxu0 0
      %1766 = vmatprep.subr.bf16.mxu0 0
      %1767 = vmatpush1.bf16.msra.mxu0 0
      %1768 = vmatprep.subr.bf16.mxu0 0
      %1769 = vmatpush1.bf16.msra.mxu0 0
      %1770 = vmatprep.subr.bf16.mxu0 0
      %1771 = vmatpush1.bf16.msra.mxu0 0
      %1772 = vmatprep.subr.bf16.mxu0 0
      %1773 = vmatpush1.bf16.msra.mxu0 0
      %1774 = vmatprep.mubr.bf16.mxu0 0
      %1775 = vmatmul.mubr.bf16.gmra.mrb[0].mxu0 %v1740
      %v1776 = vpop.f32.mrb[0].mxu0
      %v1777 = vadd.f32 %v1725, %v1776
      %v1778 = vpop.f32.mrb[0].mxu0
      %v1779 = vpop.f32.mrb[0].mxu0
      %v1780 = vpop.f32.mrb[0].mxu0
      %1781 = vdwg.mxu0
      %s1782 = scalar_lea.vmem %s413, 1
      %v1783 = vld [vmem:[%s1782] ss:$8 sm:$0xf]
      %v1784 = vld [vmem:[%s1782] ss:$8 sm:$0x30]
      %v1785 = vor.u32 %v1783, %v1784
      %s1786 = scalar_lea.vmem %s413, 49
      %v1787 = vld [vmem:[%s1786] ss:$8 sm:$0xf]
      %v1788 = vld [vmem:[%s1786] ss:$8 sm:$0x30]
      %v1789 = vor.u32 %v1787, %v1788
      %s1790 = scalar_lea.vmem %s413, 97
      %v1791 = vld [vmem:[%s1790] ss:$8 sm:$0xf]
      %v1792 = vld [vmem:[%s1790] ss:$8 sm:$0x30]
      %v1793 = vor.u32 %v1791, %v1792
      %s1794 = scalar_lea.vmem %s413, 145
      %v1795 = vld [vmem:[%s1794] ss:$8 sm:$0xf]
      %v1796 = vld [vmem:[%s1794] ss:$8 sm:$0x30]
      %v1797 = vor.u32 %v1795, %v1796
      %s1798 = scalar_lea.vmem %s413, 193
      %v1799 = vld [vmem:[%s1798] ss:$8 sm:$0xf]
      %v1800 = vld [vmem:[%s1798] ss:$8 sm:$0x30]
      %v1801 = vor.u32 %v1799, %v1800
      %s1802 = scalar_lea.vmem %s413, 241
      %v1803 = vld [vmem:[%s1802] ss:$8 sm:$0xf]
      %v1804 = vld [vmem:[%s1802] ss:$8 sm:$0x30]
      %v1805 = vor.u32 %v1803, %v1804
      %s1806 = scalar_lea.vmem %s413, 289
      %v1807 = vld [vmem:[%s1806] ss:$8 sm:$0xf]
      %v1808 = vld [vmem:[%s1806] ss:$8 sm:$0x30]
      %v1809 = vor.u32 %v1807, %v1808
      %s1810 = scalar_lea.vmem %s413, 337
      %v1811 = vld [vmem:[%s1810] ss:$8 sm:$0xf]
      %v1812 = vld [vmem:[%s1810] ss:$8 sm:$0x30]
      %v1813 = vor.u32 %v1811, %v1812
      %v1822 = vlaneseq
      %v1823 = vshrl.u32 %v1822, 7
      %v1824 = vsub.s32 0, %v1823
      %v1825 = vrot.slane %v1785, %v1824
      %v1826 = vlaneseq
      %v1827 = vshrl.u32 %v1826, 7
      %v1828 = vsub.s32 1, %v1827
      %v1829 = vrot.slane %v1785, %v1828
      %v1830 = vlaneseq
      %v1831 = vshrl.u32 %v1830, 7
      %v1832 = vsub.s32 2, %v1831
      %v1833 = vrot.slane %v1785, %v1832
      %v1834 = vlaneseq
      %v1835 = vshrl.u32 %v1834, 7
      %v1836 = vsub.s32 3, %v1835
      %v1837 = vrot.slane %v1785, %v1836
      %v1838 = vlaneseq
      %v1839 = vshrl.u32 %v1838, 7
      %v1840 = vsub.s32 4, %v1839
      %v1841 = vrot.slane %v1785, %v1840
      %v1842 = vlaneseq
      %v1843 = vshrl.u32 %v1842, 7
      %v1844 = vsub.s32 5, %v1843
      %v1845 = vrot.slane %v1785, %v1844
      %v1846 = vlaneseq
      %v1847 = vshrl.u32 %v1846, 7
      %v1848 = vsub.s32 0, %v1847
      %v1849 = vrot.slane %v1789, %v1848
      %v1850 = vlaneseq
      %v1851 = vshrl.u32 %v1850, 7
      %v1852 = vsub.s32 1, %v1851
      %v1853 = vrot.slane %v1789, %v1852
      %v1854 = vlaneseq
      %v1855 = vshrl.u32 %v1854, 7
      %v1856 = vsub.s32 2, %v1855
      %v1857 = vrot.slane %v1789, %v1856
      %v1858 = vlaneseq
      %v1859 = vshrl.u32 %v1858, 7
      %v1860 = vsub.s32 3, %v1859
      %v1861 = vrot.slane %v1789, %v1860
      %v1862 = vlaneseq
      %v1863 = vshrl.u32 %v1862, 7
      %v1864 = vsub.s32 4, %v1863
      %v1865 = vrot.slane %v1789, %v1864
      %v1866 = vlaneseq
      %v1867 = vshrl.u32 %v1866, 7
      %v1868 = vsub.s32 5, %v1867
      %v1869 = vrot.slane %v1789, %v1868
      %v1870 = vlaneseq
      %v1871 = vshrl.u32 %v1870, 7
      %v1872 = vsub.s32 0, %v1871
      %v1873 = vrot.slane %v1793, %v1872
      %v1874 = vlaneseq
      %v1875 = vshrl.u32 %v1874, 7
      %v1876 = vsub.s32 1, %v1875
      %v1877 = vrot.slane %v1793, %v1876
      %v1878 = vlaneseq
      %v1879 = vshrl.u32 %v1878, 7
      %v1880 = vsub.s32 2, %v1879
      %v1881 = vrot.slane %v1793, %v1880
      %v1882 = vlaneseq
      %v1883 = vshrl.u32 %v1882, 7
      %v1884 = vsub.s32 3, %v1883
      %v1885 = vrot.slane %v1793, %v1884
      %v1886 = vlaneseq
      %v1887 = vshrl.u32 %v1886, 7
      %v1888 = vsub.s32 4, %v1887
      %v1889 = vrot.slane %v1793, %v1888
      %v1890 = vlaneseq
      %v1891 = vshrl.u32 %v1890, 7
      %v1892 = vsub.s32 5, %v1891
      %v1893 = vrot.slane %v1793, %v1892
      %v1894 = vlaneseq
      %v1895 = vshrl.u32 %v1894, 7
      %v1896 = vsub.s32 0, %v1895
      %v1897 = vrot.slane %v1797, %v1896
      %v1898 = vlaneseq
      %v1899 = vshrl.u32 %v1898, 7
      %v1900 = vsub.s32 1, %v1899
      %v1901 = vrot.slane %v1797, %v1900
      %v1902 = vlaneseq
      %v1903 = vshrl.u32 %v1902, 7
      %v1904 = vsub.s32 2, %v1903
      %v1905 = vrot.slane %v1797, %v1904
      %v1906 = vlaneseq
      %v1907 = vshrl.u32 %v1906, 7
      %v1908 = vsub.s32 3, %v1907
      %v1909 = vrot.slane %v1797, %v1908
      %v1910 = vlaneseq
      %v1911 = vshrl.u32 %v1910, 7
      %v1912 = vsub.s32 4, %v1911
      %v1913 = vrot.slane %v1797, %v1912
      %v1914 = vlaneseq
      %v1915 = vshrl.u32 %v1914, 7
      %v1916 = vsub.s32 5, %v1915
      %v1917 = vrot.slane %v1797, %v1916
      %v1918 = vlaneseq
      %v1919 = vshrl.u32 %v1918, 7
      %v1920 = vsub.s32 0, %v1919
      %v1921 = vrot.slane %v1801, %v1920
      %v1922 = vlaneseq
      %v1923 = vshrl.u32 %v1922, 7
      %v1924 = vsub.s32 1, %v1923
      %v1925 = vrot.slane %v1801, %v1924
      %v1926 = vlaneseq
      %v1927 = vshrl.u32 %v1926, 7
      %v1928 = vsub.s32 2, %v1927
      %v1929 = vrot.slane %v1801, %v1928
      %v1930 = vlaneseq
      %v1931 = vshrl.u32 %v1930, 7
      %v1932 = vsub.s32 3, %v1931
      %v1933 = vrot.slane %v1801, %v1932
      %v1934 = vlaneseq
      %v1935 = vshrl.u32 %v1934, 7
      %v1936 = vsub.s32 4, %v1935
      %v1937 = vrot.slane %v1801, %v1936
      %v1938 = vlaneseq
      %v1939 = vshrl.u32 %v1938, 7
      %v1940 = vsub.s32 5, %v1939
      %v1941 = vrot.slane %v1801, %v1940
      %v1942 = vlaneseq
      %v1943 = vshrl.u32 %v1942, 7
      %v1944 = vsub.s32 0, %v1943
      %v1945 = vrot.slane %v1805, %v1944
      %v1946 = vlaneseq
      %v1947 = vshrl.u32 %v1946, 7
      %v1948 = vsub.s32 1, %v1947
      %v1949 = vrot.slane %v1805, %v1948
      %v1950 = vlaneseq
      %v1951 = vshrl.u32 %v1950, 7
      %v1952 = vsub.s32 2, %v1951
      %v1953 = vrot.slane %v1805, %v1952
      %v1954 = vlaneseq
      %v1955 = vshrl.u32 %v1954, 7
      %v1956 = vsub.s32 3, %v1955
      %v1957 = vrot.slane %v1805, %v1956
      %v1958 = vlaneseq
      %v1959 = vshrl.u32 %v1958, 7
      %v1960 = vsub.s32 4, %v1959
      %v1961 = vrot.slane %v1805, %v1960
      %v1962 = vlaneseq
      %v1963 = vshrl.u32 %v1962, 7
      %v1964 = vsub.s32 5, %v1963
      %v1965 = vrot.slane %v1805, %v1964
      %v1966 = vlaneseq
      %v1967 = vshrl.u32 %v1966, 7
      %v1968 = vsub.s32 0, %v1967
      %v1969 = vrot.slane %v1809, %v1968
      %v1970 = vlaneseq
      %v1971 = vshrl.u32 %v1970, 7
      %v1972 = vsub.s32 1, %v1971
      %v1973 = vrot.slane %v1809, %v1972
      %v1974 = vlaneseq
      %v1975 = vshrl.u32 %v1974, 7
      %v1976 = vsub.s32 2, %v1975
      %v1977 = vrot.slane %v1809, %v1976
      %v1978 = vlaneseq
      %v1979 = vshrl.u32 %v1978, 7
      %v1980 = vsub.s32 3, %v1979
      %v1981 = vrot.slane %v1809, %v1980
      %v1982 = vlaneseq
      %v1983 = vshrl.u32 %v1982, 7
      %v1984 = vsub.s32 4, %v1983
      %v1985 = vrot.slane %v1809, %v1984
      %v1986 = vlaneseq
      %v1987 = vshrl.u32 %v1986, 7
      %v1988 = vsub.s32 5, %v1987
      %v1989 = vrot.slane %v1809, %v1988
      %v1990 = vlaneseq
      %v1991 = vshrl.u32 %v1990, 7
      %v1992 = vsub.s32 0, %v1991
      %v1993 = vrot.slane %v1813, %v1992
      %v1994 = vlaneseq
      %v1995 = vshrl.u32 %v1994, 7
      %v1996 = vsub.s32 1, %v1995
      %v1997 = vrot.slane %v1813, %v1996
      %v1998 = vlaneseq
      %v1999 = vshrl.u32 %v1998, 7
      %v2000 = vsub.s32 2, %v1999
      %v2001 = vrot.slane %v1813, %v2000
      %v2002 = vlaneseq
      %v2003 = vshrl.u32 %v2002, 7
      %v2004 = vsub.s32 3, %v2003
      %v2005 = vrot.slane %v1813, %v2004
      %v2006 = vlaneseq
      %v2007 = vshrl.u32 %v2006, 7
      %v2008 = vsub.s32 4, %v2007
      %v2009 = vrot.slane %v1813, %v2008
      %v2010 = vlaneseq
      %v2011 = vshrl.u32 %v2010, 7
      %v2012 = vsub.s32 5, %v2011
      %v2013 = vrot.slane %v1813, %v2012
      %v2062 = vpack.c.bf16 %v1825, %v1825
      %v2063 = vpack.c.bf16 %v1829, %v1829
      %v2064 = vpack.c.bf16 %v1833, %v1833
      %v2065 = vpack.c.bf16 %v1837, %v1837
      %v2066 = vpack.c.bf16 %v1841, %v1841
      %v2067 = vpack.c.bf16 %v1845, %v1845
      %v2068 = vpack.c.bf16 %v1849, %v1849
      %v2069 = vpack.c.bf16 %v1853, %v1853
      %v2070 = vpack.c.bf16 %v1857, %v1857
      %v2071 = vpack.c.bf16 %v1861, %v1861
      %v2072 = vpack.c.bf16 %v1865, %v1865
      %v2073 = vpack.c.bf16 %v1869, %v1869
      %v2074 = vpack.c.bf16 %v1873, %v1873
      %v2075 = vpack.c.bf16 %v1877, %v1877
      %v2076 = vpack.c.bf16 %v1881, %v1881
      %v2077 = vpack.c.bf16 %v1885, %v1885
      %v2078 = vpack.c.bf16 %v1889, %v1889
      %v2079 = vpack.c.bf16 %v1893, %v1893
      %v2080 = vpack.c.bf16 %v1897, %v1897
      %v2081 = vpack.c.bf16 %v1901, %v1901
      %v2082 = vpack.c.bf16 %v1905, %v1905
      %v2083 = vpack.c.bf16 %v1909, %v1909
      %v2084 = vpack.c.bf16 %v1913, %v1913
      %v2085 = vpack.c.bf16 %v1917, %v1917
      %v2086 = vpack.c.bf16 %v1921, %v1921
      %v2087 = vpack.c.bf16 %v1925, %v1925
      %v2088 = vpack.c.bf16 %v1929, %v1929
      %v2089 = vpack.c.bf16 %v1933, %v1933
      %v2090 = vpack.c.bf16 %v1937, %v1937
      %v2091 = vpack.c.bf16 %v1941, %v1941
      %v2092 = vpack.c.bf16 %v1945, %v1945
      %v2093 = vpack.c.bf16 %v1949, %v1949
      %v2094 = vpack.c.bf16 %v1953, %v1953
      %v2095 = vpack.c.bf16 %v1957, %v1957
      %v2096 = vpack.c.bf16 %v1961, %v1961
      %v2097 = vpack.c.bf16 %v1965, %v1965
      %v2098 = vpack.c.bf16 %v1969, %v1969
      %v2099 = vpack.c.bf16 %v1973, %v1973
      %v2100 = vpack.c.bf16 %v1977, %v1977
      %v2101 = vpack.c.bf16 %v1981, %v1981
      %v2102 = vpack.c.bf16 %v1985, %v1985
      %v2103 = vpack.c.bf16 %v1989, %v1989
      %v2104 = vpack.c.bf16 %v1993, %v1993
      %v2105 = vpack.c.bf16 %v1997, %v1997
      %v2106 = vpack.c.bf16 %v2001, %v2001
      %v2107 = vpack.c.bf16 %v2005, %v2005
      %v2108 = vpack.c.bf16 %v2009, %v2009
      %v2109 = vpack.c.bf16 %v2013, %v2013
      %v2158 = vunpack.c.l.b16 %v2062
      %v2159 = vunpack.c.l.b16 %v2063
      %v2160 = vunpack.c.l.b16 %v2064
      %v2161 = vunpack.c.l.b16 %v2065
      %v2162 = vunpack.c.l.b16 %v2066
      %v2163 = vunpack.c.l.b16 %v2067
      %v2164 = vunpack.c.l.b16 %v2068
      %v2165 = vunpack.c.l.b16 %v2069
      %v2166 = vunpack.c.l.b16 %v2070
      %v2167 = vunpack.c.l.b16 %v2071
      %v2168 = vunpack.c.l.b16 %v2072
      %v2169 = vunpack.c.l.b16 %v2073
      %v2170 = vunpack.c.l.b16 %v2074
      %v2171 = vunpack.c.l.b16 %v2075
      %v2172 = vunpack.c.l.b16 %v2076
      %v2173 = vunpack.c.l.b16 %v2077
      %v2174 = vunpack.c.l.b16 %v2078
      %v2175 = vunpack.c.l.b16 %v2079
      %v2176 = vunpack.c.l.b16 %v2080
      %v2177 = vunpack.c.l.b16 %v2081
      %v2178 = vunpack.c.l.b16 %v2082
      %v2179 = vunpack.c.l.b16 %v2083
      %v2180 = vunpack.c.l.b16 %v2084
      %v2181 = vunpack.c.l.b16 %v2085
      %v2182 = vunpack.c.l.b16 %v2086
      %v2183 = vunpack.c.l.b16 %v2087
      %v2184 = vunpack.c.l.b16 %v2088
      %v2185 = vunpack.c.l.b16 %v2089
      %v2186 = vunpack.c.l.b16 %v2090
      %v2187 = vunpack.c.l.b16 %v2091
      %v2188 = vunpack.c.l.b16 %v2092
      %v2189 = vunpack.c.l.b16 %v2093
      %v2190 = vunpack.c.l.b16 %v2094
      %v2191 = vunpack.c.l.b16 %v2095
      %v2192 = vunpack.c.l.b16 %v2096
      %v2193 = vunpack.c.l.b16 %v2097
      %v2194 = vunpack.c.l.b16 %v2098
      %v2195 = vunpack.c.l.b16 %v2099
      %v2196 = vunpack.c.l.b16 %v2100
      %v2197 = vunpack.c.l.b16 %v2101
      %v2198 = vunpack.c.l.b16 %v2102
      %v2199 = vunpack.c.l.b16 %v2103
      %v2200 = vunpack.c.l.b16 %v2104
      %v2201 = vunpack.c.l.b16 %v2105
      %v2202 = vunpack.c.l.b16 %v2106
      %v2203 = vunpack.c.l.b16 %v2107
      %v2204 = vunpack.c.l.b16 %v2108
      %v2205 = vunpack.c.l.b16 %v2109
      %v2206 = vrot.slane %v2164, 7
      %v2207 = vsel %vm960, %v2206, %v2158
      %v2208 = vrot.slane %v2170, 6
      %v2209 = vsel %vm963, %v2208, %v2207
      %v2210 = vrot.slane %v2176, 5
      %v2211 = vsel %vm966, %v2210, %v2209
      %v2212 = vrot.slane %v2182, 4
      %v2213 = vsel %vm969, %v2212, %v2211
      %v2214 = vrot.slane %v2188, 3
      %v2215 = vsel %vm972, %v2214, %v2213
      %v2216 = vrot.slane %v2194, 2
      %v2217 = vsel %vm975, %v2216, %v2215
      %v2218 = vrot.slane %v2200, 1
      %v2219 = vsel %vm978, %v2218, %v2217
      %v2220 = vrot.slane %v2165, 7
      %v2221 = vsel %vm960, %v2220, %v2159
      %v2222 = vrot.slane %v2171, 6
      %v2223 = vsel %vm963, %v2222, %v2221
      %v2224 = vrot.slane %v2177, 5
      %v2225 = vsel %vm966, %v2224, %v2223
      %v2226 = vrot.slane %v2183, 4
      %v2227 = vsel %vm969, %v2226, %v2225
      %v2228 = vrot.slane %v2189, 3
      %v2229 = vsel %vm972, %v2228, %v2227
      %v2230 = vrot.slane %v2195, 2
      %v2231 = vsel %vm975, %v2230, %v2229
      %v2232 = vrot.slane %v2201, 1
      %v2233 = vsel %vm978, %v2232, %v2231
      %v2234 = vrot.slane %v2166, 7
      %v2235 = vsel %vm960, %v2234, %v2160
      %v2236 = vrot.slane %v2172, 6
      %v2237 = vsel %vm963, %v2236, %v2235
      %v2238 = vrot.slane %v2178, 5
      %v2239 = vsel %vm966, %v2238, %v2237
      %v2240 = vrot.slane %v2184, 4
      %v2241 = vsel %vm969, %v2240, %v2239
      %v2242 = vrot.slane %v2190, 3
      %v2243 = vsel %vm972, %v2242, %v2241
      %v2244 = vrot.slane %v2196, 2
      %v2245 = vsel %vm975, %v2244, %v2243
      %v2246 = vrot.slane %v2202, 1
      %v2247 = vsel %vm978, %v2246, %v2245
      %v2248 = vrot.slane %v2167, 7
      %v2249 = vsel %vm960, %v2248, %v2161
      %v2250 = vrot.slane %v2173, 6
      %v2251 = vsel %vm963, %v2250, %v2249
      %v2252 = vrot.slane %v2179, 5
      %v2253 = vsel %vm966, %v2252, %v2251
      %v2254 = vrot.slane %v2185, 4
      %v2255 = vsel %vm969, %v2254, %v2253
      %v2256 = vrot.slane %v2191, 3
      %v2257 = vsel %vm972, %v2256, %v2255
      %v2258 = vrot.slane %v2197, 2
      %v2259 = vsel %vm975, %v2258, %v2257
      %v2260 = vrot.slane %v2203, 1
      %v2261 = vsel %vm978, %v2260, %v2259
      %v2262 = vrot.slane %v2168, 7
      %v2263 = vsel %vm960, %v2262, %v2162
      %v2264 = vrot.slane %v2174, 6
      %v2265 = vsel %vm963, %v2264, %v2263
      %v2266 = vrot.slane %v2180, 5
      %v2267 = vsel %vm966, %v2266, %v2265
      %v2268 = vrot.slane %v2186, 4
      %v2269 = vsel %vm969, %v2268, %v2267
      %v2270 = vrot.slane %v2192, 3
      %v2271 = vsel %vm972, %v2270, %v2269
      %v2272 = vrot.slane %v2198, 2
      %v2273 = vsel %vm975, %v2272, %v2271
      %v2274 = vrot.slane %v2204, 1
      %v2275 = vsel %vm978, %v2274, %v2273
      %v2276 = vrot.slane %v2169, 7
      %v2277 = vsel %vm960, %v2276, %v2163
      %v2278 = vrot.slane %v2175, 6
      %v2279 = vsel %vm963, %v2278, %v2277
      %v2280 = vrot.slane %v2181, 5
      %v2281 = vsel %vm966, %v2280, %v2279
      %v2282 = vrot.slane %v2187, 4
      %v2283 = vsel %vm969, %v2282, %v2281
      %v2284 = vrot.slane %v2193, 3
      %v2285 = vsel %vm972, %v2284, %v2283
      %v2286 = vrot.slane %v2199, 2
      %v2287 = vsel %vm975, %v2286, %v2285
      %v2288 = vrot.slane %v2205, 1
      %v2289 = vsel %vm978, %v2288, %v2287
      %v2290 = vpack.c.b16 %v2219, %v2219
      %v2291 = vpack.c.b16 %v2233, %v2233
      %v2292 = vpack.c.b16 %v2247, %v2247
      %v2293 = vpack.c.b16 %v2261, %v2261
      %v2294 = vpack.c.b16 %v2275, %v2275
      %v2295 = vpack.c.b16 %v2289, %v2289
      %v2302 = vsel %vm1316, %v2295, 0
      %2304 = vmatprep.subr.bf16.mxu0 0
      %2305 = vmatpush1.bf16.msra.mxu0 %v1231
      %2306 = vmatprep.subr.bf16.mxu0 0
      %2307 = vmatpush1.bf16.msra.mxu0 %v1232
      %2308 = vmatprep.subr.bf16.mxu0 0
      %2309 = vmatpush1.bf16.msra.mxu0 %v1233
      %2310 = vmatprep.subr.bf16.mxu0 0
      %2311 = vmatpush1.bf16.msra.mxu0 %v1234
      %2312 = vmatprep.subr.bf16.mxu0 0
      %2313 = vmatpush1.bf16.msra.mxu0 %v1235
      %2314 = vmatprep.subr.bf16.mxu0 0
      %2315 = vmatpush1.bf16.msra.mxu0 %v1236
      %2316 = vmatprep.subr.bf16.mxu0 0
      %2317 = vmatpush1.bf16.msra.mxu0 %v1237
      %2318 = vmatprep.subr.bf16.mxu0 0
      %2319 = vmatpush1.bf16.msra.mxu0 %v1238
      %2320 = vmatprep.subr.bf16.mxu0 0
      %2321 = vmatpush1.bf16.msra.mxu0 %v1239
      %2322 = vmatprep.subr.bf16.mxu0 0
      %2323 = vmatpush1.bf16.msra.mxu0 %v1240
      %2324 = vmatprep.subr.bf16.mxu0 0
      %2325 = vmatpush1.bf16.msra.mxu0 %v1241
      %2326 = vmatprep.subr.bf16.mxu0 0
      %2327 = vmatpush1.bf16.msra.mxu0 %v1242
      %2328 = vmatprep.subr.bf16.mxu0 0
      %2329 = vmatpush1.bf16.msra.mxu0 %v1243
      %2330 = vmatprep.subr.bf16.mxu0 0
      %2331 = vmatpush1.bf16.msra.mxu0 %v1244
      %2332 = vmatprep.subr.bf16.mxu0 0
      %2333 = vmatpush1.bf16.msra.mxu0 %v1245
      %2334 = vmatprep.subr.bf16.mxu0 0
      %2335 = vmatpush1.bf16.msra.mxu0 %v1246
      %2336 = vmatprep.mubr.bf16.mxu0 %v2291
      %2337 = vmatmul.mubr.bf16.gmra.mrb[0].mxu0 %v2290
      %v2338 = vpop.f32.mrb[0].mxu0
      %v2339 = vadd.f32 %v861, %v2338
      %v2340 = vpop.f32.mrb[0].mxu0
      %v2341 = vpop.f32.mrb[0].mxu0
      %v2342 = vpop.f32.mrb[0].mxu0
      %2343 = vdwg.mxu0
      %2344 = vmatprep.subr.bf16.mxu0 0
      %2345 = vmatpush1.bf16.msra.mxu0 %v1247
      %2346 = vmatprep.subr.bf16.mxu0 0
      %2347 = vmatpush1.bf16.msra.mxu0 %v1248
      %2348 = vmatprep.subr.bf16.mxu0 0
      %2349 = vmatpush1.bf16.msra.mxu0 %v1249
      %2350 = vmatprep.subr.bf16.mxu0 0
      %2351 = vmatpush1.bf16.msra.mxu0 %v1250
      %2352 = vmatprep.subr.bf16.mxu0 0
      %2353 = vmatpush1.bf16.msra.mxu0 %v1251
      %2354 = vmatprep.subr.bf16.mxu0 0
      %2355 = vmatpush1.bf16.msra.mxu0 %v1252
      %2356 = vmatprep.subr.bf16.mxu0 0
      %2357 = vmatpush1.bf16.msra.mxu0 %v1253
      %2358 = vmatprep.subr.bf16.mxu0 0
      %2359 = vmatpush1.bf16.msra.mxu0 %v1254
      %2360 = vmatprep.subr.bf16.mxu0 0
      %2361 = vmatpush1.bf16.msra.mxu0 %v1255
      %2362 = vmatprep.subr.bf16.mxu0 0
      %2363 = vmatpush1.bf16.msra.mxu0 %v1256
      %2364 = vmatprep.subr.bf16.mxu0 0
      %2365 = vmatpush1.bf16.msra.mxu0 %v1257
      %2366 = vmatprep.subr.bf16.mxu0 0
      %2367 = vmatpush1.bf16.msra.mxu0 %v1258
      %2368 = vmatprep.subr.bf16.mxu0 0
      %2369 = vmatpush1.bf16.msra.mxu0 %v1259
      %2370 = vmatprep.subr.bf16.mxu0 0
      %2371 = vmatpush1.bf16.msra.mxu0 %v1260
      %2372 = vmatprep.subr.bf16.mxu0 0
      %2373 = vmatpush1.bf16.msra.mxu0 %v1261
      %2374 = vmatprep.subr.bf16.mxu0 0
      %2375 = vmatpush1.bf16.msra.mxu0 %v1262
      %2376 = vmatprep.mubr.bf16.mxu0 %v2293
      %2377 = vmatmul.mubr.bf16.gmra.mrb[0].mxu0 %v2292
      %v2378 = vpop.f32.mrb[0].mxu0
      %v2379 = vadd.f32 %v2339, %v2378
      %v2380 = vpop.f32.mrb[0].mxu0
      %v2381 = vpop.f32.mrb[0].mxu0
      %v2382 = vpop.f32.mrb[0].mxu0
      %2383 = vdwg.mxu0
      %2384 = vmatprep.subr.bf16.mxu0 0
      %2385 = vmatpush1.bf16.msra.mxu0 %v1263
      %2386 = vmatprep.subr.bf16.mxu0 0
      %2387 = vmatpush1.bf16.msra.mxu0 %v1264
      %2388 = vmatprep.subr.bf16.mxu0 0
      %2389 = vmatpush1.bf16.msra.mxu0 %v1265
      %2390 = vmatprep.subr.bf16.mxu0 0
      %2391 = vmatpush1.bf16.msra.mxu0 %v1266
      %2392 = vmatprep.subr.bf16.mxu0 0
      %2393 = vmatpush1.bf16.msra.mxu0 %v1267
      %2394 = vmatprep.subr.bf16.mxu0 0
      %2395 = vmatpush1.bf16.msra.mxu0 %v1268
      %2396 = vmatprep.subr.bf16.mxu0 0
      %2397 = vmatpush1.bf16.msra.mxu0 %v1269
      %2398 = vmatprep.subr.bf16.mxu0 0
      %2399 = vmatpush1.bf16.msra.mxu0 %v1270
      %2400 = vmatprep.subr.bf16.mxu0 0
      %2401 = vmatpush1.bf16.msra.mxu0 %v1271
      %2402 = vmatprep.subr.bf16.mxu0 0
      %2403 = vmatpush1.bf16.msra.mxu0 %v1272
      %2404 = vmatprep.subr.bf16.mxu0 0
      %2405 = vmatpush1.bf16.msra.mxu0 %v1325
      %2406 = vmatprep.subr.bf16.mxu0 0
      %2407 = vmatpush1.bf16.msra.mxu0 0
      %2408 = vmatprep.subr.bf16.mxu0 0
      %2409 = vmatpush1.bf16.msra.mxu0 0
      %2410 = vmatprep.subr.bf16.mxu0 0
      %2411 = vmatpush1.bf16.msra.mxu0 0
      %2412 = vmatprep.subr.bf16.mxu0 0
      %2413 = vmatpush1.bf16.msra.mxu0 0
      %2414 = vmatprep.subr.bf16.mxu0 0
      %2415 = vmatpush1.bf16.msra.mxu0 0
      %2416 = vmatprep.mubr.bf16.mxu0 %v2302
      %2417 = vmatmul.mubr.bf16.gmra.mrb[0].mxu0 %v2294
      %v2418 = vpop.f32.mrb[0].mxu0
      %v2419 = vadd.f32 %v2379, %v2418
      %v2420 = vpop.f32.mrb[0].mxu0
      %v2421 = vpop.f32.mrb[0].mxu0
      %v2422 = vpop.f32.mrb[0].mxu0
      %2423 = vdwg.mxu0
      %v2424 = vmax.f32 %v2419, 0.0
      %v2425 = vpack.c.bf16 %v2424, %v2424
      %v2427 = vsel %vm1467, %v2425, 0
      %2429 = vmatprep.subr.bf16.mxu0 0
      %2430 = vmatpush1.bf16.msra.mxu0 %v1463
      %2431 = vmatprep.subr.bf16.mxu0 0
      %2432 = vmatpush1.bf16.msra.mxu0 %v1464
      %2433 = vmatprep.subr.bf16.mxu0 0
      %2434 = vmatpush1.bf16.msra.mxu0 0
      %2435 = vmatprep.subr.bf16.mxu0 0
      %2436 = vmatpush1.bf16.msra.mxu0 0
      %2437 = vmatprep.subr.bf16.mxu0 0
      %2438 = vmatpush1.bf16.msra.mxu0 0
      %2439 = vmatprep.subr.bf16.mxu0 0
      %2440 = vmatpush1.bf16.msra.mxu0 0
      %2441 = vmatprep.subr.bf16.mxu0 0
      %2442 = vmatpush1.bf16.msra.mxu0 0
      %2443 = vmatprep.subr.bf16.mxu0 0
      %2444 = vmatpush1.bf16.msra.mxu0 0
      %2445 = vmatprep.subr.bf16.mxu0 0
      %2446 = vmatpush1.bf16.msra.mxu0 0
      %2447 = vmatprep.subr.bf16.mxu0 0
      %2448 = vmatpush1.bf16.msra.mxu0 0
      %2449 = vmatprep.subr.bf16.mxu0 0
      %2450 = vmatpush1.bf16.msra.mxu0 0
      %2451 = vmatprep.subr.bf16.mxu0 0
      %2452 = vmatpush1.bf16.msra.mxu0 0
      %2453 = vmatprep.subr.bf16.mxu0 0
      %2454 = vmatpush1.bf16.msra.mxu0 0
      %2455 = vmatprep.subr.bf16.mxu0 0
      %2456 = vmatpush1.bf16.msra.mxu0 0
      %2457 = vmatprep.subr.bf16.mxu0 0
      %2458 = vmatpush1.bf16.msra.mxu0 0
      %2459 = vmatprep.subr.bf16.mxu0 0
      %2460 = vmatpush1.bf16.msra.mxu0 0
      %2461 = vmatprep.mubr.bf16.mxu0 0
      %2462 = vmatmul.mubr.bf16.gmra.mrb[0].mxu0 %v2427
      %v2463 = vpop.f32.mrb[0].mxu0
      %v2464 = vadd.f32 %v1453, %v2463
      %v2465 = vpop.f32.mrb[0].mxu0
      %v2466 = vpop.f32.mrb[0].mxu0
      %v2467 = vpop.f32.mrb[0].mxu0
      %2468 = vdwg.mxu0
      %v2469 = vmax.f32 %v2464, 0.0
      %v2470 = vpack.c.bf16 %v2469, %v2469
      %v2472 = vsel %vm1467, %v2470, 0
      %2474 = vmatprep.subr.bf16.mxu0 0
      %2475 = vmatpush1.bf16.msra.mxu0 %v1527
      %2476 = vmatprep.subr.bf16.mxu0 0
      %2477 = vmatpush1.bf16.msra.mxu0 %v1528
      %2478 = vmatprep.subr.bf16.mxu0 0
      %2479 = vmatpush1.bf16.msra.mxu0 0
      %2480 = vmatprep.subr.bf16.mxu0 0
      %2481 = vmatpush1.bf16.msra.mxu0 0
      %2482 = vmatprep.subr.bf16.mxu0 0
      %2483 = vmatpush1.bf16.msra.mxu0 0
      %2484 = vmatprep.subr.bf16.mxu0 0
      %2485 = vmatpush1.bf16.msra.mxu0 0
      %2486 = vmatprep.subr.bf16.mxu0 0
      %2487 = vmatpush1.bf16.msra.mxu0 0
      %2488 = vmatprep.subr.bf16.mxu0 0
      %2489 = vmatpush1.bf16.msra.mxu0 0
      %2490 = vmatprep.subr.bf16.mxu0 0
      %2491 = vmatpush1.bf16.msra.mxu0 0
      %2492 = vmatprep.subr.bf16.mxu0 0
      %2493 = vmatpush1.bf16.msra.mxu0 0
      %2494 = vmatprep.subr.bf16.mxu0 0
      %2495 = vmatpush1.bf16.msra.mxu0 0
      %2496 = vmatprep.subr.bf16.mxu0 0
      %2497 = vmatpush1.bf16.msra.mxu0 0
      %2498 = vmatprep.subr.bf16.mxu0 0
      %2499 = vmatpush1.bf16.msra.mxu0 0
      %2500 = vmatprep.subr.bf16.mxu0 0
      %2501 = vmatpush1.bf16.msra.mxu0 0
      %2502 = vmatprep.subr.bf16.mxu0 0
      %2503 = vmatpush1.bf16.msra.mxu0 0
      %2504 = vmatprep.subr.bf16.mxu0 0
      %2505 = vmatpush1.bf16.msra.mxu0 0
      %2506 = vmatprep.mubr.bf16.mxu0 0
      %2507 = vmatmul.mubr.bf16.gmra.mrb[0].mxu0 %v2472
      %v2508 = vpop.f32.mrb[0].mxu0
      %v2509 = vadd.f32 %v1517, %v2508
      %v2510 = vpop.f32.mrb[0].mxu0
      %v2511 = vpop.f32.mrb[0].mxu0
      %v2512 = vpop.f32.mrb[0].mxu0
      %2513 = vdwg.mxu0
      %2514 = vmatprep.subr.bf16.mxu0 0
      %2515 = vmatpush1.bf16.msra.mxu0 %v1582
      %2516 = vmatprep.subr.bf16.mxu0 0
      %2517 = vmatpush1.bf16.msra.mxu0 %v1583
      %2518 = vmatprep.subr.bf16.mxu0 0
      %2519 = vmatpush1.bf16.msra.mxu0 0
      %2520 = vmatprep.subr.bf16.mxu0 0
      %2521 = vmatpush1.bf16.msra.mxu0 0
      %2522 = vmatprep.subr.bf16.mxu0 0
      %2523 = vmatpush1.bf16.msra.mxu0 0
      %2524 = vmatprep.subr.bf16.mxu0 0
      %2525 = vmatpush1.bf16.msra.mxu0 0
      %2526 = vmatprep.subr.bf16.mxu0 0
      %2527 = vmatpush1.bf16.msra.mxu0 0
      %2528 = vmatprep.subr.bf16.mxu0 0
      %2529 = vmatpush1.bf16.msra.mxu0 0
      %2530 = vmatprep.subr.bf16.mxu0 0
      %2531 = vmatpush1.bf16.msra.mxu0 0
      %2532 = vmatprep.subr.bf16.mxu0 0
      %2533 = vmatpush1.bf16.msra.mxu0 0
      %2534 = vmatprep.subr.bf16.mxu0 0
      %2535 = vmatpush1.bf16.msra.mxu0 0
      %2536 = vmatprep.subr.bf16.mxu0 0
      %2537 = vmatpush1.bf16.msra.mxu0 0
      %2538 = vmatprep.subr.bf16.mxu0 0
      %2539 = vmatpush1.bf16.msra.mxu0 0
      %2540 = vmatprep.subr.bf16.mxu0 0
      %2541 = vmatpush1.bf16.msra.mxu0 0
      %2542 = vmatprep.subr.bf16.mxu0 0
      %2543 = vmatpush1.bf16.msra.mxu0 0
      %2544 = vmatprep.subr.bf16.mxu0 0
      %2545 = vmatpush1.bf16.msra.mxu0 0
      %2546 = vmatprep.mubr.bf16.mxu0 0
      %2547 = vmatmul.mubr.bf16.gmra.mrb[0].mxu0 %v1677
      %v2548 = vpop.f32.mrb[0].mxu0
      %v2549 = vadd.f32 0.0, %v2548
      %v2550 = vpop.f32.mrb[0].mxu0
      %v2551 = vpop.f32.mrb[0].mxu0
      %v2552 = vpop.f32.mrb[0].mxu0
      %2553 = vdwg.mxu0
      %v2554 = vadd.f32 %v2509, %v2549
      %v2555 = vxor.u32 %v2554, 2147483648
      %v2556 = vmul.f32 %v2555, 1.442695
      %v2557 = vpow.pop %v2556
      %v2558 = vadd.f32 %v2557, 1.0
      %v2559 = vrcp.pop %v2558
      %v2560 = vmul.f32 1.0, %v2559
      %v2561 = vtanh.pop %v2554
      %v2562 = vmul.f32 %v2560, %v1647
      %2564 = vrot.lane.b32.xlu0 %v2561, 32
      %v2565 = vpop.permute.xlu0 %2564
      %v2567 = vmul.f32 %v2560, %v2565
      %2569 = vrot.lane.b32.xlu0 %v2567, 32
      %v2570 = vpop.permute.xlu0 %2569
      %v2572 = vadd.f32 %v2562, %v2570
      %v2573 = vtanh.pop %v2572
      %2575 = vrot.lane.b32.xlu0 %v2573, 32
      %v2576 = vpop.permute.xlu0 %2575
      %v2578 = vmul.f32 %v2560, %v2576
      %v2579 = vpack.c.bf16 %v2578, %v2578
      %2581 = vrot.lane.b32.xlu0 %v2579, 64
      %v2582 = vpop.permute.xlu0 %2581
      %v2584 = vsel %vm1467, %v2582, 0
      %2586 = vmatprep.subr.bf16.mxu0 0
      %2587 = vmatpush1.bf16.msra.mxu0 %v1672
      %2588 = vmatprep.subr.bf16.mxu0 0
      %2589 = vmatpush1.bf16.msra.mxu0 %v1673
      %2590 = vmatprep.subr.bf16.mxu0 0
      %2591 = vmatpush1.bf16.msra.mxu0 0
      %2592 = vmatprep.subr.bf16.mxu0 0
      %2593 = vmatpush1.bf16.msra.mxu0 0
      %2594 = vmatprep.subr.bf16.mxu0 0
      %2595 = vmatpush1.bf16.msra.mxu0 0
      %2596 = vmatprep.subr.bf16.mxu0 0
      %2597 = vmatpush1.bf16.msra.mxu0 0
      %2598 = vmatprep.subr.bf16.mxu0 0
      %2599 = vmatpush1.bf16.msra.mxu0 0
      %2600 = vmatprep.subr.bf16.mxu0 0
      %2601 = vmatpush1.bf16.msra.mxu0 0
      %2602 = vmatprep.subr.bf16.mxu0 0
      %2603 = vmatpush1.bf16.msra.mxu0 0
      %2604 = vmatprep.subr.bf16.mxu0 0
      %2605 = vmatpush1.bf16.msra.mxu0 0
      %2606 = vmatprep.subr.bf16.mxu0 0
      %2607 = vmatpush1.bf16.msra.mxu0 0
      %2608 = vmatprep.subr.bf16.mxu0 0
      %2609 = vmatpush1.bf16.msra.mxu0 0
      %2610 = vmatprep.subr.bf16.mxu0 0
      %2611 = vmatpush1.bf16.msra.mxu0 0
      %2612 = vmatprep.subr.bf16.mxu0 0
      %2613 = vmatpush1.bf16.msra.mxu0 0
      %2614 = vmatprep.subr.bf16.mxu0 0
      %2615 = vmatpush1.bf16.msra.mxu0 0
      %2616 = vmatprep.subr.bf16.mxu0 0
      %2617 = vmatpush1.bf16.msra.mxu0 0
      %2618 = vmatprep.mubr.bf16.mxu0 0
      %2619 = vmatmul.mubr.bf16.gmra.mrb[0].mxu0 %v2584
      %v2620 = vpop.f32.mrb[0].mxu0
      %v2621 = vadd.f32 %v1659, %v2620
      %v2622 = vpop.f32.mrb[0].mxu0
      %v2623 = vpop.f32.mrb[0].mxu0
      %v2624 = vpop.f32.mrb[0].mxu0
      %2625 = vdwg.mxu0
      %v2626 = vmax.f32 %v2621, 0.0
      %v2627 = vpack.c.bf16 %v2626, %v2626
      %v2629 = vsel %vm1467, %v2627, 0
      %2631 = vmatprep.subr.bf16.mxu0 0
      %2632 = vmatpush1.bf16.msra.mxu0 %v1735
      %2633 = vmatprep.subr.bf16.mxu0 0
      %2634 = vmatpush1.bf16.msra.mxu0 %v1736
      %2635 = vmatprep.subr.bf16.mxu0 0
      %2636 = vmatpush1.bf16.msra.mxu0 0
      %2637 = vmatprep.subr.bf16.mxu0 0
      %2638 = vmatpush1.bf16.msra.mxu0 0
      %2639 = vmatprep.subr.bf16.mxu0 0
      %2640 = vmatpush1.bf16.msra.mxu0 0
      %2641 = vmatprep.subr.bf16.mxu0 0
      %2642 = vmatpush1.bf16.msra.mxu0 0
      %2643 = vmatprep.subr.bf16.mxu0 0
      %2644 = vmatpush1.bf16.msra.mxu0 0
      %2645 = vmatprep.subr.bf16.mxu0 0
      %2646 = vmatpush1.bf16.msra.mxu0 0
      %2647 = vmatprep.subr.bf16.mxu0 0
      %2648 = vmatpush1.bf16.msra.mxu0 0
      %2649 = vmatprep.subr.bf16.mxu0 0
      %2650 = vmatpush1.bf16.msra.mxu0 0
      %2651 = vmatprep.subr.bf16.mxu0 0
      %2652 = vmatpush1.bf16.msra.mxu0 0
      %2653 = vmatprep.subr.bf16.mxu0 0
      %2654 = vmatpush1.bf16.msra.mxu0 0
      %2655 = vmatprep.subr.bf16.mxu0 0
      %2656 = vmatpush1.bf16.msra.mxu0 0
      %2657 = vmatprep.subr.bf16.mxu0 0
      %2658 = vmatpush1.bf16.msra.mxu0 0
      %2659 = vmatprep.subr.bf16.mxu0 0
      %2660 = vmatpush1.bf16.msra.mxu0 0
      %2661 = vmatprep.subr.bf16.mxu0 0
      %2662 = vmatpush1.bf16.msra.mxu0 0
      %2663 = vmatprep.mubr.bf16.mxu0 0
      %2664 = vmatmul.mubr.bf16.gmra.mrb[0].mxu0 %v2629
      %v2665 = vpop.f32.mrb[0].mxu0
      %v2666 = vadd.f32 %v1725, %v2665
      %v2667 = vpop.f32.mrb[0].mxu0
      %v2668 = vpop.f32.mrb[0].mxu0
      %v2669 = vpop.f32.mrb[0].mxu0
      %2670 = vdwg.mxu0
      %s2671 = scalar_lea.vmem %s413, 2
      %v2672 = vld [vmem:[%s2671] ss:$8 sm:$0xf]
      %v2673 = vld [vmem:[%s2671] ss:$8 sm:$0x30]
      %v2674 = vor.u32 %v2672, %v2673
      %s2675 = scalar_lea.vmem %s413, 50
      %v2676 = vld [vmem:[%s2675] ss:$8 sm:$0xf]
      %v2677 = vld [vmem:[%s2675] ss:$8 sm:$0x30]
      %v2678 = vor.u32 %v2676, %v2677
      %s2679 = scalar_lea.vmem %s413, 98
      %v2680 = vld [vmem:[%s2679] ss:$8 sm:$0xf]
      %v2681 = vld [vmem:[%s2679] ss:$8 sm:$0x30]
      %v2682 = vor.u32 %v2680, %v2681
      %s2683 = scalar_lea.vmem %s413, 146
      %v2684 = vld [vmem:[%s2683] ss:$8 sm:$0xf]
      %v2685 = vld [vmem:[%s2683] ss:$8 sm:$0x30]
      %v2686 = vor.u32 %v2684, %v2685
      %s2687 = scalar_lea.vmem %s413, 194
      %v2688 = vld [vmem:[%s2687] ss:$8 sm:$0xf]
      %v2689 = vld [vmem:[%s2687] ss:$8 sm:$0x30]
      %v2690 = vor.u32 %v2688, %v2689
      %s2691 = scalar_lea.vmem %s413, 242
      %v2692 = vld [vmem:[%s2691] ss:$8 sm:$0xf]
      %v2693 = vld [vmem:[%s2691] ss:$8 sm:$0x30]
      %v2694 = vor.u32 %v2692, %v2693
      %s2695 = scalar_lea.vmem %s413, 290
      %v2696 = vld [vmem:[%s2695] ss:$8 sm:$0xf]
      %v2697 = vld [vmem:[%s2695] ss:$8 sm:$0x30]
      %v2698 = vor.u32 %v2696, %v2697
      %s2699 = scalar_lea.vmem %s413, 338
      %v2700 = vld [vmem:[%s2699] ss:$8 sm:$0xf]
      %v2701 = vld [vmem:[%s2699] ss:$8 sm:$0x30]
      %v2702 = vor.u32 %v2700, %v2701
      %v2711 = vlaneseq
      %v2712 = vshrl.u32 %v2711, 7
      %v2713 = vsub.s32 0, %v2712
      %v2714 = vrot.slane %v2674, %v2713
      %v2715 = vlaneseq
      %v2716 = vshrl.u32 %v2715, 7
      %v2717 = vsub.s32 1, %v2716
      %v2718 = vrot.slane %v2674, %v2717
      %v2719 = vlaneseq
      %v2720 = vshrl.u32 %v2719, 7
      %v2721 = vsub.s32 2, %v2720
      %v2722 = vrot.slane %v2674, %v2721
      %v2723 = vlaneseq
      %v2724 = vshrl.u32 %v2723, 7
      %v2725 = vsub.s32 3, %v2724
      %v2726 = vrot.slane %v2674, %v2725
      %v2727 = vlaneseq
      %v2728 = vshrl.u32 %v2727, 7
      %v2729 = vsub.s32 4, %v2728
      %v2730 = vrot.slane %v2674, %v2729
      %v2731 = vlaneseq
      %v2732 = vshrl.u32 %v2731, 7
      %v2733 = vsub.s32 5, %v2732
      %v2734 = vrot.slane %v2674, %v2733
      %v2735 = vlaneseq
      %v2736 = vshrl.u32 %v2735, 7
      %v2737 = vsub.s32 0, %v2736
      %v2738 = vrot.slane %v2678, %v2737
      %v2739 = vlaneseq
      %v2740 = vshrl.u32 %v2739, 7
      %v2741 = vsub.s32 1, %v2740
      %v2742 = vrot.slane %v2678, %v2741
      %v2743 = vlaneseq
      %v2744 = vshrl.u32 %v2743, 7
      %v2745 = vsub.s32 2, %v2744
      %v2746 = vrot.slane %v2678, %v2745
      %v2747 = vlaneseq
      %v2748 = vshrl.u32 %v2747, 7
      %v2749 = vsub.s32 3, %v2748
      %v2750 = vrot.slane %v2678, %v2749
      %v2751 = vlaneseq
      %v2752 = vshrl.u32 %v2751, 7
      %v2753 = vsub.s32 4, %v2752
      %v2754 = vrot.slane %v2678, %v2753
      %v2755 = vlaneseq
      %v2756 = vshrl.u32 %v2755, 7
      %v2757 = vsub.s32 5, %v2756
      %v2758 = vrot.slane %v2678, %v2757
      %v2759 = vlaneseq
      %v2760 = vshrl.u32 %v2759, 7
      %v2761 = vsub.s32 0, %v2760
      %v2762 = vrot.slane %v2682, %v2761
      %v2763 = vlaneseq
      %v2764 = vshrl.u32 %v2763, 7
      %v2765 = vsub.s32 1, %v2764
      %v2766 = vrot.slane %v2682, %v2765
      %v2767 = vlaneseq
      %v2768 = vshrl.u32 %v2767, 7
      %v2769 = vsub.s32 2, %v2768
      %v2770 = vrot.slane %v2682, %v2769
      %v2771 = vlaneseq
      %v2772 = vshrl.u32 %v2771, 7
      %v2773 = vsub.s32 3, %v2772
      %v2774 = vrot.slane %v2682, %v2773
      %v2775 = vlaneseq
      %v2776 = vshrl.u32 %v2775, 7
      %v2777 = vsub.s32 4, %v2776
      %v2778 = vrot.slane %v2682, %v2777
      %v2779 = vlaneseq
      %v2780 = vshrl.u32 %v2779, 7
      %v2781 = vsub.s32 5, %v2780
      %v2782 = vrot.slane %v2682, %v2781
      %v2783 = vlaneseq
      %v2784 = vshrl.u32 %v2783, 7
      %v2785 = vsub.s32 0, %v2784
      %v2786 = vrot.slane %v2686, %v2785
      %v2787 = vlaneseq
      %v2788 = vshrl.u32 %v2787, 7
      %v2789 = vsub.s32 1, %v2788
      %v2790 = vrot.slane %v2686, %v2789
      %v2791 = vlaneseq
      %v2792 = vshrl.u32 %v2791, 7
      %v2793 = vsub.s32 2, %v2792
      %v2794 = vrot.slane %v2686, %v2793
      %v2795 = vlaneseq
      %v2796 = vshrl.u32 %v2795, 7
      %v2797 = vsub.s32 3, %v2796
      %v2798 = vrot.slane %v2686, %v2797
      %v2799 = vlaneseq
      %v2800 = vshrl.u32 %v2799, 7
      %v2801 = vsub.s32 4, %v2800
      %v2802 = vrot.slane %v2686, %v2801
      %v2803 = vlaneseq
      %v2804 = vshrl.u32 %v2803, 7
      %v2805 = vsub.s32 5, %v2804
      %v2806 = vrot.slane %v2686, %v2805
      %v2807 = vlaneseq
      %v2808 = vshrl.u32 %v2807, 7
      %v2809 = vsub.s32 0, %v2808
      %v2810 = vrot.slane %v2690, %v2809
      %v2811 = vlaneseq
      %v2812 = vshrl.u32 %v2811, 7
      %v2813 = vsub.s32 1, %v2812
      %v2814 = vrot.slane %v2690, %v2813
      %v2815 = vlaneseq
      %v2816 = vshrl.u32 %v2815, 7
      %v2817 = vsub.s32 2, %v2816
      %v2818 = vrot.slane %v2690, %v2817
      %v2819 = vlaneseq
      %v2820 = vshrl.u32 %v2819, 7
      %v2821 = vsub.s32 3, %v2820
      %v2822 = vrot.slane %v2690, %v2821
      %v2823 = vlaneseq
      %v2824 = vshrl.u32 %v2823, 7
      %v2825 = vsub.s32 4, %v2824
      %v2826 = vrot.slane %v2690, %v2825
      %v2827 = vlaneseq
      %v2828 = vshrl.u32 %v2827, 7
      %v2829 = vsub.s32 5, %v2828
      %v2830 = vrot.slane %v2690, %v2829
      %v2831 = vlaneseq
      %v2832 = vshrl.u32 %v2831, 7
      %v2833 = vsub.s32 0, %v2832
      %v2834 = vrot.slane %v2694, %v2833
      %v2835 = vlaneseq
      %v2836 = vshrl.u32 %v2835, 7
      %v2837 = vsub.s32 1, %v2836
      %v2838 = vrot.slane %v2694, %v2837
      %v2839 = vlaneseq
      %v2840 = vshrl.u32 %v2839, 7
      %v2841 = vsub.s32 2, %v2840
      %v2842 = vrot.slane %v2694, %v2841
      %v2843 = vlaneseq
      %v2844 = vshrl.u32 %v2843, 7
      %v2845 = vsub.s32 3, %v2844
      %v2846 = vrot.slane %v2694, %v2845
      %v2847 = vlaneseq
      %v2848 = vshrl.u32 %v2847, 7
      %v2849 = vsub.s32 4, %v2848
      %v2850 = vrot.slane %v2694, %v2849
      %v2851 = vlaneseq
      %v2852 = vshrl.u32 %v2851, 7
      %v2853 = vsub.s32 5, %v2852
      %v2854 = vrot.slane %v2694, %v2853
      %v2855 = vlaneseq
      %v2856 = vshrl.u32 %v2855, 7
      %v2857 = vsub.s32 0, %v2856
      %v2858 = vrot.slane %v2698, %v2857
      %v2859 = vlaneseq
      %v2860 = vshrl.u32 %v2859, 7
      %v2861 = vsub.s32 1, %v2860
      %v2862 = vrot.slane %v2698, %v2861
      %v2863 = vlaneseq
      %v2864 = vshrl.u32 %v2863, 7
      %v2865 = vsub.s32 2, %v2864
      %v2866 = vrot.slane %v2698, %v2865
      %v2867 = vlaneseq
      %v2868 = vshrl.u32 %v2867, 7
      %v2869 = vsub.s32 3, %v2868
      %v2870 = vrot.slane %v2698, %v2869
      %v2871 = vlaneseq
      %v2872 = vshrl.u32 %v2871, 7
      %v2873 = vsub.s32 4, %v2872
      %v2874 = vrot.slane %v2698, %v2873
      %v2875 = vlaneseq
      %v2876 = vshrl.u32 %v2875, 7
      %v2877 = vsub.s32 5, %v2876
      %v2878 = vrot.slane %v2698, %v2877
      %v2879 = vlaneseq
      %v2880 = vshrl.u32 %v2879, 7
      %v2881 = vsub.s32 0, %v2880
      %v2882 = vrot.slane %v2702, %v2881
      %v2883 = vlaneseq
      %v2884 = vshrl.u32 %v2883, 7
      %v2885 = vsub.s32 1, %v2884
      %v2886 = vrot.slane %v2702, %v2885
      %v2887 = vlaneseq
      %v2888 = vshrl.u32 %v2887, 7
      %v2889 = vsub.s32 2, %v2888
      %v2890 = vrot.slane %v2702, %v2889
      %v2891 = vlaneseq
      %v2892 = vshrl.u32 %v2891, 7
      %v2893 = vsub.s32 3, %v2892
      %v2894 = vrot.slane %v2702, %v2893
      %v2895 = vlaneseq
      %v2896 = vshrl.u32 %v2895, 7
      %v2897 = vsub.s32 4, %v2896
      %v2898 = vrot.slane %v2702, %v2897
      %v2899 = vlaneseq
      %v2900 = vshrl.u32 %v2899, 7
      %v2901 = vsub.s32 5, %v2900
      %v2902 = vrot.slane %v2702, %v2901
      %v2951 = vpack.c.bf16 %v2714, %v2714
      %v2952 = vpack.c.bf16 %v2718, %v2718
      %v2953 = vpack.c.bf16 %v2722, %v2722
      %v2954 = vpack.c.bf16 %v2726, %v2726
      %v2955 = vpack.c.bf16 %v2730, %v2730
      %v2956 = vpack.c.bf16 %v2734, %v2734
      %v2957 = vpack.c.bf16 %v2738, %v2738
      %v2958 = vpack.c.bf16 %v2742, %v2742
      %v2959 = vpack.c.bf16 %v2746, %v2746
      %v2960 = vpack.c.bf16 %v2750, %v2750
      %v2961 = vpack.c.bf16 %v2754, %v2754
      %v2962 = vpack.c.bf16 %v2758, %v2758
      %v2963 = vpack.c.bf16 %v2762, %v2762
      %v2964 = vpack.c.bf16 %v2766, %v2766
      %v2965 = vpack.c.bf16 %v2770, %v2770
      %v2966 = vpack.c.bf16 %v2774, %v2774
      %v2967 = vpack.c.bf16 %v2778, %v2778
      %v2968 = vpack.c.bf16 %v2782, %v2782
      %v2969 = vpack.c.bf16 %v2786, %v2786
      %v2970 = vpack.c.bf16 %v2790, %v2790
      %v2971 = vpack.c.bf16 %v2794, %v2794
      %v2972 = vpack.c.bf16 %v2798, %v2798
      %v2973 = vpack.c.bf16 %v2802, %v2802
      %v2974 = vpack.c.bf16 %v2806, %v2806
      %v2975 = vpack.c.bf16 %v2810, %v2810
      %v2976 = vpack.c.bf16 %v2814, %v2814
      %v2977 = vpack.c.bf16 %v2818, %v2818
      %v2978 = vpack.c.bf16 %v2822, %v2822
      %v2979 = vpack.c.bf16 %v2826, %v2826
      %v2980 = vpack.c.bf16 %v2830, %v2830
      %v2981 = vpack.c.bf16 %v2834, %v2834
      %v2982 = vpack.c.bf16 %v2838, %v2838
      %v2983 = vpack.c.bf16 %v2842, %v2842
      %v2984 = vpack.c.bf16 %v2846, %v2846
      %v2985 = vpack.c.bf16 %v2850, %v2850
      %v2986 = vpack.c.bf16 %v2854, %v2854
      %v2987 = vpack.c.bf16 %v2858, %v2858
      %v2988 = vpack.c.bf16 %v2862, %v2862
      %v2989 = vpack.c.bf16 %v2866, %v2866
      %v2990 = vpack.c.bf16 %v2870, %v2870
      %v2991 = vpack.c.bf16 %v2874, %v2874
      %v2992 = vpack.c.bf16 %v2878, %v2878
      %v2993 = vpack.c.bf16 %v2882, %v2882
      %v2994 = vpack.c.bf16 %v2886, %v2886
      %v2995 = vpack.c.bf16 %v2890, %v2890
      %v2996 = vpack.c.bf16 %v2894, %v2894
      %v2997 = vpack.c.bf16 %v2898, %v2898
      %v2998 = vpack.c.bf16 %v2902, %v2902
      %v3047 = vunpack.c.l.b16 %v2951
      %v3048 = vunpack.c.l.b16 %v2952
      %v3049 = vunpack.c.l.b16 %v2953
      %v3050 = vunpack.c.l.b16 %v2954
      %v3051 = vunpack.c.l.b16 %v2955
      %v3052 = vunpack.c.l.b16 %v2956
      %v3053 = vunpack.c.l.b16 %v2957
      %v3054 = vunpack.c.l.b16 %v2958
      %v3055 = vunpack.c.l.b16 %v2959
      %v3056 = vunpack.c.l.b16 %v2960
      %v3057 = vunpack.c.l.b16 %v2961
      %v3058 = vunpack.c.l.b16 %v2962
      %v3059 = vunpack.c.l.b16 %v2963
      %v3060 = vunpack.c.l.b16 %v2964
      %v3061 = vunpack.c.l.b16 %v2965
      %v3062 = vunpack.c.l.b16 %v2966
      %v3063 = vunpack.c.l.b16 %v2967
      %v3064 = vunpack.c.l.b16 %v2968
      %v3065 = vunpack.c.l.b16 %v2969
      %v3066 = vunpack.c.l.b16 %v2970
      %v3067 = vunpack.c.l.b16 %v2971
      %v3068 = vunpack.c.l.b16 %v2972
      %v3069 = vunpack.c.l.b16 %v2973
      %v3070 = vunpack.c.l.b16 %v2974
      %v3071 = vunpack.c.l.b16 %v2975
      %v3072 = vunpack.c.l.b16 %v2976
      %v3073 = vunpack.c.l.b16 %v2977
      %v3074 = vunpack.c.l.b16 %v2978
      %v3075 = vunpack.c.l.b16 %v2979
      %v3076 = vunpack.c.l.b16 %v2980
      %v3077 = vunpack.c.l.b16 %v2981
      %v3078 = vunpack.c.l.b16 %v2982
      %v3079 = vunpack.c.l.b16 %v2983
      %v3080 = vunpack.c.l.b16 %v2984
      %v3081 = vunpack.c.l.b16 %v2985
      %v3082 = vunpack.c.l.b16 %v2986
      %v3083 = vunpack.c.l.b16 %v2987
      %v3084 = vunpack.c.l.b16 %v2988
      %v3085 = vunpack.c.l.b16 %v2989
      %v3086 = vunpack.c.l.b16 %v2990
      %v3087 = vunpack.c.l.b16 %v2991
      %v3088 = vunpack.c.l.b16 %v2992
      %v3089 = vunpack.c.l.b16 %v2993
      %v3090 = vunpack.c.l.b16 %v2994
      %v3091 = vunpack.c.l.b16 %v2995
      %v3092 = vunpack.c.l.b16 %v2996
      %v3093 = vunpack.c.l.b16 %v2997
      %v3094 = vunpack.c.l.b16 %v2998
      %v3095 = vrot.slane %v3053, 7
      %v3096 = vsel %vm960, %v3095, %v3047
      %v3097 = vrot.slane %v3059, 6
      %v3098 = vsel %vm963, %v3097, %v3096
      %v3099 = vrot.slane %v3065, 5
      %v3100 = vsel %vm966, %v3099, %v3098
      %v3101 = vrot.slane %v3071, 4
      %v3102 = vsel %vm969, %v3101, %v3100
      %v3103 = vrot.slane %v3077, 3
      %v3104 = vsel %vm972, %v3103, %v3102
      %v3105 = vrot.slane %v3083, 2
      %v3106 = vsel %vm975, %v3105, %v3104
      %v3107 = vrot.slane %v3089, 1
      %v3108 = vsel %vm978, %v3107, %v3106
      %v3109 = vrot.slane %v3054, 7
      %v3110 = vsel %vm960, %v3109, %v3048
      %v3111 = vrot.slane %v3060, 6
      %v3112 = vsel %vm963, %v3111, %v3110
      %v3113 = vrot.slane %v3066, 5
      %v3114 = vsel %vm966, %v3113, %v3112
      %v3115 = vrot.slane %v3072, 4
      %v3116 = vsel %vm969, %v3115, %v3114
      %v3117 = vrot.slane %v3078, 3
      %v3118 = vsel %vm972, %v3117, %v3116
      %v3119 = vrot.slane %v3084, 2
      %v3120 = vsel %vm975, %v3119, %v3118
      %v3121 = vrot.slane %v3090, 1
      %v3122 = vsel %vm978, %v3121, %v3120
      %v3123 = vrot.slane %v3055, 7
      %v3124 = vsel %vm960, %v3123, %v3049
      %v3125 = vrot.slane %v3061, 6
      %v3126 = vsel %vm963, %v3125, %v3124
      %v3127 = vrot.slane %v3067, 5
      %v3128 = vsel %vm966, %v3127, %v3126
      %v3129 = vrot.slane %v3073, 4
      %v3130 = vsel %vm969, %v3129, %v3128
      %v3131 = vrot.slane %v3079, 3
      %v3132 = vsel %vm972, %v3131, %v3130
      %v3133 = vrot.slane %v3085, 2
      %v3134 = vsel %vm975, %v3133, %v3132
      %v3135 = vrot.slane %v3091, 1
      %v3136 = vsel %vm978, %v3135, %v3134
      %v3137 = vrot.slane %v3056, 7
      %v3138 = vsel %vm960, %v3137, %v3050
      %v3139 = vrot.slane %v3062, 6
      %v3140 = vsel %vm963, %v3139, %v3138
      %v3141 = vrot.slane %v3068, 5
      %v3142 = vsel %vm966, %v3141, %v3140
      %v3143 = vrot.slane %v3074, 4
      %v3144 = vsel %vm969, %v3143, %v3142
      %v3145 = vrot.slane %v3080, 3
      %v3146 = vsel %vm972, %v3145, %v3144
      %v3147 = vrot.slane %v3086, 2
      %v3148 = vsel %vm975, %v3147, %v3146
      %v3149 = vrot.slane %v3092, 1
      %v3150 = vsel %vm978, %v3149, %v3148
      %v3151 = vrot.slane %v3057, 7
      %v3152 = vsel %vm960, %v3151, %v3051
      %v3153 = vrot.slane %v3063, 6
      %v3154 = vsel %vm963, %v3153, %v3152
      %v3155 = vrot.slane %v3069, 5
      %v3156 = vsel %vm966, %v3155, %v3154
      %v3157 = vrot.slane %v3075, 4
      %v3158 = vsel %vm969, %v3157, %v3156
      %v3159 = vrot.slane %v3081, 3
      %v3160 = vsel %vm972, %v3159, %v3158
      %v3161 = vrot.slane %v3087, 2
      %v3162 = vsel %vm975, %v3161, %v3160
      %v3163 = vrot.slane %v3093, 1
      %v3164 = vsel %vm978, %v3163, %v3162
      %v3165 = vrot.slane %v3058, 7
      %v3166 = vsel %vm960, %v3165, %v3052
      %v3167 = vrot.slane %v3064, 6
      %v3168 = vsel %vm963, %v3167, %v3166
      %v3169 = vrot.slane %v3070, 5
      %v3170 = vsel %vm966, %v3169, %v3168
      %v3171 = vrot.slane %v3076, 4
      %v3172 = vsel %vm969, %v3171, %v3170
      %v3173 = vrot.slane %v3082, 3
      %v3174 = vsel %vm972, %v3173, %v3172
      %v3175 = vrot.slane %v3088, 2
      %v3176 = vsel %vm975, %v3175, %v3174
      %v3177 = vrot.slane %v3094, 1
      %v3178 = vsel %vm978, %v3177, %v3176
      %v3179 = vpack.c.b16 %v3108, %v3108
      %v3180 = vpack.c.b16 %v3122, %v3122
      %v3181 = vpack.c.b16 %v3136, %v3136
      %v3182 = vpack.c.b16 %v3150, %v3150
      %v3183 = vpack.c.b16 %v3164, %v3164
      %v3184 = vpack.c.b16 %v3178, %v3178
      %v3191 = vsel %vm1316, %v3184, 0
      %3193 = vmatprep.subr.bf16.mxu0 0
      %3194 = vmatpush1.bf16.msra.mxu0 %v1231
      %3195 = vmatprep.subr.bf16.mxu0 0
      %3196 = vmatpush1.bf16.msra.mxu0 %v1232
      %3197 = vmatprep.subr.bf16.mxu0 0
      %3198 = vmatpush1.bf16.msra.mxu0 %v1233
      %3199 = vmatprep.subr.bf16.mxu0 0
      %3200 = vmatpush1.bf16.msra.mxu0 %v1234
      %3201 = vmatprep.subr.bf16.mxu0 0
      %3202 = vmatpush1.bf16.msra.mxu0 %v1235
      %3203 = vmatprep.subr.bf16.mxu0 0
      %3204 = vmatpush1.bf16.msra.mxu0 %v1236
      %3205 = vmatprep.subr.bf16.mxu0 0
      %3206 = vmatpush1.bf16.msra.mxu0 %v1237
      %3207 = vmatprep.subr.bf16.mxu0 0
      %3208 = vmatpush1.bf16.msra.mxu0 %v1238
      %3209 = vmatprep.subr.bf16.mxu0 0
      %3210 = vmatpush1.bf16.msra.mxu0 %v1239
      %3211 = vmatprep.subr.bf16.mxu0 0
      %3212 = vmatpush1.bf16.msra.mxu0 %v1240
      %3213 = vmatprep.subr.bf16.mxu0 0
      %3214 = vmatpush1.bf16.msra.mxu0 %v1241
      %3215 = vmatprep.subr.bf16.mxu0 0
      %3216 = vmatpush1.bf16.msra.mxu0 %v1242
      %3217 = vmatprep.subr.bf16.mxu0 0
      %3218 = vmatpush1.bf16.msra.mxu0 %v1243
      %3219 = vmatprep.subr.bf16.mxu0 0
      %3220 = vmatpush1.bf16.msra.mxu0 %v1244
      %3221 = vmatprep.subr.bf16.mxu0 0
      %3222 = vmatpush1.bf16.msra.mxu0 %v1245
      %3223 = vmatprep.subr.bf16.mxu0 0
      %3224 = vmatpush1.bf16.msra.mxu0 %v1246
      %3225 = vmatprep.mubr.bf16.mxu0 %v3180
      %3226 = vmatmul.mubr.bf16.gmra.mrb[0].mxu0 %v3179
      %v3227 = vpop.f32.mrb[0].mxu0
      %v3228 = vadd.f32 %v861, %v3227
      %v3229 = vpop.f32.mrb[0].mxu0
      %v3230 = vpop.f32.mrb[0].mxu0
      %v3231 = vpop.f32.mrb[0].mxu0
      %3232 = vdwg.mxu0
      %3233 = vmatprep.subr.bf16.mxu0 0
      %3234 = vmatpush1.bf16.msra.mxu0 %v1247
      %3235 = vmatprep.subr.bf16.mxu0 0
      %3236 = vmatpush1.bf16.msra.mxu0 %v1248
      %3237 = vmatprep.subr.bf16.mxu0 0
      %3238 = vmatpush1.bf16.msra.mxu0 %v1249
      %3239 = vmatprep.subr.bf16.mxu0 0
      %3240 = vmatpush1.bf16.msra.mxu0 %v1250
      %3241 = vmatprep.subr.bf16.mxu0 0
      %3242 = vmatpush1.bf16.msra.mxu0 %v1251
      %3243 = vmatprep.subr.bf16.mxu0 0
      %3244 = vmatpush1.bf16.msra.mxu0 %v1252
      %3245 = vmatprep.subr.bf16.mxu0 0
      %3246 = vmatpush1.bf16.msra.mxu0 %v1253
      %3247 = vmatprep.subr.bf16.mxu0 0
      %3248 = vmatpush1.bf16.msra.mxu0 %v1254
      %3249 = vmatprep.subr.bf16.mxu0 0
      %3250 = vmatpush1.bf16.msra.mxu0 %v1255
      %3251 = vmatprep.subr.bf16.mxu0 0
      %3252 = vmatpush1.bf16.msra.mxu0 %v1256
      %3253 = vmatprep.subr.bf16.mxu0 0
      %3254 = vmatpush1.bf16.msra.mxu0 %v1257
      %3255 = vmatprep.subr.bf16.mxu0 0
      %3256 = vmatpush1.bf16.msra.mxu0 %v1258
      %3257 = vmatprep.subr.bf16.mxu0 0
      %3258 = vmatpush1.bf16.msra.mxu0 %v1259
      %3259 = vmatprep.subr.bf16.mxu0 0
      %3260 = vmatpush1.bf16.msra.mxu0 %v1260
      %3261 = vmatprep.subr.bf16.mxu0 0
      %3262 = vmatpush1.bf16.msra.mxu0 %v1261
      %3263 = vmatprep.subr.bf16.mxu0 0
      %3264 = vmatpush1.bf16.msra.mxu0 %v1262
      %3265 = vmatprep.mubr.bf16.mxu0 %v3182
      %3266 = vmatmul.mubr.bf16.gmra.mrb[0].mxu0 %v3181
      %v3267 = vpop.f32.mrb[0].mxu0
      %v3268 = vadd.f32 %v3228, %v3267
      %v3269 = vpop.f32.mrb[0].mxu0
      %v3270 = vpop.f32.mrb[0].mxu0
      %v3271 = vpop.f32.mrb[0].mxu0
      %3272 = vdwg.mxu0
      %3273 = vmatprep.subr.bf16.mxu0 0
      %3274 = vmatpush1.bf16.msra.mxu0 %v1263
      %3275 = vmatprep.subr.bf16.mxu0 0
      %3276 = vmatpush1.bf16.msra.mxu0 %v1264
      %3277 = vmatprep.subr.bf16.mxu0 0
      %3278 = vmatpush1.bf16.msra.mxu0 %v1265
      %3279 = vmatprep.subr.bf16.mxu0 0
      %3280 = vmatpush1.bf16.msra.mxu0 %v1266
      %3281 = vmatprep.subr.bf16.mxu0 0
      %3282 = vmatpush1.bf16.msra.mxu0 %v1267
      %3283 = vmatprep.subr.bf16.mxu0 0
      %3284 = vmatpush1.bf16.msra.mxu0 %v1268
      %3285 = vmatprep.subr.bf16.mxu0 0
      %3286 = vmatpush1.bf16.msra.mxu0 %v1269
      %3287 = vmatprep.subr.bf16.mxu0 0
      %3288 = vmatpush1.bf16.msra.mxu0 %v1270
      %3289 = vmatprep.subr.bf16.mxu0 0
      %3290 = vmatpush1.bf16.msra.mxu0 %v1271
      %3291 = vmatprep.subr.bf16.mxu0 0
      %3292 = vmatpush1.bf16.msra.mxu0 %v1272
      %3293 = vmatprep.subr.bf16.mxu0 0
      %3294 = vmatpush1.bf16.msra.mxu0 %v1325
      %3295 = vmatprep.subr.bf16.mxu0 0
      %3296 = vmatpush1.bf16.msra.mxu0 0
      %3297 = vmatprep.subr.bf16.mxu0 0
      %3298 = vmatpush1.bf16.msra.mxu0 0
      %3299 = vmatprep.subr.bf16.mxu0 0
      %3300 = vmatpush1.bf16.msra.mxu0 0
      %3301 = vmatprep.subr.bf16.mxu0 0
      %3302 = vmatpush1.bf16.msra.mxu0 0
      %3303 = vmatprep.subr.bf16.mxu0 0
      %3304 = vmatpush1.bf16.msra.mxu0 0
      %3305 = vmatprep.mubr.bf16.mxu0 %v3191
      %3306 = vmatmul.mubr.bf16.gmra.mrb[0].mxu0 %v3183
      %v3307 = vpop.f32.mrb[0].mxu0
      %v3308 = vadd.f32 %v3268, %v3307
      %v3309 = vpop.f32.mrb[0].mxu0
      %v3310 = vpop.f32.mrb[0].mxu0
      %v3311 = vpop.f32.mrb[0].mxu0
      %3312 = vdwg.mxu0
      %v3313 = vmax.f32 %v3308, 0.0
      %v3314 = vpack.c.bf16 %v3313, %v3313
      %v3316 = vsel %vm1467, %v3314, 0
      %3318 = vmatprep.subr.bf16.mxu0 0
      %3319 = vmatpush1.bf16.msra.mxu0 %v1463
      %3320 = vmatprep.subr.bf16.mxu0 0
      %3321 = vmatpush1.bf16.msra.mxu0 %v1464
      %3322 = vmatprep.subr.bf16.mxu0 0
      %3323 = vmatpush1.bf16.msra.mxu0 0
      %3324 = vmatprep.subr.bf16.mxu0 0
      %3325 = vmatpush1.bf16.msra.mxu0 0
      %3326 = vmatprep.subr.bf16.mxu0 0
      %3327 = vmatpush1.bf16.msra.mxu0 0
      %3328 = vmatprep.subr.bf16.mxu0 0
      %3329 = vmatpush1.bf16.msra.mxu0 0
      %3330 = vmatprep.subr.bf16.mxu0 0
      %3331 = vmatpush1.bf16.msra.mxu0 0
      %3332 = vmatprep.subr.bf16.mxu0 0
      %3333 = vmatpush1.bf16.msra.mxu0 0
      %3334 = vmatprep.subr.bf16.mxu0 0
      %3335 = vmatpush1.bf16.msra.mxu0 0
      %3336 = vmatprep.subr.bf16.mxu0 0
      %3337 = vmatpush1.bf16.msra.mxu0 0
      %3338 = vmatprep.subr.bf16.mxu0 0
      %3339 = vmatpush1.bf16.msra.mxu0 0
      %3340 = vmatprep.subr.bf16.mxu0 0
      %3341 = vmatpush1.bf16.msra.mxu0 0
      %3342 = vmatprep.subr.bf16.mxu0 0
      %3343 = vmatpush1.bf16.msra.mxu0 0
      %3344 = vmatprep.subr.bf16.mxu0 0
      %3345 = vmatpush1.bf16.msra.mxu0 0
      %3346 = vmatprep.subr.bf16.mxu0 0
      %3347 = vmatpush1.bf16.msra.mxu0 0
      %3348 = vmatprep.subr.bf16.mxu0 0
      %3349 = vmatpush1.bf16.msra.mxu0 0
      %3350 = vmatprep.mubr.bf16.mxu0 0
      %3351 = vmatmul.mubr.bf16.gmra.mrb[0].mxu0 %v3316
      %v3352 = vpop.f32.mrb[0].mxu0
      %v3353 = vadd.f32 %v1453, %v3352
      %v3354 = vpop.f32.mrb[0].mxu0
      %v3355 = vpop.f32.mrb[0].mxu0
      %v3356 = vpop.f32.mrb[0].mxu0
      %3357 = vdwg.mxu0
      %v3358 = vmax.f32 %v3353, 0.0
      %v3359 = vpack.c.bf16 %v3358, %v3358
      %v3361 = vsel %vm1467, %v3359, 0
      %3363 = vmatprep.subr.bf16.mxu0 0
      %3364 = vmatpush1.bf16.msra.mxu0 %v1527
      %3365 = vmatprep.subr.bf16.mxu0 0
      %3366 = vmatpush1.bf16.msra.mxu0 %v1528
      %3367 = vmatprep.subr.bf16.mxu0 0
      %3368 = vmatpush1.bf16.msra.mxu0 0
      %3369 = vmatprep.subr.bf16.mxu0 0
      %3370 = vmatpush1.bf16.msra.mxu0 0
      %3371 = vmatprep.subr.bf16.mxu0 0
      %3372 = vmatpush1.bf16.msra.mxu0 0
      %3373 = vmatprep.subr.bf16.mxu0 0
      %3374 = vmatpush1.bf16.msra.mxu0 0
      %3375 = vmatprep.subr.bf16.mxu0 0
      %3376 = vmatpush1.bf16.msra.mxu0 0
      %3377 = vmatprep.subr.bf16.mxu0 0
      %3378 = vmatpush1.bf16.msra.mxu0 0
      %3379 = vmatprep.subr.bf16.mxu0 0
      %3380 = vmatpush1.bf16.msra.mxu0 0
      %3381 = vmatprep.subr.bf16.mxu0 0
      %3382 = vmatpush1.bf16.msra.mxu0 0
      %3383 = vmatprep.subr.bf16.mxu0 0
      %3384 = vmatpush1.bf16.msra.mxu0 0
      %3385 = vmatprep.subr.bf16.mxu0 0
      %3386 = vmatpush1.bf16.msra.mxu0 0
      %3387 = vmatprep.subr.bf16.mxu0 0
      %3388 = vmatpush1.bf16.msra.mxu0 0
      %3389 = vmatprep.subr.bf16.mxu0 0
      %3390 = vmatpush1.bf16.msra.mxu0 0
      %3391 = vmatprep.subr.bf16.mxu0 0
      %3392 = vmatpush1.bf16.msra.mxu0 0
      %3393 = vmatprep.subr.bf16.mxu0 0
      %3394 = vmatpush1.bf16.msra.mxu0 0
      %3395 = vmatprep.mubr.bf16.mxu0 0
      %3396 = vmatmul.mubr.bf16.gmra.mrb[0].mxu0 %v3361
      %v3397 = vpop.f32.mrb[0].mxu0
      %v3398 = vadd.f32 %v1517, %v3397
      %v3399 = vpop.f32.mrb[0].mxu0
      %v3400 = vpop.f32.mrb[0].mxu0
      %v3401 = vpop.f32.mrb[0].mxu0
      %3402 = vdwg.mxu0
      %3403 = vmatprep.subr.bf16.mxu0 0
      %3404 = vmatpush1.bf16.msra.mxu0 %v1582
      %3405 = vmatprep.subr.bf16.mxu0 0
      %3406 = vmatpush1.bf16.msra.mxu0 %v1583
      %3407 = vmatprep.subr.bf16.mxu0 0
      %3408 = vmatpush1.bf16.msra.mxu0 0
      %3409 = vmatprep.subr.bf16.mxu0 0
      %3410 = vmatpush1.bf16.msra.mxu0 0
      %3411 = vmatprep.subr.bf16.mxu0 0
      %3412 = vmatpush1.bf16.msra.mxu0 0
      %3413 = vmatprep.subr.bf16.mxu0 0
      %3414 = vmatpush1.bf16.msra.mxu0 0
      %3415 = vmatprep.subr.bf16.mxu0 0
      %3416 = vmatpush1.bf16.msra.mxu0 0
      %3417 = vmatprep.subr.bf16.mxu0 0
      %3418 = vmatpush1.bf16.msra.mxu0 0
      %3419 = vmatprep.subr.bf16.mxu0 0
      %3420 = vmatpush1.bf16.msra.mxu0 0
      %3421 = vmatprep.subr.bf16.mxu0 0
      %3422 = vmatpush1.bf16.msra.mxu0 0
      %3423 = vmatprep.subr.bf16.mxu0 0
      %3424 = vmatpush1.bf16.msra.mxu0 0
      %3425 = vmatprep.subr.bf16.mxu0 0
      %3426 = vmatpush1.bf16.msra.mxu0 0
      %3427 = vmatprep.subr.bf16.mxu0 0
      %3428 = vmatpush1.bf16.msra.mxu0 0
      %3429 = vmatprep.subr.bf16.mxu0 0
      %3430 = vmatpush1.bf16.msra.mxu0 0
      %3431 = vmatprep.subr.bf16.mxu0 0
      %3432 = vmatpush1.bf16.msra.mxu0 0
      %3433 = vmatprep.subr.bf16.mxu0 0
      %3434 = vmatpush1.bf16.msra.mxu0 0
      %3435 = vmatprep.mubr.bf16.mxu0 0
      %3436 = vmatmul.mubr.bf16.gmra.mrb[0].mxu0 %v2584
      %v3437 = vpop.f32.mrb[0].mxu0
      %v3438 = vadd.f32 0.0, %v3437
      %v3439 = vpop.f32.mrb[0].mxu0
      %v3440 = vpop.f32.mrb[0].mxu0
      %v3441 = vpop.f32.mrb[0].mxu0
      %3442 = vdwg.mxu0
      %v3443 = vadd.f32 %v3398, %v3438
      %v3444 = vxor.u32 %v3443, 2147483648
      %v3445 = vmul.f32 %v3444, 1.442695
      %v3446 = vpow.pop %v3445
      %v3447 = vadd.f32 %v3446, 1.0
      %v3448 = vrcp.pop %v3447
      %v3449 = vmul.f32 1.0, %v3448
      %v3450 = vtanh.pop %v3443
      %v3451 = vmul.f32 %v3449, %v2572
      %3453 = vrot.lane.b32.xlu0 %v3450, 32
      %v3454 = vpop.permute.xlu0 %3453
      %v3456 = vmul.f32 %v3449, %v3454
      %3458 = vrot.lane.b32.xlu0 %v3456, 32
      %v3459 = vpop.permute.xlu0 %3458
      %v3461 = vadd.f32 %v3451, %v3459
      %v3462 = vtanh.pop %v3461
      %3464 = vrot.lane.b32.xlu0 %v3462, 32
      %v3465 = vpop.permute.xlu0 %3464
      %v3467 = vmul.f32 %v3449, %v3465
      %v3468 = vpack.c.bf16 %v3467, %v3467
      %3470 = vrot.lane.b32.xlu0 %v3468, 64
      %v3471 = vpop.permute.xlu0 %3470
      %v3473 = vsel %vm1467, %v3471, 0
      %3475 = vmatprep.subr.bf16.mxu0 0
      %3476 = vmatpush1.bf16.msra.mxu0 %v1672
      %3477 = vmatprep.subr.bf16.mxu0 0
      %3478 = vmatpush1.bf16.msra.mxu0 %v1673
      %3479 = vmatprep.subr.bf16.mxu0 0
      %3480 = vmatpush1.bf16.msra.mxu0 0
      %3481 = vmatprep.subr.bf16.mxu0 0
      %3482 = vmatpush1.bf16.msra.mxu0 0
      %3483 = vmatprep.subr.bf16.mxu0 0
      %3484 = vmatpush1.bf16.msra.mxu0 0
      %3485 = vmatprep.subr.bf16.mxu0 0
      %3486 = vmatpush1.bf16.msra.mxu0 0
      %3487 = vmatprep.subr.bf16.mxu0 0
      %3488 = vmatpush1.bf16.msra.mxu0 0
      %3489 = vmatprep.subr.bf16.mxu0 0
      %3490 = vmatpush1.bf16.msra.mxu0 0
      %3491 = vmatprep.subr.bf16.mxu0 0
      %3492 = vmatpush1.bf16.msra.mxu0 0
      %3493 = vmatprep.subr.bf16.mxu0 0
      %3494 = vmatpush1.bf16.msra.mxu0 0
      %3495 = vmatprep.subr.bf16.mxu0 0
      %3496 = vmatpush1.bf16.msra.mxu0 0
      %3497 = vmatprep.subr.bf16.mxu0 0
      %3498 = vmatpush1.bf16.msra.mxu0 0
      %3499 = vmatprep.subr.bf16.mxu0 0
      %3500 = vmatpush1.bf16.msra.mxu0 0
      %3501 = vmatprep.subr.bf16.mxu0 0
      %3502 = vmatpush1.bf16.msra.mxu0 0
      %3503 = vmatprep.subr.bf16.mxu0 0
      %3504 = vmatpush1.bf16.msra.mxu0 0
      %3505 = vmatprep.subr.bf16.mxu0 0
      %3506 = vmatpush1.bf16.msra.mxu0 0
      %3507 = vmatprep.mubr.bf16.mxu0 0
      %3508 = vmatmul.mubr.bf16.gmra.mrb[0].mxu0 %v3473
      %v3509 = vpop.f32.mrb[0].mxu0
      %v3510 = vadd.f32 %v1659, %v3509
      %v3511 = vpop.f32.mrb[0].mxu0
      %v3512 = vpop.f32.mrb[0].mxu0
      %v3513 = vpop.f32.mrb[0].mxu0
      %3514 = vdwg.mxu0
      %v3515 = vmax.f32 %v3510, 0.0
      %v3516 = vpack.c.bf16 %v3515, %v3515
      %v3518 = vsel %vm1467, %v3516, 0
      %3520 = vmatprep.subr.bf16.mxu0 0
      %3521 = vmatpush1.bf16.msra.mxu0 %v1735
      %3522 = vmatprep.subr.bf16.mxu0 0
      %3523 = vmatpush1.bf16.msra.mxu0 %v1736
      %3524 = vmatprep.subr.bf16.mxu0 0
      %3525 = vmatpush1.bf16.msra.mxu0 0
      %3526 = vmatprep.subr.bf16.mxu0 0
      %3527 = vmatpush1.bf16.msra.mxu0 0
      %3528 = vmatprep.subr.bf16.mxu0 0
      %3529 = vmatpush1.bf16.msra.mxu0 0
      %3530 = vmatprep.subr.bf16.mxu0 0
      %3531 = vmatpush1.bf16.msra.mxu0 0
      %3532 = vmatprep.subr.bf16.mxu0 0
      %3533 = vmatpush1.bf16.msra.mxu0 0
      %3534 = vmatprep.subr.bf16.mxu0 0
      %3535 = vmatpush1.bf16.msra.mxu0 0
      %3536 = vmatprep.subr.bf16.mxu0 0
      %3537 = vmatpush1.bf16.msra.mxu0 0
      %3538 = vmatprep.subr.bf16.mxu0 0
      %3539 = vmatpush1.bf16.msra.mxu0 0
      %3540 = vmatprep.subr.bf16.mxu0 0
      %3541 = vmatpush1.bf16.msra.mxu0 0
      %3542 = vmatprep.subr.bf16.mxu0 0
      %3543 = vmatpush1.bf16.msra.mxu0 0
      %3544 = vmatprep.subr.bf16.mxu0 0
      %3545 = vmatpush1.bf16.msra.mxu0 0
      %3546 = vmatprep.subr.bf16.mxu0 0
      %3547 = vmatpush1.bf16.msra.mxu0 0
      %3548 = vmatprep.subr.bf16.mxu0 0
      %3549 = vmatpush1.bf16.msra.mxu0 0
      %3550 = vmatprep.subr.bf16.mxu0 0
      %3551 = vmatpush1.bf16.msra.mxu0 0
      %3552 = vmatprep.mubr.bf16.mxu0 0
      %3553 = vmatmul.mubr.bf16.gmra.mrb[0].mxu0 %v3518
      %v3554 = vpop.f32.mrb[0].mxu0
      %v3555 = vadd.f32 %v1725, %v3554
      %v3556 = vpop.f32.mrb[0].mxu0
      %v3557 = vpop.f32.mrb[0].mxu0
      %v3558 = vpop.f32.mrb[0].mxu0
      %3559 = vdwg.mxu0
      %s3560 = scalar_lea.vmem %s413, 3
      %v3561 = vld [vmem:[%s3560] ss:$8 sm:$0xf]
      %v3562 = vld [vmem:[%s3560] ss:$8 sm:$0x30]
      %v3563 = vor.u32 %v3561, %v3562
      %s3564 = scalar_lea.vmem %s413, 51
      %v3565 = vld [vmem:[%s3564] ss:$8 sm:$0xf]
      %v3566 = vld [vmem:[%s3564] ss:$8 sm:$0x30]
      %v3567 = vor.u32 %v3565, %v3566
      %s3568 = scalar_lea.vmem %s413, 99
      %v3569 = vld [vmem:[%s3568] ss:$8 sm:$0xf]
      %v3570 = vld [vmem:[%s3568] ss:$8 sm:$0x30]
      %v3571 = vor.u32 %v3569, %v3570
      %s3572 = scalar_lea.vmem %s413, 147
      %v3573 = vld [vmem:[%s3572] ss:$8 sm:$0xf]
      %v3574 = vld [vmem:[%s3572] ss:$8 sm:$0x30]
      %v3575 = vor.u32 %v3573, %v3574
      %s3576 = scalar_lea.vmem %s413, 195
      %v3577 = vld [vmem:[%s3576] ss:$8 sm:$0xf]
      %v3578 = vld [vmem:[%s3576] ss:$8 sm:$0x30]
      %v3579 = vor.u32 %v3577, %v3578
      %s3580 = scalar_lea.vmem %s413, 243
      %v3581 = vld [vmem:[%s3580] ss:$8 sm:$0xf]
      %v3582 = vld [vmem:[%s3580] ss:$8 sm:$0x30]
      %v3583 = vor.u32 %v3581, %v3582
      %s3584 = scalar_lea.vmem %s413, 291
      %v3585 = vld [vmem:[%s3584] ss:$8 sm:$0xf]
      %v3586 = vld [vmem:[%s3584] ss:$8 sm:$0x30]
      %v3587 = vor.u32 %v3585, %v3586
      %s3588 = scalar_lea.vmem %s413, 339
      %v3589 = vld [vmem:[%s3588] ss:$8 sm:$0xf]
      %v3590 = vld [vmem:[%s3588] ss:$8 sm:$0x30]
      %v3591 = vor.u32 %v3589, %v3590
      %v3600 = vlaneseq
      %v3601 = vshrl.u32 %v3600, 7
      %v3602 = vsub.s32 0, %v3601
      %v3603 = vrot.slane %v3563, %v3602
      %v3604 = vlaneseq
      %v3605 = vshrl.u32 %v3604, 7
      %v3606 = vsub.s32 1, %v3605
      %v3607 = vrot.slane %v3563, %v3606
      %v3608 = vlaneseq
      %v3609 = vshrl.u32 %v3608, 7
      %v3610 = vsub.s32 2, %v3609
      %v3611 = vrot.slane %v3563, %v3610
      %v3612 = vlaneseq
      %v3613 = vshrl.u32 %v3612, 7
      %v3614 = vsub.s32 3, %v3613
      %v3615 = vrot.slane %v3563, %v3614
      %v3616 = vlaneseq
      %v3617 = vshrl.u32 %v3616, 7
      %v3618 = vsub.s32 4, %v3617
      %v3619 = vrot.slane %v3563, %v3618
      %v3620 = vlaneseq
      %v3621 = vshrl.u32 %v3620, 7
      %v3622 = vsub.s32 5, %v3621
      %v3623 = vrot.slane %v3563, %v3622
      %v3624 = vlaneseq
      %v3625 = vshrl.u32 %v3624, 7
      %v3626 = vsub.s32 0, %v3625
      %v3627 = vrot.slane %v3567, %v3626
      %v3628 = vlaneseq
      %v3629 = vshrl.u32 %v3628, 7
      %v3630 = vsub.s32 1, %v3629
      %v3631 = vrot.slane %v3567, %v3630
      %v3632 = vlaneseq
      %v3633 = vshrl.u32 %v3632, 7
      %v3634 = vsub.s32 2, %v3633
      %v3635 = vrot.slane %v3567, %v3634
      %v3636 = vlaneseq
      %v3637 = vshrl.u32 %v3636, 7
      %v3638 = vsub.s32 3, %v3637
      %v3639 = vrot.slane %v3567, %v3638
      %v3640 = vlaneseq
      %v3641 = vshrl.u32 %v3640, 7
      %v3642 = vsub.s32 4, %v3641
      %v3643 = vrot.slane %v3567, %v3642
      %v3644 = vlaneseq
      %v3645 = vshrl.u32 %v3644, 7
      %v3646 = vsub.s32 5, %v3645
      %v3647 = vrot.slane %v3567, %v3646
      %v3648 = vlaneseq
      %v3649 = vshrl.u32 %v3648, 7
      %v3650 = vsub.s32 0, %v3649
      %v3651 = vrot.slane %v3571, %v3650
      %v3652 = vlaneseq
      %v3653 = vshrl.u32 %v3652, 7
      %v3654 = vsub.s32 1, %v3653
      %v3655 = vrot.slane %v3571, %v3654
      %v3656 = vlaneseq
      %v3657 = vshrl.u32 %v3656, 7
      %v3658 = vsub.s32 2, %v3657
      %v3659 = vrot.slane %v3571, %v3658
      %v3660 = vlaneseq
      %v3661 = vshrl.u32 %v3660, 7
      %v3662 = vsub.s32 3, %v3661
      %v3663 = vrot.slane %v3571, %v3662
      %v3664 = vlaneseq
      %v3665 = vshrl.u32 %v3664, 7
      %v3666 = vsub.s32 4, %v3665
      %v3667 = vrot.slane %v3571, %v3666
      %v3668 = vlaneseq
      %v3669 = vshrl.u32 %v3668, 7
      %v3670 = vsub.s32 5, %v3669
      %v3671 = vrot.slane %v3571, %v3670
      %v3672 = vlaneseq
      %v3673 = vshrl.u32 %v3672, 7
      %v3674 = vsub.s32 0, %v3673
      %v3675 = vrot.slane %v3575, %v3674
      %v3676 = vlaneseq
      %v3677 = vshrl.u32 %v3676, 7
      %v3678 = vsub.s32 1, %v3677
      %v3679 = vrot.slane %v3575, %v3678
      %v3680 = vlaneseq
      %v3681 = vshrl.u32 %v3680, 7
      %v3682 = vsub.s32 2, %v3681
      %v3683 = vrot.slane %v3575, %v3682
      %v3684 = vlaneseq
      %v3685 = vshrl.u32 %v3684, 7
      %v3686 = vsub.s32 3, %v3685
      %v3687 = vrot.slane %v3575, %v3686
      %v3688 = vlaneseq
      %v3689 = vshrl.u32 %v3688, 7
      %v3690 = vsub.s32 4, %v3689
      %v3691 = vrot.slane %v3575, %v3690
      %v3692 = vlaneseq
      %v3693 = vshrl.u32 %v3692, 7
      %v3694 = vsub.s32 5, %v3693
      %v3695 = vrot.slane %v3575, %v3694
      %v3696 = vlaneseq
      %v3697 = vshrl.u32 %v3696, 7
      %v3698 = vsub.s32 0, %v3697
      %v3699 = vrot.slane %v3579, %v3698
      %v3700 = vlaneseq
      %v3701 = vshrl.u32 %v3700, 7
      %v3702 = vsub.s32 1, %v3701
      %v3703 = vrot.slane %v3579, %v3702
      %v3704 = vlaneseq
      %v3705 = vshrl.u32 %v3704, 7
      %v3706 = vsub.s32 2, %v3705
      %v3707 = vrot.slane %v3579, %v3706
      %v3708 = vlaneseq
      %v3709 = vshrl.u32 %v3708, 7
      %v3710 = vsub.s32 3, %v3709
      %v3711 = vrot.slane %v3579, %v3710
      %v3712 = vlaneseq
      %v3713 = vshrl.u32 %v3712, 7
      %v3714 = vsub.s32 4, %v3713
      %v3715 = vrot.slane %v3579, %v3714
      %v3716 = vlaneseq
      %v3717 = vshrl.u32 %v3716, 7
      %v3718 = vsub.s32 5, %v3717
      %v3719 = vrot.slane %v3579, %v3718
      %v3720 = vlaneseq
      %v3721 = vshrl.u32 %v3720, 7
      %v3722 = vsub.s32 0, %v3721
      %v3723 = vrot.slane %v3583, %v3722
      %v3724 = vlaneseq
      %v3725 = vshrl.u32 %v3724, 7
      %v3726 = vsub.s32 1, %v3725
      %v3727 = vrot.slane %v3583, %v3726
      %v3728 = vlaneseq
      %v3729 = vshrl.u32 %v3728, 7
      %v3730 = vsub.s32 2, %v3729
      %v3731 = vrot.slane %v3583, %v3730
      %v3732 = vlaneseq
      %v3733 = vshrl.u32 %v3732, 7
      %v3734 = vsub.s32 3, %v3733
      %v3735 = vrot.slane %v3583, %v3734
      %v3736 = vlaneseq
      %v3737 = vshrl.u32 %v3736, 7
      %v3738 = vsub.s32 4, %v3737
      %v3739 = vrot.slane %v3583, %v3738
      %v3740 = vlaneseq
      %v3741 = vshrl.u32 %v3740, 7
      %v3742 = vsub.s32 5, %v3741
      %v3743 = vrot.slane %v3583, %v3742
      %v3744 = vlaneseq
      %v3745 = vshrl.u32 %v3744, 7
      %v3746 = vsub.s32 0, %v3745
      %v3747 = vrot.slane %v3587, %v3746
      %v3748 = vlaneseq
      %v3749 = vshrl.u32 %v3748, 7
      %v3750 = vsub.s32 1, %v3749
      %v3751 = vrot.slane %v3587, %v3750
      %v3752 = vlaneseq
      %v3753 = vshrl.u32 %v3752, 7
      %v3754 = vsub.s32 2, %v3753
      %v3755 = vrot.slane %v3587, %v3754
      %v3756 = vlaneseq
      %v3757 = vshrl.u32 %v3756, 7
      %v3758 = vsub.s32 3, %v3757
      %v3759 = vrot.slane %v3587, %v3758
      %v3760 = vlaneseq
      %v3761 = vshrl.u32 %v3760, 7
      %v3762 = vsub.s32 4, %v3761
      %v3763 = vrot.slane %v3587, %v3762
      %v3764 = vlaneseq
      %v3765 = vshrl.u32 %v3764, 7
      %v3766 = vsub.s32 5, %v3765
      %v3767 = vrot.slane %v3587, %v3766
      %v3768 = vlaneseq
      %v3769 = vshrl.u32 %v3768, 7
      %v3770 = vsub.s32 0, %v3769
      %v3771 = vrot.slane %v3591, %v3770
      %v3772 = vlaneseq
      %v3773 = vshrl.u32 %v3772, 7
      %v3774 = vsub.s32 1, %v3773
      %v3775 = vrot.slane %v3591, %v3774
      %v3776 = vlaneseq
      %v3777 = vshrl.u32 %v3776, 7
      %v3778 = vsub.s32 2, %v3777
      %v3779 = vrot.slane %v3591, %v3778
      %v3780 = vlaneseq
      %v3781 = vshrl.u32 %v3780, 7
      %v3782 = vsub.s32 3, %v3781
      %v3783 = vrot.slane %v3591, %v3782
      %v3784 = vlaneseq
      %v3785 = vshrl.u32 %v3784, 7
      %v3786 = vsub.s32 4, %v3785
      %v3787 = vrot.slane %v3591, %v3786
      %v3788 = vlaneseq
      %v3789 = vshrl.u32 %v3788, 7
      %v3790 = vsub.s32 5, %v3789
      %v3791 = vrot.slane %v3591, %v3790
      %v3840 = vpack.c.bf16 %v3603, %v3603
      %v3841 = vpack.c.bf16 %v3607, %v3607
      %v3842 = vpack.c.bf16 %v3611, %v3611
      %v3843 = vpack.c.bf16 %v3615, %v3615
      %v3844 = vpack.c.bf16 %v3619, %v3619
      %v3845 = vpack.c.bf16 %v3623, %v3623
      %v3846 = vpack.c.bf16 %v3627, %v3627
      %v3847 = vpack.c.bf16 %v3631, %v3631
      %v3848 = vpack.c.bf16 %v3635, %v3635
      %v3849 = vpack.c.bf16 %v3639, %v3639
      %v3850 = vpack.c.bf16 %v3643, %v3643
      %v3851 = vpack.c.bf16 %v3647, %v3647
      %v3852 = vpack.c.bf16 %v3651, %v3651
      %v3853 = vpack.c.bf16 %v3655, %v3655
      %v3854 = vpack.c.bf16 %v3659, %v3659
      %v3855 = vpack.c.bf16 %v3663, %v3663
      %v3856 = vpack.c.bf16 %v3667, %v3667
      %v3857 = vpack.c.bf16 %v3671, %v3671
      %v3858 = vpack.c.bf16 %v3675, %v3675
      %v3859 = vpack.c.bf16 %v3679, %v3679
      %v3860 = vpack.c.bf16 %v3683, %v3683
      %v3861 = vpack.c.bf16 %v3687, %v3687
      %v3862 = vpack.c.bf16 %v3691, %v3691
      %v3863 = vpack.c.bf16 %v3695, %v3695
      %v3864 = vpack.c.bf16 %v3699, %v3699
      %v3865 = vpack.c.bf16 %v3703, %v3703
      %v3866 = vpack.c.bf16 %v3707, %v3707
      %v3867 = vpack.c.bf16 %v3711, %v3711
      %v3868 = vpack.c.bf16 %v3715, %v3715
      %v3869 = vpack.c.bf16 %v3719, %v3719
      %v3870 = vpack.c.bf16 %v3723, %v3723
      %v3871 = vpack.c.bf16 %v3727, %v3727
      %v3872 = vpack.c.bf16 %v3731, %v3731
      %v3873 = vpack.c.bf16 %v3735, %v3735
      %v3874 = vpack.c.bf16 %v3739, %v3739
      %v3875 = vpack.c.bf16 %v3743, %v3743
      %v3876 = vpack.c.bf16 %v3747, %v3747
      %v3877 = vpack.c.bf16 %v3751, %v3751
      %v3878 = vpack.c.bf16 %v3755, %v3755
      %v3879 = vpack.c.bf16 %v3759, %v3759
      %v3880 = vpack.c.bf16 %v3763, %v3763
      %v3881 = vpack.c.bf16 %v3767, %v3767
      %v3882 = vpack.c.bf16 %v3771, %v3771
      %v3883 = vpack.c.bf16 %v3775, %v3775
      %v3884 = vpack.c.bf16 %v3779, %v3779
      %v3885 = vpack.c.bf16 %v3783, %v3783
      %v3886 = vpack.c.bf16 %v3787, %v3787
      %v3887 = vpack.c.bf16 %v3791, %v3791
      %v3936 = vunpack.c.l.b16 %v3840
      %v3937 = vunpack.c.l.b16 %v3841
      %v3938 = vunpack.c.l.b16 %v3842
      %v3939 = vunpack.c.l.b16 %v3843
      %v3940 = vunpack.c.l.b16 %v3844
      %v3941 = vunpack.c.l.b16 %v3845
      %v3942 = vunpack.c.l.b16 %v3846
      %v3943 = vunpack.c.l.b16 %v3847
      %v3944 = vunpack.c.l.b16 %v3848
      %v3945 = vunpack.c.l.b16 %v3849
      %v3946 = vunpack.c.l.b16 %v3850
      %v3947 = vunpack.c.l.b16 %v3851
      %v3948 = vunpack.c.l.b16 %v3852
      %v3949 = vunpack.c.l.b16 %v3853
      %v3950 = vunpack.c.l.b16 %v3854
      %v3951 = vunpack.c.l.b16 %v3855
      %v3952 = vunpack.c.l.b16 %v3856
      %v3953 = vunpack.c.l.b16 %v3857
      %v3954 = vunpack.c.l.b16 %v3858
      %v3955 = vunpack.c.l.b16 %v3859
      %v3956 = vunpack.c.l.b16 %v3860
      %v3957 = vunpack.c.l.b16 %v3861
      %v3958 = vunpack.c.l.b16 %v3862
      %v3959 = vunpack.c.l.b16 %v3863
      %v3960 = vunpack.c.l.b16 %v3864
      %v3961 = vunpack.c.l.b16 %v3865
      %v3962 = vunpack.c.l.b16 %v3866
      %v3963 = vunpack.c.l.b16 %v3867
      %v3964 = vunpack.c.l.b16 %v3868
      %v3965 = vunpack.c.l.b16 %v3869
      %v3966 = vunpack.c.l.b16 %v3870
      %v3967 = vunpack.c.l.b16 %v3871
      %v3968 = vunpack.c.l.b16 %v3872
      %v3969 = vunpack.c.l.b16 %v3873
      %v3970 = vunpack.c.l.b16 %v3874
      %v3971 = vunpack.c.l.b16 %v3875
      %v3972 = vunpack.c.l.b16 %v3876
      %v3973 = vunpack.c.l.b16 %v3877
      %v3974 = vunpack.c.l.b16 %v3878
      %v3975 = vunpack.c.l.b16 %v3879
      %v3976 = vunpack.c.l.b16 %v3880
      %v3977 = vunpack.c.l.b16 %v3881
      %v3978 = vunpack.c.l.b16 %v3882
      %v3979 = vunpack.c.l.b16 %v3883
      %v3980 = vunpack.c.l.b16 %v3884
      %v3981 = vunpack.c.l.b16 %v3885
      %v3982 = vunpack.c.l.b16 %v3886
      %v3983 = vunpack.c.l.b16 %v3887
      %v3984 = vrot.slane %v3942, 7
      %v3985 = vsel %vm960, %v3984, %v3936
      %v3986 = vrot.slane %v3948, 6
      %v3987 = vsel %vm963, %v3986, %v3985
      %v3988 = vrot.slane %v3954, 5
      %v3989 = vsel %vm966, %v3988, %v3987
      %v3990 = vrot.slane %v3960, 4
      %v3991 = vsel %vm969, %v3990, %v3989
      %v3992 = vrot.slane %v3966, 3
      %v3993 = vsel %vm972, %v3992, %v3991
      %v3994 = vrot.slane %v3972, 2
      %v3995 = vsel %vm975, %v3994, %v3993
      %v3996 = vrot.slane %v3978, 1
      %v3997 = vsel %vm978, %v3996, %v3995
      %v3998 = vrot.slane %v3943, 7
      %v3999 = vsel %vm960, %v3998, %v3937
      %v4000 = vrot.slane %v3949, 6
      %v4001 = vsel %vm963, %v4000, %v3999
      %v4002 = vrot.slane %v3955, 5
      %v4003 = vsel %vm966, %v4002, %v4001
      %v4004 = vrot.slane %v3961, 4
      %v4005 = vsel %vm969, %v4004, %v4003
      %v4006 = vrot.slane %v3967, 3
      %v4007 = vsel %vm972, %v4006, %v4005
      %v4008 = vrot.slane %v3973, 2
      %v4009 = vsel %vm975, %v4008, %v4007
      %v4010 = vrot.slane %v3979, 1
      %v4011 = vsel %vm978, %v4010, %v4009
      %v4012 = vrot.slane %v3944, 7
      %v4013 = vsel %vm960, %v4012, %v3938
      %v4014 = vrot.slane %v3950, 6
      %v4015 = vsel %vm963, %v4014, %v4013
      %v4016 = vrot.slane %v3956, 5
      %v4017 = vsel %vm966, %v4016, %v4015
      %v4018 = vrot.slane %v3962, 4
      %v4019 = vsel %vm969, %v4018, %v4017
      %v4020 = vrot.slane %v3968, 3
      %v4021 = vsel %vm972, %v4020, %v4019
      %v4022 = vrot.slane %v3974, 2
      %v4023 = vsel %vm975, %v4022, %v4021
      %v4024 = vrot.slane %v3980, 1
      %v4025 = vsel %vm978, %v4024, %v4023
      %v4026 = vrot.slane %v3945, 7
      %v4027 = vsel %vm960, %v4026, %v3939
      %v4028 = vrot.slane %v3951, 6
      %v4029 = vsel %vm963, %v4028, %v4027
      %v4030 = vrot.slane %v3957, 5
      %v4031 = vsel %vm966, %v4030, %v4029
      %v4032 = vrot.slane %v3963, 4
      %v4033 = vsel %vm969, %v4032, %v4031
      %v4034 = vrot.slane %v3969, 3
      %v4035 = vsel %vm972, %v4034, %v4033
      %v4036 = vrot.slane %v3975, 2
      %v4037 = vsel %vm975, %v4036, %v4035
      %v4038 = vrot.slane %v3981, 1
      %v4039 = vsel %vm978, %v4038, %v4037
      %v4040 = vrot.slane %v3946, 7
      %v4041 = vsel %vm960, %v4040, %v3940
      %v4042 = vrot.slane %v3952, 6
      %v4043 = vsel %vm963, %v4042, %v4041
      %v4044 = vrot.slane %v3958, 5
      %v4045 = vsel %vm966, %v4044, %v4043
      %v4046 = vrot.slane %v3964, 4
      %v4047 = vsel %vm969, %v4046, %v4045
      %v4048 = vrot.slane %v3970, 3
      %v4049 = vsel %vm972, %v4048, %v4047
      %v4050 = vrot.slane %v3976, 2
      %v4051 = vsel %vm975, %v4050, %v4049
      %v4052 = vrot.slane %v3982, 1
      %v4053 = vsel %vm978, %v4052, %v4051
      %v4054 = vrot.slane %v3947, 7
      %v4055 = vsel %vm960, %v4054, %v3941
      %v4056 = vrot.slane %v3953, 6
      %v4057 = vsel %vm963, %v4056, %v4055
      %v4058 = vrot.slane %v3959, 5
      %v4059 = vsel %vm966, %v4058, %v4057
      %v4060 = vrot.slane %v3965, 4
      %v4061 = vsel %vm969, %v4060, %v4059
      %v4062 = vrot.slane %v3971, 3
      %v4063 = vsel %vm972, %v4062, %v4061
      %v4064 = vrot.slane %v3977, 2
      %v4065 = vsel %vm975, %v4064, %v4063
      %v4066 = vrot.slane %v3983, 1
      %v4067 = vsel %vm978, %v4066, %v4065
      %v4068 = vpack.c.b16 %v3997, %v3997
      %v4069 = vpack.c.b16 %v4011, %v4011
      %v4070 = vpack.c.b16 %v4025, %v4025
      %v4071 = vpack.c.b16 %v4039, %v4039
      %v4072 = vpack.c.b16 %v4053, %v4053
      %v4073 = vpack.c.b16 %v4067, %v4067
      %v4080 = vsel %vm1316, %v4073, 0
      %4082 = vmatprep.subr.bf16.mxu0 0
      %4083 = vmatpush1.bf16.msra.mxu0 %v1231
      %4084 = vmatprep.subr.bf16.mxu0 0
      %4085 = vmatpush1.bf16.msra.mxu0 %v1232
      %4086 = vmatprep.subr.bf16.mxu0 0
      %4087 = vmatpush1.bf16.msra.mxu0 %v1233
      %4088 = vmatprep.subr.bf16.mxu0 0
      %4089 = vmatpush1.bf16.msra.mxu0 %v1234
      %4090 = vmatprep.subr.bf16.mxu0 0
      %4091 = vmatpush1.bf16.msra.mxu0 %v1235
      %4092 = vmatprep.subr.bf16.mxu0 0
      %4093 = vmatpush1.bf16.msra.mxu0 %v1236
      %4094 = vmatprep.subr.bf16.mxu0 0
      %4095 = vmatpush1.bf16.msra.mxu0 %v1237
      %4096 = vmatprep.subr.bf16.mxu0 0
      %4097 = vmatpush1.bf16.msra.mxu0 %v1238
      %4098 = vmatprep.subr.bf16.mxu0 0
      %4099 = vmatpush1.bf16.msra.mxu0 %v1239
      %4100 = vmatprep.subr.bf16.mxu0 0
      %4101 = vmatpush1.bf16.msra.mxu0 %v1240
      %4102 = vmatprep.subr.bf16.mxu0 0
      %4103 = vmatpush1.bf16.msra.mxu0 %v1241
      %4104 = vmatprep.subr.bf16.mxu0 0
      %4105 = vmatpush1.bf16.msra.mxu0 %v1242
      %4106 = vmatprep.subr.bf16.mxu0 0
      %4107 = vmatpush1.bf16.msra.mxu0 %v1243
      %4108 = vmatprep.subr.bf16.mxu0 0
      %4109 = vmatpush1.bf16.msra.mxu0 %v1244
      %4110 = vmatprep.subr.bf16.mxu0 0
      %4111 = vmatpush1.bf16.msra.mxu0 %v1245
      %4112 = vmatprep.subr.bf16.mxu0 0
      %4113 = vmatpush1.bf16.msra.mxu0 %v1246
      %4114 = vmatprep.mubr.bf16.mxu0 %v4069
      %4115 = vmatmul.mubr.bf16.gmra.mrb[0].mxu0 %v4068
      %v4116 = vpop.f32.mrb[0].mxu0
      %v4117 = vadd.f32 %v861, %v4116
      %v4118 = vpop.f32.mrb[0].mxu0
      %v4119 = vpop.f32.mrb[0].mxu0
      %v4120 = vpop.f32.mrb[0].mxu0
      %4121 = vdwg.mxu0
      %4122 = vmatprep.subr.bf16.mxu0 0
      %4123 = vmatpush1.bf16.msra.mxu0 %v1247
      %4124 = vmatprep.subr.bf16.mxu0 0
      %4125 = vmatpush1.bf16.msra.mxu0 %v1248
      %4126 = vmatprep.subr.bf16.mxu0 0
      %4127 = vmatpush1.bf16.msra.mxu0 %v1249
      %4128 = vmatprep.subr.bf16.mxu0 0
      %4129 = vmatpush1.bf16.msra.mxu0 %v1250
      %4130 = vmatprep.subr.bf16.mxu0 0
      %4131 = vmatpush1.bf16.msra.mxu0 %v1251
      %4132 = vmatprep.subr.bf16.mxu0 0
      %4133 = vmatpush1.bf16.msra.mxu0 %v1252
      %4134 = vmatprep.subr.bf16.mxu0 0
      %4135 = vmatpush1.bf16.msra.mxu0 %v1253
      %4136 = vmatprep.subr.bf16.mxu0 0
      %4137 = vmatpush1.bf16.msra.mxu0 %v1254
      %4138 = vmatprep.subr.bf16.mxu0 0
      %4139 = vmatpush1.bf16.msra.mxu0 %v1255
      %4140 = vmatprep.subr.bf16.mxu0 0
      %4141 = vmatpush1.bf16.msra.mxu0 %v1256
      %4142 = vmatprep.subr.bf16.mxu0 0
      %4143 = vmatpush1.bf16.msra.mxu0 %v1257
      %4144 = vmatprep.subr.bf16.mxu0 0
      %4145 = vmatpush1.bf16.msra.mxu0 %v1258
      %4146 = vmatprep.subr.bf16.mxu0 0
      %4147 = vmatpush1.bf16.msra.mxu0 %v1259
      %4148 = vmatprep.subr.bf16.mxu0 0
      %4149 = vmatpush1.bf16.msra.mxu0 %v1260
      %4150 = vmatprep.subr.bf16.mxu0 0
      %4151 = vmatpush1.bf16.msra.mxu0 %v1261
      %4152 = vmatprep.subr.bf16.mxu0 0
      %4153 = vmatpush1.bf16.msra.mxu0 %v1262
      %4154 = vmatprep.mubr.bf16.mxu0 %v4071
      %4155 = vmatmul.mubr.bf16.gmra.mrb[0].mxu0 %v4070
      %v4156 = vpop.f32.mrb[0].mxu0
      %v4157 = vadd.f32 %v4117, %v4156
      %v4158 = vpop.f32.mrb[0].mxu0
      %v4159 = vpop.f32.mrb[0].mxu0
      %v4160 = vpop.f32.mrb[0].mxu0
      %4161 = vdwg.mxu0
      %4162 = vmatprep.subr.bf16.mxu0 0
      %4163 = vmatpush1.bf16.msra.mxu0 %v1263
      %4164 = vmatprep.subr.bf16.mxu0 0
      %4165 = vmatpush1.bf16.msra.mxu0 %v1264
      %4166 = vmatprep.subr.bf16.mxu0 0
      %4167 = vmatpush1.bf16.msra.mxu0 %v1265
      %4168 = vmatprep.subr.bf16.mxu0 0
      %4169 = vmatpush1.bf16.msra.mxu0 %v1266
      %4170 = vmatprep.subr.bf16.mxu0 0
      %4171 = vmatpush1.bf16.msra.mxu0 %v1267
      %4172 = vmatprep.subr.bf16.mxu0 0
      %4173 = vmatpush1.bf16.msra.mxu0 %v1268
      %4174 = vmatprep.subr.bf16.mxu0 0
      %4175 = vmatpush1.bf16.msra.mxu0 %v1269
      %4176 = vmatprep.subr.bf16.mxu0 0
      %4177 = vmatpush1.bf16.msra.mxu0 %v1270
      %4178 = vmatprep.subr.bf16.mxu0 0
      %4179 = vmatpush1.bf16.msra.mxu0 %v1271
      %4180 = vmatprep.subr.bf16.mxu0 0
      %4181 = vmatpush1.bf16.msra.mxu0 %v1272
      %4182 = vmatprep.subr.bf16.mxu0 0
      %4183 = vmatpush1.bf16.msra.mxu0 %v1325
      %4184 = vmatprep.subr.bf16.mxu0 0
      %4185 = vmatpush1.bf16.msra.mxu0 0
      %4186 = vmatprep.subr.bf16.mxu0 0
      %4187 = vmatpush1.bf16.msra.mxu0 0
      %4188 = vmatprep.subr.bf16.mxu0 0
      %4189 = vmatpush1.bf16.msra.mxu0 0
      %4190 = vmatprep.subr.bf16.mxu0 0
      %4191 = vmatpush1.bf16.msra.mxu0 0
      %4192 = vmatprep.subr.bf16.mxu0 0
      %4193 = vmatpush1.bf16.msra.mxu0 0
      %4194 = vmatprep.mubr.bf16.mxu0 %v4080
      %4195 = vmatmul.mubr.bf16.gmra.mrb[0].mxu0 %v4072
      %v4196 = vpop.f32.mrb[0].mxu0
      %v4197 = vadd.f32 %v4157, %v4196
      %v4198 = vpop.f32.mrb[0].mxu0
      %v4199 = vpop.f32.mrb[0].mxu0
      %v4200 = vpop.f32.mrb[0].mxu0
      %4201 = vdwg.mxu0
      %v4202 = vmax.f32 %v4197, 0.0
      %v4203 = vpack.c.bf16 %v4202, %v4202
      %v4205 = vsel %vm1467, %v4203, 0
      %4207 = vmatprep.subr.bf16.mxu0 0
      %4208 = vmatpush1.bf16.msra.mxu0 %v1463
      %4209 = vmatprep.subr.bf16.mxu0 0
      %4210 = vmatpush1.bf16.msra.mxu0 %v1464
      %4211 = vmatprep.subr.bf16.mxu0 0
      %4212 = vmatpush1.bf16.msra.mxu0 0
      %4213 = vmatprep.subr.bf16.mxu0 0
      %4214 = vmatpush1.bf16.msra.mxu0 0
      %4215 = vmatprep.subr.bf16.mxu0 0
      %4216 = vmatpush1.bf16.msra.mxu0 0
      %4217 = vmatprep.subr.bf16.mxu0 0
      %4218 = vmatpush1.bf16.msra.mxu0 0
      %4219 = vmatprep.subr.bf16.mxu0 0
      %4220 = vmatpush1.bf16.msra.mxu0 0
      %4221 = vmatprep.subr.bf16.mxu0 0
      %4222 = vmatpush1.bf16.msra.mxu0 0
      %4223 = vmatprep.subr.bf16.mxu0 0
      %4224 = vmatpush1.bf16.msra.mxu0 0
      %4225 = vmatprep.subr.bf16.mxu0 0
      %4226 = vmatpush1.bf16.msra.mxu0 0
      %4227 = vmatprep.subr.bf16.mxu0 0
      %4228 = vmatpush1.bf16.msra.mxu0 0
      %4229 = vmatprep.subr.bf16.mxu0 0
      %4230 = vmatpush1.bf16.msra.mxu0 0
      %4231 = vmatprep.subr.bf16.mxu0 0
      %4232 = vmatpush1.bf16.msra.mxu0 0
      %4233 = vmatprep.subr.bf16.mxu0 0
      %4234 = vmatpush1.bf16.msra.mxu0 0
      %4235 = vmatprep.subr.bf16.mxu0 0
      %4236 = vmatpush1.bf16.msra.mxu0 0
      %4237 = vmatprep.subr.bf16.mxu0 0
      %4238 = vmatpush1.bf16.msra.mxu0 0
      %4239 = vmatprep.mubr.bf16.mxu0 0
      %4240 = vmatmul.mubr.bf16.gmra.mrb[0].mxu0 %v4205
      %v4241 = vpop.f32.mrb[0].mxu0
      %v4242 = vadd.f32 %v1453, %v4241
      %v4243 = vpop.f32.mrb[0].mxu0
      %v4244 = vpop.f32.mrb[0].mxu0
      %v4245 = vpop.f32.mrb[0].mxu0
      %4246 = vdwg.mxu0
      %v4247 = vmax.f32 %v4242, 0.0
      %v4248 = vpack.c.bf16 %v4247, %v4247
      %v4250 = vsel %vm1467, %v4248, 0
      %4252 = vmatprep.subr.bf16.mxu0 0
      %4253 = vmatpush1.bf16.msra.mxu0 %v1527
      %4254 = vmatprep.subr.bf16.mxu0 0
      %4255 = vmatpush1.bf16.msra.mxu0 %v1528
      %4256 = vmatprep.subr.bf16.mxu0 0
      %4257 = vmatpush1.bf16.msra.mxu0 0
      %4258 = vmatprep.subr.bf16.mxu0 0
      %4259 = vmatpush1.bf16.msra.mxu0 0
      %4260 = vmatprep.subr.bf16.mxu0 0
      %4261 = vmatpush1.bf16.msra.mxu0 0
      %4262 = vmatprep.subr.bf16.mxu0 0
      %4263 = vmatpush1.bf16.msra.mxu0 0
      %4264 = vmatprep.subr.bf16.mxu0 0
      %4265 = vmatpush1.bf16.msra.mxu0 0
      %4266 = vmatprep.subr.bf16.mxu0 0
      %4267 = vmatpush1.bf16.msra.mxu0 0
      %4268 = vmatprep.subr.bf16.mxu0 0
      %4269 = vmatpush1.bf16.msra.mxu0 0
      %4270 = vmatprep.subr.bf16.mxu0 0
      %4271 = vmatpush1.bf16.msra.mxu0 0
      %4272 = vmatprep.subr.bf16.mxu0 0
      %4273 = vmatpush1.bf16.msra.mxu0 0
      %4274 = vmatprep.subr.bf16.mxu0 0
      %4275 = vmatpush1.bf16.msra.mxu0 0
      %4276 = vmatprep.subr.bf16.mxu0 0
      %4277 = vmatpush1.bf16.msra.mxu0 0
      %4278 = vmatprep.subr.bf16.mxu0 0
      %4279 = vmatpush1.bf16.msra.mxu0 0
      %4280 = vmatprep.subr.bf16.mxu0 0
      %4281 = vmatpush1.bf16.msra.mxu0 0
      %4282 = vmatprep.subr.bf16.mxu0 0
      %4283 = vmatpush1.bf16.msra.mxu0 0
      %4284 = vmatprep.mubr.bf16.mxu0 0
      %4285 = vmatmul.mubr.bf16.gmra.mrb[0].mxu0 %v4250
      %v4286 = vpop.f32.mrb[0].mxu0
      %v4287 = vadd.f32 %v1517, %v4286
      %v4288 = vpop.f32.mrb[0].mxu0
      %v4289 = vpop.f32.mrb[0].mxu0
      %v4290 = vpop.f32.mrb[0].mxu0
      %4291 = vdwg.mxu0
      %4292 = vmatprep.subr.bf16.mxu0 0
      %4293 = vmatpush1.bf16.msra.mxu0 %v1582
      %4294 = vmatprep.subr.bf16.mxu0 0
      %4295 = vmatpush1.bf16.msra.mxu0 %v1583
      %4296 = vmatprep.subr.bf16.mxu0 0
      %4297 = vmatpush1.bf16.msra.mxu0 0
      %4298 = vmatprep.subr.bf16.mxu0 0
      %4299 = vmatpush1.bf16.msra.mxu0 0
      %4300 = vmatprep.subr.bf16.mxu0 0
      %4301 = vmatpush1.bf16.msra.mxu0 0
      %4302 = vmatprep.subr.bf16.mxu0 0
      %4303 = vmatpush1.bf16.msra.mxu0 0
      %4304 = vmatprep.subr.bf16.mxu0 0
      %4305 = vmatpush1.bf16.msra.mxu0 0
      %4306 = vmatprep.subr.bf16.mxu0 0
      %4307 = vmatpush1.bf16.msra.mxu0 0
      %4308 = vmatprep.subr.bf16.mxu0 0
      %4309 = vmatpush1.bf16.msra.mxu0 0
      %4310 = vmatprep.subr.bf16.mxu0 0
      %4311 = vmatpush1.bf16.msra.mxu0 0
      %4312 = vmatprep.subr.bf16.mxu0 0
      %4313 = vmatpush1.bf16.msra.mxu0 0
      %4314 = vmatprep.subr.bf16.mxu0 0
      %4315 = vmatpush1.bf16.msra.mxu0 0
      %4316 = vmatprep.subr.bf16.mxu0 0
      %4317 = vmatpush1.bf16.msra.mxu0 0
      %4318 = vmatprep.subr.bf16.mxu0 0
      %4319 = vmatpush1.bf16.msra.mxu0 0
      %4320 = vmatprep.subr.bf16.mxu0 0
      %4321 = vmatpush1.bf16.msra.mxu0 0
      %4322 = vmatprep.subr.bf16.mxu0 0
      %4323 = vmatpush1.bf16.msra.mxu0 0
      %4324 = vmatprep.mubr.bf16.mxu0 0
      %4325 = vmatmul.mubr.bf16.gmra.mrb[0].mxu0 %v3473
      %v4326 = vpop.f32.mrb[0].mxu0
      %v4327 = vadd.f32 0.0, %v4326
      %v4328 = vpop.f32.mrb[0].mxu0
      %v4329 = vpop.f32.mrb[0].mxu0
      %v4330 = vpop.f32.mrb[0].mxu0
      %4331 = vdwg.mxu0
      %v4332 = vadd.f32 %v4287, %v4327
      %v4333 = vxor.u32 %v4332, 2147483648
      %v4334 = vmul.f32 %v4333, 1.442695
      %v4335 = vpow.pop %v4334
      %v4336 = vadd.f32 %v4335, 1.0
      %v4337 = vrcp.pop %v4336
      %v4338 = vmul.f32 1.0, %v4337
      %v4339 = vtanh.pop %v4332
      %v4340 = vmul.f32 %v4338, %v3461
      %4342 = vrot.lane.b32.xlu0 %v4339, 32
      %v4343 = vpop.permute.xlu0 %4342
      %v4345 = vmul.f32 %v4338, %v4343
      %4347 = vrot.lane.b32.xlu0 %v4345, 32
      %v4348 = vpop.permute.xlu0 %4347
      %v4350 = vadd.f32 %v4340, %v4348
      %v4351 = vtanh.pop %v4350
      %4353 = vrot.lane.b32.xlu0 %v4351, 32
      %v4354 = vpop.permute.xlu0 %4353
      %v4356 = vmul.f32 %v4338, %v4354
      %v4357 = vpack.c.bf16 %v4356, %v4356
      %4359 = vrot.lane.b32.xlu0 %v4357, 64
      %v4360 = vpop.permute.xlu0 %4359
      %v4362 = vsel %vm1467, %v4360, 0
      %4364 = vmatprep.subr.bf16.mxu0 0
      %4365 = vmatpush1.bf16.msra.mxu0 %v1672
      %4366 = vmatprep.subr.bf16.mxu0 0
      %4367 = vmatpush1.bf16.msra.mxu0 %v1673
      %4368 = vmatprep.subr.bf16.mxu0 0
      %4369 = vmatpush1.bf16.msra.mxu0 0
      %4370 = vmatprep.subr.bf16.mxu0 0
      %4371 = vmatpush1.bf16.msra.mxu0 0
      %4372 = vmatprep.subr.bf16.mxu0 0
      %4373 = vmatpush1.bf16.msra.mxu0 0
      %4374 = vmatprep.subr.bf16.mxu0 0
      %4375 = vmatpush1.bf16.msra.mxu0 0
      %4376 = vmatprep.subr.bf16.mxu0 0
      %4377 = vmatpush1.bf16.msra.mxu0 0
      %4378 = vmatprep.subr.bf16.mxu0 0
      %4379 = vmatpush1.bf16.msra.mxu0 0
      %4380 = vmatprep.subr.bf16.mxu0 0
      %4381 = vmatpush1.bf16.msra.mxu0 0
      %4382 = vmatprep.subr.bf16.mxu0 0
      %4383 = vmatpush1.bf16.msra.mxu0 0
      %4384 = vmatprep.subr.bf16.mxu0 0
      %4385 = vmatpush1.bf16.msra.mxu0 0
      %4386 = vmatprep.subr.bf16.mxu0 0
      %4387 = vmatpush1.bf16.msra.mxu0 0
      %4388 = vmatprep.subr.bf16.mxu0 0
      %4389 = vmatpush1.bf16.msra.mxu0 0
      %4390 = vmatprep.subr.bf16.mxu0 0
      %4391 = vmatpush1.bf16.msra.mxu0 0
      %4392 = vmatprep.subr.bf16.mxu0 0
      %4393 = vmatpush1.bf16.msra.mxu0 0
      %4394 = vmatprep.subr.bf16.mxu0 0
      %4395 = vmatpush1.bf16.msra.mxu0 0
      %4396 = vmatprep.mubr.bf16.mxu0 0
      %4397 = vmatmul.mubr.bf16.gmra.mrb[0].mxu0 %v4362
      %v4398 = vpop.f32.mrb[0].mxu0
      %v4399 = vadd.f32 %v1659, %v4398
      %v4400 = vpop.f32.mrb[0].mxu0
      %v4401 = vpop.f32.mrb[0].mxu0
      %v4402 = vpop.f32.mrb[0].mxu0
      %4403 = vdwg.mxu0
      %v4404 = vmax.f32 %v4399, 0.0
      %v4405 = vpack.c.bf16 %v4404, %v4404
      %v4407 = vsel %vm1467, %v4405, 0
      %4409 = vmatprep.subr.bf16.mxu0 0
      %4410 = vmatpush1.bf16.msra.mxu0 %v1735
      %4411 = vmatprep.subr.bf16.mxu0 0
      %4412 = vmatpush1.bf16.msra.mxu0 %v1736
      %4413 = vmatprep.subr.bf16.mxu0 0
      %4414 = vmatpush1.bf16.msra.mxu0 0
      %4415 = vmatprep.subr.bf16.mxu0 0
      %4416 = vmatpush1.bf16.msra.mxu0 0
      %4417 = vmatprep.subr.bf16.mxu0 0
      %4418 = vmatpush1.bf16.msra.mxu0 0
      %4419 = vmatprep.subr.bf16.mxu0 0
      %4420 = vmatpush1.bf16.msra.mxu0 0
      %4421 = vmatprep.subr.bf16.mxu0 0
      %4422 = vmatpush1.bf16.msra.mxu0 0
      %4423 = vmatprep.subr.bf16.mxu0 0
      %4424 = vmatpush1.bf16.msra.mxu0 0
      %4425 = vmatprep.subr.bf16.mxu0 0
      %4426 = vmatpush1.bf16.msra.mxu0 0
      %4427 = vmatprep.subr.bf16.mxu0 0
      %4428 = vmatpush1.bf16.msra.mxu0 0
      %4429 = vmatprep.subr.bf16.mxu0 0
      %4430 = vmatpush1.bf16.msra.mxu0 0
      %4431 = vmatprep.subr.bf16.mxu0 0
      %4432 = vmatpush1.bf16.msra.mxu0 0
      %4433 = vmatprep.subr.bf16.mxu0 0
      %4434 = vmatpush1.bf16.msra.mxu0 0
      %4435 = vmatprep.subr.bf16.mxu0 0
      %4436 = vmatpush1.bf16.msra.mxu0 0
      %4437 = vmatprep.subr.bf16.mxu0 0
      %4438 = vmatpush1.bf16.msra.mxu0 0
      %4439 = vmatprep.subr.bf16.mxu0 0
      %4440 = vmatpush1.bf16.msra.mxu0 0
      %4441 = vmatprep.mubr.bf16.mxu0 0
      %4442 = vmatmul.mubr.bf16.gmra.mrb[0].mxu0 %v4407
      %v4443 = vpop.f32.mrb[0].mxu0
      %v4444 = vadd.f32 %v1725, %v4443
      %v4445 = vpop.f32.mrb[0].mxu0
      %v4446 = vpop.f32.mrb[0].mxu0
      %v4447 = vpop.f32.mrb[0].mxu0
      %4448 = vdwg.mxu0
      %s4449 = scalar_lea.vmem %s413, 4
      %v4450 = vld [vmem:[%s4449] ss:$8 sm:$0xf]
      %v4451 = vld [vmem:[%s4449] ss:$8 sm:$0x30]
      %v4452 = vor.u32 %v4450, %v4451
      %s4453 = scalar_lea.vmem %s413, 52
      %v4454 = vld [vmem:[%s4453] ss:$8 sm:$0xf]
      %v4455 = vld [vmem:[%s4453] ss:$8 sm:$0x30]
      %v4456 = vor.u32 %v4454, %v4455
      %s4457 = scalar_lea.vmem %s413, 100
      %v4458 = vld [vmem:[%s4457] ss:$8 sm:$0xf]
      %v4459 = vld [vmem:[%s4457] ss:$8 sm:$0x30]
      %v4460 = vor.u32 %v4458, %v4459
      %s4461 = scalar_lea.vmem %s413, 148
      %v4462 = vld [vmem:[%s4461] ss:$8 sm:$0xf]
      %v4463 = vld [vmem:[%s4461] ss:$8 sm:$0x30]
      %v4464 = vor.u32 %v4462, %v4463
      %s4465 = scalar_lea.vmem %s413, 196
      %v4466 = vld [vmem:[%s4465] ss:$8 sm:$0xf]
      %v4467 = vld [vmem:[%s4465] ss:$8 sm:$0x30]
      %v4468 = vor.u32 %v4466, %v4467
      %s4469 = scalar_lea.vmem %s413, 244
      %v4470 = vld [vmem:[%s4469] ss:$8 sm:$0xf]
      %v4471 = vld [vmem:[%s4469] ss:$8 sm:$0x30]
      %v4472 = vor.u32 %v4470, %v4471
      %s4473 = scalar_lea.vmem %s413, 292
      %v4474 = vld [vmem:[%s4473] ss:$8 sm:$0xf]
      %v4475 = vld [vmem:[%s4473] ss:$8 sm:$0x30]
      %v4476 = vor.u32 %v4474, %v4475
      %s4477 = scalar_lea.vmem %s413, 340
      %v4478 = vld [vmem:[%s4477] ss:$8 sm:$0xf]
      %v4479 = vld [vmem:[%s4477] ss:$8 sm:$0x30]
      %v4480 = vor.u32 %v4478, %v4479
      %v4489 = vlaneseq
      %v4490 = vshrl.u32 %v4489, 7
      %v4491 = vsub.s32 0, %v4490
      %v4492 = vrot.slane %v4452, %v4491
      %v4493 = vlaneseq
      %v4494 = vshrl.u32 %v4493, 7
      %v4495 = vsub.s32 1, %v4494
      %v4496 = vrot.slane %v4452, %v4495
      %v4497 = vlaneseq
      %v4498 = vshrl.u32 %v4497, 7
      %v4499 = vsub.s32 2, %v4498
      %v4500 = vrot.slane %v4452, %v4499
      %v4501 = vlaneseq
      %v4502 = vshrl.u32 %v4501, 7
      %v4503 = vsub.s32 3, %v4502
      %v4504 = vrot.slane %v4452, %v4503
      %v4505 = vlaneseq
      %v4506 = vshrl.u32 %v4505, 7
      %v4507 = vsub.s32 4, %v4506
      %v4508 = vrot.slane %v4452, %v4507
      %v4509 = vlaneseq
      %v4510 = vshrl.u32 %v4509, 7
      %v4511 = vsub.s32 5, %v4510
      %v4512 = vrot.slane %v4452, %v4511
      %v4513 = vlaneseq
      %v4514 = vshrl.u32 %v4513, 7
      %v4515 = vsub.s32 0, %v4514
      %v4516 = vrot.slane %v4456, %v4515
      %v4517 = vlaneseq
      %v4518 = vshrl.u32 %v4517, 7
      %v4519 = vsub.s32 1, %v4518
      %v4520 = vrot.slane %v4456, %v4519
      %v4521 = vlaneseq
      %v4522 = vshrl.u32 %v4521, 7
      %v4523 = vsub.s32 2, %v4522
      %v4524 = vrot.slane %v4456, %v4523
      %v4525 = vlaneseq
      %v4526 = vshrl.u32 %v4525, 7
      %v4527 = vsub.s32 3, %v4526
      %v4528 = vrot.slane %v4456, %v4527
      %v4529 = vlaneseq
      %v4530 = vshrl.u32 %v4529, 7
      %v4531 = vsub.s32 4, %v4530
      %v4532 = vrot.slane %v4456, %v4531
      %v4533 = vlaneseq
      %v4534 = vshrl.u32 %v4533, 7
      %v4535 = vsub.s32 5, %v4534
      %v4536 = vrot.slane %v4456, %v4535
      %v4537 = vlaneseq
      %v4538 = vshrl.u32 %v4537, 7
      %v4539 = vsub.s32 0, %v4538
      %v4540 = vrot.slane %v4460, %v4539
      %v4541 = vlaneseq
      %v4542 = vshrl.u32 %v4541, 7
      %v4543 = vsub.s32 1, %v4542
      %v4544 = vrot.slane %v4460, %v4543
      %v4545 = vlaneseq
      %v4546 = vshrl.u32 %v4545, 7
      %v4547 = vsub.s32 2, %v4546
      %v4548 = vrot.slane %v4460, %v4547
      %v4549 = vlaneseq
      %v4550 = vshrl.u32 %v4549, 7
      %v4551 = vsub.s32 3, %v4550
      %v4552 = vrot.slane %v4460, %v4551
      %v4553 = vlaneseq
      %v4554 = vshrl.u32 %v4553, 7
      %v4555 = vsub.s32 4, %v4554
      %v4556 = vrot.slane %v4460, %v4555
      %v4557 = vlaneseq
      %v4558 = vshrl.u32 %v4557, 7
      %v4559 = vsub.s32 5, %v4558
      %v4560 = vrot.slane %v4460, %v4559
      %v4561 = vlaneseq
      %v4562 = vshrl.u32 %v4561, 7
      %v4563 = vsub.s32 0, %v4562
      %v4564 = vrot.slane %v4464, %v4563
      %v4565 = vlaneseq
      %v4566 = vshrl.u32 %v4565, 7
      %v4567 = vsub.s32 1, %v4566
      %v4568 = vrot.slane %v4464, %v4567
      %v4569 = vlaneseq
      %v4570 = vshrl.u32 %v4569, 7
      %v4571 = vsub.s32 2, %v4570
      %v4572 = vrot.slane %v4464, %v4571
      %v4573 = vlaneseq
      %v4574 = vshrl.u32 %v4573, 7
      %v4575 = vsub.s32 3, %v4574
      %v4576 = vrot.slane %v4464, %v4575
      %v4577 = vlaneseq
      %v4578 = vshrl.u32 %v4577, 7
      %v4579 = vsub.s32 4, %v4578
      %v4580 = vrot.slane %v4464, %v4579
      %v4581 = vlaneseq
      %v4582 = vshrl.u32 %v4581, 7
      %v4583 = vsub.s32 5, %v4582
      %v4584 = vrot.slane %v4464, %v4583
      %v4585 = vlaneseq
      %v4586 = vshrl.u32 %v4585, 7
      %v4587 = vsub.s32 0, %v4586
      %v4588 = vrot.slane %v4468, %v4587
      %v4589 = vlaneseq
      %v4590 = vshrl.u32 %v4589, 7
      %v4591 = vsub.s32 1, %v4590
      %v4592 = vrot.slane %v4468, %v4591
      %v4593 = vlaneseq
      %v4594 = vshrl.u32 %v4593, 7
      %v4595 = vsub.s32 2, %v4594
      %v4596 = vrot.slane %v4468, %v4595
      %v4597 = vlaneseq
      %v4598 = vshrl.u32 %v4597, 7
      %v4599 = vsub.s32 3, %v4598
      %v4600 = vrot.slane %v4468, %v4599
      %v4601 = vlaneseq
      %v4602 = vshrl.u32 %v4601, 7
      %v4603 = vsub.s32 4, %v4602
      %v4604 = vrot.slane %v4468, %v4603
      %v4605 = vlaneseq
      %v4606 = vshrl.u32 %v4605, 7
      %v4607 = vsub.s32 5, %v4606
      %v4608 = vrot.slane %v4468, %v4607
      %v4609 = vlaneseq
      %v4610 = vshrl.u32 %v4609, 7
      %v4611 = vsub.s32 0, %v4610
      %v4612 = vrot.slane %v4472, %v4611
      %v4613 = vlaneseq
      %v4614 = vshrl.u32 %v4613, 7
      %v4615 = vsub.s32 1, %v4614
      %v4616 = vrot.slane %v4472, %v4615
      %v4617 = vlaneseq
      %v4618 = vshrl.u32 %v4617, 7
      %v4619 = vsub.s32 2, %v4618
      %v4620 = vrot.slane %v4472, %v4619
      %v4621 = vlaneseq
      %v4622 = vshrl.u32 %v4621, 7
      %v4623 = vsub.s32 3, %v4622
      %v4624 = vrot.slane %v4472, %v4623
      %v4625 = vlaneseq
      %v4626 = vshrl.u32 %v4625, 7
      %v4627 = vsub.s32 4, %v4626
      %v4628 = vrot.slane %v4472, %v4627
      %v4629 = vlaneseq
      %v4630 = vshrl.u32 %v4629, 7
      %v4631 = vsub.s32 5, %v4630
      %v4632 = vrot.slane %v4472, %v4631
      %v4633 = vlaneseq
      %v4634 = vshrl.u32 %v4633, 7
      %v4635 = vsub.s32 0, %v4634
      %v4636 = vrot.slane %v4476, %v4635
      %v4637 = vlaneseq
      %v4638 = vshrl.u32 %v4637, 7
      %v4639 = vsub.s32 1, %v4638
      %v4640 = vrot.slane %v4476, %v4639
      %v4641 = vlaneseq
      %v4642 = vshrl.u32 %v4641, 7
      %v4643 = vsub.s32 2, %v4642
      %v4644 = vrot.slane %v4476, %v4643
      %v4645 = vlaneseq
      %v4646 = vshrl.u32 %v4645, 7
      %v4647 = vsub.s32 3, %v4646
      %v4648 = vrot.slane %v4476, %v4647
      %v4649 = vlaneseq
      %v4650 = vshrl.u32 %v4649, 7
      %v4651 = vsub.s32 4, %v4650
      %v4652 = vrot.slane %v4476, %v4651
      %v4653 = vlaneseq
      %v4654 = vshrl.u32 %v4653, 7
      %v4655 = vsub.s32 5, %v4654
      %v4656 = vrot.slane %v4476, %v4655
      %v4657 = vlaneseq
      %v4658 = vshrl.u32 %v4657, 7
      %v4659 = vsub.s32 0, %v4658
      %v4660 = vrot.slane %v4480, %v4659
      %v4661 = vlaneseq
      %v4662 = vshrl.u32 %v4661, 7
      %v4663 = vsub.s32 1, %v4662
      %v4664 = vrot.slane %v4480, %v4663
      %v4665 = vlaneseq
      %v4666 = vshrl.u32 %v4665, 7
      %v4667 = vsub.s32 2, %v4666
      %v4668 = vrot.slane %v4480, %v4667
      %v4669 = vlaneseq
      %v4670 = vshrl.u32 %v4669, 7
      %v4671 = vsub.s32 3, %v4670
      %v4672 = vrot.slane %v4480, %v4671
      %v4673 = vlaneseq
      %v4674 = vshrl.u32 %v4673, 7
      %v4675 = vsub.s32 4, %v4674
      %v4676 = vrot.slane %v4480, %v4675
      %v4677 = vlaneseq
      %v4678 = vshrl.u32 %v4677, 7
      %v4679 = vsub.s32 5, %v4678
      %v4680 = vrot.slane %v4480, %v4679
      %v4729 = vpack.c.bf16 %v4492, %v4492
      %v4730 = vpack.c.bf16 %v4496, %v4496
      %v4731 = vpack.c.bf16 %v4500, %v4500
      %v4732 = vpack.c.bf16 %v4504, %v4504
      %v4733 = vpack.c.bf16 %v4508, %v4508
      %v4734 = vpack.c.bf16 %v4512, %v4512
      %v4735 = vpack.c.bf16 %v4516, %v4516
      %v4736 = vpack.c.bf16 %v4520, %v4520
      %v4737 = vpack.c.bf16 %v4524, %v4524
      %v4738 = vpack.c.bf16 %v4528, %v4528
      %v4739 = vpack.c.bf16 %v4532, %v4532
      %v4740 = vpack.c.bf16 %v4536, %v4536
      %v4741 = vpack.c.bf16 %v4540, %v4540
      %v4742 = vpack.c.bf16 %v4544, %v4544
      %v4743 = vpack.c.bf16 %v4548, %v4548
      %v4744 = vpack.c.bf16 %v4552, %v4552
      %v4745 = vpack.c.bf16 %v4556, %v4556
      %v4746 = vpack.c.bf16 %v4560, %v4560
      %v4747 = vpack.c.bf16 %v4564, %v4564
      %v4748 = vpack.c.bf16 %v4568, %v4568
      %v4749 = vpack.c.bf16 %v4572, %v4572
      %v4750 = vpack.c.bf16 %v4576, %v4576
      %v4751 = vpack.c.bf16 %v4580, %v4580
      %v4752 = vpack.c.bf16 %v4584, %v4584
      %v4753 = vpack.c.bf16 %v4588, %v4588
      %v4754 = vpack.c.bf16 %v4592, %v4592
      %v4755 = vpack.c.bf16 %v4596, %v4596
      %v4756 = vpack.c.bf16 %v4600, %v4600
      %v4757 = vpack.c.bf16 %v4604, %v4604
      %v4758 = vpack.c.bf16 %v4608, %v4608
      %v4759 = vpack.c.bf16 %v4612, %v4612
      %v4760 = vpack.c.bf16 %v4616, %v4616
      %v4761 = vpack.c.bf16 %v4620, %v4620
      %v4762 = vpack.c.bf16 %v4624, %v4624
      %v4763 = vpack.c.bf16 %v4628, %v4628
      %v4764 = vpack.c.bf16 %v4632, %v4632
      %v4765 = vpack.c.bf16 %v4636, %v4636
      %v4766 = vpack.c.bf16 %v4640, %v4640
      %v4767 = vpack.c.bf16 %v4644, %v4644
      %v4768 = vpack.c.bf16 %v4648, %v4648
      %v4769 = vpack.c.bf16 %v4652, %v4652
      %v4770 = vpack.c.bf16 %v4656, %v4656
      %v4771 = vpack.c.bf16 %v4660, %v4660
      %v4772 = vpack.c.bf16 %v4664, %v4664
      %v4773 = vpack.c.bf16 %v4668, %v4668
      %v4774 = vpack.c.bf16 %v4672, %v4672
      %v4775 = vpack.c.bf16 %v4676, %v4676
      %v4776 = vpack.c.bf16 %v4680, %v4680
      %v4825 = vunpack.c.l.b16 %v4729
      %v4826 = vunpack.c.l.b16 %v4730
      %v4827 = vunpack.c.l.b16 %v4731
      %v4828 = vunpack.c.l.b16 %v4732
      %v4829 = vunpack.c.l.b16 %v4733
      %v4830 = vunpack.c.l.b16 %v4734
      %v4831 = vunpack.c.l.b16 %v4735
      %v4832 = vunpack.c.l.b16 %v4736
      %v4833 = vunpack.c.l.b16 %v4737
      %v4834 = vunpack.c.l.b16 %v4738
      %v4835 = vunpack.c.l.b16 %v4739
      %v4836 = vunpack.c.l.b16 %v4740
      %v4837 = vunpack.c.l.b16 %v4741
      %v4838 = vunpack.c.l.b16 %v4742
      %v4839 = vunpack.c.l.b16 %v4743
      %v4840 = vunpack.c.l.b16 %v4744
      %v4841 = vunpack.c.l.b16 %v4745
      %v4842 = vunpack.c.l.b16 %v4746
      %v4843 = vunpack.c.l.b16 %v4747
      %v4844 = vunpack.c.l.b16 %v4748
      %v4845 = vunpack.c.l.b16 %v4749
      %v4846 = vunpack.c.l.b16 %v4750
      %v4847 = vunpack.c.l.b16 %v4751
      %v4848 = vunpack.c.l.b16 %v4752
      %v4849 = vunpack.c.l.b16 %v4753
      %v4850 = vunpack.c.l.b16 %v4754
      %v4851 = vunpack.c.l.b16 %v4755
      %v4852 = vunpack.c.l.b16 %v4756
      %v4853 = vunpack.c.l.b16 %v4757
      %v4854 = vunpack.c.l.b16 %v4758
      %v4855 = vunpack.c.l.b16 %v4759
      %v4856 = vunpack.c.l.b16 %v4760
      %v4857 = vunpack.c.l.b16 %v4761
      %v4858 = vunpack.c.l.b16 %v4762
      %v4859 = vunpack.c.l.b16 %v4763
      %v4860 = vunpack.c.l.b16 %v4764
      %v4861 = vunpack.c.l.b16 %v4765
      %v4862 = vunpack.c.l.b16 %v4766
      %v4863 = vunpack.c.l.b16 %v4767
      %v4864 = vunpack.c.l.b16 %v4768
      %v4865 = vunpack.c.l.b16 %v4769
      %v4866 = vunpack.c.l.b16 %v4770
      %v4867 = vunpack.c.l.b16 %v4771
      %v4868 = vunpack.c.l.b16 %v4772
      %v4869 = vunpack.c.l.b16 %v4773
      %v4870 = vunpack.c.l.b16 %v4774
      %v4871 = vunpack.c.l.b16 %v4775
      %v4872 = vunpack.c.l.b16 %v4776
      %v4873 = vrot.slane %v4831, 7
      %v4874 = vsel %vm960, %v4873, %v4825
      %v4875 = vrot.slane %v4837, 6
      %v4876 = vsel %vm963, %v4875, %v4874
      %v4877 = vrot.slane %v4843, 5
      %v4878 = vsel %vm966, %v4877, %v4876
      %v4879 = vrot.slane %v4849, 4
      %v4880 = vsel %vm969, %v4879, %v4878
      %v4881 = vrot.slane %v4855, 3
      %v4882 = vsel %vm972, %v4881, %v4880
      %v4883 = vrot.slane %v4861, 2
      %v4884 = vsel %vm975, %v4883, %v4882
      %v4885 = vrot.slane %v4867, 1
      %v4886 = vsel %vm978, %v4885, %v4884
      %v4887 = vrot.slane %v4832, 7
      %v4888 = vsel %vm960, %v4887, %v4826
      %v4889 = vrot.slane %v4838, 6
      %v4890 = vsel %vm963, %v4889, %v4888
      %v4891 = vrot.slane %v4844, 5
      %v4892 = vsel %vm966, %v4891, %v4890
      %v4893 = vrot.slane %v4850, 4
      %v4894 = vsel %vm969, %v4893, %v4892
      %v4895 = vrot.slane %v4856, 3
      %v4896 = vsel %vm972, %v4895, %v4894
      %v4897 = vrot.slane %v4862, 2
      %v4898 = vsel %vm975, %v4897, %v4896
      %v4899 = vrot.slane %v4868, 1
      %v4900 = vsel %vm978, %v4899, %v4898
      %v4901 = vrot.slane %v4833, 7
      %v4902 = vsel %vm960, %v4901, %v4827
      %v4903 = vrot.slane %v4839, 6
      %v4904 = vsel %vm963, %v4903, %v4902
      %v4905 = vrot.slane %v4845, 5
      %v4906 = vsel %vm966, %v4905, %v4904
      %v4907 = vrot.slane %v4851, 4
      %v4908 = vsel %vm969, %v4907, %v4906
      %v4909 = vrot.slane %v4857, 3
      %v4910 = vsel %vm972, %v4909, %v4908
      %v4911 = vrot.slane %v4863, 2
      %v4912 = vsel %vm975, %v4911, %v4910
      %v4913 = vrot.slane %v4869, 1
      %v4914 = vsel %vm978, %v4913, %v4912
      %v4915 = vrot.slane %v4834, 7
      %v4916 = vsel %vm960, %v4915, %v4828
      %v4917 = vrot.slane %v4840, 6
      %v4918 = vsel %vm963, %v4917, %v4916
      %v4919 = vrot.slane %v4846, 5
      %v4920 = vsel %vm966, %v4919, %v4918
      %v4921 = vrot.slane %v4852, 4
      %v4922 = vsel %vm969, %v4921, %v4920
      %v4923 = vrot.slane %v4858, 3
      %v4924 = vsel %vm972, %v4923, %v4922
      %v4925 = vrot.slane %v4864, 2
      %v4926 = vsel %vm975, %v4925, %v4924
      %v4927 = vrot.slane %v4870, 1
      %v4928 = vsel %vm978, %v4927, %v4926
      %v4929 = vrot.slane %v4835, 7
      %v4930 = vsel %vm960, %v4929, %v4829
      %v4931 = vrot.slane %v4841, 6
      %v4932 = vsel %vm963, %v4931, %v4930
      %v4933 = vrot.slane %v4847, 5
      %v4934 = vsel %vm966, %v4933, %v4932
      %v4935 = vrot.slane %v4853, 4
      %v4936 = vsel %vm969, %v4935, %v4934
      %v4937 = vrot.slane %v4859, 3
      %v4938 = vsel %vm972, %v4937, %v4936
      %v4939 = vrot.slane %v4865, 2
      %v4940 = vsel %vm975, %v4939, %v4938
      %v4941 = vrot.slane %v4871, 1
      %v4942 = vsel %vm978, %v4941, %v4940
      %v4943 = vrot.slane %v4836, 7
      %v4944 = vsel %vm960, %v4943, %v4830
      %v4945 = vrot.slane %v4842, 6
      %v4946 = vsel %vm963, %v4945, %v4944
      %v4947 = vrot.slane %v4848, 5
      %v4948 = vsel %vm966, %v4947, %v4946
      %v4949 = vrot.slane %v4854, 4
      %v4950 = vsel %vm969, %v4949, %v4948
      %v4951 = vrot.slane %v4860, 3
      %v4952 = vsel %vm972, %v4951, %v4950
      %v4953 = vrot.slane %v4866, 2
      %v4954 = vsel %vm975, %v4953, %v4952
      %v4955 = vrot.slane %v4872, 1
      %v4956 = vsel %vm978, %v4955, %v4954
      %v4957 = vpack.c.b16 %v4886, %v4886
      %v4958 = vpack.c.b16 %v4900, %v4900
      %v4959 = vpack.c.b16 %v4914, %v4914
      %v4960 = vpack.c.b16 %v4928, %v4928
      %v4961 = vpack.c.b16 %v4942, %v4942
      %v4962 = vpack.c.b16 %v4956, %v4956
      %v4969 = vsel %vm1316, %v4962, 0
      %4971 = vmatprep.subr.bf16.mxu0 0
      %4972 = vmatpush1.bf16.msra.mxu0 %v1231
      %4973 = vmatprep.subr.bf16.mxu0 0
      %4974 = vmatpush1.bf16.msra.mxu0 %v1232
      %4975 = vmatprep.subr.bf16.mxu0 0
      %4976 = vmatpush1.bf16.msra.mxu0 %v1233
      %4977 = vmatprep.subr.bf16.mxu0 0
      %4978 = vmatpush1.bf16.msra.mxu0 %v1234
      %4979 = vmatprep.subr.bf16.mxu0 0
      %4980 = vmatpush1.bf16.msra.mxu0 %v1235
      %4981 = vmatprep.subr.bf16.mxu0 0
      %4982 = vmatpush1.bf16.msra.mxu0 %v1236
      %4983 = vmatprep.subr.bf16.mxu0 0
      %4984 = vmatpush1.bf16.msra.mxu0 %v1237
      %4985 = vmatprep.subr.bf16.mxu0 0
      %4986 = vmatpush1.bf16.msra.mxu0 %v1238
      %4987 = vmatprep.subr.bf16.mxu0 0
      %4988 = vmatpush1.bf16.msra.mxu0 %v1239
      %4989 = vmatprep.subr.bf16.mxu0 0
      %4990 = vmatpush1.bf16.msra.mxu0 %v1240
      %4991 = vmatprep.subr.bf16.mxu0 0
      %4992 = vmatpush1.bf16.msra.mxu0 %v1241
      %4993 = vmatprep.subr.bf16.mxu0 0
      %4994 = vmatpush1.bf16.msra.mxu0 %v1242
      %4995 = vmatprep.subr.bf16.mxu0 0
      %4996 = vmatpush1.bf16.msra.mxu0 %v1243
      %4997 = vmatprep.subr.bf16.mxu0 0
      %4998 = vmatpush1.bf16.msra.mxu0 %v1244
      %4999 = vmatprep.subr.bf16.mxu0 0
      %5000 = vmatpush1.bf16.msra.mxu0 %v1245
      %5001 = vmatprep.subr.bf16.mxu0 0
      %5002 = vmatpush1.bf16.msra.mxu0 %v1246
      %5003 = vmatprep.mubr.bf16.mxu0 %v4958
      %5004 = vmatmul.mubr.bf16.gmra.mrb[0].mxu0 %v4957
      %v5005 = vpop.f32.mrb[0].mxu0
      %v5006 = vadd.f32 %v861, %v5005
      %v5007 = vpop.f32.mrb[0].mxu0
      %v5008 = vpop.f32.mrb[0].mxu0
      %v5009 = vpop.f32.mrb[0].mxu0
      %5010 = vdwg.mxu0
      %5011 = vmatprep.subr.bf16.mxu0 0
      %5012 = vmatpush1.bf16.msra.mxu0 %v1247
      %5013 = vmatprep.subr.bf16.mxu0 0
      %5014 = vmatpush1.bf16.msra.mxu0 %v1248
      %5015 = vmatprep.subr.bf16.mxu0 0
      %5016 = vmatpush1.bf16.msra.mxu0 %v1249
      %5017 = vmatprep.subr.bf16.mxu0 0
      %5018 = vmatpush1.bf16.msra.mxu0 %v1250
      %5019 = vmatprep.subr.bf16.mxu0 0
      %5020 = vmatpush1.bf16.msra.mxu0 %v1251
      %5021 = vmatprep.subr.bf16.mxu0 0
      %5022 = vmatpush1.bf16.msra.mxu0 %v1252
      %5023 = vmatprep.subr.bf16.mxu0 0
      %5024 = vmatpush1.bf16.msra.mxu0 %v1253
      %5025 = vmatprep.subr.bf16.mxu0 0
      %5026 = vmatpush1.bf16.msra.mxu0 %v1254
      %5027 = vmatprep.subr.bf16.mxu0 0
      %5028 = vmatpush1.bf16.msra.mxu0 %v1255
      %5029 = vmatprep.subr.bf16.mxu0 0
      %5030 = vmatpush1.bf16.msra.mxu0 %v1256
      %5031 = vmatprep.subr.bf16.mxu0 0
      %5032 = vmatpush1.bf16.msra.mxu0 %v1257
      %5033 = vmatprep.subr.bf16.mxu0 0
      %5034 = vmatpush1.bf16.msra.mxu0 %v1258
      %5035 = vmatprep.subr.bf16.mxu0 0
      %5036 = vmatpush1.bf16.msra.mxu0 %v1259
      %5037 = vmatprep.subr.bf16.mxu0 0
      %5038 = vmatpush1.bf16.msra.mxu0 %v1260
      %5039 = vmatprep.subr.bf16.mxu0 0
      %5040 = vmatpush1.bf16.msra.mxu0 %v1261
      %5041 = vmatprep.subr.bf16.mxu0 0
      %5042 = vmatpush1.bf16.msra.mxu0 %v1262
      %5043 = vmatprep.mubr.bf16.mxu0 %v4960
      %5044 = vmatmul.mubr.bf16.gmra.mrb[0].mxu0 %v4959
      %v5045 = vpop.f32.mrb[0].mxu0
      %v5046 = vadd.f32 %v5006, %v5045
      %v5047 = vpop.f32.mrb[0].mxu0
      %v5048 = vpop.f32.mrb[0].mxu0
      %v5049 = vpop.f32.mrb[0].mxu0
      %5050 = vdwg.mxu0
      %5051 = vmatprep.subr.bf16.mxu0 0
      %5052 = vmatpush1.bf16.msra.mxu0 %v1263
      %5053 = vmatprep.subr.bf16.mxu0 0
      %5054 = vmatpush1.bf16.msra.mxu0 %v1264
      %5055 = vmatprep.subr.bf16.mxu0 0
      %5056 = vmatpush1.bf16.msra.mxu0 %v1265
      %5057 = vmatprep.subr.bf16.mxu0 0
      %5058 = vmatpush1.bf16.msra.mxu0 %v1266
      %5059 = vmatprep.subr.bf16.mxu0 0
      %5060 = vmatpush1.bf16.msra.mxu0 %v1267
      %5061 = vmatprep.subr.bf16.mxu0 0
      %5062 = vmatpush1.bf16.msra.mxu0 %v1268
      %5063 = vmatprep.subr.bf16.mxu0 0
      %5064 = vmatpush1.bf16.msra.mxu0 %v1269
      %5065 = vmatprep.subr.bf16.mxu0 0
      %5066 = vmatpush1.bf16.msra.mxu0 %v1270
      %5067 = vmatprep.subr.bf16.mxu0 0
      %5068 = vmatpush1.bf16.msra.mxu0 %v1271
      %5069 = vmatprep.subr.bf16.mxu0 0
      %5070 = vmatpush1.bf16.msra.mxu0 %v1272
      %5071 = vmatprep.subr.bf16.mxu0 0
      %5072 = vmatpush1.bf16.msra.mxu0 %v1325
      %5073 = vmatprep.subr.bf16.mxu0 0
      %5074 = vmatpush1.bf16.msra.mxu0 0
      %5075 = vmatprep.subr.bf16.mxu0 0
      %5076 = vmatpush1.bf16.msra.mxu0 0
      %5077 = vmatprep.subr.bf16.mxu0 0
      %5078 = vmatpush1.bf16.msra.mxu0 0
      %5079 = vmatprep.subr.bf16.mxu0 0
      %5080 = vmatpush1.bf16.msra.mxu0 0
      %5081 = vmatprep.subr.bf16.mxu0 0
      %5082 = vmatpush1.bf16.msra.mxu0 0
      %5083 = vmatprep.mubr.bf16.mxu0 %v4969
      %5084 = vmatmul.mubr.bf16.gmra.mrb[0].mxu0 %v4961
      %v5085 = vpop.f32.mrb[0].mxu0
      %v5086 = vadd.f32 %v5046, %v5085
      %v5087 = vpop.f32.mrb[0].mxu0
      %v5088 = vpop.f32.mrb[0].mxu0
      %v5089 = vpop.f32.mrb[0].mxu0
      %5090 = vdwg.mxu0
      %v5091 = vmax.f32 %v5086, 0.0
      %v5092 = vpack.c.bf16 %v5091, %v5091
      %v5094 = vsel %vm1467, %v5092, 0
      %5096 = vmatprep.subr.bf16.mxu0 0
      %5097 = vmatpush1.bf16.msra.mxu0 %v1463
      %5098 = vmatprep.subr.bf16.mxu0 0
      %5099 = vmatpush1.bf16.msra.mxu0 %v1464
      %5100 = vmatprep.subr.bf16.mxu0 0
      %5101 = vmatpush1.bf16.msra.mxu0 0
      %5102 = vmatprep.subr.bf16.mxu0 0
      %5103 = vmatpush1.bf16.msra.mxu0 0
      %5104 = vmatprep.subr.bf16.mxu0 0
      %5105 = vmatpush1.bf16.msra.mxu0 0
      %5106 = vmatprep.subr.bf16.mxu0 0
      %5107 = vmatpush1.bf16.msra.mxu0 0
      %5108 = vmatprep.subr.bf16.mxu0 0
      %5109 = vmatpush1.bf16.msra.mxu0 0
      %5110 = vmatprep.subr.bf16.mxu0 0
      %5111 = vmatpush1.bf16.msra.mxu0 0
      %5112 = vmatprep.subr.bf16.mxu0 0
      %5113 = vmatpush1.bf16.msra.mxu0 0
      %5114 = vmatprep.subr.bf16.mxu0 0
      %5115 = vmatpush1.bf16.msra.mxu0 0
      %5116 = vmatprep.subr.bf16.mxu0 0
      %5117 = vmatpush1.bf16.msra.mxu0 0
      %5118 = vmatprep.subr.bf16.mxu0 0
      %5119 = vmatpush1.bf16.msra.mxu0 0
      %5120 = vmatprep.subr.bf16.mxu0 0
      %5121 = vmatpush1.bf16.msra.mxu0 0
      %5122 = vmatprep.subr.bf16.mxu0 0
      %5123 = vmatpush1.bf16.msra.mxu0 0
      %5124 = vmatprep.subr.bf16.mxu0 0
      %5125 = vmatpush1.bf16.msra.mxu0 0
      %5126 = vmatprep.subr.bf16.mxu0 0
      %5127 = vmatpush1.bf16.msra.mxu0 0
      %5128 = vmatprep.mubr.bf16.mxu0 0
      %5129 = vmatmul.mubr.bf16.gmra.mrb[0].mxu0 %v5094
      %v5130 = vpop.f32.mrb[0].mxu0
      %v5131 = vadd.f32 %v1453, %v5130
      %v5132 = vpop.f32.mrb[0].mxu0
      %v5133 = vpop.f32.mrb[0].mxu0
      %v5134 = vpop.f32.mrb[0].mxu0
      %5135 = vdwg.mxu0
      %v5136 = vmax.f32 %v5131, 0.0
      %v5137 = vpack.c.bf16 %v5136, %v5136
      %v5139 = vsel %vm1467, %v5137, 0
      %5141 = vmatprep.subr.bf16.mxu0 0
      %5142 = vmatpush1.bf16.msra.mxu0 %v1527
      %5143 = vmatprep.subr.bf16.mxu0 0
      %5144 = vmatpush1.bf16.msra.mxu0 %v1528
      %5145 = vmatprep.subr.bf16.mxu0 0
      %5146 = vmatpush1.bf16.msra.mxu0 0
      %5147 = vmatprep.subr.bf16.mxu0 0
      %5148 = vmatpush1.bf16.msra.mxu0 0
      %5149 = vmatprep.subr.bf16.mxu0 0
      %5150 = vmatpush1.bf16.msra.mxu0 0
      %5151 = vmatprep.subr.bf16.mxu0 0
      %5152 = vmatpush1.bf16.msra.mxu0 0
      %5153 = vmatprep.subr.bf16.mxu0 0
      %5154 = vmatpush1.bf16.msra.mxu0 0
      %5155 = vmatprep.subr.bf16.mxu0 0
      %5156 = vmatpush1.bf16.msra.mxu0 0
      %5157 = vmatprep.subr.bf16.mxu0 0
      %5158 = vmatpush1.bf16.msra.mxu0 0
      %5159 = vmatprep.subr.bf16.mxu0 0
      %5160 = vmatpush1.bf16.msra.mxu0 0
      %5161 = vmatprep.subr.bf16.mxu0 0
      %5162 = vmatpush1.bf16.msra.mxu0 0
      %5163 = vmatprep.subr.bf16.mxu0 0
      %5164 = vmatpush1.bf16.msra.mxu0 0
      %5165 = vmatprep.subr.bf16.mxu0 0
      %5166 = vmatpush1.bf16.msra.mxu0 0
      %5167 = vmatprep.subr.bf16.mxu0 0
      %5168 = vmatpush1.bf16.msra.mxu0 0
      %5169 = vmatprep.subr.bf16.mxu0 0
      %5170 = vmatpush1.bf16.msra.mxu0 0
      %5171 = vmatprep.subr.bf16.mxu0 0
      %5172 = vmatpush1.bf16.msra.mxu0 0
      %5173 = vmatprep.mubr.bf16.mxu0 0
      %5174 = vmatmul.mubr.bf16.gmra.mrb[0].mxu0 %v5139
      %v5175 = vpop.f32.mrb[0].mxu0
      %v5176 = vadd.f32 %v1517, %v5175
      %v5177 = vpop.f32.mrb[0].mxu0
      %v5178 = vpop.f32.mrb[0].mxu0
      %v5179 = vpop.f32.mrb[0].mxu0
      %5180 = vdwg.mxu0
      %5181 = vmatprep.subr.bf16.mxu0 0
      %5182 = vmatpush1.bf16.msra.mxu0 %v1582
      %5183 = vmatprep.subr.bf16.mxu0 0
      %5184 = vmatpush1.bf16.msra.mxu0 %v1583
      %5185 = vmatprep.subr.bf16.mxu0 0
      %5186 = vmatpush1.bf16.msra.mxu0 0
      %5187 = vmatprep.subr.bf16.mxu0 0
      %5188 = vmatpush1.bf16.msra.mxu0 0
      %5189 = vmatprep.subr.bf16.mxu0 0
      %5190 = vmatpush1.bf16.msra.mxu0 0
      %5191 = vmatprep.subr.bf16.mxu0 0
      %5192 = vmatpush1.bf16.msra.mxu0 0
      %5193 = vmatprep.subr.bf16.mxu0 0
      %5194 = vmatpush1.bf16.msra.mxu0 0
      %5195 = vmatprep.subr.bf16.mxu0 0
      %5196 = vmatpush1.bf16.msra.mxu0 0
      %5197 = vmatprep.subr.bf16.mxu0 0
      %5198 = vmatpush1.bf16.msra.mxu0 0
      %5199 = vmatprep.subr.bf16.mxu0 0
      %5200 = vmatpush1.bf16.msra.mxu0 0
      %5201 = vmatprep.subr.bf16.mxu0 0
      %5202 = vmatpush1.bf16.msra.mxu0 0
      %5203 = vmatprep.subr.bf16.mxu0 0
      %5204 = vmatpush1.bf16.msra.mxu0 0
      %5205 = vmatprep.subr.bf16.mxu0 0
      %5206 = vmatpush1.bf16.msra.mxu0 0
      %5207 = vmatprep.subr.bf16.mxu0 0
      %5208 = vmatpush1.bf16.msra.mxu0 0
      %5209 = vmatprep.subr.bf16.mxu0 0
      %5210 = vmatpush1.bf16.msra.mxu0 0
      %5211 = vmatprep.subr.bf16.mxu0 0
      %5212 = vmatpush1.bf16.msra.mxu0 0
      %5213 = vmatprep.mubr.bf16.mxu0 0
      %5214 = vmatmul.mubr.bf16.gmra.mrb[0].mxu0 %v4362
      %v5215 = vpop.f32.mrb[0].mxu0
      %v5216 = vadd.f32 0.0, %v5215
      %v5217 = vpop.f32.mrb[0].mxu0
      %v5218 = vpop.f32.mrb[0].mxu0
      %v5219 = vpop.f32.mrb[0].mxu0
      %5220 = vdwg.mxu0
      %v5221 = vadd.f32 %v5176, %v5216
      %v5222 = vxor.u32 %v5221, 2147483648
      %v5223 = vmul.f32 %v5222, 1.442695
      %v5224 = vpow.pop %v5223
      %v5225 = vadd.f32 %v5224, 1.0
      %v5226 = vrcp.pop %v5225
      %v5227 = vmul.f32 1.0, %v5226
      %v5228 = vtanh.pop %v5221
      %v5229 = vmul.f32 %v5227, %v4350
      %5231 = vrot.lane.b32.xlu0 %v5228, 32
      %v5232 = vpop.permute.xlu0 %5231
      %v5234 = vmul.f32 %v5227, %v5232
      %5236 = vrot.lane.b32.xlu0 %v5234, 32
      %v5237 = vpop.permute.xlu0 %5236
      %v5239 = vadd.f32 %v5229, %v5237
      %v5240 = vtanh.pop %v5239
      %5242 = vrot.lane.b32.xlu0 %v5240, 32
      %v5243 = vpop.permute.xlu0 %5242
      %v5245 = vmul.f32 %v5227, %v5243
      %v5246 = vpack.c.bf16 %v5245, %v5245
      %5248 = vrot.lane.b32.xlu0 %v5246, 64
      %v5249 = vpop.permute.xlu0 %5248
      %v5251 = vsel %vm1467, %v5249, 0
      %5253 = vmatprep.subr.bf16.mxu0 0
      %5254 = vmatpush1.bf16.msra.mxu0 %v1672
      %5255 = vmatprep.subr.bf16.mxu0 0
      %5256 = vmatpush1.bf16.msra.mxu0 %v1673
      %5257 = vmatprep.subr.bf16.mxu0 0
      %5258 = vmatpush1.bf16.msra.mxu0 0
      %5259 = vmatprep.subr.bf16.mxu0 0
      %5260 = vmatpush1.bf16.msra.mxu0 0
      %5261 = vmatprep.subr.bf16.mxu0 0
      %5262 = vmatpush1.bf16.msra.mxu0 0
      %5263 = vmatprep.subr.bf16.mxu0 0
      %5264 = vmatpush1.bf16.msra.mxu0 0
      %5265 = vmatprep.subr.bf16.mxu0 0
      %5266 = vmatpush1.bf16.msra.mxu0 0
      %5267 = vmatprep.subr.bf16.mxu0 0
      %5268 = vmatpush1.bf16.msra.mxu0 0
      %5269 = vmatprep.subr.bf16.mxu0 0
      %5270 = vmatpush1.bf16.msra.mxu0 0
      %5271 = vmatprep.subr.bf16.mxu0 0
      %5272 = vmatpush1.bf16.msra.mxu0 0
      %5273 = vmatprep.subr.bf16.mxu0 0
      %5274 = vmatpush1.bf16.msra.mxu0 0
      %5275 = vmatprep.subr.bf16.mxu0 0
      %5276 = vmatpush1.bf16.msra.mxu0 0
      %5277 = vmatprep.subr.bf16.mxu0 0
      %5278 = vmatpush1.bf16.msra.mxu0 0
      %5279 = vmatprep.subr.bf16.mxu0 0
      %5280 = vmatpush1.bf16.msra.mxu0 0
      %5281 = vmatprep.subr.bf16.mxu0 0
      %5282 = vmatpush1.bf16.msra.mxu0 0
      %5283 = vmatprep.subr.bf16.mxu0 0
      %5284 = vmatpush1.bf16.msra.mxu0 0
      %5285 = vmatprep.mubr.bf16.mxu0 0
      %5286 = vmatmul.mubr.bf16.gmra.mrb[0].mxu0 %v5251
      %v5287 = vpop.f32.mrb[0].mxu0
      %v5288 = vadd.f32 %v1659, %v5287
      %v5289 = vpop.f32.mrb[0].mxu0
      %v5290 = vpop.f32.mrb[0].mxu0
      %v5291 = vpop.f32.mrb[0].mxu0
      %5292 = vdwg.mxu0
      %v5293 = vmax.f32 %v5288, 0.0
      %v5294 = vpack.c.bf16 %v5293, %v5293
      %v5296 = vsel %vm1467, %v5294, 0
      %5298 = vmatprep.subr.bf16.mxu0 0
      %5299 = vmatpush1.bf16.msra.mxu0 %v1735
      %5300 = vmatprep.subr.bf16.mxu0 0
      %5301 = vmatpush1.bf16.msra.mxu0 %v1736
      %5302 = vmatprep.subr.bf16.mxu0 0
      %5303 = vmatpush1.bf16.msra.mxu0 0
      %5304 = vmatprep.subr.bf16.mxu0 0
      %5305 = vmatpush1.bf16.msra.mxu0 0
      %5306 = vmatprep.subr.bf16.mxu0 0
      %5307 = vmatpush1.bf16.msra.mxu0 0
      %5308 = vmatprep.subr.bf16.mxu0 0
      %5309 = vmatpush1.bf16.msra.mxu0 0
      %5310 = vmatprep.subr.bf16.mxu0 0
      %5311 = vmatpush1.bf16.msra.mxu0 0
      %5312 = vmatprep.subr.bf16.mxu0 0
      %5313 = vmatpush1.bf16.msra.mxu0 0
      %5314 = vmatprep.subr.bf16.mxu0 0
      %5315 = vmatpush1.bf16.msra.mxu0 0
      %5316 = vmatprep.subr.bf16.mxu0 0
      %5317 = vmatpush1.bf16.msra.mxu0 0
      %5318 = vmatprep.subr.bf16.mxu0 0
      %5319 = vmatpush1.bf16.msra.mxu0 0
      %5320 = vmatprep.subr.bf16.mxu0 0
      %5321 = vmatpush1.bf16.msra.mxu0 0
      %5322 = vmatprep.subr.bf16.mxu0 0
      %5323 = vmatpush1.bf16.msra.mxu0 0
      %5324 = vmatprep.subr.bf16.mxu0 0
      %5325 = vmatpush1.bf16.msra.mxu0 0
      %5326 = vmatprep.subr.bf16.mxu0 0
      %5327 = vmatpush1.bf16.msra.mxu0 0
      %5328 = vmatprep.subr.bf16.mxu0 0
      %5329 = vmatpush1.bf16.msra.mxu0 0
      %5330 = vmatprep.mubr.bf16.mxu0 0
      %5331 = vmatmul.mubr.bf16.gmra.mrb[0].mxu0 %v5296
      %v5332 = vpop.f32.mrb[0].mxu0
      %v5333 = vadd.f32 %v1725, %v5332
      %v5334 = vpop.f32.mrb[0].mxu0
      %v5335 = vpop.f32.mrb[0].mxu0
      %v5336 = vpop.f32.mrb[0].mxu0
      %5337 = vdwg.mxu0
      %s5338 = scalar_lea.vmem %s413, 5
      %v5339 = vld [vmem:[%s5338] ss:$8 sm:$0xf]
      %v5340 = vld [vmem:[%s5338] ss:$8 sm:$0x30]
      %v5341 = vor.u32 %v5339, %v5340
      %s5342 = scalar_lea.vmem %s413, 53
      %v5343 = vld [vmem:[%s5342] ss:$8 sm:$0xf]
      %v5344 = vld [vmem:[%s5342] ss:$8 sm:$0x30]
      %v5345 = vor.u32 %v5343, %v5344
      %s5346 = scalar_lea.vmem %s413, 101
      %v5347 = vld [vmem:[%s5346] ss:$8 sm:$0xf]
      %v5348 = vld [vmem:[%s5346] ss:$8 sm:$0x30]
      %v5349 = vor.u32 %v5347, %v5348
      %s5350 = scalar_lea.vmem %s413, 149
      %v5351 = vld [vmem:[%s5350] ss:$8 sm:$0xf]
      %v5352 = vld [vmem:[%s5350] ss:$8 sm:$0x30]
      %v5353 = vor.u32 %v5351, %v5352
      %s5354 = scalar_lea.vmem %s413, 197
      %v5355 = vld [vmem:[%s5354] ss:$8 sm:$0xf]
      %v5356 = vld [vmem:[%s5354] ss:$8 sm:$0x30]
      %v5357 = vor.u32 %v5355, %v5356
      %s5358 = scalar_lea.vmem %s413, 245
      %v5359 = vld [vmem:[%s5358] ss:$8 sm:$0xf]
      %v5360 = vld [vmem:[%s5358] ss:$8 sm:$0x30]
      %v5361 = vor.u32 %v5359, %v5360
      %s5362 = scalar_lea.vmem %s413, 293
      %v5363 = vld [vmem:[%s5362] ss:$8 sm:$0xf]
      %v5364 = vld [vmem:[%s5362] ss:$8 sm:$0x30]
      %v5365 = vor.u32 %v5363, %v5364
      %s5366 = scalar_lea.vmem %s413, 341
      %v5367 = vld [vmem:[%s5366] ss:$8 sm:$0xf]
      %v5368 = vld [vmem:[%s5366] ss:$8 sm:$0x30]
      %v5369 = vor.u32 %v5367, %v5368
      %v5378 = vlaneseq
      %v5379 = vshrl.u32 %v5378, 7
      %v5380 = vsub.s32 0, %v5379
      %v5381 = vrot.slane %v5341, %v5380
      %v5382 = vlaneseq
      %v5383 = vshrl.u32 %v5382, 7
      %v5384 = vsub.s32 1, %v5383
      %v5385 = vrot.slane %v5341, %v5384
      %v5386 = vlaneseq
      %v5387 = vshrl.u32 %v5386, 7
      %v5388 = vsub.s32 2, %v5387
      %v5389 = vrot.slane %v5341, %v5388
      %v5390 = vlaneseq
      %v5391 = vshrl.u32 %v5390, 7
      %v5392 = vsub.s32 3, %v5391
      %v5393 = vrot.slane %v5341, %v5392
      %v5394 = vlaneseq
      %v5395 = vshrl.u32 %v5394, 7
      %v5396 = vsub.s32 4, %v5395
      %v5397 = vrot.slane %v5341, %v5396
      %v5398 = vlaneseq
      %v5399 = vshrl.u32 %v5398, 7
      %v5400 = vsub.s32 5, %v5399
      %v5401 = vrot.slane %v5341, %v5400
      %v5402 = vlaneseq
      %v5403 = vshrl.u32 %v5402, 7
      %v5404 = vsub.s32 0, %v5403
      %v5405 = vrot.slane %v5345, %v5404
      %v5406 = vlaneseq
      %v5407 = vshrl.u32 %v5406, 7
      %v5408 = vsub.s32 1, %v5407
      %v5409 = vrot.slane %v5345, %v5408
      %v5410 = vlaneseq
      %v5411 = vshrl.u32 %v5410, 7
      %v5412 = vsub.s32 2, %v5411
      %v5413 = vrot.slane %v5345, %v5412
      %v5414 = vlaneseq
      %v5415 = vshrl.u32 %v5414, 7
      %v5416 = vsub.s32 3, %v5415
      %v5417 = vrot.slane %v5345, %v5416
      %v5418 = vlaneseq
      %v5419 = vshrl.u32 %v5418, 7
      %v5420 = vsub.s32 4, %v5419
      %v5421 = vrot.slane %v5345, %v5420
      %v5422 = vlaneseq
      %v5423 = vshrl.u32 %v5422, 7
      %v5424 = vsub.s32 5, %v5423
      %v5425 = vrot.slane %v5345, %v5424
      %v5426 = vlaneseq
      %v5427 = vshrl.u32 %v5426, 7
      %v5428 = vsub.s32 0, %v5427
      %v5429 = vrot.slane %v5349, %v5428
      %v5430 = vlaneseq
      %v5431 = vshrl.u32 %v5430, 7
      %v5432 = vsub.s32 1, %v5431
      %v5433 = vrot.slane %v5349, %v5432
      %v5434 = vlaneseq
      %v5435 = vshrl.u32 %v5434, 7
      %v5436 = vsub.s32 2, %v5435
      %v5437 = vrot.slane %v5349, %v5436
      %v5438 = vlaneseq
      %v5439 = vshrl.u32 %v5438, 7
      %v5440 = vsub.s32 3, %v5439
      %v5441 = vrot.slane %v5349, %v5440
      %v5442 = vlaneseq
      %v5443 = vshrl.u32 %v5442, 7
      %v5444 = vsub.s32 4, %v5443
      %v5445 = vrot.slane %v5349, %v5444
      %v5446 = vlaneseq
      %v5447 = vshrl.u32 %v5446, 7
      %v5448 = vsub.s32 5, %v5447
      %v5449 = vrot.slane %v5349, %v5448
      %v5450 = vlaneseq
      %v5451 = vshrl.u32 %v5450, 7
      %v5452 = vsub.s32 0, %v5451
      %v5453 = vrot.slane %v5353, %v5452
      %v5454 = vlaneseq
      %v5455 = vshrl.u32 %v5454, 7
      %v5456 = vsub.s32 1, %v5455
      %v5457 = vrot.slane %v5353, %v5456
      %v5458 = vlaneseq
      %v5459 = vshrl.u32 %v5458, 7
      %v5460 = vsub.s32 2, %v5459
      %v5461 = vrot.slane %v5353, %v5460
      %v5462 = vlaneseq
      %v5463 = vshrl.u32 %v5462, 7
      %v5464 = vsub.s32 3, %v5463
      %v5465 = vrot.slane %v5353, %v5464
      %v5466 = vlaneseq
      %v5467 = vshrl.u32 %v5466, 7
      %v5468 = vsub.s32 4, %v5467
      %v5469 = vrot.slane %v5353, %v5468
      %v5470 = vlaneseq
      %v5471 = vshrl.u32 %v5470, 7
      %v5472 = vsub.s32 5, %v5471
      %v5473 = vrot.slane %v5353, %v5472
      %v5474 = vlaneseq
      %v5475 = vshrl.u32 %v5474, 7
      %v5476 = vsub.s32 0, %v5475
      %v5477 = vrot.slane %v5357, %v5476
      %v5478 = vlaneseq
      %v5479 = vshrl.u32 %v5478, 7
      %v5480 = vsub.s32 1, %v5479
      %v5481 = vrot.slane %v5357, %v5480
      %v5482 = vlaneseq
      %v5483 = vshrl.u32 %v5482, 7
      %v5484 = vsub.s32 2, %v5483
      %v5485 = vrot.slane %v5357, %v5484
      %v5486 = vlaneseq
      %v5487 = vshrl.u32 %v5486, 7
      %v5488 = vsub.s32 3, %v5487
      %v5489 = vrot.slane %v5357, %v5488
      %v5490 = vlaneseq
      %v5491 = vshrl.u32 %v5490, 7
      %v5492 = vsub.s32 4, %v5491
      %v5493 = vrot.slane %v5357, %v5492
      %v5494 = vlaneseq
      %v5495 = vshrl.u32 %v5494, 7
      %v5496 = vsub.s32 5, %v5495
      %v5497 = vrot.slane %v5357, %v5496
      %v5498 = vlaneseq
      %v5499 = vshrl.u32 %v5498, 7
      %v5500 = vsub.s32 0, %v5499
      %v5501 = vrot.slane %v5361, %v5500
      %v5502 = vlaneseq
      %v5503 = vshrl.u32 %v5502, 7
      %v5504 = vsub.s32 1, %v5503
      %v5505 = vrot.slane %v5361, %v5504
      %v5506 = vlaneseq
      %v5507 = vshrl.u32 %v5506, 7
      %v5508 = vsub.s32 2, %v5507
      %v5509 = vrot.slane %v5361, %v5508
      %v5510 = vlaneseq
      %v5511 = vshrl.u32 %v5510, 7
      %v5512 = vsub.s32 3, %v5511
      %v5513 = vrot.slane %v5361, %v5512
      %v5514 = vlaneseq
      %v5515 = vshrl.u32 %v5514, 7
      %v5516 = vsub.s32 4, %v5515
      %v5517 = vrot.slane %v5361, %v5516
      %v5518 = vlaneseq
      %v5519 = vshrl.u32 %v5518, 7
      %v5520 = vsub.s32 5, %v5519
      %v5521 = vrot.slane %v5361, %v5520
      %v5522 = vlaneseq
      %v5523 = vshrl.u32 %v5522, 7
      %v5524 = vsub.s32 0, %v5523
      %v5525 = vrot.slane %v5365, %v5524
      %v5526 = vlaneseq
      %v5527 = vshrl.u32 %v5526, 7
      %v5528 = vsub.s32 1, %v5527
      %v5529 = vrot.slane %v5365, %v5528
      %v5530 = vlaneseq
      %v5531 = vshrl.u32 %v5530, 7
      %v5532 = vsub.s32 2, %v5531
      %v5533 = vrot.slane %v5365, %v5532
      %v5534 = vlaneseq
      %v5535 = vshrl.u32 %v5534, 7
      %v5536 = vsub.s32 3, %v5535
      %v5537 = vrot.slane %v5365, %v5536
      %v5538 = vlaneseq
      %v5539 = vshrl.u32 %v5538, 7
      %v5540 = vsub.s32 4, %v5539
      %v5541 = vrot.slane %v5365, %v5540
      %v5542 = vlaneseq
      %v5543 = vshrl.u32 %v5542, 7
      %v5544 = vsub.s32 5, %v5543
      %v5545 = vrot.slane %v5365, %v5544
      %v5546 = vlaneseq
      %v5547 = vshrl.u32 %v5546, 7
      %v5548 = vsub.s32 0, %v5547
      %v5549 = vrot.slane %v5369, %v5548
      %v5550 = vlaneseq
      %v5551 = vshrl.u32 %v5550, 7
      %v5552 = vsub.s32 1, %v5551
      %v5553 = vrot.slane %v5369, %v5552
      %v5554 = vlaneseq
      %v5555 = vshrl.u32 %v5554, 7
      %v5556 = vsub.s32 2, %v5555
      %v5557 = vrot.slane %v5369, %v5556
      %v5558 = vlaneseq
      %v5559 = vshrl.u32 %v5558, 7
      %v5560 = vsub.s32 3, %v5559
      %v5561 = vrot.slane %v5369, %v5560
      %v5562 = vlaneseq
      %v5563 = vshrl.u32 %v5562, 7
      %v5564 = vsub.s32 4, %v5563
      %v5565 = vrot.slane %v5369, %v5564
      %v5566 = vlaneseq
      %v5567 = vshrl.u32 %v5566, 7
      %v5568 = vsub.s32 5, %v5567
      %v5569 = vrot.slane %v5369, %v5568
      %v5618 = vpack.c.bf16 %v5381, %v5381
      %v5619 = vpack.c.bf16 %v5385, %v5385
      %v5620 = vpack.c.bf16 %v5389, %v5389
      %v5621 = vpack.c.bf16 %v5393, %v5393
      %v5622 = vpack.c.bf16 %v5397, %v5397
      %v5623 = vpack.c.bf16 %v5401, %v5401
      %v5624 = vpack.c.bf16 %v5405, %v5405
      %v5625 = vpack.c.bf16 %v5409, %v5409
      %v5626 = vpack.c.bf16 %v5413, %v5413
      %v5627 = vpack.c.bf16 %v5417, %v5417
      %v5628 = vpack.c.bf16 %v5421, %v5421
      %v5629 = vpack.c.bf16 %v5425, %v5425
      %v5630 = vpack.c.bf16 %v5429, %v5429
      %v5631 = vpack.c.bf16 %v5433, %v5433
      %v5632 = vpack.c.bf16 %v5437, %v5437
      %v5633 = vpack.c.bf16 %v5441, %v5441
      %v5634 = vpack.c.bf16 %v5445, %v5445
      %v5635 = vpack.c.bf16 %v5449, %v5449
      %v5636 = vpack.c.bf16 %v5453, %v5453
      %v5637 = vpack.c.bf16 %v5457, %v5457
      %v5638 = vpack.c.bf16 %v5461, %v5461
      %v5639 = vpack.c.bf16 %v5465, %v5465
      %v5640 = vpack.c.bf16 %v5469, %v5469
      %v5641 = vpack.c.bf16 %v5473, %v5473
      %v5642 = vpack.c.bf16 %v5477, %v5477
      %v5643 = vpack.c.bf16 %v5481, %v5481
      %v5644 = vpack.c.bf16 %v5485, %v5485
      %v5645 = vpack.c.bf16 %v5489, %v5489
      %v5646 = vpack.c.bf16 %v5493, %v5493
      %v5647 = vpack.c.bf16 %v5497, %v5497
      %v5648 = vpack.c.bf16 %v5501, %v5501
      %v5649 = vpack.c.bf16 %v5505, %v5505
      %v5650 = vpack.c.bf16 %v5509, %v5509
      %v5651 = vpack.c.bf16 %v5513, %v5513
      %v5652 = vpack.c.bf16 %v5517, %v5517
      %v5653 = vpack.c.bf16 %v5521, %v5521
      %v5654 = vpack.c.bf16 %v5525, %v5525
      %v5655 = vpack.c.bf16 %v5529, %v5529
      %v5656 = vpack.c.bf16 %v5533, %v5533
      %v5657 = vpack.c.bf16 %v5537, %v5537
      %v5658 = vpack.c.bf16 %v5541, %v5541
      %v5659 = vpack.c.bf16 %v5545, %v5545
      %v5660 = vpack.c.bf16 %v5549, %v5549
      %v5661 = vpack.c.bf16 %v5553, %v5553
      %v5662 = vpack.c.bf16 %v5557, %v5557
      %v5663 = vpack.c.bf16 %v5561, %v5561
      %v5664 = vpack.c.bf16 %v5565, %v5565
      %v5665 = vpack.c.bf16 %v5569, %v5569
      %v5714 = vunpack.c.l.b16 %v5618
      %v5715 = vunpack.c.l.b16 %v5619
      %v5716 = vunpack.c.l.b16 %v5620
      %v5717 = vunpack.c.l.b16 %v5621
      %v5718 = vunpack.c.l.b16 %v5622
      %v5719 = vunpack.c.l.b16 %v5623
      %v5720 = vunpack.c.l.b16 %v5624
      %v5721 = vunpack.c.l.b16 %v5625
      %v5722 = vunpack.c.l.b16 %v5626
      %v5723 = vunpack.c.l.b16 %v5627
      %v5724 = vunpack.c.l.b16 %v5628
      %v5725 = vunpack.c.l.b16 %v5629
      %v5726 = vunpack.c.l.b16 %v5630
      %v5727 = vunpack.c.l.b16 %v5631
      %v5728 = vunpack.c.l.b16 %v5632
      %v5729 = vunpack.c.l.b16 %v5633
      %v5730 = vunpack.c.l.b16 %v5634
      %v5731 = vunpack.c.l.b16 %v5635
      %v5732 = vunpack.c.l.b16 %v5636
      %v5733 = vunpack.c.l.b16 %v5637
      %v5734 = vunpack.c.l.b16 %v5638
      %v5735 = vunpack.c.l.b16 %v5639
      %v5736 = vunpack.c.l.b16 %v5640
      %v5737 = vunpack.c.l.b16 %v5641
      %v5738 = vunpack.c.l.b16 %v5642
      %v5739 = vunpack.c.l.b16 %v5643
      %v5740 = vunpack.c.l.b16 %v5644
      %v5741 = vunpack.c.l.b16 %v5645
      %v5742 = vunpack.c.l.b16 %v5646
      %v5743 = vunpack.c.l.b16 %v5647
      %v5744 = vunpack.c.l.b16 %v5648
      %v5745 = vunpack.c.l.b16 %v5649
      %v5746 = vunpack.c.l.b16 %v5650
      %v5747 = vunpack.c.l.b16 %v5651
      %v5748 = vunpack.c.l.b16 %v5652
      %v5749 = vunpack.c.l.b16 %v5653
      %v5750 = vunpack.c.l.b16 %v5654
      %v5751 = vunpack.c.l.b16 %v5655
      %v5752 = vunpack.c.l.b16 %v5656
      %v5753 = vunpack.c.l.b16 %v5657
      %v5754 = vunpack.c.l.b16 %v5658
      %v5755 = vunpack.c.l.b16 %v5659
      %v5756 = vunpack.c.l.b16 %v5660
      %v5757 = vunpack.c.l.b16 %v5661
      %v5758 = vunpack.c.l.b16 %v5662
      %v5759 = vunpack.c.l.b16 %v5663
      %v5760 = vunpack.c.l.b16 %v5664
      %v5761 = vunpack.c.l.b16 %v5665
      %v5762 = vrot.slane %v5720, 7
      %v5763 = vsel %vm960, %v5762, %v5714
      %v5764 = vrot.slane %v5726, 6
      %v5765 = vsel %vm963, %v5764, %v5763
      %v5766 = vrot.slane %v5732, 5
      %v5767 = vsel %vm966, %v5766, %v5765
      %v5768 = vrot.slane %v5738, 4
      %v5769 = vsel %vm969, %v5768, %v5767
      %v5770 = vrot.slane %v5744, 3
      %v5771 = vsel %vm972, %v5770, %v5769
      %v5772 = vrot.slane %v5750, 2
      %v5773 = vsel %vm975, %v5772, %v5771
      %v5774 = vrot.slane %v5756, 1
      %v5775 = vsel %vm978, %v5774, %v5773
      %v5776 = vrot.slane %v5721, 7
      %v5777 = vsel %vm960, %v5776, %v5715
      %v5778 = vrot.slane %v5727, 6
      %v5779 = vsel %vm963, %v5778, %v5777
      %v5780 = vrot.slane %v5733, 5
      %v5781 = vsel %vm966, %v5780, %v5779
      %v5782 = vrot.slane %v5739, 4
      %v5783 = vsel %vm969, %v5782, %v5781
      %v5784 = vrot.slane %v5745, 3
      %v5785 = vsel %vm972, %v5784, %v5783
      %v5786 = vrot.slane %v5751, 2
      %v5787 = vsel %vm975, %v5786, %v5785
      %v5788 = vrot.slane %v5757, 1
      %v5789 = vsel %vm978, %v5788, %v5787
      %v5790 = vrot.slane %v5722, 7
      %v5791 = vsel %vm960, %v5790, %v5716
      %v5792 = vrot.slane %v5728, 6
      %v5793 = vsel %vm963, %v5792, %v5791
      %v5794 = vrot.slane %v5734, 5
      %v5795 = vsel %vm966, %v5794, %v5793
      %v5796 = vrot.slane %v5740, 4
      %v5797 = vsel %vm969, %v5796, %v5795
      %v5798 = vrot.slane %v5746, 3
      %v5799 = vsel %vm972, %v5798, %v5797
      %v5800 = vrot.slane %v5752, 2
      %v5801 = vsel %vm975, %v5800, %v5799
      %v5802 = vrot.slane %v5758, 1
      %v5803 = vsel %vm978, %v5802, %v5801
      %v5804 = vrot.slane %v5723, 7
      %v5805 = vsel %vm960, %v5804, %v5717
      %v5806 = vrot.slane %v5729, 6
      %v5807 = vsel %vm963, %v5806, %v5805
      %v5808 = vrot.slane %v5735, 5
      %v5809 = vsel %vm966, %v5808, %v5807
      %v5810 = vrot.slane %v5741, 4
      %v5811 = vsel %vm969, %v5810, %v5809
      %v5812 = vrot.slane %v5747, 3
      %v5813 = vsel %vm972, %v5812, %v5811
      %v5814 = vrot.slane %v5753, 2
      %v5815 = vsel %vm975, %v5814, %v5813
      %v5816 = vrot.slane %v5759, 1
      %v5817 = vsel %vm978, %v5816, %v5815
      %v5818 = vrot.slane %v5724, 7
      %v5819 = vsel %vm960, %v5818, %v5718
      %v5820 = vrot.slane %v5730, 6
      %v5821 = vsel %vm963, %v5820, %v5819
      %v5822 = vrot.slane %v5736, 5
      %v5823 = vsel %vm966, %v5822, %v5821
      %v5824 = vrot.slane %v5742, 4
      %v5825 = vsel %vm969, %v5824, %v5823
      %v5826 = vrot.slane %v5748, 3
      %v5827 = vsel %vm972, %v5826, %v5825
      %v5828 = vrot.slane %v5754, 2
      %v5829 = vsel %vm975, %v5828, %v5827
      %v5830 = vrot.slane %v5760, 1
      %v5831 = vsel %vm978, %v5830, %v5829
      %v5832 = vrot.slane %v5725, 7
      %v5833 = vsel %vm960, %v5832, %v5719
      %v5834 = vrot.slane %v5731, 6
      %v5835 = vsel %vm963, %v5834, %v5833
      %v5836 = vrot.slane %v5737, 5
      %v5837 = vsel %vm966, %v5836, %v5835
      %v5838 = vrot.slane %v5743, 4
      %v5839 = vsel %vm969, %v5838, %v5837
      %v5840 = vrot.slane %v5749, 3
      %v5841 = vsel %vm972, %v5840, %v5839
      %v5842 = vrot.slane %v5755, 2
      %v5843 = vsel %vm975, %v5842, %v5841
      %v5844 = vrot.slane %v5761, 1
      %v5845 = vsel %vm978, %v5844, %v5843
      %v5846 = vpack.c.b16 %v5775, %v5775
      %v5847 = vpack.c.b16 %v5789, %v5789
      %v5848 = vpack.c.b16 %v5803, %v5803
      %v5849 = vpack.c.b16 %v5817, %v5817
      %v5850 = vpack.c.b16 %v5831, %v5831
      %v5851 = vpack.c.b16 %v5845, %v5845
      %v5858 = vsel %vm1316, %v5851, 0
      %5860 = vmatprep.subr.bf16.mxu0 0
      %5861 = vmatpush1.bf16.msra.mxu0 %v1231
      %5862 = vmatprep.subr.bf16.mxu0 0
      %5863 = vmatpush1.bf16.msra.mxu0 %v1232
      %5864 = vmatprep.subr.bf16.mxu0 0
      %5865 = vmatpush1.bf16.msra.mxu0 %v1233
      %5866 = vmatprep.subr.bf16.mxu0 0
      %5867 = vmatpush1.bf16.msra.mxu0 %v1234
      %5868 = vmatprep.subr.bf16.mxu0 0
      %5869 = vmatpush1.bf16.msra.mxu0 %v1235
      %5870 = vmatprep.subr.bf16.mxu0 0
      %5871 = vmatpush1.bf16.msra.mxu0 %v1236
      %5872 = vmatprep.subr.bf16.mxu0 0
      %5873 = vmatpush1.bf16.msra.mxu0 %v1237
      %5874 = vmatprep.subr.bf16.mxu0 0
      %5875 = vmatpush1.bf16.msra.mxu0 %v1238
      %5876 = vmatprep.subr.bf16.mxu0 0
      %5877 = vmatpush1.bf16.msra.mxu0 %v1239
      %5878 = vmatprep.subr.bf16.mxu0 0
      %5879 = vmatpush1.bf16.msra.mxu0 %v1240
      %5880 = vmatprep.subr.bf16.mxu0 0
      %5881 = vmatpush1.bf16.msra.mxu0 %v1241
      %5882 = vmatprep.subr.bf16.mxu0 0
      %5883 = vmatpush1.bf16.msra.mxu0 %v1242
      %5884 = vmatprep.subr.bf16.mxu0 0
      %5885 = vmatpush1.bf16.msra.mxu0 %v1243
      %5886 = vmatprep.subr.bf16.mxu0 0
      %5887 = vmatpush1.bf16.msra.mxu0 %v1244
      %5888 = vmatprep.subr.bf16.mxu0 0
      %5889 = vmatpush1.bf16.msra.mxu0 %v1245
      %5890 = vmatprep.subr.bf16.mxu0 0
      %5891 = vmatpush1.bf16.msra.mxu0 %v1246
      %5892 = vmatprep.mubr.bf16.mxu0 %v5847
      %5893 = vmatmul.mubr.bf16.gmra.mrb[0].mxu0 %v5846
      %v5894 = vpop.f32.mrb[0].mxu0
      %v5895 = vadd.f32 %v861, %v5894
      %v5896 = vpop.f32.mrb[0].mxu0
      %v5897 = vpop.f32.mrb[0].mxu0
      %v5898 = vpop.f32.mrb[0].mxu0
      %5899 = vdwg.mxu0
      %5900 = vmatprep.subr.bf16.mxu0 0
      %5901 = vmatpush1.bf16.msra.mxu0 %v1247
      %5902 = vmatprep.subr.bf16.mxu0 0
      %5903 = vmatpush1.bf16.msra.mxu0 %v1248
      %5904 = vmatprep.subr.bf16.mxu0 0
      %5905 = vmatpush1.bf16.msra.mxu0 %v1249
      %5906 = vmatprep.subr.bf16.mxu0 0
      %5907 = vmatpush1.bf16.msra.mxu0 %v1250
      %5908 = vmatprep.subr.bf16.mxu0 0
      %5909 = vmatpush1.bf16.msra.mxu0 %v1251
      %5910 = vmatprep.subr.bf16.mxu0 0
      %5911 = vmatpush1.bf16.msra.mxu0 %v1252
      %5912 = vmatprep.subr.bf16.mxu0 0
      %5913 = vmatpush1.bf16.msra.mxu0 %v1253
      %5914 = vmatprep.subr.bf16.mxu0 0
      %5915 = vmatpush1.bf16.msra.mxu0 %v1254
      %5916 = vmatprep.subr.bf16.mxu0 0
      %5917 = vmatpush1.bf16.msra.mxu0 %v1255
      %5918 = vmatprep.subr.bf16.mxu0 0
      %5919 = vmatpush1.bf16.msra.mxu0 %v1256
      %5920 = vmatprep.subr.bf16.mxu0 0
      %5921 = vmatpush1.bf16.msra.mxu0 %v1257
      %5922 = vmatprep.subr.bf16.mxu0 0
      %5923 = vmatpush1.bf16.msra.mxu0 %v1258
      %5924 = vmatprep.subr.bf16.mxu0 0
      %5925 = vmatpush1.bf16.msra.mxu0 %v1259
      %5926 = vmatprep.subr.bf16.mxu0 0
      %5927 = vmatpush1.bf16.msra.mxu0 %v1260
      %5928 = vmatprep.subr.bf16.mxu0 0
      %5929 = vmatpush1.bf16.msra.mxu0 %v1261
      %5930 = vmatprep.subr.bf16.mxu0 0
      %5931 = vmatpush1.bf16.msra.mxu0 %v1262
      %5932 = vmatprep.mubr.bf16.mxu0 %v5849
      %5933 = vmatmul.mubr.bf16.gmra.mrb[0].mxu0 %v5848
      %v5934 = vpop.f32.mrb[0].mxu0
      %v5935 = vadd.f32 %v5895, %v5934
      %v5936 = vpop.f32.mrb[0].mxu0
      %v5937 = vpop.f32.mrb[0].mxu0
      %v5938 = vpop.f32.mrb[0].mxu0
      %5939 = vdwg.mxu0
      %5940 = vmatprep.subr.bf16.mxu0 0
      %5941 = vmatpush1.bf16.msra.mxu0 %v1263
      %5942 = vmatprep.subr.bf16.mxu0 0
      %5943 = vmatpush1.bf16.msra.mxu0 %v1264
      %5944 = vmatprep.subr.bf16.mxu0 0
      %5945 = vmatpush1.bf16.msra.mxu0 %v1265
      %5946 = vmatprep.subr.bf16.mxu0 0
      %5947 = vmatpush1.bf16.msra.mxu0 %v1266
      %5948 = vmatprep.subr.bf16.mxu0 0
      %5949 = vmatpush1.bf16.msra.mxu0 %v1267
      %5950 = vmatprep.subr.bf16.mxu0 0
      %5951 = vmatpush1.bf16.msra.mxu0 %v1268
      %5952 = vmatprep.subr.bf16.mxu0 0
      %5953 = vmatpush1.bf16.msra.mxu0 %v1269
      %5954 = vmatprep.subr.bf16.mxu0 0
      %5955 = vmatpush1.bf16.msra.mxu0 %v1270
      %5956 = vmatprep.subr.bf16.mxu0 0
      %5957 = vmatpush1.bf16.msra.mxu0 %v1271
      %5958 = vmatprep.subr.bf16.mxu0 0
      %5959 = vmatpush1.bf16.msra.mxu0 %v1272
      %5960 = vmatprep.subr.bf16.mxu0 0
      %5961 = vmatpush1.bf16.msra.mxu0 %v1325
      %5962 = vmatprep.subr.bf16.mxu0 0
      %5963 = vmatpush1.bf16.msra.mxu0 0
      %5964 = vmatprep.subr.bf16.mxu0 0
      %5965 = vmatpush1.bf16.msra.mxu0 0
      %5966 = vmatprep.subr.bf16.mxu0 0
      %5967 = vmatpush1.bf16.msra.mxu0 0
      %5968 = vmatprep.subr.bf16.mxu0 0
      %5969 = vmatpush1.bf16.msra.mxu0 0
      %5970 = vmatprep.subr.bf16.mxu0 0
      %5971 = vmatpush1.bf16.msra.mxu0 0
      %5972 = vmatprep.mubr.bf16.mxu0 %v5858
      %5973 = vmatmul.mubr.bf16.gmra.mrb[0].mxu0 %v5850
      %v5974 = vpop.f32.mrb[0].mxu0
      %v5975 = vadd.f32 %v5935, %v5974
      %v5976 = vpop.f32.mrb[0].mxu0
      %v5977 = vpop.f32.mrb[0].mxu0
      %v5978 = vpop.f32.mrb[0].mxu0
      %5979 = vdwg.mxu0
      %v5980 = vmax.f32 %v5975, 0.0
      %v5981 = vpack.c.bf16 %v5980, %v5980
      %v5983 = vsel %vm1467, %v5981, 0
      %5985 = vmatprep.subr.bf16.mxu0 0
      %5986 = vmatpush1.bf16.msra.mxu0 %v1463
      %5987 = vmatprep.subr.bf16.mxu0 0
      %5988 = vmatpush1.bf16.msra.mxu0 %v1464
      %5989 = vmatprep.subr.bf16.mxu0 0
      %5990 = vmatpush1.bf16.msra.mxu0 0
      %5991 = vmatprep.subr.bf16.mxu0 0
      %5992 = vmatpush1.bf16.msra.mxu0 0
      %5993 = vmatprep.subr.bf16.mxu0 0
      %5994 = vmatpush1.bf16.msra.mxu0 0
      %5995 = vmatprep.subr.bf16.mxu0 0
      %5996 = vmatpush1.bf16.msra.mxu0 0
      %5997 = vmatprep.subr.bf16.mxu0 0
      %5998 = vmatpush1.bf16.msra.mxu0 0
      %5999 = vmatprep.subr.bf16.mxu0 0
      %6000 = vmatpush1.bf16.msra.mxu0 0
      %6001 = vmatprep.subr.bf16.mxu0 0
      %6002 = vmatpush1.bf16.msra.mxu0 0
      %6003 = vmatprep.subr.bf16.mxu0 0
      %6004 = vmatpush1.bf16.msra.mxu0 0
      %6005 = vmatprep.subr.bf16.mxu0 0
      %6006 = vmatpush1.bf16.msra.mxu0 0
      %6007 = vmatprep.subr.bf16.mxu0 0
      %6008 = vmatpush1.bf16.msra.mxu0 0
      %6009 = vmatprep.subr.bf16.mxu0 0
      %6010 = vmatpush1.bf16.msra.mxu0 0
      %6011 = vmatprep.subr.bf16.mxu0 0
      %6012 = vmatpush1.bf16.msra.mxu0 0
      %6013 = vmatprep.subr.bf16.mxu0 0
      %6014 = vmatpush1.bf16.msra.mxu0 0
      %6015 = vmatprep.subr.bf16.mxu0 0
      %6016 = vmatpush1.bf16.msra.mxu0 0
      %6017 = vmatprep.mubr.bf16.mxu0 0
      %6018 = vmatmul.mubr.bf16.gmra.mrb[0].mxu0 %v5983
      %v6019 = vpop.f32.mrb[0].mxu0
      %v6020 = vadd.f32 %v1453, %v6019
      %v6021 = vpop.f32.mrb[0].mxu0
      %v6022 = vpop.f32.mrb[0].mxu0
      %v6023 = vpop.f32.mrb[0].mxu0
      %6024 = vdwg.mxu0
      %v6025 = vmax.f32 %v6020, 0.0
      %v6026 = vpack.c.bf16 %v6025, %v6025
      %v6028 = vsel %vm1467, %v6026, 0
      %6030 = vmatprep.subr.bf16.mxu0 0
      %6031 = vmatpush1.bf16.msra.mxu0 %v1527
      %6032 = vmatprep.subr.bf16.mxu0 0
      %6033 = vmatpush1.bf16.msra.mxu0 %v1528
      %6034 = vmatprep.subr.bf16.mxu0 0
      %6035 = vmatpush1.bf16.msra.mxu0 0
      %6036 = vmatprep.subr.bf16.mxu0 0
      %6037 = vmatpush1.bf16.msra.mxu0 0
      %6038 = vmatprep.subr.bf16.mxu0 0
      %6039 = vmatpush1.bf16.msra.mxu0 0
      %6040 = vmatprep.subr.bf16.mxu0 0
      %6041 = vmatpush1.bf16.msra.mxu0 0
      %6042 = vmatprep.subr.bf16.mxu0 0
      %6043 = vmatpush1.bf16.msra.mxu0 0
      %6044 = vmatprep.subr.bf16.mxu0 0
      %6045 = vmatpush1.bf16.msra.mxu0 0
      %6046 = vmatprep.subr.bf16.mxu0 0
      %6047 = vmatpush1.bf16.msra.mxu0 0
      %6048 = vmatprep.subr.bf16.mxu0 0
      %6049 = vmatpush1.bf16.msra.mxu0 0
      %6050 = vmatprep.subr.bf16.mxu0 0
      %6051 = vmatpush1.bf16.msra.mxu0 0
      %6052 = vmatprep.subr.bf16.mxu0 0
      %6053 = vmatpush1.bf16.msra.mxu0 0
      %6054 = vmatprep.subr.bf16.mxu0 0
      %6055 = vmatpush1.bf16.msra.mxu0 0
      %6056 = vmatprep.subr.bf16.mxu0 0
      %6057 = vmatpush1.bf16.msra.mxu0 0
      %6058 = vmatprep.subr.bf16.mxu0 0
      %6059 = vmatpush1.bf16.msra.mxu0 0
      %6060 = vmatprep.subr.bf16.mxu0 0
      %6061 = vmatpush1.bf16.msra.mxu0 0
      %6062 = vmatprep.mubr.bf16.mxu0 0
      %6063 = vmatmul.mubr.bf16.gmra.mrb[0].mxu0 %v6028
      %v6064 = vpop.f32.mrb[0].mxu0
      %v6065 = vadd.f32 %v1517, %v6064
      %v6066 = vpop.f32.mrb[0].mxu0
      %v6067 = vpop.f32.mrb[0].mxu0
      %v6068 = vpop.f32.mrb[0].mxu0
      %6069 = vdwg.mxu0
      %6070 = vmatprep.subr.bf16.mxu0 0
      %6071 = vmatpush1.bf16.msra.mxu0 %v1582
      %6072 = vmatprep.subr.bf16.mxu0 0
      %6073 = vmatpush1.bf16.msra.mxu0 %v1583
      %6074 = vmatprep.subr.bf16.mxu0 0
      %6075 = vmatpush1.bf16.msra.mxu0 0
      %6076 = vmatprep.subr.bf16.mxu0 0
      %6077 = vmatpush1.bf16.msra.mxu0 0
      %6078 = vmatprep.subr.bf16.mxu0 0
      %6079 = vmatpush1.bf16.msra.mxu0 0
      %6080 = vmatprep.subr.bf16.mxu0 0
      %6081 = vmatpush1.bf16.msra.mxu0 0
      %6082 = vmatprep.subr.bf16.mxu0 0
      %6083 = vmatpush1.bf16.msra.mxu0 0
      %6084 = vmatprep.subr.bf16.mxu0 0
      %6085 = vmatpush1.bf16.msra.mxu0 0
      %6086 = vmatprep.subr.bf16.mxu0 0
      %6087 = vmatpush1.bf16.msra.mxu0 0
      %6088 = vmatprep.subr.bf16.mxu0 0
      %6089 = vmatpush1.bf16.msra.mxu0 0
      %6090 = vmatprep.subr.bf16.mxu0 0
      %6091 = vmatpush1.bf16.msra.mxu0 0
      %6092 = vmatprep.subr.bf16.mxu0 0
      %6093 = vmatpush1.bf16.msra.mxu0 0
      %6094 = vmatprep.subr.bf16.mxu0 0
      %6095 = vmatpush1.bf16.msra.mxu0 0
      %6096 = vmatprep.subr.bf16.mxu0 0
      %6097 = vmatpush1.bf16.msra.mxu0 0
      %6098 = vmatprep.subr.bf16.mxu0 0
      %6099 = vmatpush1.bf16.msra.mxu0 0
      %6100 = vmatprep.subr.bf16.mxu0 0
      %6101 = vmatpush1.bf16.msra.mxu0 0
      %6102 = vmatprep.mubr.bf16.mxu0 0
      %6103 = vmatmul.mubr.bf16.gmra.mrb[0].mxu0 %v5251
      %v6104 = vpop.f32.mrb[0].mxu0
      %v6105 = vadd.f32 0.0, %v6104
      %v6106 = vpop.f32.mrb[0].mxu0
      %v6107 = vpop.f32.mrb[0].mxu0
      %v6108 = vpop.f32.mrb[0].mxu0
      %6109 = vdwg.mxu0
      %v6110 = vadd.f32 %v6065, %v6105
      %v6111 = vxor.u32 %v6110, 2147483648
      %v6112 = vmul.f32 %v6111, 1.442695
      %v6113 = vpow.pop %v6112
      %v6114 = vadd.f32 %v6113, 1.0
      %v6115 = vrcp.pop %v6114
      %v6116 = vmul.f32 1.0, %v6115
      %v6117 = vtanh.pop %v6110
      %v6118 = vmul.f32 %v6116, %v5239
      %6120 = vrot.lane.b32.xlu0 %v6117, 32
      %v6121 = vpop.permute.xlu0 %6120
      %v6123 = vmul.f32 %v6116, %v6121
      %6125 = vrot.lane.b32.xlu0 %v6123, 32
      %v6126 = vpop.permute.xlu0 %6125
      %v6128 = vadd.f32 %v6118, %v6126
      %v6129 = vtanh.pop %v6128
      %6131 = vrot.lane.b32.xlu0 %v6129, 32
      %v6132 = vpop.permute.xlu0 %6131
      %v6134 = vmul.f32 %v6116, %v6132
      %v6135 = vpack.c.bf16 %v6134, %v6134
      %6137 = vrot.lane.b32.xlu0 %v6135, 64
      %v6138 = vpop.permute.xlu0 %6137
      %v6140 = vsel %vm1467, %v6138, 0
      %6142 = vmatprep.subr.bf16.mxu0 0
      %6143 = vmatpush1.bf16.msra.mxu0 %v1672
      %6144 = vmatprep.subr.bf16.mxu0 0
      %6145 = vmatpush1.bf16.msra.mxu0 %v1673
      %6146 = vmatprep.subr.bf16.mxu0 0
      %6147 = vmatpush1.bf16.msra.mxu0 0
      %6148 = vmatprep.subr.bf16.mxu0 0
      %6149 = vmatpush1.bf16.msra.mxu0 0
      %6150 = vmatprep.subr.bf16.mxu0 0
      %6151 = vmatpush1.bf16.msra.mxu0 0
      %6152 = vmatprep.subr.bf16.mxu0 0
      %6153 = vmatpush1.bf16.msra.mxu0 0
      %6154 = vmatprep.subr.bf16.mxu0 0
      %6155 = vmatpush1.bf16.msra.mxu0 0
      %6156 = vmatprep.subr.bf16.mxu0 0
      %6157 = vmatpush1.bf16.msra.mxu0 0
      %6158 = vmatprep.subr.bf16.mxu0 0
      %6159 = vmatpush1.bf16.msra.mxu0 0
      %6160 = vmatprep.subr.bf16.mxu0 0
      %6161 = vmatpush1.bf16.msra.mxu0 0
      %6162 = vmatprep.subr.bf16.mxu0 0
      %6163 = vmatpush1.bf16.msra.mxu0 0
      %6164 = vmatprep.subr.bf16.mxu0 0
      %6165 = vmatpush1.bf16.msra.mxu0 0
      %6166 = vmatprep.subr.bf16.mxu0 0
      %6167 = vmatpush1.bf16.msra.mxu0 0
      %6168 = vmatprep.subr.bf16.mxu0 0
      %6169 = vmatpush1.bf16.msra.mxu0 0
      %6170 = vmatprep.subr.bf16.mxu0 0
      %6171 = vmatpush1.bf16.msra.mxu0 0
      %6172 = vmatprep.subr.bf16.mxu0 0
      %6173 = vmatpush1.bf16.msra.mxu0 0
      %6174 = vmatprep.mubr.bf16.mxu0 0
      %6175 = vmatmul.mubr.bf16.gmra.mrb[0].mxu0 %v6140
      %v6176 = vpop.f32.mrb[0].mxu0
      %v6177 = vadd.f32 %v1659, %v6176
      %v6178 = vpop.f32.mrb[0].mxu0
      %v6179 = vpop.f32.mrb[0].mxu0
      %v6180 = vpop.f32.mrb[0].mxu0
      %6181 = vdwg.mxu0
      %v6182 = vmax.f32 %v6177, 0.0
      %v6183 = vpack.c.bf16 %v6182, %v6182
      %v6185 = vsel %vm1467, %v6183, 0
      %6187 = vmatprep.subr.bf16.mxu0 0
      %6188 = vmatpush1.bf16.msra.mxu0 %v1735
      %6189 = vmatprep.subr.bf16.mxu0 0
      %6190 = vmatpush1.bf16.msra.mxu0 %v1736
      %6191 = vmatprep.subr.bf16.mxu0 0
      %6192 = vmatpush1.bf16.msra.mxu0 0
      %6193 = vmatprep.subr.bf16.mxu0 0
      %6194 = vmatpush1.bf16.msra.mxu0 0
      %6195 = vmatprep.subr.bf16.mxu0 0
      %6196 = vmatpush1.bf16.msra.mxu0 0
      %6197 = vmatprep.subr.bf16.mxu0 0
      %6198 = vmatpush1.bf16.msra.mxu0 0
      %6199 = vmatprep.subr.bf16.mxu0 0
      %6200 = vmatpush1.bf16.msra.mxu0 0
      %6201 = vmatprep.subr.bf16.mxu0 0
      %6202 = vmatpush1.bf16.msra.mxu0 0
      %6203 = vmatprep.subr.bf16.mxu0 0
      %6204 = vmatpush1.bf16.msra.mxu0 0
      %6205 = vmatprep.subr.bf16.mxu0 0
      %6206 = vmatpush1.bf16.msra.mxu0 0
      %6207 = vmatprep.subr.bf16.mxu0 0
      %6208 = vmatpush1.bf16.msra.mxu0 0
      %6209 = vmatprep.subr.bf16.mxu0 0
      %6210 = vmatpush1.bf16.msra.mxu0 0
      %6211 = vmatprep.subr.bf16.mxu0 0
      %6212 = vmatpush1.bf16.msra.mxu0 0
      %6213 = vmatprep.subr.bf16.mxu0 0
      %6214 = vmatpush1.bf16.msra.mxu0 0
      %6215 = vmatprep.subr.bf16.mxu0 0
      %6216 = vmatpush1.bf16.msra.mxu0 0
      %6217 = vmatprep.subr.bf16.mxu0 0
      %6218 = vmatpush1.bf16.msra.mxu0 0
      %6219 = vmatprep.mubr.bf16.mxu0 0
      %6220 = vmatmul.mubr.bf16.gmra.mrb[0].mxu0 %v6185
      %v6221 = vpop.f32.mrb[0].mxu0
      %v6222 = vadd.f32 %v1725, %v6221
      %v6223 = vpop.f32.mrb[0].mxu0
      %v6224 = vpop.f32.mrb[0].mxu0
      %v6225 = vpop.f32.mrb[0].mxu0
      %6226 = vdwg.mxu0
      %s6227 = scalar_lea.vmem %s413, 6
      %v6228 = vld [vmem:[%s6227] ss:$8 sm:$0xf]
      %v6229 = vld [vmem:[%s6227] ss:$8 sm:$0x30]
      %v6230 = vor.u32 %v6228, %v6229
      %s6231 = scalar_lea.vmem %s413, 54
      %v6232 = vld [vmem:[%s6231] ss:$8 sm:$0xf]
      %v6233 = vld [vmem:[%s6231] ss:$8 sm:$0x30]
      %v6234 = vor.u32 %v6232, %v6233
      %s6235 = scalar_lea.vmem %s413, 102
      %v6236 = vld [vmem:[%s6235] ss:$8 sm:$0xf]
      %v6237 = vld [vmem:[%s6235] ss:$8 sm:$0x30]
      %v6238 = vor.u32 %v6236, %v6237
      %s6239 = scalar_lea.vmem %s413, 150
      %v6240 = vld [vmem:[%s6239] ss:$8 sm:$0xf]
      %v6241 = vld [vmem:[%s6239] ss:$8 sm:$0x30]
      %v6242 = vor.u32 %v6240, %v6241
      %s6243 = scalar_lea.vmem %s413, 198
      %v6244 = vld [vmem:[%s6243] ss:$8 sm:$0xf]
      %v6245 = vld [vmem:[%s6243] ss:$8 sm:$0x30]
      %v6246 = vor.u32 %v6244, %v6245
      %s6247 = scalar_lea.vmem %s413, 246
      %v6248 = vld [vmem:[%s6247] ss:$8 sm:$0xf]
      %v6249 = vld [vmem:[%s6247] ss:$8 sm:$0x30]
      %v6250 = vor.u32 %v6248, %v6249
      %s6251 = scalar_lea.vmem %s413, 294
      %v6252 = vld [vmem:[%s6251] ss:$8 sm:$0xf]
      %v6253 = vld [vmem:[%s6251] ss:$8 sm:$0x30]
      %v6254 = vor.u32 %v6252, %v6253
      %s6255 = scalar_lea.vmem %s413, 342
      %v6256 = vld [vmem:[%s6255] ss:$8 sm:$0xf]
      %v6257 = vld [vmem:[%s6255] ss:$8 sm:$0x30]
      %v6258 = vor.u32 %v6256, %v6257
      %v6267 = vlaneseq
      %v6268 = vshrl.u32 %v6267, 7
      %v6269 = vsub.s32 0, %v6268
      %v6270 = vrot.slane %v6230, %v6269
      %v6271 = vlaneseq
      %v6272 = vshrl.u32 %v6271, 7
      %v6273 = vsub.s32 1, %v6272
      %v6274 = vrot.slane %v6230, %v6273
      %v6275 = vlaneseq
      %v6276 = vshrl.u32 %v6275, 7
      %v6277 = vsub.s32 2, %v6276
      %v6278 = vrot.slane %v6230, %v6277
      %v6279 = vlaneseq
      %v6280 = vshrl.u32 %v6279, 7
      %v6281 = vsub.s32 3, %v6280
      %v6282 = vrot.slane %v6230, %v6281
      %v6283 = vlaneseq
      %v6284 = vshrl.u32 %v6283, 7
      %v6285 = vsub.s32 4, %v6284
      %v6286 = vrot.slane %v6230, %v6285
      %v6287 = vlaneseq
      %v6288 = vshrl.u32 %v6287, 7
      %v6289 = vsub.s32 5, %v6288
      %v6290 = vrot.slane %v6230, %v6289
      %v6291 = vlaneseq
      %v6292 = vshrl.u32 %v6291, 7
      %v6293 = vsub.s32 0, %v6292
      %v6294 = vrot.slane %v6234, %v6293
      %v6295 = vlaneseq
      %v6296 = vshrl.u32 %v6295, 7
      %v6297 = vsub.s32 1, %v6296
      %v6298 = vrot.slane %v6234, %v6297
      %v6299 = vlaneseq
      %v6300 = vshrl.u32 %v6299, 7
      %v6301 = vsub.s32 2, %v6300
      %v6302 = vrot.slane %v6234, %v6301
      %v6303 = vlaneseq
      %v6304 = vshrl.u32 %v6303, 7
      %v6305 = vsub.s32 3, %v6304
      %v6306 = vrot.slane %v6234, %v6305
      %v6307 = vlaneseq
      %v6308 = vshrl.u32 %v6307, 7
      %v6309 = vsub.s32 4, %v6308
      %v6310 = vrot.slane %v6234, %v6309
      %v6311 = vlaneseq
      %v6312 = vshrl.u32 %v6311, 7
      %v6313 = vsub.s32 5, %v6312
      %v6314 = vrot.slane %v6234, %v6313
      %v6315 = vlaneseq
      %v6316 = vshrl.u32 %v6315, 7
      %v6317 = vsub.s32 0, %v6316
      %v6318 = vrot.slane %v6238, %v6317
      %v6319 = vlaneseq
      %v6320 = vshrl.u32 %v6319, 7
      %v6321 = vsub.s32 1, %v6320
      %v6322 = vrot.slane %v6238, %v6321
      %v6323 = vlaneseq
      %v6324 = vshrl.u32 %v6323, 7
      %v6325 = vsub.s32 2, %v6324
      %v6326 = vrot.slane %v6238, %v6325
      %v6327 = vlaneseq
      %v6328 = vshrl.u32 %v6327, 7
      %v6329 = vsub.s32 3, %v6328
      %v6330 = vrot.slane %v6238, %v6329
      %v6331 = vlaneseq
      %v6332 = vshrl.u32 %v6331, 7
      %v6333 = vsub.s32 4, %v6332
      %v6334 = vrot.slane %v6238, %v6333
      %v6335 = vlaneseq
      %v6336 = vshrl.u32 %v6335, 7
      %v6337 = vsub.s32 5, %v6336
      %v6338 = vrot.slane %v6238, %v6337
      %v6339 = vlaneseq
      %v6340 = vshrl.u32 %v6339, 7
      %v6341 = vsub.s32 0, %v6340
      %v6342 = vrot.slane %v6242, %v6341
      %v6343 = vlaneseq
      %v6344 = vshrl.u32 %v6343, 7
      %v6345 = vsub.s32 1, %v6344
      %v6346 = vrot.slane %v6242, %v6345
      %v6347 = vlaneseq
      %v6348 = vshrl.u32 %v6347, 7
      %v6349 = vsub.s32 2, %v6348
      %v6350 = vrot.slane %v6242, %v6349
      %v6351 = vlaneseq
      %v6352 = vshrl.u32 %v6351, 7
      %v6353 = vsub.s32 3, %v6352
      %v6354 = vrot.slane %v6242, %v6353
      %v6355 = vlaneseq
      %v6356 = vshrl.u32 %v6355, 7
      %v6357 = vsub.s32 4, %v6356
      %v6358 = vrot.slane %v6242, %v6357
      %v6359 = vlaneseq
      %v6360 = vshrl.u32 %v6359, 7
      %v6361 = vsub.s32 5, %v6360
      %v6362 = vrot.slane %v6242, %v6361
      %v6363 = vlaneseq
      %v6364 = vshrl.u32 %v6363, 7
      %v6365 = vsub.s32 0, %v6364
      %v6366 = vrot.slane %v6246, %v6365
      %v6367 = vlaneseq
      %v6368 = vshrl.u32 %v6367, 7
      %v6369 = vsub.s32 1, %v6368
      %v6370 = vrot.slane %v6246, %v6369
      %v6371 = vlaneseq
      %v6372 = vshrl.u32 %v6371, 7
      %v6373 = vsub.s32 2, %v6372
      %v6374 = vrot.slane %v6246, %v6373
      %v6375 = vlaneseq
      %v6376 = vshrl.u32 %v6375, 7
      %v6377 = vsub.s32 3, %v6376
      %v6378 = vrot.slane %v6246, %v6377
      %v6379 = vlaneseq
      %v6380 = vshrl.u32 %v6379, 7
      %v6381 = vsub.s32 4, %v6380
      %v6382 = vrot.slane %v6246, %v6381
      %v6383 = vlaneseq
      %v6384 = vshrl.u32 %v6383, 7
      %v6385 = vsub.s32 5, %v6384
      %v6386 = vrot.slane %v6246, %v6385
      %v6387 = vlaneseq
      %v6388 = vshrl.u32 %v6387, 7
      %v6389 = vsub.s32 0, %v6388
      %v6390 = vrot.slane %v6250, %v6389
      %v6391 = vlaneseq
      %v6392 = vshrl.u32 %v6391, 7
      %v6393 = vsub.s32 1, %v6392
      %v6394 = vrot.slane %v6250, %v6393
      %v6395 = vlaneseq
      %v6396 = vshrl.u32 %v6395, 7
      %v6397 = vsub.s32 2, %v6396
      %v6398 = vrot.slane %v6250, %v6397
      %v6399 = vlaneseq
      %v6400 = vshrl.u32 %v6399, 7
      %v6401 = vsub.s32 3, %v6400
      %v6402 = vrot.slane %v6250, %v6401
      %v6403 = vlaneseq
      %v6404 = vshrl.u32 %v6403, 7
      %v6405 = vsub.s32 4, %v6404
      %v6406 = vrot.slane %v6250, %v6405
      %v6407 = vlaneseq
      %v6408 = vshrl.u32 %v6407, 7
      %v6409 = vsub.s32 5, %v6408
      %v6410 = vrot.slane %v6250, %v6409
      %v6411 = vlaneseq
      %v6412 = vshrl.u32 %v6411, 7
      %v6413 = vsub.s32 0, %v6412
      %v6414 = vrot.slane %v6254, %v6413
      %v6415 = vlaneseq
      %v6416 = vshrl.u32 %v6415, 7
      %v6417 = vsub.s32 1, %v6416
      %v6418 = vrot.slane %v6254, %v6417
      %v6419 = vlaneseq
      %v6420 = vshrl.u32 %v6419, 7
      %v6421 = vsub.s32 2, %v6420
      %v6422 = vrot.slane %v6254, %v6421
      %v6423 = vlaneseq
      %v6424 = vshrl.u32 %v6423, 7
      %v6425 = vsub.s32 3, %v6424
      %v6426 = vrot.slane %v6254, %v6425
      %v6427 = vlaneseq
      %v6428 = vshrl.u32 %v6427, 7
      %v6429 = vsub.s32 4, %v6428
      %v6430 = vrot.slane %v6254, %v6429
      %v6431 = vlaneseq
      %v6432 = vshrl.u32 %v6431, 7
      %v6433 = vsub.s32 5, %v6432
      %v6434 = vrot.slane %v6254, %v6433
      %v6435 = vlaneseq
      %v6436 = vshrl.u32 %v6435, 7
      %v6437 = vsub.s32 0, %v6436
      %v6438 = vrot.slane %v6258, %v6437
      %v6439 = vlaneseq
      %v6440 = vshrl.u32 %v6439, 7
      %v6441 = vsub.s32 1, %v6440
      %v6442 = vrot.slane %v6258, %v6441
      %v6443 = vlaneseq
      %v6444 = vshrl.u32 %v6443, 7
      %v6445 = vsub.s32 2, %v6444
      %v6446 = vrot.slane %v6258, %v6445
      %v6447 = vlaneseq
      %v6448 = vshrl.u32 %v6447, 7
      %v6449 = vsub.s32 3, %v6448
      %v6450 = vrot.slane %v6258, %v6449
      %v6451 = vlaneseq
      %v6452 = vshrl.u32 %v6451, 7
      %v6453 = vsub.s32 4, %v6452
      %v6454 = vrot.slane %v6258, %v6453
      %v6455 = vlaneseq
      %v6456 = vshrl.u32 %v6455, 7
      %v6457 = vsub.s32 5, %v6456
      %v6458 = vrot.slane %v6258, %v6457
      %v6507 = vpack.c.bf16 %v6270, %v6270
      %v6508 = vpack.c.bf16 %v6274, %v6274
      %v6509 = vpack.c.bf16 %v6278, %v6278
      %v6510 = vpack.c.bf16 %v6282, %v6282
      %v6511 = vpack.c.bf16 %v6286, %v6286
      %v6512 = vpack.c.bf16 %v6290, %v6290
      %v6513 = vpack.c.bf16 %v6294, %v6294
      %v6514 = vpack.c.bf16 %v6298, %v6298
      %v6515 = vpack.c.bf16 %v6302, %v6302
      %v6516 = vpack.c.bf16 %v6306, %v6306
      %v6517 = vpack.c.bf16 %v6310, %v6310
      %v6518 = vpack.c.bf16 %v6314, %v6314
      %v6519 = vpack.c.bf16 %v6318, %v6318
      %v6520 = vpack.c.bf16 %v6322, %v6322
      %v6521 = vpack.c.bf16 %v6326, %v6326
      %v6522 = vpack.c.bf16 %v6330, %v6330
      %v6523 = vpack.c.bf16 %v6334, %v6334
      %v6524 = vpack.c.bf16 %v6338, %v6338
      %v6525 = vpack.c.bf16 %v6342, %v6342
      %v6526 = vpack.c.bf16 %v6346, %v6346
      %v6527 = vpack.c.bf16 %v6350, %v6350
      %v6528 = vpack.c.bf16 %v6354, %v6354
      %v6529 = vpack.c.bf16 %v6358, %v6358
      %v6530 = vpack.c.bf16 %v6362, %v6362
      %v6531 = vpack.c.bf16 %v6366, %v6366
      %v6532 = vpack.c.bf16 %v6370, %v6370
      %v6533 = vpack.c.bf16 %v6374, %v6374
      %v6534 = vpack.c.bf16 %v6378, %v6378
      %v6535 = vpack.c.bf16 %v6382, %v6382
      %v6536 = vpack.c.bf16 %v6386, %v6386
      %v6537 = vpack.c.bf16 %v6390, %v6390
      %v6538 = vpack.c.bf16 %v6394, %v6394
      %v6539 = vpack.c.bf16 %v6398, %v6398
      %v6540 = vpack.c.bf16 %v6402, %v6402
      %v6541 = vpack.c.bf16 %v6406, %v6406
      %v6542 = vpack.c.bf16 %v6410, %v6410
      %v6543 = vpack.c.bf16 %v6414, %v6414
      %v6544 = vpack.c.bf16 %v6418, %v6418
      %v6545 = vpack.c.bf16 %v6422, %v6422
      %v6546 = vpack.c.bf16 %v6426, %v6426
      %v6547 = vpack.c.bf16 %v6430, %v6430
      %v6548 = vpack.c.bf16 %v6434, %v6434
      %v6549 = vpack.c.bf16 %v6438, %v6438
      %v6550 = vpack.c.bf16 %v6442, %v6442
      %v6551 = vpack.c.bf16 %v6446, %v6446
      %v6552 = vpack.c.bf16 %v6450, %v6450
      %v6553 = vpack.c.bf16 %v6454, %v6454
      %v6554 = vpack.c.bf16 %v6458, %v6458
      %v6603 = vunpack.c.l.b16 %v6507
      %v6604 = vunpack.c.l.b16 %v6508
      %v6605 = vunpack.c.l.b16 %v6509
      %v6606 = vunpack.c.l.b16 %v6510
      %v6607 = vunpack.c.l.b16 %v6511
      %v6608 = vunpack.c.l.b16 %v6512
      %v6609 = vunpack.c.l.b16 %v6513
      %v6610 = vunpack.c.l.b16 %v6514
      %v6611 = vunpack.c.l.b16 %v6515
      %v6612 = vunpack.c.l.b16 %v6516
      %v6613 = vunpack.c.l.b16 %v6517
      %v6614 = vunpack.c.l.b16 %v6518
      %v6615 = vunpack.c.l.b16 %v6519
      %v6616 = vunpack.c.l.b16 %v6520
      %v6617 = vunpack.c.l.b16 %v6521
      %v6618 = vunpack.c.l.b16 %v6522
      %v6619 = vunpack.c.l.b16 %v6523
      %v6620 = vunpack.c.l.b16 %v6524
      %v6621 = vunpack.c.l.b16 %v6525
      %v6622 = vunpack.c.l.b16 %v6526
      %v6623 = vunpack.c.l.b16 %v6527
      %v6624 = vunpack.c.l.b16 %v6528
      %v6625 = vunpack.c.l.b16 %v6529
      %v6626 = vunpack.c.l.b16 %v6530
      %v6627 = vunpack.c.l.b16 %v6531
      %v6628 = vunpack.c.l.b16 %v6532
      %v6629 = vunpack.c.l.b16 %v6533
      %v6630 = vunpack.c.l.b16 %v6534
      %v6631 = vunpack.c.l.b16 %v6535
      %v6632 = vunpack.c.l.b16 %v6536
      %v6633 = vunpack.c.l.b16 %v6537
      %v6634 = vunpack.c.l.b16 %v6538
      %v6635 = vunpack.c.l.b16 %v6539
      %v6636 = vunpack.c.l.b16 %v6540
      %v6637 = vunpack.c.l.b16 %v6541
      %v6638 = vunpack.c.l.b16 %v6542
      %v6639 = vunpack.c.l.b16 %v6543
      %v6640 = vunpack.c.l.b16 %v6544
      %v6641 = vunpack.c.l.b16 %v6545
      %v6642 = vunpack.c.l.b16 %v6546
      %v6643 = vunpack.c.l.b16 %v6547
      %v6644 = vunpack.c.l.b16 %v6548
      %v6645 = vunpack.c.l.b16 %v6549
      %v6646 = vunpack.c.l.b16 %v6550
      %v6647 = vunpack.c.l.b16 %v6551
      %v6648 = vunpack.c.l.b16 %v6552
      %v6649 = vunpack.c.l.b16 %v6553
      %v6650 = vunpack.c.l.b16 %v6554
      %v6651 = vrot.slane %v6609, 7
      %v6652 = vsel %vm960, %v6651, %v6603
      %v6653 = vrot.slane %v6615, 6
      %v6654 = vsel %vm963, %v6653, %v6652
      %v6655 = vrot.slane %v6621, 5
      %v6656 = vsel %vm966, %v6655, %v6654
      %v6657 = vrot.slane %v6627, 4
      %v6658 = vsel %vm969, %v6657, %v6656
      %v6659 = vrot.slane %v6633, 3
      %v6660 = vsel %vm972, %v6659, %v6658
      %v6661 = vrot.slane %v6639, 2
      %v6662 = vsel %vm975, %v6661, %v6660
      %v6663 = vrot.slane %v6645, 1
      %v6664 = vsel %vm978, %v6663, %v6662
      %v6665 = vrot.slane %v6610, 7
      %v6666 = vsel %vm960, %v6665, %v6604
      %v6667 = vrot.slane %v6616, 6
      %v6668 = vsel %vm963, %v6667, %v6666
      %v6669 = vrot.slane %v6622, 5
      %v6670 = vsel %vm966, %v6669, %v6668
      %v6671 = vrot.slane %v6628, 4
      %v6672 = vsel %vm969, %v6671, %v6670
      %v6673 = vrot.slane %v6634, 3
      %v6674 = vsel %vm972, %v6673, %v6672
      %v6675 = vrot.slane %v6640, 2
      %v6676 = vsel %vm975, %v6675, %v6674
      %v6677 = vrot.slane %v6646, 1
      %v6678 = vsel %vm978, %v6677, %v6676
      %v6679 = vrot.slane %v6611, 7
      %v6680 = vsel %vm960, %v6679, %v6605
      %v6681 = vrot.slane %v6617, 6
      %v6682 = vsel %vm963, %v6681, %v6680
      %v6683 = vrot.slane %v6623, 5
      %v6684 = vsel %vm966, %v6683, %v6682
      %v6685 = vrot.slane %v6629, 4
      %v6686 = vsel %vm969, %v6685, %v6684
      %v6687 = vrot.slane %v6635, 3
      %v6688 = vsel %vm972, %v6687, %v6686
      %v6689 = vrot.slane %v6641, 2
      %v6690 = vsel %vm975, %v6689, %v6688
      %v6691 = vrot.slane %v6647, 1
      %v6692 = vsel %vm978, %v6691, %v6690
      %v6693 = vrot.slane %v6612, 7
      %v6694 = vsel %vm960, %v6693, %v6606
      %v6695 = vrot.slane %v6618, 6
      %v6696 = vsel %vm963, %v6695, %v6694
      %v6697 = vrot.slane %v6624, 5
      %v6698 = vsel %vm966, %v6697, %v6696
      %v6699 = vrot.slane %v6630, 4
      %v6700 = vsel %vm969, %v6699, %v6698
      %v6701 = vrot.slane %v6636, 3
      %v6702 = vsel %vm972, %v6701, %v6700
      %v6703 = vrot.slane %v6642, 2
      %v6704 = vsel %vm975, %v6703, %v6702
      %v6705 = vrot.slane %v6648, 1
      %v6706 = vsel %vm978, %v6705, %v6704
      %v6707 = vrot.slane %v6613, 7
      %v6708 = vsel %vm960, %v6707, %v6607
      %v6709 = vrot.slane %v6619, 6
      %v6710 = vsel %vm963, %v6709, %v6708
      %v6711 = vrot.slane %v6625, 5
      %v6712 = vsel %vm966, %v6711, %v6710
      %v6713 = vrot.slane %v6631, 4
      %v6714 = vsel %vm969, %v6713, %v6712
      %v6715 = vrot.slane %v6637, 3
      %v6716 = vsel %vm972, %v6715, %v6714
      %v6717 = vrot.slane %v6643, 2
      %v6718 = vsel %vm975, %v6717, %v6716
      %v6719 = vrot.slane %v6649, 1
      %v6720 = vsel %vm978, %v6719, %v6718
      %v6721 = vrot.slane %v6614, 7
      %v6722 = vsel %vm960, %v6721, %v6608
      %v6723 = vrot.slane %v6620, 6
      %v6724 = vsel %vm963, %v6723, %v6722
      %v6725 = vrot.slane %v6626, 5
      %v6726 = vsel %vm966, %v6725, %v6724
      %v6727 = vrot.slane %v6632, 4
      %v6728 = vsel %vm969, %v6727, %v6726
      %v6729 = vrot.slane %v6638, 3
      %v6730 = vsel %vm972, %v6729, %v6728
      %v6731 = vrot.slane %v6644, 2
      %v6732 = vsel %vm975, %v6731, %v6730
      %v6733 = vrot.slane %v6650, 1
      %v6734 = vsel %vm978, %v6733, %v6732
      %v6735 = vpack.c.b16 %v6664, %v6664
      %v6736 = vpack.c.b16 %v6678, %v6678
      %v6737 = vpack.c.b16 %v6692, %v6692
      %v6738 = vpack.c.b16 %v6706, %v6706
      %v6739 = vpack.c.b16 %v6720, %v6720
      %v6740 = vpack.c.b16 %v6734, %v6734
      %v6747 = vsel %vm1316, %v6740, 0
      %6749 = vmatprep.subr.bf16.mxu0 0
      %6750 = vmatpush1.bf16.msra.mxu0 %v1231
      %6751 = vmatprep.subr.bf16.mxu0 0
      %6752 = vmatpush1.bf16.msra.mxu0 %v1232
      %6753 = vmatprep.subr.bf16.mxu0 0
      %6754 = vmatpush1.bf16.msra.mxu0 %v1233
      %6755 = vmatprep.subr.bf16.mxu0 0
      %6756 = vmatpush1.bf16.msra.mxu0 %v1234
      %6757 = vmatprep.subr.bf16.mxu0 0
      %6758 = vmatpush1.bf16.msra.mxu0 %v1235
      %6759 = vmatprep.subr.bf16.mxu0 0
      %6760 = vmatpush1.bf16.msra.mxu0 %v1236
      %6761 = vmatprep.subr.bf16.mxu0 0
      %6762 = vmatpush1.bf16.msra.mxu0 %v1237
      %6763 = vmatprep.subr.bf16.mxu0 0
      %6764 = vmatpush1.bf16.msra.mxu0 %v1238
      %6765 = vmatprep.subr.bf16.mxu0 0
      %6766 = vmatpush1.bf16.msra.mxu0 %v1239
      %6767 = vmatprep.subr.bf16.mxu0 0
      %6768 = vmatpush1.bf16.msra.mxu0 %v1240
      %6769 = vmatprep.subr.bf16.mxu0 0
      %6770 = vmatpush1.bf16.msra.mxu0 %v1241
      %6771 = vmatprep.subr.bf16.mxu0 0
      %6772 = vmatpush1.bf16.msra.mxu0 %v1242
      %6773 = vmatprep.subr.bf16.mxu0 0
      %6774 = vmatpush1.bf16.msra.mxu0 %v1243
      %6775 = vmatprep.subr.bf16.mxu0 0
      %6776 = vmatpush1.bf16.msra.mxu0 %v1244
      %6777 = vmatprep.subr.bf16.mxu0 0
      %6778 = vmatpush1.bf16.msra.mxu0 %v1245
      %6779 = vmatprep.subr.bf16.mxu0 0
      %6780 = vmatpush1.bf16.msra.mxu0 %v1246
      %6781 = vmatprep.mubr.bf16.mxu0 %v6736
      %6782 = vmatmul.mubr.bf16.gmra.mrb[0].mxu0 %v6735
      %v6783 = vpop.f32.mrb[0].mxu0
      %v6784 = vadd.f32 %v861, %v6783
      %v6785 = vpop.f32.mrb[0].mxu0
      %v6786 = vpop.f32.mrb[0].mxu0
      %v6787 = vpop.f32.mrb[0].mxu0
      %6788 = vdwg.mxu0
      %6789 = vmatprep.subr.bf16.mxu0 0
      %6790 = vmatpush1.bf16.msra.mxu0 %v1247
      %6791 = vmatprep.subr.bf16.mxu0 0
      %6792 = vmatpush1.bf16.msra.mxu0 %v1248
      %6793 = vmatprep.subr.bf16.mxu0 0
      %6794 = vmatpush1.bf16.msra.mxu0 %v1249
      %6795 = vmatprep.subr.bf16.mxu0 0
      %6796 = vmatpush1.bf16.msra.mxu0 %v1250
      %6797 = vmatprep.subr.bf16.mxu0 0
      %6798 = vmatpush1.bf16.msra.mxu0 %v1251
      %6799 = vmatprep.subr.bf16.mxu0 0
      %6800 = vmatpush1.bf16.msra.mxu0 %v1252
      %6801 = vmatprep.subr.bf16.mxu0 0
      %6802 = vmatpush1.bf16.msra.mxu0 %v1253
      %6803 = vmatprep.subr.bf16.mxu0 0
      %6804 = vmatpush1.bf16.msra.mxu0 %v1254
      %6805 = vmatprep.subr.bf16.mxu0 0
      %6806 = vmatpush1.bf16.msra.mxu0 %v1255
      %6807 = vmatprep.subr.bf16.mxu0 0
      %6808 = vmatpush1.bf16.msra.mxu0 %v1256
      %6809 = vmatprep.subr.bf16.mxu0 0
      %6810 = vmatpush1.bf16.msra.mxu0 %v1257
      %6811 = vmatprep.subr.bf16.mxu0 0
      %6812 = vmatpush1.bf16.msra.mxu0 %v1258
      %6813 = vmatprep.subr.bf16.mxu0 0
      %6814 = vmatpush1.bf16.msra.mxu0 %v1259
      %6815 = vmatprep.subr.bf16.mxu0 0
      %6816 = vmatpush1.bf16.msra.mxu0 %v1260
      %6817 = vmatprep.subr.bf16.mxu0 0
      %6818 = vmatpush1.bf16.msra.mxu0 %v1261
      %6819 = vmatprep.subr.bf16.mxu0 0
      %6820 = vmatpush1.bf16.msra.mxu0 %v1262
      %6821 = vmatprep.mubr.bf16.mxu0 %v6738
      %6822 = vmatmul.mubr.bf16.gmra.mrb[0].mxu0 %v6737
      %v6823 = vpop.f32.mrb[0].mxu0
      %v6824 = vadd.f32 %v6784, %v6823
      %v6825 = vpop.f32.mrb[0].mxu0
      %v6826 = vpop.f32.mrb[0].mxu0
      %v6827 = vpop.f32.mrb[0].mxu0
      %6828 = vdwg.mxu0
      %6829 = vmatprep.subr.bf16.mxu0 0
      %6830 = vmatpush1.bf16.msra.mxu0 %v1263
      %6831 = vmatprep.subr.bf16.mxu0 0
      %6832 = vmatpush1.bf16.msra.mxu0 %v1264
      %6833 = vmatprep.subr.bf16.mxu0 0
      %6834 = vmatpush1.bf16.msra.mxu0 %v1265
      %6835 = vmatprep.subr.bf16.mxu0 0
      %6836 = vmatpush1.bf16.msra.mxu0 %v1266
      %6837 = vmatprep.subr.bf16.mxu0 0
      %6838 = vmatpush1.bf16.msra.mxu0 %v1267
      %6839 = vmatprep.subr.bf16.mxu0 0
      %6840 = vmatpush1.bf16.msra.mxu0 %v1268
      %6841 = vmatprep.subr.bf16.mxu0 0
      %6842 = vmatpush1.bf16.msra.mxu0 %v1269
      %6843 = vmatprep.subr.bf16.mxu0 0
      %6844 = vmatpush1.bf16.msra.mxu0 %v1270
      %6845 = vmatprep.subr.bf16.mxu0 0
      %6846 = vmatpush1.bf16.msra.mxu0 %v1271
      %6847 = vmatprep.subr.bf16.mxu0 0
      %6848 = vmatpush1.bf16.msra.mxu0 %v1272
      %6849 = vmatprep.subr.bf16.mxu0 0
      %6850 = vmatpush1.bf16.msra.mxu0 %v1325
      %6851 = vmatprep.subr.bf16.mxu0 0
      %6852 = vmatpush1.bf16.msra.mxu0 0
      %6853 = vmatprep.subr.bf16.mxu0 0
      %6854 = vmatpush1.bf16.msra.mxu0 0
      %6855 = vmatprep.subr.bf16.mxu0 0
      %6856 = vmatpush1.bf16.msra.mxu0 0
      %6857 = vmatprep.subr.bf16.mxu0 0
      %6858 = vmatpush1.bf16.msra.mxu0 0
      %6859 = vmatprep.subr.bf16.mxu0 0
      %6860 = vmatpush1.bf16.msra.mxu0 0
      %6861 = vmatprep.mubr.bf16.mxu0 %v6747
      %6862 = vmatmul.mubr.bf16.gmra.mrb[0].mxu0 %v6739
      %v6863 = vpop.f32.mrb[0].mxu0
      %v6864 = vadd.f32 %v6824, %v6863
      %v6865 = vpop.f32.mrb[0].mxu0
      %v6866 = vpop.f32.mrb[0].mxu0
      %v6867 = vpop.f32.mrb[0].mxu0
      %6868 = vdwg.mxu0
      %v6869 = vmax.f32 %v6864, 0.0
      %v6870 = vpack.c.bf16 %v6869, %v6869
      %v6872 = vsel %vm1467, %v6870, 0
      %6874 = vmatprep.subr.bf16.mxu0 0
      %6875 = vmatpush1.bf16.msra.mxu0 %v1463
      %6876 = vmatprep.subr.bf16.mxu0 0
      %6877 = vmatpush1.bf16.msra.mxu0 %v1464
      %6878 = vmatprep.subr.bf16.mxu0 0
      %6879 = vmatpush1.bf16.msra.mxu0 0
      %6880 = vmatprep.subr.bf16.mxu0 0
      %6881 = vmatpush1.bf16.msra.mxu0 0
      %6882 = vmatprep.subr.bf16.mxu0 0
      %6883 = vmatpush1.bf16.msra.mxu0 0
      %6884 = vmatprep.subr.bf16.mxu0 0
      %6885 = vmatpush1.bf16.msra.mxu0 0
      %6886 = vmatprep.subr.bf16.mxu0 0
      %6887 = vmatpush1.bf16.msra.mxu0 0
      %6888 = vmatprep.subr.bf16.mxu0 0
      %6889 = vmatpush1.bf16.msra.mxu0 0
      %6890 = vmatprep.subr.bf16.mxu0 0
      %6891 = vmatpush1.bf16.msra.mxu0 0
      %6892 = vmatprep.subr.bf16.mxu0 0
      %6893 = vmatpush1.bf16.msra.mxu0 0
      %6894 = vmatprep.subr.bf16.mxu0 0
      %6895 = vmatpush1.bf16.msra.mxu0 0
      %6896 = vmatprep.subr.bf16.mxu0 0
      %6897 = vmatpush1.bf16.msra.mxu0 0
      %6898 = vmatprep.subr.bf16.mxu0 0
      %6899 = vmatpush1.bf16.msra.mxu0 0
      %6900 = vmatprep.subr.bf16.mxu0 0
      %6901 = vmatpush1.bf16.msra.mxu0 0
      %6902 = vmatprep.subr.bf16.mxu0 0
      %6903 = vmatpush1.bf16.msra.mxu0 0
      %6904 = vmatprep.subr.bf16.mxu0 0
      %6905 = vmatpush1.bf16.msra.mxu0 0
      %6906 = vmatprep.mubr.bf16.mxu0 0
      %6907 = vmatmul.mubr.bf16.gmra.mrb[0].mxu0 %v6872
      %v6908 = vpop.f32.mrb[0].mxu0
      %v6909 = vadd.f32 %v1453, %v6908
      %v6910 = vpop.f32.mrb[0].mxu0
      %v6911 = vpop.f32.mrb[0].mxu0
      %v6912 = vpop.f32.mrb[0].mxu0
      %6913 = vdwg.mxu0
      %v6914 = vmax.f32 %v6909, 0.0
      %v6915 = vpack.c.bf16 %v6914, %v6914
      %v6917 = vsel %vm1467, %v6915, 0
      %6919 = vmatprep.subr.bf16.mxu0 0
      %6920 = vmatpush1.bf16.msra.mxu0 %v1527
      %6921 = vmatprep.subr.bf16.mxu0 0
      %6922 = vmatpush1.bf16.msra.mxu0 %v1528
      %6923 = vmatprep.subr.bf16.mxu0 0
      %6924 = vmatpush1.bf16.msra.mxu0 0
      %6925 = vmatprep.subr.bf16.mxu0 0
      %6926 = vmatpush1.bf16.msra.mxu0 0
      %6927 = vmatprep.subr.bf16.mxu0 0
      %6928 = vmatpush1.bf16.msra.mxu0 0
      %6929 = vmatprep.subr.bf16.mxu0 0
      %6930 = vmatpush1.bf16.msra.mxu0 0
      %6931 = vmatprep.subr.bf16.mxu0 0
      %6932 = vmatpush1.bf16.msra.mxu0 0
      %6933 = vmatprep.subr.bf16.mxu0 0
      %6934 = vmatpush1.bf16.msra.mxu0 0
      %6935 = vmatprep.subr.bf16.mxu0 0
      %6936 = vmatpush1.bf16.msra.mxu0 0
      %6937 = vmatprep.subr.bf16.mxu0 0
      %6938 = vmatpush1.bf16.msra.mxu0 0
      %6939 = vmatprep.subr.bf16.mxu0 0
      %6940 = vmatpush1.bf16.msra.mxu0 0
      %6941 = vmatprep.subr.bf16.mxu0 0
      %6942 = vmatpush1.bf16.msra.mxu0 0
      %6943 = vmatprep.subr.bf16.mxu0 0
      %6944 = vmatpush1.bf16.msra.mxu0 0
      %6945 = vmatprep.subr.bf16.mxu0 0
      %6946 = vmatpush1.bf16.msra.mxu0 0
      %6947 = vmatprep.subr.bf16.mxu0 0
      %6948 = vmatpush1.bf16.msra.mxu0 0
      %6949 = vmatprep.subr.bf16.mxu0 0
      %6950 = vmatpush1.bf16.msra.mxu0 0
      %6951 = vmatprep.mubr.bf16.mxu0 0
      %6952 = vmatmul.mubr.bf16.gmra.mrb[0].mxu0 %v6917
      %v6953 = vpop.f32.mrb[0].mxu0
      %v6954 = vadd.f32 %v1517, %v6953
      %v6955 = vpop.f32.mrb[0].mxu0
      %v6956 = vpop.f32.mrb[0].mxu0
      %v6957 = vpop.f32.mrb[0].mxu0
      %6958 = vdwg.mxu0
      %6959 = vmatprep.subr.bf16.mxu0 0
      %6960 = vmatpush1.bf16.msra.mxu0 %v1582
      %6961 = vmatprep.subr.bf16.mxu0 0
      %6962 = vmatpush1.bf16.msra.mxu0 %v1583
      %6963 = vmatprep.subr.bf16.mxu0 0
      %6964 = vmatpush1.bf16.msra.mxu0 0
      %6965 = vmatprep.subr.bf16.mxu0 0
      %6966 = vmatpush1.bf16.msra.mxu0 0
      %6967 = vmatprep.subr.bf16.mxu0 0
      %6968 = vmatpush1.bf16.msra.mxu0 0
      %6969 = vmatprep.subr.bf16.mxu0 0
      %6970 = vmatpush1.bf16.msra.mxu0 0
      %6971 = vmatprep.subr.bf16.mxu0 0
      %6972 = vmatpush1.bf16.msra.mxu0 0
      %6973 = vmatprep.subr.bf16.mxu0 0
      %6974 = vmatpush1.bf16.msra.mxu0 0
      %6975 = vmatprep.subr.bf16.mxu0 0
      %6976 = vmatpush1.bf16.msra.mxu0 0
      %6977 = vmatprep.subr.bf16.mxu0 0
      %6978 = vmatpush1.bf16.msra.mxu0 0
      %6979 = vmatprep.subr.bf16.mxu0 0
      %6980 = vmatpush1.bf16.msra.mxu0 0
      %6981 = vmatprep.subr.bf16.mxu0 0
      %6982 = vmatpush1.bf16.msra.mxu0 0
      %6983 = vmatprep.subr.bf16.mxu0 0
      %6984 = vmatpush1.bf16.msra.mxu0 0
      %6985 = vmatprep.subr.bf16.mxu0 0
      %6986 = vmatpush1.bf16.msra.mxu0 0
      %6987 = vmatprep.subr.bf16.mxu0 0
      %6988 = vmatpush1.bf16.msra.mxu0 0
      %6989 = vmatprep.subr.bf16.mxu0 0
      %6990 = vmatpush1.bf16.msra.mxu0 0
      %6991 = vmatprep.mubr.bf16.mxu0 0
      %6992 = vmatmul.mubr.bf16.gmra.mrb[0].mxu0 %v6140
      %v6993 = vpop.f32.mrb[0].mxu0
      %v6994 = vadd.f32 0.0, %v6993
      %v6995 = vpop.f32.mrb[0].mxu0
      %v6996 = vpop.f32.mrb[0].mxu0
      %v6997 = vpop.f32.mrb[0].mxu0
      %6998 = vdwg.mxu0
      %v6999 = vadd.f32 %v6954, %v6994
      %v7000 = vxor.u32 %v6999, 2147483648
      %v7001 = vmul.f32 %v7000, 1.442695
      %v7002 = vpow.pop %v7001
      %v7003 = vadd.f32 %v7002, 1.0
      %v7004 = vrcp.pop %v7003
      %v7005 = vmul.f32 1.0, %v7004
      %v7006 = vtanh.pop %v6999
      %v7007 = vmul.f32 %v7005, %v6128
      %7009 = vrot.lane.b32.xlu0 %v7006, 32
      %v7010 = vpop.permute.xlu0 %7009
      %v7012 = vmul.f32 %v7005, %v7010
      %7014 = vrot.lane.b32.xlu0 %v7012, 32
      %v7015 = vpop.permute.xlu0 %7014
      %v7017 = vadd.f32 %v7007, %v7015
      %v7018 = vtanh.pop %v7017
      %7020 = vrot.lane.b32.xlu0 %v7018, 32
      %v7021 = vpop.permute.xlu0 %7020
      %v7023 = vmul.f32 %v7005, %v7021
      %v7024 = vpack.c.bf16 %v7023, %v7023
      %7026 = vrot.lane.b32.xlu0 %v7024, 64
      %v7027 = vpop.permute.xlu0 %7026
      %v7029 = vsel %vm1467, %v7027, 0
      %7031 = vmatprep.subr.bf16.mxu0 0
      %7032 = vmatpush1.bf16.msra.mxu0 %v1672
      %7033 = vmatprep.subr.bf16.mxu0 0
      %7034 = vmatpush1.bf16.msra.mxu0 %v1673
      %7035 = vmatprep.subr.bf16.mxu0 0
      %7036 = vmatpush1.bf16.msra.mxu0 0
      %7037 = vmatprep.subr.bf16.mxu0 0
      %7038 = vmatpush1.bf16.msra.mxu0 0
      %7039 = vmatprep.subr.bf16.mxu0 0
      %7040 = vmatpush1.bf16.msra.mxu0 0
      %7041 = vmatprep.subr.bf16.mxu0 0
      %7042 = vmatpush1.bf16.msra.mxu0 0
      %7043 = vmatprep.subr.bf16.mxu0 0
      %7044 = vmatpush1.bf16.msra.mxu0 0
      %7045 = vmatprep.subr.bf16.mxu0 0
      %7046 = vmatpush1.bf16.msra.mxu0 0
      %7047 = vmatprep.subr.bf16.mxu0 0
      %7048 = vmatpush1.bf16.msra.mxu0 0
      %7049 = vmatprep.subr.bf16.mxu0 0
      %7050 = vmatpush1.bf16.msra.mxu0 0
      %7051 = vmatprep.subr.bf16.mxu0 0
      %7052 = vmatpush1.bf16.msra.mxu0 0
      %7053 = vmatprep.subr.bf16.mxu0 0
      %7054 = vmatpush1.bf16.msra.mxu0 0
      %7055 = vmatprep.subr.bf16.mxu0 0
      %7056 = vmatpush1.bf16.msra.mxu0 0
      %7057 = vmatprep.subr.bf16.mxu0 0
      %7058 = vmatpush1.bf16.msra.mxu0 0
      %7059 = vmatprep.subr.bf16.mxu0 0
      %7060 = vmatpush1.bf16.msra.mxu0 0
      %7061 = vmatprep.subr.bf16.mxu0 0
      %7062 = vmatpush1.bf16.msra.mxu0 0
      %7063 = vmatprep.mubr.bf16.mxu0 0
      %7064 = vmatmul.mubr.bf16.gmra.mrb[0].mxu0 %v7029
      %v7065 = vpop.f32.mrb[0].mxu0
      %v7066 = vadd.f32 %v1659, %v7065
      %v7067 = vpop.f32.mrb[0].mxu0
      %v7068 = vpop.f32.mrb[0].mxu0
      %v7069 = vpop.f32.mrb[0].mxu0
      %7070 = vdwg.mxu0
      %v7071 = vmax.f32 %v7066, 0.0
      %v7072 = vpack.c.bf16 %v7071, %v7071
      %v7074 = vsel %vm1467, %v7072, 0
      %7076 = vmatprep.subr.bf16.mxu0 0
      %7077 = vmatpush1.bf16.msra.mxu0 %v1735
      %7078 = vmatprep.subr.bf16.mxu0 0
      %7079 = vmatpush1.bf16.msra.mxu0 %v1736
      %7080 = vmatprep.subr.bf16.mxu0 0
      %7081 = vmatpush1.bf16.msra.mxu0 0
      %7082 = vmatprep.subr.bf16.mxu0 0
      %7083 = vmatpush1.bf16.msra.mxu0 0
      %7084 = vmatprep.subr.bf16.mxu0 0
      %7085 = vmatpush1.bf16.msra.mxu0 0
      %7086 = vmatprep.subr.bf16.mxu0 0
      %7087 = vmatpush1.bf16.msra.mxu0 0
      %7088 = vmatprep.subr.bf16.mxu0 0
      %7089 = vmatpush1.bf16.msra.mxu0 0
      %7090 = vmatprep.subr.bf16.mxu0 0
      %7091 = vmatpush1.bf16.msra.mxu0 0
      %7092 = vmatprep.subr.bf16.mxu0 0
      %7093 = vmatpush1.bf16.msra.mxu0 0
      %7094 = vmatprep.subr.bf16.mxu0 0
      %7095 = vmatpush1.bf16.msra.mxu0 0
      %7096 = vmatprep.subr.bf16.mxu0 0
      %7097 = vmatpush1.bf16.msra.mxu0 0
      %7098 = vmatprep.subr.bf16.mxu0 0
      %7099 = vmatpush1.bf16.msra.mxu0 0
      %7100 = vmatprep.subr.bf16.mxu0 0
      %7101 = vmatpush1.bf16.msra.mxu0 0
      %7102 = vmatprep.subr.bf16.mxu0 0
      %7103 = vmatpush1.bf16.msra.mxu0 0
      %7104 = vmatprep.subr.bf16.mxu0 0
      %7105 = vmatpush1.bf16.msra.mxu0 0
      %7106 = vmatprep.subr.bf16.mxu0 0
      %7107 = vmatpush1.bf16.msra.mxu0 0
      %7108 = vmatprep.mubr.bf16.mxu0 0
      %7109 = vmatmul.mubr.bf16.gmra.mrb[0].mxu0 %v7074
      %v7110 = vpop.f32.mrb[0].mxu0
      %v7111 = vadd.f32 %v1725, %v7110
      %v7112 = vpop.f32.mrb[0].mxu0
      %v7113 = vpop.f32.mrb[0].mxu0
      %v7114 = vpop.f32.mrb[0].mxu0
      %7115 = vdwg.mxu0
      %s7116 = scalar_lea.vmem %s413, 7
      %v7117 = vld [vmem:[%s7116] ss:$8 sm:$0xf]
      %v7118 = vld [vmem:[%s7116] ss:$8 sm:$0x30]
      %v7119 = vor.u32 %v7117, %v7118
      %s7120 = scalar_lea.vmem %s413, 55
      %v7121 = vld [vmem:[%s7120] ss:$8 sm:$0xf]
      %v7122 = vld [vmem:[%s7120] ss:$8 sm:$0x30]
      %v7123 = vor.u32 %v7121, %v7122
      %s7124 = scalar_lea.vmem %s413, 103
      %v7125 = vld [vmem:[%s7124] ss:$8 sm:$0xf]
      %v7126 = vld [vmem:[%s7124] ss:$8 sm:$0x30]
      %v7127 = vor.u32 %v7125, %v7126
      %s7128 = scalar_lea.vmem %s413, 151
      %v7129 = vld [vmem:[%s7128] ss:$8 sm:$0xf]
      %v7130 = vld [vmem:[%s7128] ss:$8 sm:$0x30]
      %v7131 = vor.u32 %v7129, %v7130
      %s7132 = scalar_lea.vmem %s413, 199
      %v7133 = vld [vmem:[%s7132] ss:$8 sm:$0xf]
      %v7134 = vld [vmem:[%s7132] ss:$8 sm:$0x30]
      %v7135 = vor.u32 %v7133, %v7134
      %s7136 = scalar_lea.vmem %s413, 247
      %v7137 = vld [vmem:[%s7136] ss:$8 sm:$0xf]
      %v7138 = vld [vmem:[%s7136] ss:$8 sm:$0x30]
      %v7139 = vor.u32 %v7137, %v7138
      %s7140 = scalar_lea.vmem %s413, 295
      %v7141 = vld [vmem:[%s7140] ss:$8 sm:$0xf]
      %v7142 = vld [vmem:[%s7140] ss:$8 sm:$0x30]
      %v7143 = vor.u32 %v7141, %v7142
      %s7144 = scalar_lea.vmem %s413, 343
      %v7145 = vld [vmem:[%s7144] ss:$8 sm:$0xf]
      %v7146 = vld [vmem:[%s7144] ss:$8 sm:$0x30]
      %v7147 = vor.u32 %v7145, %v7146
      %v7156 = vlaneseq
      %v7157 = vshrl.u32 %v7156, 7
      %v7158 = vsub.s32 0, %v7157
      %v7159 = vrot.slane %v7119, %v7158
      %v7160 = vlaneseq
      %v7161 = vshrl.u32 %v7160, 7
      %v7162 = vsub.s32 1, %v7161
      %v7163 = vrot.slane %v7119, %v7162
      %v7164 = vlaneseq
      %v7165 = vshrl.u32 %v7164, 7
      %v7166 = vsub.s32 2, %v7165
      %v7167 = vrot.slane %v7119, %v7166
      %v7168 = vlaneseq
      %v7169 = vshrl.u32 %v7168, 7
      %v7170 = vsub.s32 3, %v7169
      %v7171 = vrot.slane %v7119, %v7170
      %v7172 = vlaneseq
      %v7173 = vshrl.u32 %v7172, 7
      %v7174 = vsub.s32 4, %v7173
      %v7175 = vrot.slane %v7119, %v7174
      %v7176 = vlaneseq
      %v7177 = vshrl.u32 %v7176, 7
      %v7178 = vsub.s32 5, %v7177
      %v7179 = vrot.slane %v7119, %v7178
      %v7180 = vlaneseq
      %v7181 = vshrl.u32 %v7180, 7
      %v7182 = vsub.s32 0, %v7181
      %v7183 = vrot.slane %v7123, %v7182
      %v7184 = vlaneseq
      %v7185 = vshrl.u32 %v7184, 7
      %v7186 = vsub.s32 1, %v7185
      %v7187 = vrot.slane %v7123, %v7186
      %v7188 = vlaneseq
      %v7189 = vshrl.u32 %v7188, 7
      %v7190 = vsub.s32 2, %v7189
      %v7191 = vrot.slane %v7123, %v7190
      %v7192 = vlaneseq
      %v7193 = vshrl.u32 %v7192, 7
      %v7194 = vsub.s32 3, %v7193
      %v7195 = vrot.slane %v7123, %v7194
      %v7196 = vlaneseq
      %v7197 = vshrl.u32 %v7196, 7
      %v7198 = vsub.s32 4, %v7197
      %v7199 = vrot.slane %v7123, %v7198
      %v7200 = vlaneseq
      %v7201 = vshrl.u32 %v7200, 7
      %v7202 = vsub.s32 5, %v7201
      %v7203 = vrot.slane %v7123, %v7202
      %v7204 = vlaneseq
      %v7205 = vshrl.u32 %v7204, 7
      %v7206 = vsub.s32 0, %v7205
      %v7207 = vrot.slane %v7127, %v7206
      %v7208 = vlaneseq
      %v7209 = vshrl.u32 %v7208, 7
      %v7210 = vsub.s32 1, %v7209
      %v7211 = vrot.slane %v7127, %v7210
      %v7212 = vlaneseq
      %v7213 = vshrl.u32 %v7212, 7
      %v7214 = vsub.s32 2, %v7213
      %v7215 = vrot.slane %v7127, %v7214
      %v7216 = vlaneseq
      %v7217 = vshrl.u32 %v7216, 7
      %v7218 = vsub.s32 3, %v7217
      %v7219 = vrot.slane %v7127, %v7218
      %v7220 = vlaneseq
      %v7221 = vshrl.u32 %v7220, 7
      %v7222 = vsub.s32 4, %v7221
      %v7223 = vrot.slane %v7127, %v7222
      %v7224 = vlaneseq
      %v7225 = vshrl.u32 %v7224, 7
      %v7226 = vsub.s32 5, %v7225
      %v7227 = vrot.slane %v7127, %v7226
      %v7228 = vlaneseq
      %v7229 = vshrl.u32 %v7228, 7
      %v7230 = vsub.s32 0, %v7229
      %v7231 = vrot.slane %v7131, %v7230
      %v7232 = vlaneseq
      %v7233 = vshrl.u32 %v7232, 7
      %v7234 = vsub.s32 1, %v7233
      %v7235 = vrot.slane %v7131, %v7234
      %v7236 = vlaneseq
      %v7237 = vshrl.u32 %v7236, 7
      %v7238 = vsub.s32 2, %v7237
      %v7239 = vrot.slane %v7131, %v7238
      %v7240 = vlaneseq
      %v7241 = vshrl.u32 %v7240, 7
      %v7242 = vsub.s32 3, %v7241
      %v7243 = vrot.slane %v7131, %v7242
      %v7244 = vlaneseq
      %v7245 = vshrl.u32 %v7244, 7
      %v7246 = vsub.s32 4, %v7245
      %v7247 = vrot.slane %v7131, %v7246
      %v7248 = vlaneseq
      %v7249 = vshrl.u32 %v7248, 7
      %v7250 = vsub.s32 5, %v7249
      %v7251 = vrot.slane %v7131, %v7250
      %v7252 = vlaneseq
      %v7253 = vshrl.u32 %v7252, 7
      %v7254 = vsub.s32 0, %v7253
      %v7255 = vrot.slane %v7135, %v7254
      %v7256 = vlaneseq
      %v7257 = vshrl.u32 %v7256, 7
      %v7258 = vsub.s32 1, %v7257
      %v7259 = vrot.slane %v7135, %v7258
      %v7260 = vlaneseq
      %v7261 = vshrl.u32 %v7260, 7
      %v7262 = vsub.s32 2, %v7261
      %v7263 = vrot.slane %v7135, %v7262
      %v7264 = vlaneseq
      %v7265 = vshrl.u32 %v7264, 7
      %v7266 = vsub.s32 3, %v7265
      %v7267 = vrot.slane %v7135, %v7266
      %v7268 = vlaneseq
      %v7269 = vshrl.u32 %v7268, 7
      %v7270 = vsub.s32 4, %v7269
      %v7271 = vrot.slane %v7135, %v7270
      %v7272 = vlaneseq
      %v7273 = vshrl.u32 %v7272, 7
      %v7274 = vsub.s32 5, %v7273
      %v7275 = vrot.slane %v7135, %v7274
      %v7276 = vlaneseq
      %v7277 = vshrl.u32 %v7276, 7
      %v7278 = vsub.s32 0, %v7277
      %v7279 = vrot.slane %v7139, %v7278
      %v7280 = vlaneseq
      %v7281 = vshrl.u32 %v7280, 7
      %v7282 = vsub.s32 1, %v7281
      %v7283 = vrot.slane %v7139, %v7282
      %v7284 = vlaneseq
      %v7285 = vshrl.u32 %v7284, 7
      %v7286 = vsub.s32 2, %v7285
      %v7287 = vrot.slane %v7139, %v7286
      %v7288 = vlaneseq
      %v7289 = vshrl.u32 %v7288, 7
      %v7290 = vsub.s32 3, %v7289
      %v7291 = vrot.slane %v7139, %v7290
      %v7292 = vlaneseq
      %v7293 = vshrl.u32 %v7292, 7
      %v7294 = vsub.s32 4, %v7293
      %v7295 = vrot.slane %v7139, %v7294
      %v7296 = vlaneseq
      %v7297 = vshrl.u32 %v7296, 7
      %v7298 = vsub.s32 5, %v7297
      %v7299 = vrot.slane %v7139, %v7298
      %v7300 = vlaneseq
      %v7301 = vshrl.u32 %v7300, 7
      %v7302 = vsub.s32 0, %v7301
      %v7303 = vrot.slane %v7143, %v7302
      %v7304 = vlaneseq
      %v7305 = vshrl.u32 %v7304, 7
      %v7306 = vsub.s32 1, %v7305
      %v7307 = vrot.slane %v7143, %v7306
      %v7308 = vlaneseq
      %v7309 = vshrl.u32 %v7308, 7
      %v7310 = vsub.s32 2, %v7309
      %v7311 = vrot.slane %v7143, %v7310
      %v7312 = vlaneseq
      %v7313 = vshrl.u32 %v7312, 7
      %v7314 = vsub.s32 3, %v7313
      %v7315 = vrot.slane %v7143, %v7314
      %v7316 = vlaneseq
      %v7317 = vshrl.u32 %v7316, 7
      %v7318 = vsub.s32 4, %v7317
      %v7319 = vrot.slane %v7143, %v7318
      %v7320 = vlaneseq
      %v7321 = vshrl.u32 %v7320, 7
      %v7322 = vsub.s32 5, %v7321
      %v7323 = vrot.slane %v7143, %v7322
      %v7324 = vlaneseq
      %v7325 = vshrl.u32 %v7324, 7
      %v7326 = vsub.s32 0, %v7325
      %v7327 = vrot.slane %v7147, %v7326
      %v7328 = vlaneseq
      %v7329 = vshrl.u32 %v7328, 7
      %v7330 = vsub.s32 1, %v7329
      %v7331 = vrot.slane %v7147, %v7330
      %v7332 = vlaneseq
      %v7333 = vshrl.u32 %v7332, 7
      %v7334 = vsub.s32 2, %v7333
      %v7335 = vrot.slane %v7147, %v7334
      %v7336 = vlaneseq
      %v7337 = vshrl.u32 %v7336, 7
      %v7338 = vsub.s32 3, %v7337
      %v7339 = vrot.slane %v7147, %v7338
      %v7340 = vlaneseq
      %v7341 = vshrl.u32 %v7340, 7
      %v7342 = vsub.s32 4, %v7341
      %v7343 = vrot.slane %v7147, %v7342
      %v7344 = vlaneseq
      %v7345 = vshrl.u32 %v7344, 7
      %v7346 = vsub.s32 5, %v7345
      %v7347 = vrot.slane %v7147, %v7346
      %v7396 = vpack.c.bf16 %v7159, %v7159
      %v7397 = vpack.c.bf16 %v7163, %v7163
      %v7398 = vpack.c.bf16 %v7167, %v7167
      %v7399 = vpack.c.bf16 %v7171, %v7171
      %v7400 = vpack.c.bf16 %v7175, %v7175
      %v7401 = vpack.c.bf16 %v7179, %v7179
      %v7402 = vpack.c.bf16 %v7183, %v7183
      %v7403 = vpack.c.bf16 %v7187, %v7187
      %v7404 = vpack.c.bf16 %v7191, %v7191
      %v7405 = vpack.c.bf16 %v7195, %v7195
      %v7406 = vpack.c.bf16 %v7199, %v7199
      %v7407 = vpack.c.bf16 %v7203, %v7203
      %v7408 = vpack.c.bf16 %v7207, %v7207
      %v7409 = vpack.c.bf16 %v7211, %v7211
      %v7410 = vpack.c.bf16 %v7215, %v7215
      %v7411 = vpack.c.bf16 %v7219, %v7219
      %v7412 = vpack.c.bf16 %v7223, %v7223
      %v7413 = vpack.c.bf16 %v7227, %v7227
      %v7414 = vpack.c.bf16 %v7231, %v7231
      %v7415 = vpack.c.bf16 %v7235, %v7235
      %v7416 = vpack.c.bf16 %v7239, %v7239
      %v7417 = vpack.c.bf16 %v7243, %v7243
      %v7418 = vpack.c.bf16 %v7247, %v7247
      %v7419 = vpack.c.bf16 %v7251, %v7251
      %v7420 = vpack.c.bf16 %v7255, %v7255
      %v7421 = vpack.c.bf16 %v7259, %v7259
      %v7422 = vpack.c.bf16 %v7263, %v7263
      %v7423 = vpack.c.bf16 %v7267, %v7267
      %v7424 = vpack.c.bf16 %v7271, %v7271
      %v7425 = vpack.c.bf16 %v7275, %v7275
      %v7426 = vpack.c.bf16 %v7279, %v7279
      %v7427 = vpack.c.bf16 %v7283, %v7283
      %v7428 = vpack.c.bf16 %v7287, %v7287
      %v7429 = vpack.c.bf16 %v7291, %v7291
      %v7430 = vpack.c.bf16 %v7295, %v7295
      %v7431 = vpack.c.bf16 %v7299, %v7299
      %v7432 = vpack.c.bf16 %v7303, %v7303
      %v7433 = vpack.c.bf16 %v7307, %v7307
      %v7434 = vpack.c.bf16 %v7311, %v7311
      %v7435 = vpack.c.bf16 %v7315, %v7315
      %v7436 = vpack.c.bf16 %v7319, %v7319
      %v7437 = vpack.c.bf16 %v7323, %v7323
      %v7438 = vpack.c.bf16 %v7327, %v7327
      %v7439 = vpack.c.bf16 %v7331, %v7331
      %v7440 = vpack.c.bf16 %v7335, %v7335
      %v7441 = vpack.c.bf16 %v7339, %v7339
      %v7442 = vpack.c.bf16 %v7343, %v7343
      %v7443 = vpack.c.bf16 %v7347, %v7347
      %v7492 = vunpack.c.l.b16 %v7396
      %v7493 = vunpack.c.l.b16 %v7397
      %v7494 = vunpack.c.l.b16 %v7398
      %v7495 = vunpack.c.l.b16 %v7399
      %v7496 = vunpack.c.l.b16 %v7400
      %v7497 = vunpack.c.l.b16 %v7401
      %v7498 = vunpack.c.l.b16 %v7402
      %v7499 = vunpack.c.l.b16 %v7403
      %v7500 = vunpack.c.l.b16 %v7404
      %v7501 = vunpack.c.l.b16 %v7405
      %v7502 = vunpack.c.l.b16 %v7406
      %v7503 = vunpack.c.l.b16 %v7407
      %v7504 = vunpack.c.l.b16 %v7408
      %v7505 = vunpack.c.l.b16 %v7409
      %v7506 = vunpack.c.l.b16 %v7410
      %v7507 = vunpack.c.l.b16 %v7411
      %v7508 = vunpack.c.l.b16 %v7412
      %v7509 = vunpack.c.l.b16 %v7413
      %v7510 = vunpack.c.l.b16 %v7414
      %v7511 = vunpack.c.l.b16 %v7415
      %v7512 = vunpack.c.l.b16 %v7416
      %v7513 = vunpack.c.l.b16 %v7417
      %v7514 = vunpack.c.l.b16 %v7418
      %v7515 = vunpack.c.l.b16 %v7419
      %v7516 = vunpack.c.l.b16 %v7420
      %v7517 = vunpack.c.l.b16 %v7421
      %v7518 = vunpack.c.l.b16 %v7422
      %v7519 = vunpack.c.l.b16 %v7423
      %v7520 = vunpack.c.l.b16 %v7424
      %v7521 = vunpack.c.l.b16 %v7425
      %v7522 = vunpack.c.l.b16 %v7426
      %v7523 = vunpack.c.l.b16 %v7427
      %v7524 = vunpack.c.l.b16 %v7428
      %v7525 = vunpack.c.l.b16 %v7429
      %v7526 = vunpack.c.l.b16 %v7430
      %v7527 = vunpack.c.l.b16 %v7431
      %v7528 = vunpack.c.l.b16 %v7432
      %v7529 = vunpack.c.l.b16 %v7433
      %v7530 = vunpack.c.l.b16 %v7434
      %v7531 = vunpack.c.l.b16 %v7435
      %v7532 = vunpack.c.l.b16 %v7436
      %v7533 = vunpack.c.l.b16 %v7437
      %v7534 = vunpack.c.l.b16 %v7438
      %v7535 = vunpack.c.l.b16 %v7439
      %v7536 = vunpack.c.l.b16 %v7440
      %v7537 = vunpack.c.l.b16 %v7441
      %v7538 = vunpack.c.l.b16 %v7442
      %v7539 = vunpack.c.l.b16 %v7443
      %v7540 = vrot.slane %v7498, 7
      %v7541 = vsel %vm960, %v7540, %v7492
      %v7542 = vrot.slane %v7504, 6
      %v7543 = vsel %vm963, %v7542, %v7541
      %v7544 = vrot.slane %v7510, 5
      %v7545 = vsel %vm966, %v7544, %v7543
      %v7546 = vrot.slane %v7516, 4
      %v7547 = vsel %vm969, %v7546, %v7545
      %v7548 = vrot.slane %v7522, 3
      %v7549 = vsel %vm972, %v7548, %v7547
      %v7550 = vrot.slane %v7528, 2
      %v7551 = vsel %vm975, %v7550, %v7549
      %v7552 = vrot.slane %v7534, 1
      %v7553 = vsel %vm978, %v7552, %v7551
      %v7554 = vrot.slane %v7499, 7
      %v7555 = vsel %vm960, %v7554, %v7493
      %v7556 = vrot.slane %v7505, 6
      %v7557 = vsel %vm963, %v7556, %v7555
      %v7558 = vrot.slane %v7511, 5
      %v7559 = vsel %vm966, %v7558, %v7557
      %v7560 = vrot.slane %v7517, 4
      %v7561 = vsel %vm969, %v7560, %v7559
      %v7562 = vrot.slane %v7523, 3
      %v7563 = vsel %vm972, %v7562, %v7561
      %v7564 = vrot.slane %v7529, 2
      %v7565 = vsel %vm975, %v7564, %v7563
      %v7566 = vrot.slane %v7535, 1
      %v7567 = vsel %vm978, %v7566, %v7565
      %v7568 = vrot.slane %v7500, 7
      %v7569 = vsel %vm960, %v7568, %v7494
      %v7570 = vrot.slane %v7506, 6
      %v7571 = vsel %vm963, %v7570, %v7569
      %v7572 = vrot.slane %v7512, 5
      %v7573 = vsel %vm966, %v7572, %v7571
      %v7574 = vrot.slane %v7518, 4
      %v7575 = vsel %vm969, %v7574, %v7573
      %v7576 = vrot.slane %v7524, 3
      %v7577 = vsel %vm972, %v7576, %v7575
      %v7578 = vrot.slane %v7530, 2
      %v7579 = vsel %vm975, %v7578, %v7577
      %v7580 = vrot.slane %v7536, 1
      %v7581 = vsel %vm978, %v7580, %v7579
      %v7582 = vrot.slane %v7501, 7
      %v7583 = vsel %vm960, %v7582, %v7495
      %v7584 = vrot.slane %v7507, 6
      %v7585 = vsel %vm963, %v7584, %v7583
      %v7586 = vrot.slane %v7513, 5
      %v7587 = vsel %vm966, %v7586, %v7585
      %v7588 = vrot.slane %v7519, 4
      %v7589 = vsel %vm969, %v7588, %v7587
      %v7590 = vrot.slane %v7525, 3
      %v7591 = vsel %vm972, %v7590, %v7589
      %v7592 = vrot.slane %v7531, 2
      %v7593 = vsel %vm975, %v7592, %v7591
      %v7594 = vrot.slane %v7537, 1
      %v7595 = vsel %vm978, %v7594, %v7593
      %v7596 = vrot.slane %v7502, 7
      %v7597 = vsel %vm960, %v7596, %v7496
      %v7598 = vrot.slane %v7508, 6
      %v7599 = vsel %vm963, %v7598, %v7597
      %v7600 = vrot.slane %v7514, 5
      %v7601 = vsel %vm966, %v7600, %v7599
      %v7602 = vrot.slane %v7520, 4
      %v7603 = vsel %vm969, %v7602, %v7601
      %v7604 = vrot.slane %v7526, 3
      %v7605 = vsel %vm972, %v7604, %v7603
      %v7606 = vrot.slane %v7532, 2
      %v7607 = vsel %vm975, %v7606, %v7605
      %v7608 = vrot.slane %v7538, 1
      %v7609 = vsel %vm978, %v7608, %v7607
      %v7610 = vrot.slane %v7503, 7
      %v7611 = vsel %vm960, %v7610, %v7497
      %v7612 = vrot.slane %v7509, 6
      %v7613 = vsel %vm963, %v7612, %v7611
      %v7614 = vrot.slane %v7515, 5
      %v7615 = vsel %vm966, %v7614, %v7613
      %v7616 = vrot.slane %v7521, 4
      %v7617 = vsel %vm969, %v7616, %v7615
      %v7618 = vrot.slane %v7527, 3
      %v7619 = vsel %vm972, %v7618, %v7617
      %v7620 = vrot.slane %v7533, 2
      %v7621 = vsel %vm975, %v7620, %v7619
      %v7622 = vrot.slane %v7539, 1
      %v7623 = vsel %vm978, %v7622, %v7621
      %v7624 = vpack.c.b16 %v7553, %v7553
      %v7625 = vpack.c.b16 %v7567, %v7567
      %v7626 = vpack.c.b16 %v7581, %v7581
      %v7627 = vpack.c.b16 %v7595, %v7595
      %v7628 = vpack.c.b16 %v7609, %v7609
      %v7629 = vpack.c.b16 %v7623, %v7623
      %v7636 = vsel %vm1316, %v7629, 0
      %7638 = vmatprep.subr.bf16.mxu0 0
      %7639 = vmatpush1.bf16.msra.mxu0 %v1231
      %7640 = vmatprep.subr.bf16.mxu0 0
      %7641 = vmatpush1.bf16.msra.mxu0 %v1232
      %7642 = vmatprep.subr.bf16.mxu0 0
      %7643 = vmatpush1.bf16.msra.mxu0 %v1233
      %7644 = vmatprep.subr.bf16.mxu0 0
      %7645 = vmatpush1.bf16.msra.mxu0 %v1234
      %7646 = vmatprep.subr.bf16.mxu0 0
      %7647 = vmatpush1.bf16.msra.mxu0 %v1235
      %7648 = vmatprep.subr.bf16.mxu0 0
      %7649 = vmatpush1.bf16.msra.mxu0 %v1236
      %7650 = vmatprep.subr.bf16.mxu0 0
      %7651 = vmatpush1.bf16.msra.mxu0 %v1237
      %7652 = vmatprep.subr.bf16.mxu0 0
      %7653 = vmatpush1.bf16.msra.mxu0 %v1238
      %7654 = vmatprep.subr.bf16.mxu0 0
      %7655 = vmatpush1.bf16.msra.mxu0 %v1239
      %7656 = vmatprep.subr.bf16.mxu0 0
      %7657 = vmatpush1.bf16.msra.mxu0 %v1240
      %7658 = vmatprep.subr.bf16.mxu0 0
      %7659 = vmatpush1.bf16.msra.mxu0 %v1241
      %7660 = vmatprep.subr.bf16.mxu0 0
      %7661 = vmatpush1.bf16.msra.mxu0 %v1242
      %7662 = vmatprep.subr.bf16.mxu0 0
      %7663 = vmatpush1.bf16.msra.mxu0 %v1243
      %7664 = vmatprep.subr.bf16.mxu0 0
      %7665 = vmatpush1.bf16.msra.mxu0 %v1244
      %7666 = vmatprep.subr.bf16.mxu0 0
      %7667 = vmatpush1.bf16.msra.mxu0 %v1245
      %7668 = vmatprep.subr.bf16.mxu0 0
      %7669 = vmatpush1.bf16.msra.mxu0 %v1246
      %7670 = vmatprep.mubr.bf16.mxu0 %v7625
      %7671 = vmatmul.mubr.bf16.gmra.mrb[0].mxu0 %v7624
      %v7672 = vpop.f32.mrb[0].mxu0
      %v7673 = vadd.f32 %v861, %v7672
      %v7674 = vpop.f32.mrb[0].mxu0
      %v7675 = vpop.f32.mrb[0].mxu0
      %v7676 = vpop.f32.mrb[0].mxu0
      %7677 = vdwg.mxu0
      %7678 = vmatprep.subr.bf16.mxu0 0
      %7679 = vmatpush1.bf16.msra.mxu0 %v1247
      %7680 = vmatprep.subr.bf16.mxu0 0
      %7681 = vmatpush1.bf16.msra.mxu0 %v1248
      %7682 = vmatprep.subr.bf16.mxu0 0
      %7683 = vmatpush1.bf16.msra.mxu0 %v1249
      %7684 = vmatprep.subr.bf16.mxu0 0
      %7685 = vmatpush1.bf16.msra.mxu0 %v1250
      %7686 = vmatprep.subr.bf16.mxu0 0
      %7687 = vmatpush1.bf16.msra.mxu0 %v1251
      %7688 = vmatprep.subr.bf16.mxu0 0
      %7689 = vmatpush1.bf16.msra.mxu0 %v1252
      %7690 = vmatprep.subr.bf16.mxu0 0
      %7691 = vmatpush1.bf16.msra.mxu0 %v1253
      %7692 = vmatprep.subr.bf16.mxu0 0
      %7693 = vmatpush1.bf16.msra.mxu0 %v1254
      %7694 = vmatprep.subr.bf16.mxu0 0
      %7695 = vmatpush1.bf16.msra.mxu0 %v1255
      %7696 = vmatprep.subr.bf16.mxu0 0
      %7697 = vmatpush1.bf16.msra.mxu0 %v1256
      %7698 = vmatprep.subr.bf16.mxu0 0
      %7699 = vmatpush1.bf16.msra.mxu0 %v1257
      %7700 = vmatprep.subr.bf16.mxu0 0
      %7701 = vmatpush1.bf16.msra.mxu0 %v1258
      %7702 = vmatprep.subr.bf16.mxu0 0
      %7703 = vmatpush1.bf16.msra.mxu0 %v1259
      %7704 = vmatprep.subr.bf16.mxu0 0
      %7705 = vmatpush1.bf16.msra.mxu0 %v1260
      %7706 = vmatprep.subr.bf16.mxu0 0
      %7707 = vmatpush1.bf16.msra.mxu0 %v1261
      %7708 = vmatprep.subr.bf16.mxu0 0
      %7709 = vmatpush1.bf16.msra.mxu0 %v1262
      %7710 = vmatprep.mubr.bf16.mxu0 %v7627
      %7711 = vmatmul.mubr.bf16.gmra.mrb[0].mxu0 %v7626
      %v7712 = vpop.f32.mrb[0].mxu0
      %v7713 = vadd.f32 %v7673, %v7712
      %v7714 = vpop.f32.mrb[0].mxu0
      %v7715 = vpop.f32.mrb[0].mxu0
      %v7716 = vpop.f32.mrb[0].mxu0
      %7717 = vdwg.mxu0
      %7718 = vmatprep.subr.bf16.mxu0 0
      %7719 = vmatpush1.bf16.msra.mxu0 %v1263
      %7720 = vmatprep.subr.bf16.mxu0 0
      %7721 = vmatpush1.bf16.msra.mxu0 %v1264
      %7722 = vmatprep.subr.bf16.mxu0 0
      %7723 = vmatpush1.bf16.msra.mxu0 %v1265
      %7724 = vmatprep.subr.bf16.mxu0 0
      %7725 = vmatpush1.bf16.msra.mxu0 %v1266
      %7726 = vmatprep.subr.bf16.mxu0 0
      %7727 = vmatpush1.bf16.msra.mxu0 %v1267
      %7728 = vmatprep.subr.bf16.mxu0 0
      %7729 = vmatpush1.bf16.msra.mxu0 %v1268
      %7730 = vmatprep.subr.bf16.mxu0 0
      %7731 = vmatpush1.bf16.msra.mxu0 %v1269
      %7732 = vmatprep.subr.bf16.mxu0 0
      %7733 = vmatpush1.bf16.msra.mxu0 %v1270
      %7734 = vmatprep.subr.bf16.mxu0 0
      %7735 = vmatpush1.bf16.msra.mxu0 %v1271
      %7736 = vmatprep.subr.bf16.mxu0 0
      %7737 = vmatpush1.bf16.msra.mxu0 %v1272
      %7738 = vmatprep.subr.bf16.mxu0 0
      %7739 = vmatpush1.bf16.msra.mxu0 %v1325
      %7740 = vmatprep.subr.bf16.mxu0 0
      %7741 = vmatpush1.bf16.msra.mxu0 0
      %7742 = vmatprep.subr.bf16.mxu0 0
      %7743 = vmatpush1.bf16.msra.mxu0 0
      %7744 = vmatprep.subr.bf16.mxu0 0
      %7745 = vmatpush1.bf16.msra.mxu0 0
      %7746 = vmatprep.subr.bf16.mxu0 0
      %7747 = vmatpush1.bf16.msra.mxu0 0
      %7748 = vmatprep.subr.bf16.mxu0 0
      %7749 = vmatpush1.bf16.msra.mxu0 0
      %7750 = vmatprep.mubr.bf16.mxu0 %v7636
      %7751 = vmatmul.mubr.bf16.gmra.mrb[0].mxu0 %v7628
      %v7752 = vpop.f32.mrb[0].mxu0
      %v7753 = vadd.f32 %v7713, %v7752
      %v7754 = vpop.f32.mrb[0].mxu0
      %v7755 = vpop.f32.mrb[0].mxu0
      %v7756 = vpop.f32.mrb[0].mxu0
      %7757 = vdwg.mxu0
      %v7758 = vmax.f32 %v7753, 0.0
      %v7759 = vpack.c.bf16 %v7758, %v7758
      %v7761 = vsel %vm1467, %v7759, 0
      %7763 = vmatprep.subr.bf16.mxu0 0
      %7764 = vmatpush1.bf16.msra.mxu0 %v1463
      %7765 = vmatprep.subr.bf16.mxu0 0
      %7766 = vmatpush1.bf16.msra.mxu0 %v1464
      %7767 = vmatprep.subr.bf16.mxu0 0
      %7768 = vmatpush1.bf16.msra.mxu0 0
      %7769 = vmatprep.subr.bf16.mxu0 0
      %7770 = vmatpush1.bf16.msra.mxu0 0
      %7771 = vmatprep.subr.bf16.mxu0 0
      %7772 = vmatpush1.bf16.msra.mxu0 0
      %7773 = vmatprep.subr.bf16.mxu0 0
      %7774 = vmatpush1.bf16.msra.mxu0 0
      %7775 = vmatprep.subr.bf16.mxu0 0
      %7776 = vmatpush1.bf16.msra.mxu0 0
      %7777 = vmatprep.subr.bf16.mxu0 0
      %7778 = vmatpush1.bf16.msra.mxu0 0
      %7779 = vmatprep.subr.bf16.mxu0 0
      %7780 = vmatpush1.bf16.msra.mxu0 0
      %7781 = vmatprep.subr.bf16.mxu0 0
      %7782 = vmatpush1.bf16.msra.mxu0 0
      %7783 = vmatprep.subr.bf16.mxu0 0
      %7784 = vmatpush1.bf16.msra.mxu0 0
      %7785 = vmatprep.subr.bf16.mxu0 0
      %7786 = vmatpush1.bf16.msra.mxu0 0
      %7787 = vmatprep.subr.bf16.mxu0 0
      %7788 = vmatpush1.bf16.msra.mxu0 0
      %7789 = vmatprep.subr.bf16.mxu0 0
      %7790 = vmatpush1.bf16.msra.mxu0 0
      %7791 = vmatprep.subr.bf16.mxu0 0
      %7792 = vmatpush1.bf16.msra.mxu0 0
      %7793 = vmatprep.subr.bf16.mxu0 0
      %7794 = vmatpush1.bf16.msra.mxu0 0
      %7795 = vmatprep.mubr.bf16.mxu0 0
      %7796 = vmatmul.mubr.bf16.gmra.mrb[0].mxu0 %v7761
      %v7797 = vpop.f32.mrb[0].mxu0
      %v7798 = vadd.f32 %v1453, %v7797
      %v7799 = vpop.f32.mrb[0].mxu0
      %v7800 = vpop.f32.mrb[0].mxu0
      %v7801 = vpop.f32.mrb[0].mxu0
      %7802 = vdwg.mxu0
      %v7803 = vmax.f32 %v7798, 0.0
      %v7804 = vpack.c.bf16 %v7803, %v7803
      %v7806 = vsel %vm1467, %v7804, 0
      %7808 = vmatprep.subr.bf16.mxu0 0
      %7809 = vmatpush1.bf16.msra.mxu0 %v1527
      %7810 = vmatprep.subr.bf16.mxu0 0
      %7811 = vmatpush1.bf16.msra.mxu0 %v1528
      %7812 = vmatprep.subr.bf16.mxu0 0
      %7813 = vmatpush1.bf16.msra.mxu0 0
      %7814 = vmatprep.subr.bf16.mxu0 0
      %7815 = vmatpush1.bf16.msra.mxu0 0
      %7816 = vmatprep.subr.bf16.mxu0 0
      %7817 = vmatpush1.bf16.msra.mxu0 0
      %7818 = vmatprep.subr.bf16.mxu0 0
      %7819 = vmatpush1.bf16.msra.mxu0 0
      %7820 = vmatprep.subr.bf16.mxu0 0
      %7821 = vmatpush1.bf16.msra.mxu0 0
      %7822 = vmatprep.subr.bf16.mxu0 0
      %7823 = vmatpush1.bf16.msra.mxu0 0
      %7824 = vmatprep.subr.bf16.mxu0 0
      %7825 = vmatpush1.bf16.msra.mxu0 0
      %7826 = vmatprep.subr.bf16.mxu0 0
      %7827 = vmatpush1.bf16.msra.mxu0 0
      %7828 = vmatprep.subr.bf16.mxu0 0
      %7829 = vmatpush1.bf16.msra.mxu0 0
      %7830 = vmatprep.subr.bf16.mxu0 0
      %7831 = vmatpush1.bf16.msra.mxu0 0
      %7832 = vmatprep.subr.bf16.mxu0 0
      %7833 = vmatpush1.bf16.msra.mxu0 0
      %7834 = vmatprep.subr.bf16.mxu0 0
      %7835 = vmatpush1.bf16.msra.mxu0 0
      %7836 = vmatprep.subr.bf16.mxu0 0
      %7837 = vmatpush1.bf16.msra.mxu0 0
      %7838 = vmatprep.subr.bf16.mxu0 0
      %7839 = vmatpush1.bf16.msra.mxu0 0
      %7840 = vmatprep.mubr.bf16.mxu0 0
      %7841 = vmatmul.mubr.bf16.gmra.mrb[0].mxu0 %v7806
      %v7842 = vpop.f32.mrb[0].mxu0
      %v7843 = vadd.f32 %v1517, %v7842
      %v7844 = vpop.f32.mrb[0].mxu0
      %v7845 = vpop.f32.mrb[0].mxu0
      %v7846 = vpop.f32.mrb[0].mxu0
      %7847 = vdwg.mxu0
      %7848 = vmatprep.subr.bf16.mxu0 0
      %7849 = vmatpush1.bf16.msra.mxu0 %v1582
      %7850 = vmatprep.subr.bf16.mxu0 0
      %7851 = vmatpush1.bf16.msra.mxu0 %v1583
      %7852 = vmatprep.subr.bf16.mxu0 0
      %7853 = vmatpush1.bf16.msra.mxu0 0
      %7854 = vmatprep.subr.bf16.mxu0 0
      %7855 = vmatpush1.bf16.msra.mxu0 0
      %7856 = vmatprep.subr.bf16.mxu0 0
      %7857 = vmatpush1.bf16.msra.mxu0 0
      %7858 = vmatprep.subr.bf16.mxu0 0
      %7859 = vmatpush1.bf16.msra.mxu0 0
      %7860 = vmatprep.subr.bf16.mxu0 0
      %7861 = vmatpush1.bf16.msra.mxu0 0
      %7862 = vmatprep.subr.bf16.mxu0 0
      %7863 = vmatpush1.bf16.msra.mxu0 0
      %7864 = vmatprep.subr.bf16.mxu0 0
      %7865 = vmatpush1.bf16.msra.mxu0 0
      %7866 = vmatprep.subr.bf16.mxu0 0
      %7867 = vmatpush1.bf16.msra.mxu0 0
      %7868 = vmatprep.subr.bf16.mxu0 0
      %7869 = vmatpush1.bf16.msra.mxu0 0
      %7870 = vmatprep.subr.bf16.mxu0 0
      %7871 = vmatpush1.bf16.msra.mxu0 0
      %7872 = vmatprep.subr.bf16.mxu0 0
      %7873 = vmatpush1.bf16.msra.mxu0 0
      %7874 = vmatprep.subr.bf16.mxu0 0
      %7875 = vmatpush1.bf16.msra.mxu0 0
      %7876 = vmatprep.subr.bf16.mxu0 0
      %7877 = vmatpush1.bf16.msra.mxu0 0
      %7878 = vmatprep.subr.bf16.mxu0 0
      %7879 = vmatpush1.bf16.msra.mxu0 0
      %7880 = vmatprep.mubr.bf16.mxu0 0
      %7881 = vmatmul.mubr.bf16.gmra.mrb[0].mxu0 %v7029
      %v7882 = vpop.f32.mrb[0].mxu0
      %v7883 = vadd.f32 0.0, %v7882
      %v7884 = vpop.f32.mrb[0].mxu0
      %v7885 = vpop.f32.mrb[0].mxu0
      %v7886 = vpop.f32.mrb[0].mxu0
      %7887 = vdwg.mxu0
      %v7888 = vadd.f32 %v7843, %v7883
      %v7889 = vxor.u32 %v7888, 2147483648
      %v7890 = vmul.f32 %v7889, 1.442695
      %v7891 = vpow.pop %v7890
      %v7892 = vadd.f32 %v7891, 1.0
      %v7893 = vrcp.pop %v7892
      %v7894 = vmul.f32 1.0, %v7893
      %v7895 = vtanh.pop %v7888
      %v7896 = vmul.f32 %v7894, %v7017
      %7898 = vrot.lane.b32.xlu0 %v7895, 32
      %v7899 = vpop.permute.xlu0 %7898
      %v7901 = vmul.f32 %v7894, %v7899
      %7903 = vrot.lane.b32.xlu0 %v7901, 32
      %v7904 = vpop.permute.xlu0 %7903
      %v7906 = vadd.f32 %v7896, %v7904
      %v7907 = vtanh.pop %v7906
      %7909 = vrot.lane.b32.xlu0 %v7907, 32
      %v7910 = vpop.permute.xlu0 %7909
      %v7912 = vmul.f32 %v7894, %v7910
      %v7913 = vpack.c.bf16 %v7912, %v7912
      %7915 = vrot.lane.b32.xlu0 %v7913, 64
      %v7916 = vpop.permute.xlu0 %7915
      %v7918 = vsel %vm1467, %v7916, 0
      %7920 = vmatprep.subr.bf16.mxu0 0
      %7921 = vmatpush1.bf16.msra.mxu0 %v1672
      %7922 = vmatprep.subr.bf16.mxu0 0
      %7923 = vmatpush1.bf16.msra.mxu0 %v1673
      %7924 = vmatprep.subr.bf16.mxu0 0
      %7925 = vmatpush1.bf16.msra.mxu0 0
      %7926 = vmatprep.subr.bf16.mxu0 0
      %7927 = vmatpush1.bf16.msra.mxu0 0
      %7928 = vmatprep.subr.bf16.mxu0 0
      %7929 = vmatpush1.bf16.msra.mxu0 0
      %7930 = vmatprep.subr.bf16.mxu0 0
      %7931 = vmatpush1.bf16.msra.mxu0 0
      %7932 = vmatprep.subr.bf16.mxu0 0
      %7933 = vmatpush1.bf16.msra.mxu0 0
      %7934 = vmatprep.subr.bf16.mxu0 0
      %7935 = vmatpush1.bf16.msra.mxu0 0
      %7936 = vmatprep.subr.bf16.mxu0 0
      %7937 = vmatpush1.bf16.msra.mxu0 0
      %7938 = vmatprep.subr.bf16.mxu0 0
      %7939 = vmatpush1.bf16.msra.mxu0 0
      %7940 = vmatprep.subr.bf16.mxu0 0
      %7941 = vmatpush1.bf16.msra.mxu0 0
      %7942 = vmatprep.subr.bf16.mxu0 0
      %7943 = vmatpush1.bf16.msra.mxu0 0
      %7944 = vmatprep.subr.bf16.mxu0 0
      %7945 = vmatpush1.bf16.msra.mxu0 0
      %7946 = vmatprep.subr.bf16.mxu0 0
      %7947 = vmatpush1.bf16.msra.mxu0 0
      %7948 = vmatprep.subr.bf16.mxu0 0
      %7949 = vmatpush1.bf16.msra.mxu0 0
      %7950 = vmatprep.subr.bf16.mxu0 0
      %7951 = vmatpush1.bf16.msra.mxu0 0
      %7952 = vmatprep.mubr.bf16.mxu0 0
      %7953 = vmatmul.mubr.bf16.gmra.mrb[0].mxu0 %v7918
      %v7954 = vpop.f32.mrb[0].mxu0
      %v7955 = vadd.f32 %v1659, %v7954
      %v7956 = vpop.f32.mrb[0].mxu0
      %v7957 = vpop.f32.mrb[0].mxu0
      %v7958 = vpop.f32.mrb[0].mxu0
      %7959 = vdwg.mxu0
      %v7960 = vmax.f32 %v7955, 0.0
      %v7961 = vpack.c.bf16 %v7960, %v7960
      %v7963 = vsel %vm1467, %v7961, 0
      %7965 = vmatprep.subr.bf16.mxu0 0
      %7966 = vmatpush1.bf16.msra.mxu0 %v1735
      %7967 = vmatprep.subr.bf16.mxu0 0
      %7968 = vmatpush1.bf16.msra.mxu0 %v1736
      %7969 = vmatprep.subr.bf16.mxu0 0
      %7970 = vmatpush1.bf16.msra.mxu0 0
      %7971 = vmatprep.subr.bf16.mxu0 0
      %7972 = vmatpush1.bf16.msra.mxu0 0
      %7973 = vmatprep.subr.bf16.mxu0 0
      %7974 = vmatpush1.bf16.msra.mxu0 0
      %7975 = vmatprep.subr.bf16.mxu0 0
      %7976 = vmatpush1.bf16.msra.mxu0 0
      %7977 = vmatprep.subr.bf16.mxu0 0
      %7978 = vmatpush1.bf16.msra.mxu0 0
      %7979 = vmatprep.subr.bf16.mxu0 0
      %7980 = vmatpush1.bf16.msra.mxu0 0
      %7981 = vmatprep.subr.bf16.mxu0 0
      %7982 = vmatpush1.bf16.msra.mxu0 0
      %7983 = vmatprep.subr.bf16.mxu0 0
      %7984 = vmatpush1.bf16.msra.mxu0 0
      %7985 = vmatprep.subr.bf16.mxu0 0
      %7986 = vmatpush1.bf16.msra.mxu0 0
      %7987 = vmatprep.subr.bf16.mxu0 0
      %7988 = vmatpush1.bf16.msra.mxu0 0
      %7989 = vmatprep.subr.bf16.mxu0 0
      %7990 = vmatpush1.bf16.msra.mxu0 0
      %7991 = vmatprep.subr.bf16.mxu0 0
      %7992 = vmatpush1.bf16.msra.mxu0 0
      %7993 = vmatprep.subr.bf16.mxu0 0
      %7994 = vmatpush1.bf16.msra.mxu0 0
      %7995 = vmatprep.subr.bf16.mxu0 0
      %7996 = vmatpush1.bf16.msra.mxu0 0
      %7997 = vmatprep.mubr.bf16.mxu0 0
      %7998 = vmatmul.mubr.bf16.gmra.mrb[0].mxu0 %v7963
      %v7999 = vpop.f32.mrb[0].mxu0
      %v8000 = vadd.f32 %v1725, %v7999
      %v8001 = vpop.f32.mrb[0].mxu0
      %v8002 = vpop.f32.mrb[0].mxu0
      %v8003 = vpop.f32.mrb[0].mxu0
      %8004 = vdwg.mxu0
      %8006 = vrot.lane.b32.xlu0 %v2666, 1
      %v8007 = vpop.permute.xlu0 %8006
      %8010 = vrot.lane.b32.xlu0 %v3555, 2
      %v8011 = vpop.permute.xlu0 %8010
      %8014 = vrot.lane.b32.xlu0 %v4444, 3
      %v8015 = vpop.permute.xlu0 %8014
      %8018 = vrot.lane.b32.xlu0 %v5333, 4
      %v8019 = vpop.permute.xlu0 %8018
      %8022 = vrot.lane.b32.xlu0 %v6222, 5
      %v8023 = vpop.permute.xlu0 %8022
      %8026 = vrot.lane.b32.xlu0 %v7111, 6
      %v8027 = vpop.permute.xlu0 %8026
      %8030 = vrot.lane.b32.xlu0 %v8000, 7
      %v8031 = vpop.permute.xlu0 %8030
      %vm8033 = vcmask 7168
      %v8034 = vsel %vm8033, %v1777, %v8007
      %vm8035 = vcmask 15360
      %v8036 = vsel %vm8035, %v8034, %v8011
      %vm8037 = vcmask 23552
      %v8038 = vsel %vm8037, %v8036, %v8015
      %vm8039 = vcmask 31744
      %v8040 = vsel %vm8039, %v8038, %v8019
      %vm8041 = vcmask 39936
      %v8042 = vsel %vm8041, %v8040, %v8023
      %vm8043 = vcmask 48128
      %v8044 = vsel %vm8043, %v8042, %v8027
      %vm8045 = vcmask 56320
      %v8046 = vsel %vm8045, %v8044, %v8031
      %vm8047 = vcmask 64512
      %8048 = vst.msk [vmem:[%s418] sm:$0xff] %vm8047, %v8046
      %p8049 = scmp.lt.s32.totalorder %s25, 1
      %s8050 = scalar_select %p8049, %s25, 1
      %s8051 = smul.addr %s8050, 8
      %s8052 = scalar_lea.vmem %s12, %s8051
      // Predicated region
      $region69: #{critic_forward.1} parent=67 // pred_check
        %p8053 = pneg %p300
      $region70: #{critic_forward.1} parent=67 // pred_check_branch
        %8055 = sbr.rel (%p8053) target = $region72
      $region71: #{critic_forward.1} parent=67 // pred_region
        _
      $region72: #{critic_forward.1} parent=67 // pred_fallthru
        _
    $region68: #{critic_forward.1} parent=5 // pred_fallthru
      _
    %p8056 = scmp.le.s32.totalorder 2, %s20
    // Predicated region
    $region73: #{critic_forward.1} parent=5 // pred_check
      %p8057 = pneg %p8056
    $region74: #{critic_forward.1} parent=5 // pred_check_branch
      %8059 = sbr.rel (%p8057) target = $region76
    $region75: #{critic_forward.1} parent=5 // pred_region
      %s8060 = ssub.s32 %s20, 2
      // Predicated region
      $region77: #{critic_forward.1} parent=75 // pred_check
        %p8061 = pneg %p306
      $region78: #{critic_forward.1} parent=75 // pred_check_branch
        %8063 = sbr.rel (%p8061) target = $region80
      $region79: #{critic_forward.1} parent=75 // pred_region
        %p8064 = scmp.lt.s32.totalorder %s26, 1
        %s8065 = scalar_select %p8064, %s26, 1
        %s8066 = smul.addr %s8065, 8
        %s8067 = scalar_lea.vmem %s12, %s8066
      $region80: #{critic_forward.1} parent=75 // pred_fallthru
        _
    $region76: #{critic_forward.1} parent=5 // pred_fallthru
      _
  $region6: #{critic_forward.1} parent=0 // loop_footer
    %s24 = sadd.s32 1, %s20
  $region7: #{critic_forward.1} parent=0 // loop_footer_branch
    %19 = sbr.rel target = $region3
  $region8: #{critic_forward.1} parent=0 // loop_exit
    _

</llo_original>
